<compile_context>
chip_gen: v7x
topology: tpu7x:2x2x1
jax: 0.10.0
libtpu: 0.0.40
codegen_flags: <defaults>
</compile_context>

<pallas_src>
import functools
import math

import jax
import jax.numpy as jnp
from jax.experimental import pallas as pl
from jax.experimental.pallas import tpu as pltpu

NEG_SLOPE = 0.2
INV_SQRT2 = 1.0 / math.sqrt(2.0)


def _leaky(v):
    return jnp.where(v > 0, v, NEG_SLOPE * v)


def _round_up(x, m):
    return (x + m - 1) // m * m


def upblock_kernel(x_ref, mask_ref, w1e_ref, b1_ref, w2t_ref, b2_ref, wsc_ref,
                   o_ref, hp_ref, *, wop, l):
    # x_ref   : (Cin_p, LP_in)     f32  zero-halo-padded ORIGINAL-res input,
    #                                   flat row-major, padded row width Wop.
    # mask_ref: (1, L)             f32  1.0 on valid output lanes, 0.0 on junk.
    # w1e_ref : (16, Cout_p, Cin_p) bf16 phase-collapsed 2x2 conv1 weights,
    #                                   index = ((p*2+q)*2+rt)*2+ct.
    # b1_ref  : (Cout_p, 1)        f32  conv1 bias.
    # w2t_ref : (9, Cout_p, Cout_p) bf16 conv2 tap weights (pre-scaled 1/sqrt2).
    # b2_ref  : (Cout_p, 1)        f32  conv2 bias (pre-scaled 1/sqrt2).
    # wsc_ref : (Cout_p, Cin_p)    bf16 1x1 shortcut weight (pre-scaled 1/sqrt2).
    # o_ref   : (4, Cout_p, L)     f32  4 output phases p*2+q; lane = i*Wop+j,
    #                                   junk at j >= W and at the lane tail.
    # hp_ref  : (4, Cout_p, LP_h)  bf16 scratch: zero-padded conv1 activations,
    #                                   one padded flat slab per phase.
    _, cout_p, lp_h = hp_ref.shape

    u = x_ref[...]                                   # un-activated (shortcut in)
    a = _leaky(u).astype(jnp.bfloat16)               # leaky(0)=0 keeps zero halo
    u_bf = u[:, wop + 1:wop + 1 + l].astype(jnp.bfloat16)
    mask = mask_ref[...]
    b1 = b1_ref[...]
    b2 = b2_ref[...]

    # ---- conv1 via nearest-2x phase decomposition ---------------------------
    # For output phase (p, q), up2 -> 3x3 'same' conv collapses to a 2x2 conv
    # on the original-res activated input: 4 accumulating K=Cin_p matmuls.
    for ph in range(4):
        p, q = ph // 2, ph % 2
        acc = jnp.zeros((cout_p, l), jnp.float32)
        for rt in range(2):
            for ct in range(2):
                off = (rt + p) * wop + (ct + q)      # tap = contiguous lane slice
                acc = acc + jnp.dot(w1e_ref[ph * 4 + rt * 2 + ct],
                                    a[:, off:off + l],
                                    preferred_element_type=jnp.float32)
        h1 = _leaky(acc + b1) * mask                 # zero junk cols / tail ->
        #                                              exact zero halo for conv2
        # Padded slab: interior store + two tiny border-zero stores (re-done
        # every step so megacore sharding of the batch axis stays correct).
        hp_ref[ph, :, 0:wop + 1] = jnp.zeros((cout_p, wop + 1), jnp.bfloat16)
        hp_ref[ph, :, wop + 1 + l:lp_h] = jnp.zeros(
            (cout_p, lp_h - (wop + 1 + l)), jnp.bfloat16)
        hp_ref[ph, :, wop + 1:wop + 1 + l] = h1.astype(jnp.bfloat16)

    # ---- 1x1 shortcut on the un-activated input (phase independent) ---------
    # 1x1 conv commutes with nearest upsample, so one slab serves all 4 phases.
    res = jnp.dot(wsc_ref[...], u_bf, preferred_element_type=jnp.float32)

    # ---- conv2: 9 accumulating per-tap matmuls per output phase -------------
    # Tap (dh, dw) of output phase (p, q) reads source phase ((p+dh-1)%2,
    # (q+dw-1)%2) at original-res offset ((p+dh-1)//2, (q+dw-1)//2).
    for ph in range(4):
        p, q = ph // 2, ph % 2
        acc = jnp.zeros((cout_p, l), jnp.float32)
        for dh in range(3):
            sp = (p + dh - 1) % 2
            rh = (p + dh - 1) // 2
            for dw in range(3):
                sq = (q + dw - 1) % 2
                cw = (q + dw - 1) // 2
                off = (1 + rh) * wop + (1 + cw)
                acc = acc + jnp.dot(w2t_ref[dh * 3 + dw],
                                    hp_ref[sp * 2 + sq, :, off:off + l],
                                    preferred_element_type=jnp.float32)
        o_ref[ph] = (acc + b2 + res).astype(o_ref.dtype)


def upblock_forward(x_nchw, w1, b1, w2, b2, wsc):
    """x_nchw: (N, Cin, H, W) f32; w1: (3,3,Cin,Cout) HWIO; w2: (3,3,Cout,Cout);
    b1, b2: (Cout,); wsc: (Cin, Cout).  Returns (N, Cout, 2H, 2W) f32."""
    n, cin, h, w = x_nchw.shape
    cout = w1.shape[-1]
    cin_p = _round_up(cin, 8)
    cout_p = _round_up(cout, 8)

    wop = w + 2                        # padded original row width (1 col halo)
    l = _round_up(h * wop, 128)        # lane-dense flat output length (+ tail)
    lp_in = l + 3 * wop                # flat length of padded input slab
    lp_h = l + 3 * wop                 # flat length of padded conv1-act slabs

    # Glue: 1-pixel zero halo at ORIGINAL resolution only (no upsample/4x HBM).
    xp = jnp.pad(x_nchw.astype(jnp.float32),
                 ((0, 0), (0, cin_p - cin), (1, 1), (1, 1)))
    xflat = xp.reshape(n, cin_p, (h + 2) * wop)
    xflat = jnp.pad(xflat, ((0, 0), (0, 0), (0, lp_in - (h + 2) * wop)))

    # Precomputed valid-lane mask: lane = i*wop + j valid iff i < h and j < w.
    lanes = jnp.arange(l)
    mask = ((lanes < h * wop) & (lanes % wop < w)).astype(jnp.float32)
    mask = mask.reshape(1, l)

    # ---- weight prep (tiny tensors, all wrapper-side) ------------------------
    f32 = jnp.float32
    w1f = w1.astype(f32)
    # groups[p][rt] = 3x3 rows (kh) folding onto original-res offset rt-1+p.
    groups = (((0,), (1, 2)), ((0, 1), (2,)))
    w1e = []
    for p in range(2):
        for q in range(2):
            for rt in range(2):
                for ct in range(2):
                    acc = jnp.zeros((cin, cout), f32)
                    for kh in groups[p][rt]:
                        for kw in groups[q][ct]:
                            acc = acc + w1f[kh, kw]
                    w1e.append(acc.T)                        # (cout, cin)
    w1e = jnp.stack(w1e)                                     # (16, cout, cin)
    w1e = jnp.pad(w1e, ((0, 0), (0, cout_p - cout),
                        (0, cin_p - cin))).astype(jnp.bfloat16)

    w2t = jnp.transpose(w2.astype(f32), (0, 1, 3, 2)).reshape(9, cout, cout)
    w2t = jnp.pad(w2t * INV_SQRT2, ((0, 0), (0, cout_p - cout),
                                    (0, cout_p - cout))).astype(jnp.bfloat16)
    wsc_t = jnp.pad(wsc.astype(f32).T * INV_SQRT2,
                    ((0, cout_p - cout), (0, cin_p - cin))).astype(jnp.bfloat16)
    b1c = jnp.pad(b1.astype(f32), (0, cout_p - cout)).reshape(cout_p, 1)
    b2c = jnp.pad(b2.astype(f32) * INV_SQRT2,
                  (0, cout_p - cout)).reshape(cout_p, 1)

    # Explicit scoped-VMEM budget: double-buffered in/out blocks + scratch.
    vmem_est = (2 * cin_p * lp_in * 4 + 2 * 4 * cout_p * l * 4
                + 4 * cout_p * lp_h * 2
                + 2 * 2 * (w1e.size + w2t.size + wsc_t.size)
                + 2 * l * 4 + (1 << 20))
    vmem_limit = int(min(64 * 1024 * 1024, max(32 * 1024 * 1024, 2 * vmem_est)))

    kernel = functools.partial(upblock_kernel, wop=wop, l=l)
    out_ph = pl.pallas_call(
        kernel,
        out_shape=jax.ShapeDtypeStruct((n, 4, cout_p, l), jnp.float32),
        grid_spec=pltpu.PrefetchScalarGridSpec(
            num_scalar_prefetch=0,
            grid=(n,),
            in_specs=[
                pl.BlockSpec((None, cin_p, lp_in), lambda b: (b, 0, 0)),
                pl.BlockSpec((1, l), lambda b: (0, 0)),
                pl.BlockSpec((16, cout_p, cin_p), lambda b: (0, 0, 0)),
                pl.BlockSpec((cout_p, 1), lambda b: (0, 0)),
                pl.BlockSpec((9, cout_p, cout_p), lambda b: (0, 0, 0)),
                pl.BlockSpec((cout_p, 1), lambda b: (0, 0)),
                pl.BlockSpec((cout_p, cin_p), lambda b: (0, 0)),
            ],
            out_specs=pl.BlockSpec((None, 4, cout_p, l), lambda b: (b, 0, 0, 0)),
            scratch_shapes=[
                pltpu.VMEM((4, cout_p, lp_h), jnp.bfloat16),
            ],
        ),
        compiler_params=pltpu.CompilerParams(
            dimension_semantics=("parallel",),
            vmem_limit_bytes=vmem_limit),
    )(xflat, mask, w1e, b1c, w2t, b2c, wsc_t)

    # Glue: drop junk lanes / padded channels, interleave the 4 output phases.
    out_ph = out_ph[:, :, :cout, :h * wop].reshape(n, 2, 2, cout, h, wop)
    out_ph = out_ph[:, :, :, :, :, :w]                 # (n, p, q, cout, h, w)
    out = jnp.transpose(out_ph, (0, 3, 4, 1, 5, 2)).reshape(n, cout,
                                                            2 * h, 2 * w)
    return out


def ref_forward(x_nchw, w1, b1, w2, b2, wsc):
    """Pure-JAX reference matching the PyTorch forward exactly (f32)."""
    dn = ('NHWC', 'HWIO', 'NHWC')
    cin, cout = wsc.shape
    x = jnp.transpose(x_nchw, (0, 2, 3, 1)).astype(jnp.float32)

    def conv(v, k, pad):
        return jax.lax.conv_general_dilated(v, k, (1, 1), pad,
                                            dimension_numbers=dn)

    def up2(v):
        return jnp.repeat(jnp.repeat(v, 2, axis=1), 2, axis=2)

    residual = up2(conv(x, wsc.reshape(1, 1, cin, cout), 'VALID'))
    h = conv(up2(_leaky(x)), w1, [(1, 1), (1, 1)]) + b1.reshape(1, 1, 1, cout)
    out = conv(_leaky(h), w2, [(1, 1), (1, 1)]) + b2.reshape(1, 1, 1, cout)
    out = (residual + out) * INV_SQRT2
    return jnp.transpose(out, (0, 3, 1, 2))


if __name__ == "__main__":
    N, CIN, COUT, H, W = 2, 4, 8, 16, 16

    key = jax.random.PRNGKey(0)
    k = jax.random.split(key, 6)
    x = jax.random.normal(k[0], (N, CIN, H, W), jnp.float32)
    # deterministic synthetic parameter init (shapes per nn.Conv2d in __init__)
    w1 = jax.random.uniform(k[1], (3, 3, CIN, COUT), jnp.float32, -0.1, 0.1)
    b1 = jax.random.uniform(k[2], (COUT,), jnp.float32, -0.1, 0.1)
    w2 = jax.random.uniform(k[3], (3, 3, COUT, COUT), jnp.float32, -0.1, 0.1)
    b2 = jax.random.uniform(k[4], (COUT,), jnp.float32, -0.1, 0.1)
    wsc = jax.random.uniform(k[5], (CIN, COUT), jnp.float32, -0.1, 0.1)

    out = jax.block_until_ready(upblock_forward(x, w1, b1, w2, b2, wsc))
    assert out.shape == (N, COUT, 2 * H, 2 * W), out.shape

    ref = ref_forward(x, w1, b1, w2, b2, wsc)
    err = float(jnp.max(jnp.abs(out - ref)))
    # bf16 MXU operands (f32 accumulation) -> relaxed tolerance vs f32 reference
    if err > 3e-2:
        raise AssertionError(f"mismatch vs reference: max abs err = {err}")

    print("KERNEL_OK")
</pallas_src>

<mosaic_0001>
module attributes {stable_mosaic.version = 11 : i64} {
  func.func @upblock_kernel(%arg0: i32, %arg1: memref<1x8x438xf32, #tpu.memory_space<vmem>>, %arg2: memref<1x384xf32, #tpu.memory_space<vmem>>, %arg3: memref<16x8x8xbf16, #tpu.memory_space<vmem>>, %arg4: memref<8x1xf32, #tpu.memory_space<vmem>>, %arg5: memref<9x8x8xbf16, #tpu.memory_space<vmem>>, %arg6: memref<8x1xf32, #tpu.memory_space<vmem>>, %arg7: memref<8x8xbf16, #tpu.memory_space<vmem>>, %arg8: memref<1x4x8x384xf32, #tpu.memory_space<vmem>>, %arg9: memref<4x8x438xbf16, #tpu.memory_space<vmem>>) attributes {dimension_semantics = [#tpu.dimension_semantics<parallel>], iteration_bounds = array<i64: 2>, scalar_prefetch = 0 : i64, scratch_operands = 1 : i64, tpu.core_type = #tpu.core_type<tc>, window_params = [{transform_indices = @transform_0, window_bounds = array<i64: 1, 8, 438>}, {pipeline_mode = #tpu.pipeline_mode<synchronous>, transform_indices = @transform_1, window_bounds = array<i64: 1, 384>}, {pipeline_mode = #tpu.pipeline_mode<synchronous>, transform_indices = @transform_2, window_bounds = array<i64: 16, 8, 8>}, {pipeline_mode = #tpu.pipeline_mode<synchronous>, transform_indices = @transform_3, window_bounds = array<i64: 8, 1>}, {pipeline_mode = #tpu.pipeline_mode<synchronous>, transform_indices = @transform_4, window_bounds = array<i64: 9, 8, 8>}, {pipeline_mode = #tpu.pipeline_mode<synchronous>, transform_indices = @transform_5, window_bounds = array<i64: 8, 1>}, {pipeline_mode = #tpu.pipeline_mode<synchronous>, transform_indices = @transform_6, window_bounds = array<i64: 8, 8>}, {transform_indices = @transform_7, window_bounds = array<i64: 1, 4, 8, 384>}]} {
    %c0 = arith.constant 0 : index
    %c0_0 = arith.constant 0 : index
    %c0_1 = arith.constant 0 : index
    %0 = vector.load %arg1[%c0, %c0_0, %c0_1] : memref<1x8x438xf32, #tpu.memory_space<vmem>>, vector<1x8x438xf32>
    %1 = vector.shape_cast %0 : vector<1x8x438xf32> to vector<8x438xf32>
    %cst = arith.constant 0.000000e+00 : f32
    %2 = vector.broadcast %cst : f32 to vector<8x438xf32>
    %3 = arith.cmpf ogt, %1, %2 : vector<8x438xf32>
    %cst_2 = arith.constant 2.000000e-01 : f32
    %4 = vector.broadcast %cst_2 : f32 to vector<8x438xf32>
    %5 = arith.mulf %4, %1 : vector<8x438xf32>
    %6 = arith.select %3, %1, %5 : vector<8x438xi1>, vector<8x438xf32>
    %7 = arith.truncf %6 : vector<8x438xf32> to vector<8x438xbf16>
    %8 = vector.extract_strided_slice %1 {offsets = [0, 19], sizes = [8, 384], strides = [1, 1]} : vector<8x438xf32> to vector<8x384xf32>
    %9 = arith.truncf %8 : vector<8x384xf32> to vector<8x384xbf16>
    %c0_3 = arith.constant 0 : index
    %c0_4 = arith.constant 0 : index
    %10 = vector.load %arg2[%c0_3, %c0_4] : memref<1x384xf32, #tpu.memory_space<vmem>>, vector<1x384xf32>
    %c0_5 = arith.constant 0 : index
    %c0_6 = arith.constant 0 : index
    %11 = vector.load %arg4[%c0_5, %c0_6] : memref<8x1xf32, #tpu.memory_space<vmem>>, vector<8x1xf32>
    %c0_7 = arith.constant 0 : index
    %c0_8 = arith.constant 0 : index
    %12 = vector.load %arg6[%c0_7, %c0_8] : memref<8x1xf32, #tpu.memory_space<vmem>>, vector<8x1xf32>
    %cst_9 = arith.constant 0.000000e+00 : f32
    %13 = vector.broadcast %cst_9 : f32 to vector<8x384xf32>
    %c0_10 = arith.constant 0 : index
    %c0_11 = arith.constant 0 : index
    %c0_12 = arith.constant 0 : index
    %14 = vector.load %arg3[%c0_10, %c0_11, %c0_12] : memref<16x8x8xbf16, #tpu.memory_space<vmem>>, vector<1x8x8xbf16>
    %15 = vector.shape_cast %14 : vector<1x8x8xbf16> to vector<8x8xbf16>
    %16 = vector.extract_strided_slice %7 {offsets = [0, 0], sizes = [8, 384], strides = [1, 1]} : vector<8x438xbf16> to vector<8x384xbf16>
    %cst_13 = arith.constant dense<0.000000e+00> : vector<8x384xf32>
    %17 = tpu.matmul %15, %16, %cst_13 {dimension_numbers = #tpu.dot_dimension_numbers<[1], [0], [0], [1], [0, 0, 1, 1], [], []>} : vector<8x8xbf16>, vector<8x384xbf16>, vector<8x384xf32> -> vector<8x384xf32>
    %18 = arith.addf %13, %17 : vector<8x384xf32>
    %c1 = arith.constant 1 : index
    %c0_14 = arith.constant 0 : index
    %c0_15 = arith.constant 0 : index
    %19 = vector.load %arg3[%c1, %c0_14, %c0_15] : memref<16x8x8xbf16, #tpu.memory_space<vmem>>, vector<1x8x8xbf16>
    %20 = vector.shape_cast %19 : vector<1x8x8xbf16> to vector<8x8xbf16>
    %21 = vector.extract_strided_slice %7 {offsets = [0, 1], sizes = [8, 384], strides = [1, 1]} : vector<8x438xbf16> to vector<8x384xbf16>
    %cst_16 = arith.constant dense<0.000000e+00> : vector<8x384xf32>
    %22 = tpu.matmul %20, %21, %cst_16 {dimension_numbers = #tpu.dot_dimension_numbers<[1], [0], [0], [1], [0, 0, 1, 1], [], []>} : vector<8x8xbf16>, vector<8x384xbf16>, vector<8x384xf32> -> vector<8x384xf32>
    %23 = arith.addf %18, %22 : vector<8x384xf32>
    %c2 = arith.constant 2 : index
    %c0_17 = arith.constant 0 : index
    %c0_18 = arith.constant 0 : index
    %24 = vector.load %arg3[%c2, %c0_17, %c0_18] : memref<16x8x8xbf16, #tpu.memory_space<vmem>>, vector<1x8x8xbf16>
    %25 = vector.shape_cast %24 : vector<1x8x8xbf16> to vector<8x8xbf16>
    %26 = vector.extract_strided_slice %7 {offsets = [0, 18], sizes = [8, 384], strides = [1, 1]} : vector<8x438xbf16> to vector<8x384xbf16>
    %cst_19 = arith.constant dense<0.000000e+00> : vector<8x384xf32>
    %27 = tpu.matmul %25, %26, %cst_19 {dimension_numbers = #tpu.dot_dimension_numbers<[1], [0], [0], [1], [0, 0, 1, 1], [], []>} : vector<8x8xbf16>, vector<8x384xbf16>, vector<8x384xf32> -> vector<8x384xf32>
    %28 = arith.addf %23, %27 : vector<8x384xf32>
    %c3 = arith.constant 3 : index
    %c0_20 = arith.constant 0 : index
    %c0_21 = arith.constant 0 : index
    %29 = vector.load %arg3[%c3, %c0_20, %c0_21] : memref<16x8x8xbf16, #tpu.memory_space<vmem>>, vector<1x8x8xbf16>
    %30 = vector.shape_cast %29 : vector<1x8x8xbf16> to vector<8x8xbf16>
    %31 = vector.extract_strided_slice %7 {offsets = [0, 19], sizes = [8, 384], strides = [1, 1]} : vector<8x438xbf16> to vector<8x384xbf16>
    %cst_22 = arith.constant dense<0.000000e+00> : vector<8x384xf32>
    %32 = tpu.matmul %30, %31, %cst_22 {dimension_numbers = #tpu.dot_dimension_numbers<[1], [0], [0], [1], [0, 0, 1, 1], [], []>} : vector<8x8xbf16>, vector<8x384xbf16>, vector<8x384xf32> -> vector<8x384xf32>
    %33 = arith.addf %28, %32 : vector<8x384xf32>
    %34 = vector.broadcast %11 : vector<8x1xf32> to vector<8x384xf32>
    %35 = arith.addf %33, %34 : vector<8x384xf32>
    %cst_23 = arith.constant 0.000000e+00 : f32
    %36 = vector.broadcast %cst_23 : f32 to vector<8x384xf32>
    %37 = arith.cmpf ogt, %35, %36 : vector<8x384xf32>
    %cst_24 = arith.constant 2.000000e-01 : f32
    %38 = vector.broadcast %cst_24 : f32 to vector<8x384xf32>
    %39 = arith.mulf %38, %35 : vector<8x384xf32>
    %40 = arith.select %37, %35, %39 : vector<8x384xi1>, vector<8x384xf32>
    %41 = vector.broadcast %10 : vector<1x384xf32> to vector<8x384xf32>
    %42 = arith.mulf %40, %41 : vector<8x384xf32>
    %cst_25 = arith.constant 0.000000e+00 : bf16
    %43 = vector.broadcast %cst_25 : bf16 to vector<8x19xbf16>
    %c0_26 = arith.constant 0 : index
    %c0_27 = arith.constant 0 : index
    %c0_28 = arith.constant 0 : index
    %44 = vector.load %arg9[%c0_26, %c0_27, %c0_28] : memref<4x8x438xbf16, #tpu.memory_space<vmem>>, vector<1x8x19xbf16>
    %45 = vector.shape_cast %44 : vector<1x8x19xbf16> to vector<8x19xbf16>
    %46 = vector.shape_cast %43 : vector<8x19xbf16> to vector<1x8x19xbf16>
    tpu.vector_store %arg9[%c0_26, %c0_27, %c0_28], %46 {strides = array<i32>} : memref<4x8x438xbf16, #tpu.memory_space<vmem>>, vector<1x8x19xbf16>,
    %cst_29 = arith.constant 0.000000e+00 : bf16
    %47 = vector.broadcast %cst_29 : bf16 to vector<8x35xbf16>
    %c0_30 = arith.constant 0 : index
    %c0_31 = arith.constant 0 : index
    %c403 = arith.constant 403 : index
    %48 = vector.load %arg9[%c0_30, %c0_31, %c403] : memref<4x8x438xbf16, #tpu.memory_space<vmem>>, vector<1x8x35xbf16>
    %49 = vector.shape_cast %48 : vector<1x8x35xbf16> to vector<8x35xbf16>
    %50 = vector.shape_cast %47 : vector<8x35xbf16> to vector<1x8x35xbf16>
    tpu.vector_store %arg9[%c0_30, %c0_31, %c403], %50 {strides = array<i32>} : memref<4x8x438xbf16, #tpu.memory_space<vmem>>, vector<1x8x35xbf16>,
    %51 = arith.truncf %42 : vector<8x384xf32> to vector<8x384xbf16>
    %c0_32 = arith.constant 0 : index
    %c0_33 = arith.constant 0 : index
    %c19 = arith.constant 19 : index
    %52 = vector.load %arg9[%c0_32, %c0_33, %c19] : memref<4x8x438xbf16, #tpu.memory_space<vmem>>, vector<1x8x384xbf16>
    %53 = vector.shape_cast %52 : vector<1x8x384xbf16> to vector<8x384xbf16>
    %54 = vector.shape_cast %51 : vector<8x384xbf16> to vector<1x8x384xbf16>
    tpu.vector_store %arg9[%c0_32, %c0_33, %c19], %54 {strides = array<i32>} : memref<4x8x438xbf16, #tpu.memory_space<vmem>>, vector<1x8x384xbf16>,
    %cst_34 = arith.constant 0.000000e+00 : f32
    %55 = vector.broadcast %cst_34 : f32 to vector<8x384xf32>
    %c4 = arith.constant 4 : index
    %c0_35 = arith.constant 0 : index
    %c0_36 = arith.constant 0 : index
    %56 = vector.load %arg3[%c4, %c0_35, %c0_36] : memref<16x8x8xbf16, #tpu.memory_space<vmem>>, vector<1x8x8xbf16>
    %57 = vector.shape_cast %56 : vector<1x8x8xbf16> to vector<8x8xbf16>
    %58 = vector.extract_strided_slice %7 {offsets = [0, 1], sizes = [8, 384], strides = [1, 1]} : vector<8x438xbf16> to vector<8x384xbf16>
    %cst_37 = arith.constant dense<0.000000e+00> : vector<8x384xf32>
    %59 = tpu.matmul %57, %58, %cst_37 {dimension_numbers = #tpu.dot_dimension_numbers<[1], [0], [0], [1], [0, 0, 1, 1], [], []>} : vector<8x8xbf16>, vector<8x384xbf16>, vector<8x384xf32> -> vector<8x384xf32>
    %60 = arith.addf %55, %59 : vector<8x384xf32>
    %c5 = arith.constant 5 : index
    %c0_38 = arith.constant 0 : index
    %c0_39 = arith.constant 0 : index
    %61 = vector.load %arg3[%c5, %c0_38, %c0_39] : memref<16x8x8xbf16, #tpu.memory_space<vmem>>, vector<1x8x8xbf16>
    %62 = vector.shape_cast %61 : vector<1x8x8xbf16> to vector<8x8xbf16>
    %63 = vector.extract_strided_slice %7 {offsets = [0, 2], sizes = [8, 384], strides = [1, 1]} : vector<8x438xbf16> to vector<8x384xbf16>
    %cst_40 = arith.constant dense<0.000000e+00> : vector<8x384xf32>
    %64 = tpu.matmul %62, %63, %cst_40 {dimension_numbers = #tpu.dot_dimension_numbers<[1], [0], [0], [1], [0, 0, 1, 1], [], []>} : vector<8x8xbf16>, vector<8x384xbf16>, vector<8x384xf32> -> vector<8x384xf32>
    %65 = arith.addf %60, %64 : vector<8x384xf32>
    %c6 = arith.constant 6 : index
    %c0_41 = arith.constant 0 : index
    %c0_42 = arith.constant 0 : index
    %66 = vector.load %arg3[%c6, %c0_41, %c0_42] : memref<16x8x8xbf16, #tpu.memory_space<vmem>>, vector<1x8x8xbf16>
    %67 = vector.shape_cast %66 : vector<1x8x8xbf16> to vector<8x8xbf16>
    %68 = vector.extract_strided_slice %7 {offsets = [0, 19], sizes = [8, 384], strides = [1, 1]} : vector<8x438xbf16> to vector<8x384xbf16>
    %cst_43 = arith.constant dense<0.000000e+00> : vector<8x384xf32>
    %69 = tpu.matmul %67, %68, %cst_43 {dimension_numbers = #tpu.dot_dimension_numbers<[1], [0], [0], [1], [0, 0, 1, 1], [], []>} : vector<8x8xbf16>, vector<8x384xbf16>, vector<8x384xf32> -> vector<8x384xf32>
    %70 = arith.addf %65, %69 : vector<8x384xf32>
    %c7 = arith.constant 7 : index
    %c0_44 = arith.constant 0 : index
    %c0_45 = arith.constant 0 : index
    %71 = vector.load %arg3[%c7, %c0_44, %c0_45] : memref<16x8x8xbf16, #tpu.memory_space<vmem>>, vector<1x8x8xbf16>
    %72 = vector.shape_cast %71 : vector<1x8x8xbf16> to vector<8x8xbf16>
    %73 = vector.extract_strided_slice %7 {offsets = [0, 20], sizes = [8, 384], strides = [1, 1]} : vector<8x438xbf16> to vector<8x384xbf16>
    %cst_46 = arith.constant dense<0.000000e+00> : vector<8x384xf32>
    %74 = tpu.matmul %72, %73, %cst_46 {dimension_numbers = #tpu.dot_dimension_numbers<[1], [0], [0], [1], [0, 0, 1, 1], [], []>} : vector<8x8xbf16>, vector<8x384xbf16>, vector<8x384xf32> -> vector<8x384xf32>
    %75 = arith.addf %70, %74 : vector<8x384xf32>
    %76 = vector.broadcast %11 : vector<8x1xf32> to vector<8x384xf32>
    %77 = arith.addf %75, %76 : vector<8x384xf32>
    %cst_47 = arith.constant 0.000000e+00 : f32
    %78 = vector.broadcast %cst_47 : f32 to vector<8x384xf32>
    %79 = arith.cmpf ogt, %77, %78 : vector<8x384xf32>
    %cst_48 = arith.constant 2.000000e-01 : f32
    %80 = vector.broadcast %cst_48 : f32 to vector<8x384xf32>
    %81 = arith.mulf %80, %77 : vector<8x384xf32>
    %82 = arith.select %79, %77, %81 : vector<8x384xi1>, vector<8x384xf32>
    %83 = vector.broadcast %10 : vector<1x384xf32> to vector<8x384xf32>
    %84 = arith.mulf %82, %83 : vector<8x384xf32>
    %cst_49 = arith.constant 0.000000e+00 : bf16
    %85 = vector.broadcast %cst_49 : bf16 to vector<8x19xbf16>
    %c1_50 = arith.constant 1 : index
    %c0_51 = arith.constant 0 : index
    %c0_52 = arith.constant 0 : index
    %86 = vector.load %arg9[%c1_50, %c0_51, %c0_52] : memref<4x8x438xbf16, #tpu.memory_space<vmem>>, vector<1x8x19xbf16>
    %87 = vector.shape_cast %86 : vector<1x8x19xbf16> to vector<8x19xbf16>
    %88 = vector.shape_cast %85 : vector<8x19xbf16> to vector<1x8x19xbf16>
    tpu.vector_store %arg9[%c1_50, %c0_51, %c0_52], %88 {strides = array<i32>} : memref<4x8x438xbf16, #tpu.memory_space<vmem>>, vector<1x8x19xbf16>,
    %cst_53 = arith.constant 0.000000e+00 : bf16
    %89 = vector.broadcast %cst_53 : bf16 to vector<8x35xbf16>
    %c1_54 = arith.constant 1 : index
    %c0_55 = arith.constant 0 : index
    %c403_56 = arith.constant 403 : index
    %90 = vector.load %arg9[%c1_54, %c0_55, %c403_56] : memref<4x8x438xbf16, #tpu.memory_space<vmem>>, vector<1x8x35xbf16>
    %91 = vector.shape_cast %90 : vector<1x8x35xbf16> to vector<8x35xbf16>
    %92 = vector.shape_cast %89 : vector<8x35xbf16> to vector<1x8x35xbf16>
    tpu.vector_store %arg9[%c1_54, %c0_55, %c403_56], %92 {strides = array<i32>} : memref<4x8x438xbf16, #tpu.memory_space<vmem>>, vector<1x8x35xbf16>,
    %93 = arith.truncf %84 : vector<8x384xf32> to vector<8x384xbf16>
    %c1_57 = arith.constant 1 : index
    %c0_58 = arith.constant 0 : index
    %c19_59 = arith.constant 19 : index
    %94 = vector.load %arg9[%c1_57, %c0_58, %c19_59] : memref<4x8x438xbf16, #tpu.memory_space<vmem>>, vector<1x8x384xbf16>
    %95 = vector.shape_cast %94 : vector<1x8x384xbf16> to vector<8x384xbf16>
    %96 = vector.shape_cast %93 : vector<8x384xbf16> to vector<1x8x384xbf16>
    tpu.vector_store %arg9[%c1_57, %c0_58, %c19_59], %96 {strides = array<i32>} : memref<4x8x438xbf16, #tpu.memory_space<vmem>>, vector<1x8x384xbf16>,
    %cst_60 = arith.constant 0.000000e+00 : f32
    %97 = vector.broadcast %cst_60 : f32 to vector<8x384xf32>
    %c8 = arith.constant 8 : index
    %c0_61 = arith.constant 0 : index
    %c0_62 = arith.constant 0 : index
    %98 = vector.load %arg3[%c8, %c0_61, %c0_62] : memref<16x8x8xbf16, #tpu.memory_space<vmem>>, vector<1x8x8xbf16>
    %99 = vector.shape_cast %98 : vector<1x8x8xbf16> to vector<8x8xbf16>
    %100 = vector.extract_strided_slice %7 {offsets = [0, 18], sizes = [8, 384], strides = [1, 1]} : vector<8x438xbf16> to vector<8x384xbf16>
    %cst_63 = arith.constant dense<0.000000e+00> : vector<8x384xf32>
    %101 = tpu.matmul %99, %100, %cst_63 {dimension_numbers = #tpu.dot_dimension_numbers<[1], [0], [0], [1], [0, 0, 1, 1], [], []>} : vector<8x8xbf16>, vector<8x384xbf16>, vector<8x384xf32> -> vector<8x384xf32>
    %102 = arith.addf %97, %101 : vector<8x384xf32>
    %c9 = arith.constant 9 : index
    %c0_64 = arith.constant 0 : index
    %c0_65 = arith.constant 0 : index
    %103 = vector.load %arg3[%c9, %c0_64, %c0_65] : memref<16x8x8xbf16, #tpu.memory_space<vmem>>, vector<1x8x8xbf16>
    %104 = vector.shape_cast %103 : vector<1x8x8xbf16> to vector<8x8xbf16>
    %105 = vector.extract_strided_slice %7 {offsets = [0, 19], sizes = [8, 384], strides = [1, 1]} : vector<8x438xbf16> to vector<8x384xbf16>
    %cst_66 = arith.constant dense<0.000000e+00> : vector<8x384xf32>
    %106 = tpu.matmul %104, %105, %cst_66 {dimension_numbers = #tpu.dot_dimension_numbers<[1], [0], [0], [1], [0, 0, 1, 1], [], []>} : vector<8x8xbf16>, vector<8x384xbf16>, vector<8x384xf32> -> vector<8x384xf32>
    %107 = arith.addf %102, %106 : vector<8x384xf32>
    %c10 = arith.constant 10 : index
    %c0_67 = arith.constant 0 : index
    %c0_68 = arith.constant 0 : index
    %108 = vector.load %arg3[%c10, %c0_67, %c0_68] : memref<16x8x8xbf16, #tpu.memory_space<vmem>>, vector<1x8x8xbf16>
    %109 = vector.shape_cast %108 : vector<1x8x8xbf16> to vector<8x8xbf16>
    %110 = vector.extract_strided_slice %7 {offsets = [0, 36], sizes = [8, 384], strides = [1, 1]} : vector<8x438xbf16> to vector<8x384xbf16>
    %cst_69 = arith.constant dense<0.000000e+00> : vector<8x384xf32>
    %111 = tpu.matmul %109, %110, %cst_69 {dimension_numbers = #tpu.dot_dimension_numbers<[1], [0], [0], [1], [0, 0, 1, 1], [], []>} : vector<8x8xbf16>, vector<8x384xbf16>, vector<8x384xf32> -> vector<8x384xf32>
    %112 = arith.addf %107, %111 : vector<8x384xf32>
    %c11 = arith.constant 11 : index
    %c0_70 = arith.constant 0 : index
    %c0_71 = arith.constant 0 : index
    %113 = vector.load %arg3[%c11, %c0_70, %c0_71] : memref<16x8x8xbf16, #tpu.memory_space<vmem>>, vector<1x8x8xbf16>
    %114 = vector.shape_cast %113 : vector<1x8x8xbf16> to vector<8x8xbf16>
    %115 = vector.extract_strided_slice %7 {offsets = [0, 37], sizes = [8, 384], strides = [1, 1]} : vector<8x438xbf16> to vector<8x384xbf16>
    %cst_72 = arith.constant dense<0.000000e+00> : vector<8x384xf32>
    %116 = tpu.matmul %114, %115, %cst_72 {dimension_numbers = #tpu.dot_dimension_numbers<[1], [0], [0], [1], [0, 0, 1, 1], [], []>} : vector<8x8xbf16>, vector<8x384xbf16>, vector<8x384xf32> -> vector<8x384xf32>
    %117 = arith.addf %112, %116 : vector<8x384xf32>
    %118 = vector.broadcast %11 : vector<8x1xf32> to vector<8x384xf32>
    %119 = arith.addf %117, %118 : vector<8x384xf32>
    %cst_73 = arith.constant 0.000000e+00 : f32
    %120 = vector.broadcast %cst_73 : f32 to vector<8x384xf32>
    %121 = arith.cmpf ogt, %119, %120 : vector<8x384xf32>
    %cst_74 = arith.constant 2.000000e-01 : f32
    %122 = vector.broadcast %cst_74 : f32 to vector<8x384xf32>
    %123 = arith.mulf %122, %119 : vector<8x384xf32>
    %124 = arith.select %121, %119, %123 : vector<8x384xi1>, vector<8x384xf32>
    %125 = vector.broadcast %10 : vector<1x384xf32> to vector<8x384xf32>
    %126 = arith.mulf %124, %125 : vector<8x384xf32>
    %cst_75 = arith.constant 0.000000e+00 : bf16
    %127 = vector.broadcast %cst_75 : bf16 to vector<8x19xbf16>
    %c2_76 = arith.constant 2 : index
    %c0_77 = arith.constant 0 : index
    %c0_78 = arith.constant 0 : index
    %128 = vector.load %arg9[%c2_76, %c0_77, %c0_78] : memref<4x8x438xbf16, #tpu.memory_space<vmem>>, vector<1x8x19xbf16>
    %129 = vector.shape_cast %128 : vector<1x8x19xbf16> to vector<8x19xbf16>
    %130 = vector.shape_cast %127 : vector<8x19xbf16> to vector<1x8x19xbf16>
    tpu.vector_store %arg9[%c2_76, %c0_77, %c0_78], %130 {strides = array<i32>} : memref<4x8x438xbf16, #tpu.memory_space<vmem>>, vector<1x8x19xbf16>,
    %cst_79 = arith.constant 0.000000e+00 : bf16
    %131 = vector.broadcast %cst_79 : bf16 to vector<8x35xbf16>
    %c2_80 = arith.constant 2 : index
    %c0_81 = arith.constant 0 : index
    %c403_82 = arith.constant 403 : index
    %132 = vector.load %arg9[%c2_80, %c0_81, %c403_82] : memref<4x8x438xbf16, #tpu.memory_space<vmem>>, vector<1x8x35xbf16>
    %133 = vector.shape_cast %132 : vector<1x8x35xbf16> to vector<8x35xbf16>
    %134 = vector.shape_cast %131 : vector<8x35xbf16> to vector<1x8x35xbf16>
    tpu.vector_store %arg9[%c2_80, %c0_81, %c403_82], %134 {strides = array<i32>} : memref<4x8x438xbf16, #tpu.memory_space<vmem>>, vector<1x8x35xbf16>,
    %135 = arith.truncf %126 : vector<8x384xf32> to vector<8x384xbf16>
    %c2_83 = arith.constant 2 : index
    %c0_84 = arith.constant 0 : index
    %c19_85 = arith.constant 19 : index
    %136 = vector.load %arg9[%c2_83, %c0_84, %c19_85] : memref<4x8x438xbf16, #tpu.memory_space<vmem>>, vector<1x8x384xbf16>
    %137 = vector.shape_cast %136 : vector<1x8x384xbf16> to vector<8x384xbf16>
    %138 = vector.shape_cast %135 : vector<8x384xbf16> to vector<1x8x384xbf16>
    tpu.vector_store %arg9[%c2_83, %c0_84, %c19_85], %138 {strides = array<i32>} : memref<4x8x438xbf16, #tpu.memory_space<vmem>>, vector<1x8x384xbf16>,
    %cst_86 = arith.constant 0.000000e+00 : f32
    %139 = vector.broadcast %cst_86 : f32 to vector<8x384xf32>
    %c12 = arith.constant 12 : index
    %c0_87 = arith.constant 0 : index
    %c0_88 = arith.constant 0 : index
    %140 = vector.load %arg3[%c12, %c0_87, %c0_88] : memref<16x8x8xbf16, #tpu.memory_space<vmem>>, vector<1x8x8xbf16>
    %141 = vector.shape_cast %140 : vector<1x8x8xbf16> to vector<8x8xbf16>
    %142 = vector.extract_strided_slice %7 {offsets = [0, 19], sizes = [8, 384], strides = [1, 1]} : vector<8x438xbf16> to vector<8x384xbf16>
    %cst_89 = arith.constant dense<0.000000e+00> : vector<8x384xf32>
    %143 = tpu.matmul %141, %142, %cst_89 {dimension_numbers = #tpu.dot_dimension_numbers<[1], [0], [0], [1], [0, 0, 1, 1], [], []>} : vector<8x8xbf16>, vector<8x384xbf16>, vector<8x384xf32> -> vector<8x384xf32>
    %144 = arith.addf %139, %143 : vector<8x384xf32>
    %c13 = arith.constant 13 : index
    %c0_90 = arith.constant 0 : index
    %c0_91 = arith.constant 0 : index
    %145 = vector.load %arg3[%c13, %c0_90, %c0_91] : memref<16x8x8xbf16, #tpu.memory_space<vmem>>, vector<1x8x8xbf16>
    %146 = vector.shape_cast %145 : vector<1x8x8xbf16> to vector<8x8xbf16>
    %147 = vector.extract_strided_slice %7 {offsets = [0, 20], sizes = [8, 384], strides = [1, 1]} : vector<8x438xbf16> to vector<8x384xbf16>
    %cst_92 = arith.constant dense<0.000000e+00> : vector<8x384xf32>
    %148 = tpu.matmul %146, %147, %cst_92 {dimension_numbers = #tpu.dot_dimension_numbers<[1], [0], [0], [1], [0, 0, 1, 1], [], []>} : vector<8x8xbf16>, vector<8x384xbf16>, vector<8x384xf32> -> vector<8x384xf32>
    %149 = arith.addf %144, %148 : vector<8x384xf32>
    %c14 = arith.constant 14 : index
    %c0_93 = arith.constant 0 : index
    %c0_94 = arith.constant 0 : index
    %150 = vector.load %arg3[%c14, %c0_93, %c0_94] : memref<16x8x8xbf16, #tpu.memory_space<vmem>>, vector<1x8x8xbf16>
    %151 = vector.shape_cast %150 : vector<1x8x8xbf16> to vector<8x8xbf16>
    %152 = vector.extract_strided_slice %7 {offsets = [0, 37], sizes = [8, 384], strides = [1, 1]} : vector<8x438xbf16> to vector<8x384xbf16>
    %cst_95 = arith.constant dense<0.000000e+00> : vector<8x384xf32>
    %153 = tpu.matmul %151, %152, %cst_95 {dimension_numbers = #tpu.dot_dimension_numbers<[1], [0], [0], [1], [0, 0, 1, 1], [], []>} : vector<8x8xbf16>, vector<8x384xbf16>, vector<8x384xf32> -> vector<8x384xf32>
    %154 = arith.addf %149, %153 : vector<8x384xf32>
    %c15 = arith.constant 15 : index
    %c0_96 = arith.constant 0 : index
    %c0_97 = arith.constant 0 : index
    %155 = vector.load %arg3[%c15, %c0_96, %c0_97] : memref<16x8x8xbf16, #tpu.memory_space<vmem>>, vector<1x8x8xbf16>
    %156 = vector.shape_cast %155 : vector<1x8x8xbf16> to vector<8x8xbf16>
    %157 = vector.extract_strided_slice %7 {offsets = [0, 38], sizes = [8, 384], strides = [1, 1]} : vector<8x438xbf16> to vector<8x384xbf16>
    %cst_98 = arith.constant dense<0.000000e+00> : vector<8x384xf32>
    %158 = tpu.matmul %156, %157, %cst_98 {dimension_numbers = #tpu.dot_dimension_numbers<[1], [0], [0], [1], [0, 0, 1, 1], [], []>} : vector<8x8xbf16>, vector<8x384xbf16>, vector<8x384xf32> -> vector<8x384xf32>
    %159 = arith.addf %154, %158 : vector<8x384xf32>
    %160 = vector.broadcast %11 : vector<8x1xf32> to vector<8x384xf32>
    %161 = arith.addf %159, %160 : vector<8x384xf32>
    %cst_99 = arith.constant 0.000000e+00 : f32
    %162 = vector.broadcast %cst_99 : f32 to vector<8x384xf32>
    %163 = arith.cmpf ogt, %161, %162 : vector<8x384xf32>
    %cst_100 = arith.constant 2.000000e-01 : f32
    %164 = vector.broadcast %cst_100 : f32 to vector<8x384xf32>
    %165 = arith.mulf %164, %161 : vector<8x384xf32>
    %166 = arith.select %163, %161, %165 : vector<8x384xi1>, vector<8x384xf32>
    %167 = vector.broadcast %10 : vector<1x384xf32> to vector<8x384xf32>
    %168 = arith.mulf %166, %167 : vector<8x384xf32>
    %cst_101 = arith.constant 0.000000e+00 : bf16
    %169 = vector.broadcast %cst_101 : bf16 to vector<8x19xbf16>
    %c3_102 = arith.constant 3 : index
    %c0_103 = arith.constant 0 : index
    %c0_104 = arith.constant 0 : index
    %170 = vector.load %arg9[%c3_102, %c0_103, %c0_104] : memref<4x8x438xbf16, #tpu.memory_space<vmem>>, vector<1x8x19xbf16>
    %171 = vector.shape_cast %170 : vector<1x8x19xbf16> to vector<8x19xbf16>
    %172 = vector.shape_cast %169 : vector<8x19xbf16> to vector<1x8x19xbf16>
    tpu.vector_store %arg9[%c3_102, %c0_103, %c0_104], %172 {strides = array<i32>} : memref<4x8x438xbf16, #tpu.memory_space<vmem>>, vector<1x8x19xbf16>,
    %cst_105 = arith.constant 0.000000e+00 : bf16
    %173 = vector.broadcast %cst_105 : bf16 to vector<8x35xbf16>
    %c3_106 = arith.constant 3 : index
    %c0_107 = arith.constant 0 : index
    %c403_108 = arith.constant 403 : index
    %174 = vector.load %arg9[%c3_106, %c0_107, %c403_108] : memref<4x8x438xbf16, #tpu.memory_space<vmem>>, vector<1x8x35xbf16>
    %175 = vector.shape_cast %174 : vector<1x8x35xbf16> to vector<8x35xbf16>
    %176 = vector.shape_cast %173 : vector<8x35xbf16> to vector<1x8x35xbf16>
    tpu.vector_store %arg9[%c3_106, %c0_107, %c403_108], %176 {strides = array<i32>} : memref<4x8x438xbf16, #tpu.memory_space<vmem>>, vector<1x8x35xbf16>,
    %177 = arith.truncf %168 : vector<8x384xf32> to vector<8x384xbf16>
    %c3_109 = arith.constant 3 : index
    %c0_110 = arith.constant 0 : index
    %c19_111 = arith.constant 19 : index
    %178 = vector.load %arg9[%c3_109, %c0_110, %c19_111] : memref<4x8x438xbf16, #tpu.memory_space<vmem>>, vector<1x8x384xbf16>
    %179 = vector.shape_cast %178 : vector<1x8x384xbf16> to vector<8x384xbf16>
    %180 = vector.shape_cast %177 : vector<8x384xbf16> to vector<1x8x384xbf16>
    tpu.vector_store %arg9[%c3_109, %c0_110, %c19_111], %180 {strides = array<i32>} : memref<4x8x438xbf16, #tpu.memory_space<vmem>>, vector<1x8x384xbf16>,
    %c0_112 = arith.constant 0 : index
    %c0_113 = arith.constant 0 : index
    %181 = vector.load %arg7[%c0_112, %c0_113] : memref<8x8xbf16, #tpu.memory_space<vmem>>, vector<8x8xbf16>
    %cst_114 = arith.constant dense<0.000000e+00> : vector<8x384xf32>
    %182 = tpu.matmul %181, %9, %cst_114 {dimension_numbers = #tpu.dot_dimension_numbers<[1], [0], [0], [1], [0, 0, 1, 1], [], []>} : vector<8x8xbf16>, vector<8x384xbf16>, vector<8x384xf32> -> vector<8x384xf32>
    %cst_115 = arith.constant 0.000000e+00 : f32
    %183 = vector.broadcast %cst_115 : f32 to vector<8x384xf32>
    %c0_116 = arith.constant 0 : index
    %c0_117 = arith.constant 0 : index
    %c0_118 = arith.constant 0 : index
    %184 = vector.load %arg5[%c0_116, %c0_117, %c0_118] : memref<9x8x8xbf16, #tpu.memory_space<vmem>>, vector<1x8x8xbf16>
    %185 = vector.shape_cast %184 : vector<1x8x8xbf16> to vector<8x8xbf16>
    %c3_119 = arith.constant 3 : index
    %c0_120 = arith.constant 0 : index
    %c0_121 = arith.constant 0 : index
    %186 = vector.load %arg9[%c3_119, %c0_120, %c0_121] : memref<4x8x438xbf16, #tpu.memory_space<vmem>>, vector<1x8x384xbf16>
    %187 = vector.shape_cast %186 : vector<1x8x384xbf16> to vector<8x384xbf16>
    %cst_122 = arith.constant dense<0.000000e+00> : vector<8x384xf32>
    %188 = tpu.matmul %185, %187, %cst_122 {dimension_numbers = #tpu.dot_dimension_numbers<[1], [0], [0], [1], [0, 0, 1, 1], [], []>} : vector<8x8xbf16>, vector<8x384xbf16>, vector<8x384xf32> -> vector<8x384xf32>
    %189 = arith.addf %183, %188 : vector<8x384xf32>
    %c1_123 = arith.constant 1 : index
    %c0_124 = arith.constant 0 : index
    %c0_125 = arith.constant 0 : index
    %190 = vector.load %arg5[%c1_123, %c0_124, %c0_125] : memref<9x8x8xbf16, #tpu.memory_space<vmem>>, vector<1x8x8xbf16>
    %191 = vector.shape_cast %190 : vector<1x8x8xbf16> to vector<8x8xbf16>
    %c2_126 = arith.constant 2 : index
    %c0_127 = arith.constant 0 : index
    %c1_128 = arith.constant 1 : index
    %192 = vector.load %arg9[%c2_126, %c0_127, %c1_128] : memref<4x8x438xbf16, #tpu.memory_space<vmem>>, vector<1x8x384xbf16>
    %193 = vector.shape_cast %192 : vector<1x8x384xbf16> to vector<8x384xbf16>
    %cst_129 = arith.constant dense<0.000000e+00> : vector<8x384xf32>
    %194 = tpu.matmul %191, %193, %cst_129 {dimension_numbers = #tpu.dot_dimension_numbers<[1], [0], [0], [1], [0, 0, 1, 1], [], []>} : vector<8x8xbf16>, vector<8x384xbf16>, vector<8x384xf32> -> vector<8x384xf32>
    %195 = arith.addf %189, %194 : vector<8x384xf32>
    %c2_130 = arith.constant 2 : index
    %c0_131 = arith.constant 0 : index
    %c0_132 = arith.constant 0 : index
    %196 = vector.load %arg5[%c2_130, %c0_131, %c0_132] : memref<9x8x8xbf16, #tpu.memory_space<vmem>>, vector<1x8x8xbf16>
    %197 = vector.shape_cast %196 : vector<1x8x8xbf16> to vector<8x8xbf16>
    %c3_133 = arith.constant 3 : index
    %c0_134 = arith.constant 0 : index
    %c1_135 = arith.constant 1 : index
    %198 = vector.load %arg9[%c3_133, %c0_134, %c1_135] : memref<4x8x438xbf16, #tpu.memory_space<vmem>>, vector<1x8x384xbf16>
    %199 = vector.shape_cast %198 : vector<1x8x384xbf16> to vector<8x384xbf16>
    %cst_136 = arith.constant dense<0.000000e+00> : vector<8x384xf32>
    %200 = tpu.matmul %197, %199, %cst_136 {dimension_numbers = #tpu.dot_dimension_numbers<[1], [0], [0], [1], [0, 0, 1, 1], [], []>} : vector<8x8xbf16>, vector<8x384xbf16>, vector<8x384xf32> -> vector<8x384xf32>
    %201 = arith.addf %195, %200 : vector<8x384xf32>
    %c3_137 = arith.constant 3 : index
    %c0_138 = arith.constant 0 : index
    %c0_139 = arith.constant 0 : index
    %202 = vector.load %arg5[%c3_137, %c0_138, %c0_139] : memref<9x8x8xbf16, #tpu.memory_space<vmem>>, vector<1x8x8xbf16>
    %203 = vector.shape_cast %202 : vector<1x8x8xbf16> to vector<8x8xbf16>
    %c1_140 = arith.constant 1 : index
    %c0_141 = arith.constant 0 : index
    %c18 = arith.constant 18 : index
    %204 = vector.load %arg9[%c1_140, %c0_141, %c18] : memref<4x8x438xbf16, #tpu.memory_space<vmem>>, vector<1x8x384xbf16>
    %205 = vector.shape_cast %204 : vector<1x8x384xbf16> to vector<8x384xbf16>
    %cst_142 = arith.constant dense<0.000000e+00> : vector<8x384xf32>
    %206 = tpu.matmul %203, %205, %cst_142 {dimension_numbers = #tpu.dot_dimension_numbers<[1], [0], [0], [1], [0, 0, 1, 1], [], []>} : vector<8x8xbf16>, vector<8x384xbf16>, vector<8x384xf32> -> vector<8x384xf32>
    %207 = arith.addf %201, %206 : vector<8x384xf32>
    %c4_143 = arith.constant 4 : index
    %c0_144 = arith.constant 0 : index
    %c0_145 = arith.constant 0 : index
    %208 = vector.load %arg5[%c4_143, %c0_144, %c0_145] : memref<9x8x8xbf16, #tpu.memory_space<vmem>>, vector<1x8x8xbf16>
    %209 = vector.shape_cast %208 : vector<1x8x8xbf16> to vector<8x8xbf16>
    %c0_146 = arith.constant 0 : index
    %c0_147 = arith.constant 0 : index
    %c19_148 = arith.constant 19 : index
    %210 = vector.load %arg9[%c0_146, %c0_147, %c19_148] : memref<4x8x438xbf16, #tpu.memory_space<vmem>>, vector<1x8x384xbf16>
    %211 = vector.shape_cast %210 : vector<1x8x384xbf16> to vector<8x384xbf16>
    %cst_149 = arith.constant dense<0.000000e+00> : vector<8x384xf32>
    %212 = tpu.matmul %209, %211, %cst_149 {dimension_numbers = #tpu.dot_dimension_numbers<[1], [0], [0], [1], [0, 0, 1, 1], [], []>} : vector<8x8xbf16>, vector<8x384xbf16>, vector<8x384xf32> -> vector<8x384xf32>
    %213 = arith.addf %207, %212 : vector<8x384xf32>
    %c5_150 = arith.constant 5 : index
    %c0_151 = arith.constant 0 : index
    %c0_152 = arith.constant 0 : index
    %214 = vector.load %arg5[%c5_150, %c0_151, %c0_152] : memref<9x8x8xbf16, #tpu.memory_space<vmem>>, vector<1x8x8xbf16>
    %215 = vector.shape_cast %214 : vector<1x8x8xbf16> to vector<8x8xbf16>
    %c1_153 = arith.constant 1 : index
    %c0_154 = arith.constant 0 : index
    %c19_155 = arith.constant 19 : index
    %216 = vector.load %arg9[%c1_153, %c0_154, %c19_155] : memref<4x8x438xbf16, #tpu.memory_space<vmem>>, vector<1x8x384xbf16>
    %217 = vector.shape_cast %216 : vector<1x8x384xbf16> to vector<8x384xbf16>
    %cst_156 = arith.constant dense<0.000000e+00> : vector<8x384xf32>
    %218 = tpu.matmul %215, %217, %cst_156 {dimension_numbers = #tpu.dot_dimension_numbers<[1], [0], [0], [1], [0, 0, 1, 1], [], []>} : vector<8x8xbf16>, vector<8x384xbf16>, vector<8x384xf32> -> vector<8x384xf32>
    %219 = arith.addf %213, %218 : vector<8x384xf32>
    %c6_157 = arith.constant 6 : index
    %c0_158 = arith.constant 0 : index
    %c0_159 = arith.constant 0 : index
    %220 = vector.load %arg5[%c6_157, %c0_158, %c0_159] : memref<9x8x8xbf16, #tpu.memory_space<vmem>>, vector<1x8x8xbf16>
    %221 = vector.shape_cast %220 : vector<1x8x8xbf16> to vector<8x8xbf16>
    %c3_160 = arith.constant 3 : index
    %c0_161 = arith.constant 0 : index
    %c18_162 = arith.constant 18 : index
    %222 = vector.load %arg9[%c3_160, %c0_161, %c18_162] : memref<4x8x438xbf16, #tpu.memory_space<vmem>>, vector<1x8x384xbf16>
    %223 = vector.shape_cast %222 : vector<1x8x384xbf16> to vector<8x384xbf16>
    %cst_163 = arith.constant dense<0.000000e+00> : vector<8x384xf32>
    %224 = tpu.matmul %221, %223, %cst_163 {dimension_numbers = #tpu.dot_dimension_numbers<[1], [0], [0], [1], [0, 0, 1, 1], [], []>} : vector<8x8xbf16>, vector<8x384xbf16>, vector<8x384xf32> -> vector<8x384xf32>
    %225 = arith.addf %219, %224 : vector<8x384xf32>
    %c7_164 = arith.constant 7 : index
    %c0_165 = arith.constant 0 : index
    %c0_166 = arith.constant 0 : index
    %226 = vector.load %arg5[%c7_164, %c0_165, %c0_166] : memref<9x8x8xbf16, #tpu.memory_space<vmem>>, vector<1x8x8xbf16>
    %227 = vector.shape_cast %226 : vector<1x8x8xbf16> to vector<8x8xbf16>
    %c2_167 = arith.constant 2 : index
    %c0_168 = arith.constant 0 : index
    %c19_169 = arith.constant 19 : index
    %228 = vector.load %arg9[%c2_167, %c0_168, %c19_169] : memref<4x8x438xbf16, #tpu.memory_space<vmem>>, vector<1x8x384xbf16>
    %229 = vector.shape_cast %228 : vector<1x8x384xbf16> to vector<8x384xbf16>
    %cst_170 = arith.constant dense<0.000000e+00> : vector<8x384xf32>
    %230 = tpu.matmul %227, %229, %cst_170 {dimension_numbers = #tpu.dot_dimension_numbers<[1], [0], [0], [1], [0, 0, 1, 1], [], []>} : vector<8x8xbf16>, vector<8x384xbf16>, vector<8x384xf32> -> vector<8x384xf32>
    %231 = arith.addf %225, %230 : vector<8x384xf32>
    %c8_171 = arith.constant 8 : index
    %c0_172 = arith.constant 0 : index
    %c0_173 = arith.constant 0 : index
    %232 = vector.load %arg5[%c8_171, %c0_172, %c0_173] : memref<9x8x8xbf16, #tpu.memory_space<vmem>>, vector<1x8x8xbf16>
    %233 = vector.shape_cast %232 : vector<1x8x8xbf16> to vector<8x8xbf16>
    %c3_174 = arith.constant 3 : index
    %c0_175 = arith.constant 0 : index
    %c19_176 = arith.constant 19 : index
    %234 = vector.load %arg9[%c3_174, %c0_175, %c19_176] : memref<4x8x438xbf16, #tpu.memory_space<vmem>>, vector<1x8x384xbf16>
    %235 = vector.shape_cast %234 : vector<1x8x384xbf16> to vector<8x384xbf16>
    %cst_177 = arith.constant dense<0.000000e+00> : vector<8x384xf32>
    %236 = tpu.matmul %233, %235, %cst_177 {dimension_numbers = #tpu.dot_dimension_numbers<[1], [0], [0], [1], [0, 0, 1, 1], [], []>} : vector<8x8xbf16>, vector<8x384xbf16>, vector<8x384xf32> -> vector<8x384xf32>
    %237 = arith.addf %231, %236 : vector<8x384xf32>
    %238 = vector.broadcast %12 : vector<8x1xf32> to vector<8x384xf32>
    %239 = arith.addf %237, %238 : vector<8x384xf32>
    %240 = arith.addf %239, %182 : vector<8x384xf32>
    %c0_178 = arith.constant 0 : index
    %c0_179 = arith.constant 0 : index
    %c0_180 = arith.constant 0 : index
    %c0_181 = arith.constant 0 : index
    %241 = vector.load %arg8[%c0_178, %c0_179, %c0_180, %c0_181] : memref<1x4x8x384xf32, #tpu.memory_space<vmem>>, vector<1x1x8x384xf32>
    %242 = vector.shape_cast %241 : vector<1x1x8x384xf32> to vector<8x384xf32>
    %243 = vector.shape_cast %240 : vector<8x384xf32> to vector<1x1x8x384xf32>
    tpu.vector_store %arg8[%c0_178, %c0_179, %c0_180, %c0_181], %243 {strides = array<i32>} : memref<1x4x8x384xf32, #tpu.memory_space<vmem>>, vector<1x1x8x384xf32>,
    %cst_182 = arith.constant 0.000000e+00 : f32
    %244 = vector.broadcast %cst_182 : f32 to vector<8x384xf32>
    %c0_183 = arith.constant 0 : index
    %c0_184 = arith.constant 0 : index
    %c0_185 = arith.constant 0 : index
    %245 = vector.load %arg5[%c0_183, %c0_184, %c0_185] : memref<9x8x8xbf16, #tpu.memory_space<vmem>>, vector<1x8x8xbf16>
    %246 = vector.shape_cast %245 : vector<1x8x8xbf16> to vector<8x8xbf16>
    %c2_186 = arith.constant 2 : index
    %c0_187 = arith.constant 0 : index
    %c1_188 = arith.constant 1 : index
    %247 = vector.load %arg9[%c2_186, %c0_187, %c1_188] : memref<4x8x438xbf16, #tpu.memory_space<vmem>>, vector<1x8x384xbf16>
    %248 = vector.shape_cast %247 : vector<1x8x384xbf16> to vector<8x384xbf16>
    %cst_189 = arith.constant dense<0.000000e+00> : vector<8x384xf32>
    %249 = tpu.matmul %246, %248, %cst_189 {dimension_numbers = #tpu.dot_dimension_numbers<[1], [0], [0], [1], [0, 0, 1, 1], [], []>} : vector<8x8xbf16>, vector<8x384xbf16>, vector<8x384xf32> -> vector<8x384xf32>
    %250 = arith.addf %244, %249 : vector<8x384xf32>
    %c1_190 = arith.constant 1 : index
    %c0_191 = arith.constant 0 : index
    %c0_192 = arith.constant 0 : index
    %251 = vector.load %arg5[%c1_190, %c0_191, %c0_192] : memref<9x8x8xbf16, #tpu.memory_space<vmem>>, vector<1x8x8xbf16>
    %252 = vector.shape_cast %251 : vector<1x8x8xbf16> to vector<8x8xbf16>
    %c3_193 = arith.constant 3 : index
    %c0_194 = arith.constant 0 : index
    %c1_195 = arith.constant 1 : index
    %253 = vector.load %arg9[%c3_193, %c0_194, %c1_195] : memref<4x8x438xbf16, #tpu.memory_space<vmem>>, vector<1x8x384xbf16>
    %254 = vector.shape_cast %253 : vector<1x8x384xbf16> to vector<8x384xbf16>
    %cst_196 = arith.constant dense<0.000000e+00> : vector<8x384xf32>
    %255 = tpu.matmul %252, %254, %cst_196 {dimension_numbers = #tpu.dot_dimension_numbers<[1], [0], [0], [1], [0, 0, 1, 1], [], []>} : vector<8x8xbf16>, vector<8x384xbf16>, vector<8x384xf32> -> vector<8x384xf32>
    %256 = arith.addf %250, %255 : vector<8x384xf32>
    %c2_197 = arith.constant 2 : index
    %c0_198 = arith.constant 0 : index
    %c0_199 = arith.constant 0 : index
    %257 = vector.load %arg5[%c2_197, %c0_198, %c0_199] : memref<9x8x8xbf16, #tpu.memory_space<vmem>>, vector<1x8x8xbf16>
    %258 = vector.shape_cast %257 : vector<1x8x8xbf16> to vector<8x8xbf16>
    %c2_200 = arith.constant 2 : index
    %c0_201 = arith.constant 0 : index
    %c2_202 = arith.constant 2 : index
    %259 = vector.load %arg9[%c2_200, %c0_201, %c2_202] : memref<4x8x438xbf16, #tpu.memory_space<vmem>>, vector<1x8x384xbf16>
    %260 = vector.shape_cast %259 : vector<1x8x384xbf16> to vector<8x384xbf16>
    %cst_203 = arith.constant dense<0.000000e+00> : vector<8x384xf32>
    %261 = tpu.matmul %258, %260, %cst_203 {dimension_numbers = #tpu.dot_dimension_numbers<[1], [0], [0], [1], [0, 0, 1, 1], [], []>} : vector<8x8xbf16>, vector<8x384xbf16>, vector<8x384xf32> -> vector<8x384xf32>
    %262 = arith.addf %256, %261 : vector<8x384xf32>
    %c3_204 = arith.constant 3 : index
    %c0_205 = arith.constant 0 : index
    %c0_206 = arith.constant 0 : index
    %263 = vector.load %arg5[%c3_204, %c0_205, %c0_206] : memref<9x8x8xbf16, #tpu.memory_space<vmem>>, vector<1x8x8xbf16>
    %264 = vector.shape_cast %263 : vector<1x8x8xbf16> to vector<8x8xbf16>
    %c0_207 = arith.constant 0 : index
    %c0_208 = arith.constant 0 : index
    %c19_209 = arith.constant 19 : index
    %265 = vector.load %arg9[%c0_207, %c0_208, %c19_209] : memref<4x8x438xbf16, #tpu.memory_space<vmem>>, vector<1x8x384xbf16>
    %266 = vector.shape_cast %265 : vector<1x8x384xbf16> to vector<8x384xbf16>
    %cst_210 = arith.constant dense<0.000000e+00> : vector<8x384xf32>
    %267 = tpu.matmul %264, %266, %cst_210 {dimension_numbers = #tpu.dot_dimension_numbers<[1], [0], [0], [1], [0, 0, 1, 1], [], []>} : vector<8x8xbf16>, vector<8x384xbf16>, vector<8x384xf32> -> vector<8x384xf32>
    %268 = arith.addf %262, %267 : vector<8x384xf32>
    %c4_211 = arith.constant 4 : index
    %c0_212 = arith.constant 0 : index
    %c0_213 = arith.constant 0 : index
    %269 = vector.load %arg5[%c4_211, %c0_212, %c0_213] : memref<9x8x8xbf16, #tpu.memory_space<vmem>>, vector<1x8x8xbf16>
    %270 = vector.shape_cast %269 : vector<1x8x8xbf16> to vector<8x8xbf16>
    %c1_214 = arith.constant 1 : index
    %c0_215 = arith.constant 0 : index
    %c19_216 = arith.constant 19 : index
    %271 = vector.load %arg9[%c1_214, %c0_215, %c19_216] : memref<4x8x438xbf16, #tpu.memory_space<vmem>>, vector<1x8x384xbf16>
    %272 = vector.shape_cast %271 : vector<1x8x384xbf16> to vector<8x384xbf16>
    %cst_217 = arith.constant dense<0.000000e+00> : vector<8x384xf32>
    %273 = tpu.matmul %270, %272, %cst_217 {dimension_numbers = #tpu.dot_dimension_numbers<[1], [0], [0], [1], [0, 0, 1, 1], [], []>} : vector<8x8xbf16>, vector<8x384xbf16>, vector<8x384xf32> -> vector<8x384xf32>
    %274 = arith.addf %268, %273 : vector<8x384xf32>
    %c5_218 = arith.constant 5 : index
    %c0_219 = arith.constant 0 : index
    %c0_220 = arith.constant 0 : index
    %275 = vector.load %arg5[%c5_218, %c0_219, %c0_220] : memref<9x8x8xbf16, #tpu.memory_space<vmem>>, vector<1x8x8xbf16>
    %276 = vector.shape_cast %275 : vector<1x8x8xbf16> to vector<8x8xbf16>
    %c0_221 = arith.constant 0 : index
    %c0_222 = arith.constant 0 : index
    %c20 = arith.constant 20 : index
    %277 = vector.load %arg9[%c0_221, %c0_222, %c20] : memref<4x8x438xbf16, #tpu.memory_space<vmem>>, vector<1x8x384xbf16>
    %278 = vector.shape_cast %277 : vector<1x8x384xbf16> to vector<8x384xbf16>
    %cst_223 = arith.constant dense<0.000000e+00> : vector<8x384xf32>
    %279 = tpu.matmul %276, %278, %cst_223 {dimension_numbers = #tpu.dot_dimension_numbers<[1], [0], [0], [1], [0, 0, 1, 1], [], []>} : vector<8x8xbf16>, vector<8x384xbf16>, vector<8x384xf32> -> vector<8x384xf32>
    %280 = arith.addf %274, %279 : vector<8x384xf32>
    %c6_224 = arith.constant 6 : index
    %c0_225 = arith.constant 0 : index
    %c0_226 = arith.constant 0 : index
    %281 = vector.load %arg5[%c6_224, %c0_225, %c0_226] : memref<9x8x8xbf16, #tpu.memory_space<vmem>>, vector<1x8x8xbf16>
    %282 = vector.shape_cast %281 : vector<1x8x8xbf16> to vector<8x8xbf16>
    %c2_227 = arith.constant 2 : index
    %c0_228 = arith.constant 0 : index
    %c19_229 = arith.constant 19 : index
    %283 = vector.load %arg9[%c2_227, %c0_228, %c19_229] : memref<4x8x438xbf16, #tpu.memory_space<vmem>>, vector<1x8x384xbf16>
    %284 = vector.shape_cast %283 : vector<1x8x384xbf16> to vector<8x384xbf16>
    %cst_230 = arith.constant dense<0.000000e+00> : vector<8x384xf32>
    %285 = tpu.matmul %282, %284, %cst_230 {dimension_numbers = #tpu.dot_dimension_numbers<[1], [0], [0], [1], [0, 0, 1, 1], [], []>} : vector<8x8xbf16>, vector<8x384xbf16>, vector<8x384xf32> -> vector<8x384xf32>
    %286 = arith.addf %280, %285 : vector<8x384xf32>
    %c7_231 = arith.constant 7 : index
    %c0_232 = arith.constant 0 : index
    %c0_233 = arith.constant 0 : index
    %287 = vector.load %arg5[%c7_231, %c0_232, %c0_233] : memref<9x8x8xbf16, #tpu.memory_space<vmem>>, vector<1x8x8xbf16>
    %288 = vector.shape_cast %287 : vector<1x8x8xbf16> to vector<8x8xbf16>
    %c3_234 = arith.constant 3 : index
    %c0_235 = arith.constant 0 : index
    %c19_236 = arith.constant 19 : index
    %289 = vector.load %arg9[%c3_234, %c0_235, %c19_236] : memref<4x8x438xbf16, #tpu.memory_space<vmem>>, vector<1x8x384xbf16>
    %290 = vector.shape_cast %289 : vector<1x8x384xbf16> to vector<8x384xbf16>
    %cst_237 = arith.constant dense<0.000000e+00> : vector<8x384xf32>
    %291 = tpu.matmul %288, %290, %cst_237 {dimension_numbers = #tpu.dot_dimension_numbers<[1], [0], [0], [1], [0, 0, 1, 1], [], []>} : vector<8x8xbf16>, vector<8x384xbf16>, vector<8x384xf32> -> vector<8x384xf32>
    %292 = arith.addf %286, %291 : vector<8x384xf32>
    %c8_238 = arith.constant 8 : index
    %c0_239 = arith.constant 0 : index
    %c0_240 = arith.constant 0 : index
    %293 = vector.load %arg5[%c8_238, %c0_239, %c0_240] : memref<9x8x8xbf16, #tpu.memory_space<vmem>>, vector<1x8x8xbf16>
    %294 = vector.shape_cast %293 : vector<1x8x8xbf16> to vector<8x8xbf16>
    %c2_241 = arith.constant 2 : index
    %c0_242 = arith.constant 0 : index
    %c20_243 = arith.constant 20 : index
    %295 = vector.load %arg9[%c2_241, %c0_242, %c20_243] : memref<4x8x438xbf16, #tpu.memory_space<vmem>>, vector<1x8x384xbf16>
    %296 = vector.shape_cast %295 : vector<1x8x384xbf16> to vector<8x384xbf16>
    %cst_244 = arith.constant dense<0.000000e+00> : vector<8x384xf32>
    %297 = tpu.matmul %294, %296, %cst_244 {dimension_numbers = #tpu.dot_dimension_numbers<[1], [0], [0], [1], [0, 0, 1, 1], [], []>} : vector<8x8xbf16>, vector<8x384xbf16>, vector<8x384xf32> -> vector<8x384xf32>
    %298 = arith.addf %292, %297 : vector<8x384xf32>
    %299 = vector.broadcast %12 : vector<8x1xf32> to vector<8x384xf32>
    %300 = arith.addf %298, %299 : vector<8x384xf32>
    %301 = arith.addf %300, %182 : vector<8x384xf32>
    %c0_245 = arith.constant 0 : index
    %c1_246 = arith.constant 1 : index
    %c0_247 = arith.constant 0 : index
    %c0_248 = arith.constant 0 : index
    %302 = vector.load %arg8[%c0_245, %c1_246, %c0_247, %c0_248] : memref<1x4x8x384xf32, #tpu.memory_space<vmem>>, vector<1x1x8x384xf32>
    %303 = vector.shape_cast %302 : vector<1x1x8x384xf32> to vector<8x384xf32>
    %304 = vector.shape_cast %301 : vector<8x384xf32> to vector<1x1x8x384xf32>
    tpu.vector_store %arg8[%c0_245, %c1_246, %c0_247, %c0_248], %304 {strides = array<i32>} : memref<1x4x8x384xf32, #tpu.memory_space<vmem>>, vector<1x1x8x384xf32>,
    %cst_249 = arith.constant 0.000000e+00 : f32
    %305 = vector.broadcast %cst_249 : f32 to vector<8x384xf32>
    %c0_250 = arith.constant 0 : index
    %c0_251 = arith.constant 0 : index
    %c0_252 = arith.constant 0 : index
    %306 = vector.load %arg5[%c0_250, %c0_251, %c0_252] : memref<9x8x8xbf16, #tpu.memory_space<vmem>>, vector<1x8x8xbf16>
    %307 = vector.shape_cast %306 : vector<1x8x8xbf16> to vector<8x8xbf16>
    %c1_253 = arith.constant 1 : index
    %c0_254 = arith.constant 0 : index
    %c18_255 = arith.constant 18 : index
    %308 = vector.load %arg9[%c1_253, %c0_254, %c18_255] : memref<4x8x438xbf16, #tpu.memory_space<vmem>>, vector<1x8x384xbf16>
    %309 = vector.shape_cast %308 : vector<1x8x384xbf16> to vector<8x384xbf16>
    %cst_256 = arith.constant dense<0.000000e+00> : vector<8x384xf32>
    %310 = tpu.matmul %307, %309, %cst_256 {dimension_numbers = #tpu.dot_dimension_numbers<[1], [0], [0], [1], [0, 0, 1, 1], [], []>} : vector<8x8xbf16>, vector<8x384xbf16>, vector<8x384xf32> -> vector<8x384xf32>
    %311 = arith.addf %305, %310 : vector<8x384xf32>
    %c1_257 = arith.constant 1 : index
    %c0_258 = arith.constant 0 : index
    %c0_259 = arith.constant 0 : index
    %312 = vector.load %arg5[%c1_257, %c0_258, %c0_259] : memref<9x8x8xbf16, #tpu.memory_space<vmem>>, vector<1x8x8xbf16>
    %313 = vector.shape_cast %312 : vector<1x8x8xbf16> to vector<8x8xbf16>
    %c0_260 = arith.constant 0 : index
    %c0_261 = arith.constant 0 : index
    %c19_262 = arith.constant 19 : index
    %314 = vector.load %arg9[%c0_260, %c0_261, %c19_262] : memref<4x8x438xbf16, #tpu.memory_space<vmem>>, vector<1x8x384xbf16>
    %315 = vector.shape_cast %314 : vector<1x8x384xbf16> to vector<8x384xbf16>
    %cst_263 = arith.constant dense<0.000000e+00> : vector<8x384xf32>
    %316 = tpu.matmul %313, %315, %cst_263 {dimension_numbers = #tpu.dot_dimension_numbers<[1], [0], [0], [1], [0, 0, 1, 1], [], []>} : vector<8x8xbf16>, vector<8x384xbf16>, vector<8x384xf32> -> vector<8x384xf32>
    %317 = arith.addf %311, %316 : vector<8x384xf32>
    %c2_264 = arith.constant 2 : index
    %c0_265 = arith.constant 0 : index
    %c0_266 = arith.constant 0 : index
    %318 = vector.load %arg5[%c2_264, %c0_265, %c0_266] : memref<9x8x8xbf16, #tpu.memory_space<vmem>>, vector<1x8x8xbf16>
    %319 = vector.shape_cast %318 : vector<1x8x8xbf16> to vector<8x8xbf16>
    %c1_267 = arith.constant 1 : index
    %c0_268 = arith.constant 0 : index
    %c19_269 = arith.constant 19 : index
    %320 = vector.load %arg9[%c1_267, %c0_268, %c19_269] : memref<4x8x438xbf16, #tpu.memory_space<vmem>>, vector<1x8x384xbf16>
    %321 = vector.shape_cast %320 : vector<1x8x384xbf16> to vector<8x384xbf16>
    %cst_270 = arith.constant dense<0.000000e+00> : vector<8x384xf32>
    %322 = tpu.matmul %319, %321, %cst_270 {dimension_numbers = #tpu.dot_dimension_numbers<[1], [0], [0], [1], [0, 0, 1, 1], [], []>} : vector<8x8xbf16>, vector<8x384xbf16>, vector<8x384xf32> -> vector<8x384xf32>
    %323 = arith.addf %317, %322 : vector<8x384xf32>
    %c3_271 = arith.constant 3 : index
    %c0_272 = arith.constant 0 : index
    %c0_273 = arith.constant 0 : index
    %324 = vector.load %arg5[%c3_271, %c0_272, %c0_273] : memref<9x8x8xbf16, #tpu.memory_space<vmem>>, vector<1x8x8xbf16>
    %325 = vector.shape_cast %324 : vector<1x8x8xbf16> to vector<8x8xbf16>
    %c3_274 = arith.constant 3 : index
    %c0_275 = arith.constant 0 : index
    %c18_276 = arith.constant 18 : index
    %326 = vector.load %arg9[%c3_274, %c0_275, %c18_276] : memref<4x8x438xbf16, #tpu.memory_space<vmem>>, vector<1x8x384xbf16>
    %327 = vector.shape_cast %326 : vector<1x8x384xbf16> to vector<8x384xbf16>
    %cst_277 = arith.constant dense<0.000000e+00> : vector<8x384xf32>
    %328 = tpu.matmul %325, %327, %cst_277 {dimension_numbers = #tpu.dot_dimension_numbers<[1], [0], [0], [1], [0, 0, 1, 1], [], []>} : vector<8x8xbf16>, vector<8x384xbf16>, vector<8x384xf32> -> vector<8x384xf32>
    %329 = arith.addf %323, %328 : vector<8x384xf32>
    %c4_278 = arith.constant 4 : index
    %c0_279 = arith.constant 0 : index
    %c0_280 = arith.constant 0 : index
    %330 = vector.load %arg5[%c4_278, %c0_279, %c0_280] : memref<9x8x8xbf16, #tpu.memory_space<vmem>>, vector<1x8x8xbf16>
    %331 = vector.shape_cast %330 : vector<1x8x8xbf16> to vector<8x8xbf16>
    %c2_281 = arith.constant 2 : index
    %c0_282 = arith.constant 0 : index
    %c19_283 = arith.constant 19 : index
    %332 = vector.load %arg9[%c2_281, %c0_282, %c19_283] : memref<4x8x438xbf16, #tpu.memory_space<vmem>>, vector<1x8x384xbf16>
    %333 = vector.shape_cast %332 : vector<1x8x384xbf16> to vector<8x384xbf16>
    %cst_284 = arith.constant dense<0.000000e+00> : vector<8x384xf32>
    %334 = tpu.matmul %331, %333, %cst_284 {dimension_numbers = #tpu.dot_dimension_numbers<[1], [0], [0], [1], [0, 0, 1, 1], [], []>} : vector<8x8xbf16>, vector<8x384xbf16>, vector<8x384xf32> -> vector<8x384xf32>
    %335 = arith.addf %329, %334 : vector<8x384xf32>
    %c5_285 = arith.constant 5 : index
    %c0_286 = arith.constant 0 : index
    %c0_287 = arith.constant 0 : index
    %336 = vector.load %arg5[%c5_285, %c0_286, %c0_287] : memref<9x8x8xbf16, #tpu.memory_space<vmem>>, vector<1x8x8xbf16>
    %337 = vector.shape_cast %336 : vector<1x8x8xbf16> to vector<8x8xbf16>
    %c3_288 = arith.constant 3 : index
    %c0_289 = arith.constant 0 : index
    %c19_290 = arith.constant 19 : index
    %338 = vector.load %arg9[%c3_288, %c0_289, %c19_290] : memref<4x8x438xbf16, #tpu.memory_space<vmem>>, vector<1x8x384xbf16>
    %339 = vector.shape_cast %338 : vector<1x8x384xbf16> to vector<8x384xbf16>
    %cst_291 = arith.constant dense<0.000000e+00> : vector<8x384xf32>
    %340 = tpu.matmul %337, %339, %cst_291 {dimension_numbers = #tpu.dot_dimension_numbers<[1], [0], [0], [1], [0, 0, 1, 1], [], []>} : vector<8x8xbf16>, vector<8x384xbf16>, vector<8x384xf32> -> vector<8x384xf32>
    %341 = arith.addf %335, %340 : vector<8x384xf32>
    %c6_292 = arith.constant 6 : index
    %c0_293 = arith.constant 0 : index
    %c0_294 = arith.constant 0 : index
    %342 = vector.load %arg5[%c6_292, %c0_293, %c0_294] : memref<9x8x8xbf16, #tpu.memory_space<vmem>>, vector<1x8x8xbf16>
    %343 = vector.shape_cast %342 : vector<1x8x8xbf16> to vector<8x8xbf16>
    %c1_295 = arith.constant 1 : index
    %c0_296 = arith.constant 0 : index
    %c36 = arith.constant 36 : index
    %344 = vector.load %arg9[%c1_295, %c0_296, %c36] : memref<4x8x438xbf16, #tpu.memory_space<vmem>>, vector<1x8x384xbf16>
    %345 = vector.shape_cast %344 : vector<1x8x384xbf16> to vector<8x384xbf16>
    %cst_297 = arith.constant dense<0.000000e+00> : vector<8x384xf32>
    %346 = tpu.matmul %343, %345, %cst_297 {dimension_numbers = #tpu.dot_dimension_numbers<[1], [0], [0], [1], [0, 0, 1, 1], [], []>} : vector<8x8xbf16>, vector<8x384xbf16>, vector<8x384xf32> -> vector<8x384xf32>
    %347 = arith.addf %341, %346 : vector<8x384xf32>
    %c7_298 = arith.constant 7 : index
    %c0_299 = arith.constant 0 : index
    %c0_300 = arith.constant 0 : index
    %348 = vector.load %arg5[%c7_298, %c0_299, %c0_300] : memref<9x8x8xbf16, #tpu.memory_space<vmem>>, vector<1x8x8xbf16>
    %349 = vector.shape_cast %348 : vector<1x8x8xbf16> to vector<8x8xbf16>
    %c0_301 = arith.constant 0 : index
    %c0_302 = arith.constant 0 : index
    %c37 = arith.constant 37 : index
    %350 = vector.load %arg9[%c0_301, %c0_302, %c37] : memref<4x8x438xbf16, #tpu.memory_space<vmem>>, vector<1x8x384xbf16>
    %351 = vector.shape_cast %350 : vector<1x8x384xbf16> to vector<8x384xbf16>
    %cst_303 = arith.constant dense<0.000000e+00> : vector<8x384xf32>
    %352 = tpu.matmul %349, %351, %cst_303 {dimension_numbers = #tpu.dot_dimension_numbers<[1], [0], [0], [1], [0, 0, 1, 1], [], []>} : vector<8x8xbf16>, vector<8x384xbf16>, vector<8x384xf32> -> vector<8x384xf32>
    %353 = arith.addf %347, %352 : vector<8x384xf32>
    %c8_304 = arith.constant 8 : index
    %c0_305 = arith.constant 0 : index
    %c0_306 = arith.constant 0 : index
    %354 = vector.load %arg5[%c8_304, %c0_305, %c0_306] : memref<9x8x8xbf16, #tpu.memory_space<vmem>>, vector<1x8x8xbf16>
    %355 = vector.shape_cast %354 : vector<1x8x8xbf16> to vector<8x8xbf16>
    %c1_307 = arith.constant 1 : index
    %c0_308 = arith.constant 0 : index
    %c37_309 = arith.constant 37 : index
    %356 = vector.load %arg9[%c1_307, %c0_308, %c37_309] : memref<4x8x438xbf16, #tpu.memory_space<vmem>>, vector<1x8x384xbf16>
    %357 = vector.shape_cast %356 : vector<1x8x384xbf16> to vector<8x384xbf16>
    %cst_310 = arith.constant dense<0.000000e+00> : vector<8x384xf32>
    %358 = tpu.matmul %355, %357, %cst_310 {dimension_numbers = #tpu.dot_dimension_numbers<[1], [0], [0], [1], [0, 0, 1, 1], [], []>} : vector<8x8xbf16>, vector<8x384xbf16>, vector<8x384xf32> -> vector<8x384xf32>
    %359 = arith.addf %353, %358 : vector<8x384xf32>
    %360 = vector.broadcast %12 : vector<8x1xf32> to vector<8x384xf32>
    %361 = arith.addf %359, %360 : vector<8x384xf32>
    %362 = arith.addf %361, %182 : vector<8x384xf32>
    %c0_311 = arith.constant 0 : index
    %c2_312 = arith.constant 2 : index
    %c0_313 = arith.constant 0 : index
    %c0_314 = arith.constant 0 : index
    %363 = vector.load %arg8[%c0_311, %c2_312, %c0_313, %c0_314] : memref<1x4x8x384xf32, #tpu.memory_space<vmem>>, vector<1x1x8x384xf32>
    %364 = vector.shape_cast %363 : vector<1x1x8x384xf32> to vector<8x384xf32>
    %365 = vector.shape_cast %362 : vector<8x384xf32> to vector<1x1x8x384xf32>
    tpu.vector_store %arg8[%c0_311, %c2_312, %c0_313, %c0_314], %365 {strides = array<i32>} : memref<1x4x8x384xf32, #tpu.memory_space<vmem>>, vector<1x1x8x384xf32>,
    %cst_315 = arith.constant 0.000000e+00 : f32
    %366 = vector.broadcast %cst_315 : f32 to vector<8x384xf32>
    %c0_316 = arith.constant 0 : index
    %c0_317 = arith.constant 0 : index
    %c0_318 = arith.constant 0 : index
    %367 = vector.load %arg5[%c0_316, %c0_317, %c0_318] : memref<9x8x8xbf16, #tpu.memory_space<vmem>>, vector<1x8x8xbf16>
    %368 = vector.shape_cast %367 : vector<1x8x8xbf16> to vector<8x8xbf16>
    %c0_319 = arith.constant 0 : index
    %c0_320 = arith.constant 0 : index
    %c19_321 = arith.constant 19 : index
    %369 = vector.load %arg9[%c0_319, %c0_320, %c19_321] : memref<4x8x438xbf16, #tpu.memory_space<vmem>>, vector<1x8x384xbf16>
    %370 = vector.shape_cast %369 : vector<1x8x384xbf16> to vector<8x384xbf16>
    %cst_322 = arith.constant dense<0.000000e+00> : vector<8x384xf32>
    %371 = tpu.matmul %368, %370, %cst_322 {dimension_numbers = #tpu.dot_dimension_numbers<[1], [0], [0], [1], [0, 0, 1, 1], [], []>} : vector<8x8xbf16>, vector<8x384xbf16>, vector<8x384xf32> -> vector<8x384xf32>
    %372 = arith.addf %366, %371 : vector<8x384xf32>
    %c1_323 = arith.constant 1 : index
    %c0_324 = arith.constant 0 : index
    %c0_325 = arith.constant 0 : index
    %373 = vector.load %arg5[%c1_323, %c0_324, %c0_325] : memref<9x8x8xbf16, #tpu.memory_space<vmem>>, vector<1x8x8xbf16>
    %374 = vector.shape_cast %373 : vector<1x8x8xbf16> to vector<8x8xbf16>
    %c1_326 = arith.constant 1 : index
    %c0_327 = arith.constant 0 : index
    %c19_328 = arith.constant 19 : index
    %375 = vector.load %arg9[%c1_326, %c0_327, %c19_328] : memref<4x8x438xbf16, #tpu.memory_space<vmem>>, vector<1x8x384xbf16>
    %376 = vector.shape_cast %375 : vector<1x8x384xbf16> to vector<8x384xbf16>
    %cst_329 = arith.constant dense<0.000000e+00> : vector<8x384xf32>
    %377 = tpu.matmul %374, %376, %cst_329 {dimension_numbers = #tpu.dot_dimension_numbers<[1], [0], [0], [1], [0, 0, 1, 1], [], []>} : vector<8x8xbf16>, vector<8x384xbf16>, vector<8x384xf32> -> vector<8x384xf32>
    %378 = arith.addf %372, %377 : vector<8x384xf32>
    %c2_330 = arith.constant 2 : index
    %c0_331 = arith.constant 0 : index
    %c0_332 = arith.constant 0 : index
    %379 = vector.load %arg5[%c2_330, %c0_331, %c0_332] : memref<9x8x8xbf16, #tpu.memory_space<vmem>>, vector<1x8x8xbf16>
    %380 = vector.shape_cast %379 : vector<1x8x8xbf16> to vector<8x8xbf16>
    %c0_333 = arith.constant 0 : index
    %c0_334 = arith.constant 0 : index
    %c20_335 = arith.constant 20 : index
    %381 = vector.load %arg9[%c0_333, %c0_334, %c20_335] : memref<4x8x438xbf16, #tpu.memory_space<vmem>>, vector<1x8x384xbf16>
    %382 = vector.shape_cast %381 : vector<1x8x384xbf16> to vector<8x384xbf16>
    %cst_336 = arith.constant dense<0.000000e+00> : vector<8x384xf32>
    %383 = tpu.matmul %380, %382, %cst_336 {dimension_numbers = #tpu.dot_dimension_numbers<[1], [0], [0], [1], [0, 0, 1, 1], [], []>} : vector<8x8xbf16>, vector<8x384xbf16>, vector<8x384xf32> -> vector<8x384xf32>
    %384 = arith.addf %378, %383 : vector<8x384xf32>
    %c3_337 = arith.constant 3 : index
    %c0_338 = arith.constant 0 : index
    %c0_339 = arith.constant 0 : index
    %385 = vector.load %arg5[%c3_337, %c0_338, %c0_339] : memref<9x8x8xbf16, #tpu.memory_space<vmem>>, vector<1x8x8xbf16>
    %386 = vector.shape_cast %385 : vector<1x8x8xbf16> to vector<8x8xbf16>
    %c2_340 = arith.constant 2 : index
    %c0_341 = arith.constant 0 : index
    %c19_342 = arith.constant 19 : index
    %387 = vector.load %arg9[%c2_340, %c0_341, %c19_342] : memref<4x8x438xbf16, #tpu.memory_space<vmem>>, vector<1x8x384xbf16>
    %388 = vector.shape_cast %387 : vector<1x8x384xbf16> to vector<8x384xbf16>
    %cst_343 = arith.constant dense<0.000000e+00> : vector<8x384xf32>
    %389 = tpu.matmul %386, %388, %cst_343 {dimension_numbers = #tpu.dot_dimension_numbers<[1], [0], [0], [1], [0, 0, 1, 1], [], []>} : vector<8x8xbf16>, vector<8x384xbf16>, vector<8x384xf32> -> vector<8x384xf32>
    %390 = arith.addf %384, %389 : vector<8x384xf32>
    %c4_344 = arith.constant 4 : index
    %c0_345 = arith.constant 0 : index
    %c0_346 = arith.constant 0 : index
    %391 = vector.load %arg5[%c4_344, %c0_345, %c0_346] : memref<9x8x8xbf16, #tpu.memory_space<vmem>>, vector<1x8x8xbf16>
    %392 = vector.shape_cast %391 : vector<1x8x8xbf16> to vector<8x8xbf16>
    %c3_347 = arith.constant 3 : index
    %c0_348 = arith.constant 0 : index
    %c19_349 = arith.constant 19 : index
    %393 = vector.load %arg9[%c3_347, %c0_348, %c19_349] : memref<4x8x438xbf16, #tpu.memory_space<vmem>>, vector<1x8x384xbf16>
    %394 = vector.shape_cast %393 : vector<1x8x384xbf16> to vector<8x384xbf16>
    %cst_350 = arith.constant dense<0.000000e+00> : vector<8x384xf32>
    %395 = tpu.matmul %392, %394, %cst_350 {dimension_numbers = #tpu.dot_dimension_numbers<[1], [0], [0], [1], [0, 0, 1, 1], [], []>} : vector<8x8xbf16>, vector<8x384xbf16>, vector<8x384xf32> -> vector<8x384xf32>
    %396 = arith.addf %390, %395 : vector<8x384xf32>
    %c5_351 = arith.constant 5 : index
    %c0_352 = arith.constant 0 : index
    %c0_353 = arith.constant 0 : index
    %397 = vector.load %arg5[%c5_351, %c0_352, %c0_353] : memref<9x8x8xbf16, #tpu.memory_space<vmem>>, vector<1x8x8xbf16>
    %398 = vector.shape_cast %397 : vector<1x8x8xbf16> to vector<8x8xbf16>
    %c2_354 = arith.constant 2 : index
    %c0_355 = arith.constant 0 : index
    %c20_356 = arith.constant 20 : index
    %399 = vector.load %arg9[%c2_354, %c0_355, %c20_356] : memref<4x8x438xbf16, #tpu.memory_space<vmem>>, vector<1x8x384xbf16>
    %400 = vector.shape_cast %399 : vector<1x8x384xbf16> to vector<8x384xbf16>
    %cst_357 = arith.constant dense<0.000000e+00> : vector<8x384xf32>
    %401 = tpu.matmul %398, %400, %cst_357 {dimension_numbers = #tpu.dot_dimension_numbers<[1], [0], [0], [1], [0, 0, 1, 1], [], []>} : vector<8x8xbf16>, vector<8x384xbf16>, vector<8x384xf32> -> vector<8x384xf32>
    %402 = arith.addf %396, %401 : vector<8x384xf32>
    %c6_358 = arith.constant 6 : index
    %c0_359 = arith.constant 0 : index
    %c0_360 = arith.constant 0 : index
    %403 = vector.load %arg5[%c6_358, %c0_359, %c0_360] : memref<9x8x8xbf16, #tpu.memory_space<vmem>>, vector<1x8x8xbf16>
    %404 = vector.shape_cast %403 : vector<1x8x8xbf16> to vector<8x8xbf16>
    %c0_361 = arith.constant 0 : index
    %c0_362 = arith.constant 0 : index
    %c37_363 = arith.constant 37 : index
    %405 = vector.load %arg9[%c0_361, %c0_362, %c37_363] : memref<4x8x438xbf16, #tpu.memory_space<vmem>>, vector<1x8x384xbf16>
    %406 = vector.shape_cast %405 : vector<1x8x384xbf16> to vector<8x384xbf16>
    %cst_364 = arith.constant dense<0.000000e+00> : vector<8x384xf32>
    %407 = tpu.matmul %404, %406, %cst_364 {dimension_numbers = #tpu.dot_dimension_numbers<[1], [0], [0], [1], [0, 0, 1, 1], [], []>} : vector<8x8xbf16>, vector<8x384xbf16>, vector<8x384xf32> -> vector<8x384xf32>
    %408 = arith.addf %402, %407 : vector<8x384xf32>
    %c7_365 = arith.constant 7 : index
    %c0_366 = arith.constant 0 : index
    %c0_367 = arith.constant 0 : index
    %409 = vector.load %arg5[%c7_365, %c0_366, %c0_367] : memref<9x8x8xbf16, #tpu.memory_space<vmem>>, vector<1x8x8xbf16>
    %410 = vector.shape_cast %409 : vector<1x8x8xbf16> to vector<8x8xbf16>
    %c1_368 = arith.constant 1 : index
    %c0_369 = arith.constant 0 : index
    %c37_370 = arith.constant 37 : index
    %411 = vector.load %arg9[%c1_368, %c0_369, %c37_370] : memref<4x8x438xbf16, #tpu.memory_space<vmem>>, vector<1x8x384xbf16>
    %412 = vector.shape_cast %411 : vector<1x8x384xbf16> to vector<8x384xbf16>
    %cst_371 = arith.constant dense<0.000000e+00> : vector<8x384xf32>
    %413 = tpu.matmul %410, %412, %cst_371 {dimension_numbers = #tpu.dot_dimension_numbers<[1], [0], [0], [1], [0, 0, 1, 1], [], []>} : vector<8x8xbf16>, vector<8x384xbf16>, vector<8x384xf32> -> vector<8x384xf32>
    %414 = arith.addf %408, %413 : vector<8x384xf32>
    %c8_372 = arith.constant 8 : index
    %c0_373 = arith.constant 0 : index
    %c0_374 = arith.constant 0 : index
    %415 = vector.load %arg5[%c8_372, %c0_373, %c0_374] : memref<9x8x8xbf16, #tpu.memory_space<vmem>>, vector<1x8x8xbf16>
    %416 = vector.shape_cast %415 : vector<1x8x8xbf16> to vector<8x8xbf16>
    %c0_375 = arith.constant 0 : index
    %c0_376 = arith.constant 0 : index
    %c38 = arith.constant 38 : index
    %417 = vector.load %arg9[%c0_375, %c0_376, %c38] : memref<4x8x438xbf16, #tpu.memory_space<vmem>>, vector<1x8x384xbf16>
    %418 = vector.shape_cast %417 : vector<1x8x384xbf16> to vector<8x384xbf16>
    %cst_377 = arith.constant dense<0.000000e+00> : vector<8x384xf32>
    %419 = tpu.matmul %416, %418, %cst_377 {dimension_numbers = #tpu.dot_dimension_numbers<[1], [0], [0], [1], [0, 0, 1, 1], [], []>} : vector<8x8xbf16>, vector<8x384xbf16>, vector<8x384xf32> -> vector<8x384xf32>
    %420 = arith.addf %414, %419 : vector<8x384xf32>
    %421 = vector.broadcast %12 : vector<8x1xf32> to vector<8x384xf32>
    %422 = arith.addf %420, %421 : vector<8x384xf32>
    %423 = arith.addf %422, %182 : vector<8x384xf32>
    %c0_378 = arith.constant 0 : index
    %c3_379 = arith.constant 3 : index
    %c0_380 = arith.constant 0 : index
    %c0_381 = arith.constant 0 : index
    %424 = vector.load %arg8[%c0_378, %c3_379, %c0_380, %c0_381] : memref<1x4x8x384xf32, #tpu.memory_space<vmem>>, vector<1x1x8x384xf32>
    %425 = vector.shape_cast %424 : vector<1x1x8x384xf32> to vector<8x384xf32>
    %426 = vector.shape_cast %423 : vector<8x384xf32> to vector<1x1x8x384xf32>
    tpu.vector_store %arg8[%c0_378, %c3_379, %c0_380, %c0_381], %426 {strides = array<i32>} : memref<1x4x8x384xf32, #tpu.memory_space<vmem>>, vector<1x1x8x384xf32>,
    return
  }
  func.func @transform_0(%arg0: i32) -> (i32, i32, i32) {
    %c0_i32 = arith.constant 0 : i32
    %c0_i32_0 = arith.constant 0 : i32
    %c0_i32_1 = arith.constant 0 : i32
    return %arg0, %c0_i32, %c0_i32_0 : i32, i32, i32
  }
  func.func @transform_1(%arg0: i32) -> (i32, i32) {
    %c0_i32 = arith.constant 0 : i32
    %c0_i32_0 = arith.constant 0 : i32
    %c0_i32_1 = arith.constant 0 : i32
    return %c0_i32, %c0_i32_0 : i32, i32
  }
  func.func @transform_2(%arg0: i32) -> (i32, i32, i32) {
    %c0_i32 = arith.constant 0 : i32
    %c0_i32_0 = arith.constant 0 : i32
    %c0_i32_1 = arith.constant 0 : i32
    %c0_i32_2 = arith.constant 0 : i32
    return %c0_i32, %c0_i32_0, %c0_i32_1 : i32, i32, i32
  }
  func.func @transform_3(%arg0: i32) -> (i32, i32) {
    %c0_i32 = arith.constant 0 : i32
    %c0_i32_0 = arith.constant 0 : i32
    %c0_i32_1 = arith.constant 0 : i32
    return %c0_i32, %c0_i32_0 : i32, i32
  }
  func.func @transform_4(%arg0: i32) -> (i32, i32, i32) {
    %c0_i32 = arith.constant 0 : i32
    %c0_i32_0 = arith.constant 0 : i32
    %c0_i32_1 = arith.constant 0 : i32
    %c0_i32_2 = arith.constant 0 : i32
    return %c0_i32, %c0_i32_0, %c0_i32_1 : i32, i32, i32
  }
  func.func @transform_5(%arg0: i32) -> (i32, i32) {
    %c0_i32 = arith.constant 0 : i32
    %c0_i32_0 = arith.constant 0 : i32
    %c0_i32_1 = arith.constant 0 : i32
    return %c0_i32, %c0_i32_0 : i32, i32
  }
  func.func @transform_6(%arg0: i32) -> (i32, i32) {
    %c0_i32 = arith.constant 0 : i32
    %c0_i32_0 = arith.constant 0 : i32
    %c0_i32_1 = arith.constant 0 : i32
    return %c0_i32, %c0_i32_0 : i32, i32
  }
  func.func @transform_7(%arg0: i32) -> (i32, i32, i32, i32) {
    %c0_i32 = arith.constant 0 : i32
    %c0_i32_0 = arith.constant 0 : i32
    %c0_i32_1 = arith.constant 0 : i32
    %c0_i32_2 = arith.constant 0 : i32
    return %arg0, %c0_i32, %c0_i32_0, %c0_i32_1 : i32, i32, i32, i32
  }
}

</mosaic_0001>

<llo_original>
// kernel: tpu_custom_call.1
$region0: #{tpu_custom_call.1}
  #allocation0 [shape = 'u32[]', space=smem, size = 0x4, offset = 0x4, fixed_abs, tag = 'smem constant byte address 0x4 - core index']
  #allocation1 [shape = 'u32[144,128]{1,0:T(1,128)}', space=vmem, size = 0x12000, scoped, tag = 'internal scratch']
  #allocation2 [shape = 'bf16[4,8,438]{2,1,0:T(8,128)(2,1)}', space=vmem, size = 0x8000, scoped, tag = 'scratch operand']
  %s0 = inlined_call_operand.vmem [shape: f32[2,8,438], index: 0, kind: input, shape index: {}]
  %s1 = inlined_call_operand.vmem [shape: f32[1,384], index: 1, kind: input, shape index: {}]
  %s2 = inlined_call_operand.vmem [shape: bf16[16,8,8], index: 2, kind: input, shape index: {}]
  %s3 = inlined_call_operand.vmem [shape: f32[8,1], index: 3, kind: input, shape index: {}]
  %s4 = inlined_call_operand.vmem [shape: bf16[9,8,8], index: 4, kind: input, shape index: {}]
  %s5 = inlined_call_operand.vmem [shape: f32[8,1], index: 5, kind: input, shape index: {}]
  %s6 = inlined_call_operand.vmem [shape: bf16[8,8], index: 6, kind: input, shape index: {}]
  %s7 = inlined_call_operand.hbm [shape: f32[2,4,8,384], index: 7, kind: output, shape index: {}]
  %s8 = sld [smem:[#allocation0]]
  $region61: #{tpu_custom_call.1} parent=0
    _
  %s10 = ssub.s32 1, %s8
  %s11 = scalar_select 0, %s10, %s8
  $region1: #{tpu_custom_call.1} parent=0
    #allocation3 [shape = 'u8[98304]{0}', space=vmem, size = 0x18000, scoped, tag = 'output window, operand 0']
    #allocation4 [shape = 's32[2]{0}', space=sflag, size = 0x8, scoped, tag = 'scoped memory for tpu_custom_call.1']
    %12 = vsyncpa [#allocation4], 0
    %s13 = scalar_lea.sflag [#allocation4], 1
    %14 = vsyncpa %s13, 0
    loop: start=0, step=1, limit=4
    $region2: #{tpu_custom_call.1} parent=1 // loop_pre_header
      _
    $region3: #{tpu_custom_call.1} parent=1 // loop_header
      %s16 = sphi 0, %s20
      %p17 = scmp.ge.s32.totalorder %s16, 4
      %s26 = sphi 0, %s28
      %s29 = sphi 0, %s26
      %s30 = sphi 0, %s29
      %s46 = sphi 0, %s30
      %s50 = sphi 0, %s50
      %s52 = sphi 0, %s50
      %s53 = sphi 0, %s52
      %s67 = sphi 0, %s53
      %s71 = sphi 0, %s71
      %s73 = sphi 0, %s71
      %s74 = sphi 0, %s73
      %s88 = sphi 0, %s74
      %s92 = sphi 0, %s92
      %s94 = sphi 0, %s92
      %s95 = sphi 0, %s94
      %s109 = sphi 0, %s95
      %s113 = sphi 0, %s113
      %s115 = sphi 0, %s113
      %s116 = sphi 0, %s115
      %s130 = sphi 0, %s116
      %s134 = sphi 0, %s134
      %s136 = sphi 0, %s134
      %s137 = sphi 0, %s136
      %s151 = sphi 0, %s137
      %s155 = sphi 0, %s155
      %s157 = sphi 0, %s155
      %s158 = sphi 0, %s157
      %s172 = sphi 0, %s158
      %s178 = sphi 0, %s180
      %s181 = sphi 0, %s178
      %s182 = sphi 0, %s181
      %s198 = sphi 0, %s182
    $region4: #{tpu_custom_call.1} parent=1 // loop_header_branch
      %19 = sbr.rel (%p17) target = $region8
    $region5: #{tpu_custom_call.1} parent=1 // loop_body
      %s21 = ssub.s32 %s16, 1
      %s22 = ssub.s32 %s16, 2
      %s23 = sadd.s32 %s16, 1
      %s24 = ssub.s32 %s16, %s23
      %p25 = scmp.eq.s32.totalorder %s24, 0
      %s27 = sadd.s32 %s26, 1
      %s28 = scalar_select %p25, %s26, %s27
      %p31 = pneg %p25
      %p32 = scmp.eq.s32.totalorder %s16, 1
      %p33 = por %p31, %p32
      %p34 = scmp.ne.s32.totalorder %s26, %s29
      %p35 = scmp.eq.s32.totalorder %s16, 0
      %p36 = por %p34, %p35
      %p37 = scmp.ne.s32.totalorder %s26, %s29
      %p38 = scmp.eq.s32.totalorder %s21, 1
      %p39 = por %p37, %p38
      %p40 = scmp.ne.s32.totalorder %s29, %s30
      %p41 = scmp.eq.s32.totalorder %s21, 0
      %p42 = por %p40, %p41
      %p43 = scmp.ne.s32.totalorder %s29, %s30
      %p44 = scmp.eq.s32.totalorder %s22, 1
      %p45 = por %p43, %p44
      %p47 = scmp.ne.s32.totalorder %s30, %s46
      %p48 = scmp.eq.s32.totalorder %s22, 0
      %p49 = por %p47, %p48
      %s51 = sadd.s32 %s50, 1
      %p54 = scmp.eq.s32.totalorder %s16, 1
      %p55 = scmp.ne.s32.totalorder %s50, %s52
      %p56 = scmp.eq.s32.totalorder %s16, 0
      %p57 = por %p55, %p56
      %p58 = scmp.ne.s32.totalorder %s50, %s52
      %p59 = scmp.eq.s32.totalorder %s21, 1
      %p60 = por %p58, %p59
      %p61 = scmp.ne.s32.totalorder %s52, %s53
      %p62 = scmp.eq.s32.totalorder %s21, 0
      %p63 = por %p61, %p62
      %p64 = scmp.ne.s32.totalorder %s52, %s53
      %p65 = scmp.eq.s32.totalorder %s22, 1
      %p66 = por %p64, %p65
      %p68 = scmp.ne.s32.totalorder %s53, %s67
      %p69 = scmp.eq.s32.totalorder %s22, 0
      %p70 = por %p68, %p69
      %s72 = sadd.s32 %s71, 1
      %p75 = scmp.eq.s32.totalorder %s16, 1
      %p76 = scmp.ne.s32.totalorder %s71, %s73
      %p77 = scmp.eq.s32.totalorder %s16, 0
      %p78 = por %p76, %p77
      %p79 = scmp.ne.s32.totalorder %s71, %s73
      %p80 = scmp.eq.s32.totalorder %s21, 1
      %p81 = por %p79, %p80
      %p82 = scmp.ne.s32.totalorder %s73, %s74
      %p83 = scmp.eq.s32.totalorder %s21, 0
      %p84 = por %p82, %p83
      %p85 = scmp.ne.s32.totalorder %s73, %s74
      %p86 = scmp.eq.s32.totalorder %s22, 1
      %p87 = por %p85, %p86
      %p89 = scmp.ne.s32.totalorder %s74, %s88
      %p90 = scmp.eq.s32.totalorder %s22, 0
      %p91 = por %p89, %p90
      %s93 = sadd.s32 %s92, 1
      %p96 = scmp.eq.s32.totalorder %s16, 1
      %p97 = scmp.ne.s32.totalorder %s92, %s94
      %p98 = scmp.eq.s32.totalorder %s16, 0
      %p99 = por %p97, %p98
      %p100 = scmp.ne.s32.totalorder %s92, %s94
      %p101 = scmp.eq.s32.totalorder %s21, 1
      %p102 = por %p100, %p101
      %p103 = scmp.ne.s32.totalorder %s94, %s95
      %p104 = scmp.eq.s32.totalorder %s21, 0
      %p105 = por %p103, %p104
      %p106 = scmp.ne.s32.totalorder %s94, %s95
      %p107 = scmp.eq.s32.totalorder %s22, 1
      %p108 = por %p106, %p107
      %p110 = scmp.ne.s32.totalorder %s95, %s109
      %p111 = scmp.eq.s32.totalorder %s22, 0
      %p112 = por %p110, %p111
      %s114 = sadd.s32 %s113, 1
      %p117 = scmp.eq.s32.totalorder %s16, 1
      %p118 = scmp.ne.s32.totalorder %s113, %s115
      %p119 = scmp.eq.s32.totalorder %s16, 0
      %p120 = por %p118, %p119
      %p121 = scmp.ne.s32.totalorder %s113, %s115
      %p122 = scmp.eq.s32.totalorder %s21, 1
      %p123 = por %p121, %p122
      %p124 = scmp.ne.s32.totalorder %s115, %s116
      %p125 = scmp.eq.s32.totalorder %s21, 0
      %p126 = por %p124, %p125
      %p127 = scmp.ne.s32.totalorder %s115, %s116
      %p128 = scmp.eq.s32.totalorder %s22, 1
      %p129 = por %p127, %p128
      %p131 = scmp.ne.s32.totalorder %s116, %s130
      %p132 = scmp.eq.s32.totalorder %s22, 0
      %p133 = por %p131, %p132
      %s135 = sadd.s32 %s134, 1
      %p138 = scmp.eq.s32.totalorder %s16, 1
      %p139 = scmp.ne.s32.totalorder %s134, %s136
      %p140 = scmp.eq.s32.totalorder %s16, 0
      %p141 = por %p139, %p140
      %p142 = scmp.ne.s32.totalorder %s134, %s136
      %p143 = scmp.eq.s32.totalorder %s21, 1
      %p144 = por %p142, %p143
      %p145 = scmp.ne.s32.totalorder %s136, %s137
      %p146 = scmp.eq.s32.totalorder %s21, 0
      %p147 = por %p145, %p146
      %p148 = scmp.ne.s32.totalorder %s136, %s137
      %p149 = scmp.eq.s32.totalorder %s22, 1
      %p150 = por %p148, %p149
      %p152 = scmp.ne.s32.totalorder %s137, %s151
      %p153 = scmp.eq.s32.totalorder %s22, 0
      %p154 = por %p152, %p153
      %s156 = sadd.s32 %s155, 1
      %p159 = scmp.eq.s32.totalorder %s16, 1
      %p160 = scmp.ne.s32.totalorder %s155, %s157
      %p161 = scmp.eq.s32.totalorder %s16, 0
      %p162 = por %p160, %p161
      %p163 = scmp.ne.s32.totalorder %s155, %s157
      %p164 = scmp.eq.s32.totalorder %s21, 1
      %p165 = por %p163, %p164
      %p166 = scmp.ne.s32.totalorder %s157, %s158
      %p167 = scmp.eq.s32.totalorder %s21, 0
      %p168 = por %p166, %p167
      %p169 = scmp.ne.s32.totalorder %s157, %s158
      %p170 = scmp.eq.s32.totalorder %s22, 1
      %p171 = por %p169, %p170
      %p173 = scmp.ne.s32.totalorder %s158, %s172
      %p174 = scmp.eq.s32.totalorder %s22, 0
      %p175 = por %p173, %p174
      %s176 = ssub.s32 %s16, %s23
      %p177 = scmp.eq.s32.totalorder %s176, 0
      %s179 = sadd.s32 %s178, 1
      %s180 = scalar_select %p177, %s178, %s179
      %p183 = pneg %p177
      %p184 = scmp.eq.s32.totalorder %s16, 1
      %p185 = por %p183, %p184
      %p186 = scmp.ne.s32.totalorder %s178, %s181
      %p187 = scmp.eq.s32.totalorder %s16, 0
      %p188 = por %p186, %p187
      %p189 = scmp.ne.s32.totalorder %s178, %s181
      %p190 = scmp.eq.s32.totalorder %s21, 1
      %p191 = por %p189, %p190
      %p192 = scmp.ne.s32.totalorder %s181, %s182
      %p193 = scmp.eq.s32.totalorder %s21, 0
      %p194 = por %p192, %p193
      %p195 = scmp.ne.s32.totalorder %s181, %s182
      %p196 = scmp.eq.s32.totalorder %s22, 1
      %p197 = por %p195, %p196
      %p199 = scmp.ne.s32.totalorder %s182, %s198
      %p200 = scmp.eq.s32.totalorder %s22, 0
      %p201 = por %p199, %p200
      %p202 = scmp.le.s32.totalorder 1, %s16
      %p203 = scmp.lt.s32.totalorder %s16, 3
      %p204 = pnand %p202, %p203
      %p205 = pneg %p204
      // Predicated region
      $region9: #{tpu_custom_call.1} parent=5 // pred_check
        _
      $region10: #{tpu_custom_call.1} parent=5 // pred_check_branch
        %207 = sbr.rel (%p204) target = $region12
      $region11: #{tpu_custom_call.1} parent=5 // pred_region
        %s208 = ssub.s32 %s16, 1
        // Predicated region
        $region13: #{tpu_custom_call.1} parent=11 // pred_check
          %p209 = pneg %p63
        $region14: #{tpu_custom_call.1} parent=11 // pred_check_branch
          %211 = sbr.rel (%p209) target = $region16
        $region15: #{tpu_custom_call.1} parent=11 // pred_region
          _
        $region16: #{tpu_custom_call.1} parent=11 // pred_fallthru
          _
        // Predicated region
        $region17: #{tpu_custom_call.1} parent=11 // pred_check
          %p212 = pneg %p84
        $region18: #{tpu_custom_call.1} parent=11 // pred_check_branch
          %214 = sbr.rel (%p212) target = $region20
        $region19: #{tpu_custom_call.1} parent=11 // pred_region
          _
        $region20: #{tpu_custom_call.1} parent=11 // pred_fallthru
          _
        // Predicated region
        $region21: #{tpu_custom_call.1} parent=11 // pred_check
          %p215 = pneg %p105
        $region22: #{tpu_custom_call.1} parent=11 // pred_check_branch
          %217 = sbr.rel (%p215) target = $region24
        $region23: #{tpu_custom_call.1} parent=11 // pred_region
          _
        $region24: #{tpu_custom_call.1} parent=11 // pred_fallthru
          _
        // Predicated region
        $region25: #{tpu_custom_call.1} parent=11 // pred_check
          %p218 = pneg %p126
        $region26: #{tpu_custom_call.1} parent=11 // pred_check_branch
          %220 = sbr.rel (%p218) target = $region28
        $region27: #{tpu_custom_call.1} parent=11 // pred_region
          _
        $region28: #{tpu_custom_call.1} parent=11 // pred_fallthru
          _
        // Predicated region
        $region29: #{tpu_custom_call.1} parent=11 // pred_check
          %p221 = pneg %p147
        $region30: #{tpu_custom_call.1} parent=11 // pred_check_branch
          %223 = sbr.rel (%p221) target = $region32
        $region31: #{tpu_custom_call.1} parent=11 // pred_region
          _
        $region32: #{tpu_custom_call.1} parent=11 // pred_fallthru
          _
        // Predicated region
        $region33: #{tpu_custom_call.1} parent=11 // pred_check
          %p224 = pneg %p168
        $region34: #{tpu_custom_call.1} parent=11 // pred_check_branch
          %226 = sbr.rel (%p224) target = $region36
        $region35: #{tpu_custom_call.1} parent=11 // pred_region
          _
        $region36: #{tpu_custom_call.1} parent=11 // pred_fallthru
          _
      $region12: #{tpu_custom_call.1} parent=5 // pred_fallthru
        _
      %p227 = scmp.lt.s32.totalorder %s16, 2
      // Predicated region
      $region37: #{tpu_custom_call.1} parent=5 // pred_check
        %p228 = pneg %p227
      $region38: #{tpu_custom_call.1} parent=5 // pred_check_branch
        %230 = sbr.rel (%p228) target = $region40
      $region39: #{tpu_custom_call.1} parent=5 // pred_region
        // Predicated region
        $region41: #{tpu_custom_call.1} parent=39 // pred_check
          %p231 = pneg %p36
        $region42: #{tpu_custom_call.1} parent=39 // pred_check_branch
          %233 = sbr.rel (%p231) target = $region44
        $region43: #{tpu_custom_call.1} parent=39 // pred_region
          %p234 = scmp.lt.s32.totalorder %s16, 1
          %s235 = scalar_select %p234, %s16, 1
          %s236 = smul.addr %s235, 4
          %s237 = smul.addr %s236, 8
          %s238 = scalar_lea.vmem %s0, %s237
        $region44: #{tpu_custom_call.1} parent=39 // pred_fallthru
          _
      $region40: #{tpu_custom_call.1} parent=5 // pred_fallthru
        _
      %p239 = scmp.le.s32.totalorder 1, %s16
      %p240 = scmp.lt.s32.totalorder %s16, 3
      %p241 = pnand %p239, %p240
      %p242 = pneg %p241
      // Predicated region
      $region45: #{tpu_custom_call.1} parent=5 // pred_check
        _
      $region46: #{tpu_custom_call.1} parent=5 // pred_check_branch
        %244 = sbr.rel (%p241) target = $region48
      $region47: #{tpu_custom_call.1} parent=5 // pred_region
        %s245 = ssub.s32 %s16, 1
        %p246 = scmp.lt.s32.totalorder %s21, 1
        %s247 = scalar_select %p246, %s21, 1
        %s248 = smul.addr %s247, 4
        %s249 = smul.addr %s248, 8
        %s250 = scalar_lea.vmem %s0, %s249
        %p251 = pneg %p42
        %p252 = pneg %p39
        %p253 = pneg %p63
        %p254 = pneg %p60
        %p255 = pneg %p84
        %p256 = pneg %p81
        %p257 = pneg %p105
        %p258 = pneg %p102
        %p259 = pneg %p126
        %p260 = pneg %p123
        %p261 = pneg %p147
        %p262 = pneg %p144
        %p263 = pneg %p168
        %p264 = pneg %p165
        %p265 = pneg %p194
        %p266 = pneg %p191
        %s267 = sand.u32 %s181, 1
        %s268 = scalar_lea.sflag [#allocation4], %s267
        %s269 = sand.u32 %s181, 1
        %s270 = smul.addr %s269, 96
        %s271 = scalar_lea.vmem [#allocation3], %s270
        %p272 = scmp.lt.s32.totalorder %s21, 1
        %s273 = scalar_select %p272, %s21, 1
        %s274 = smul.addr %s273, 4
        %s275 = smul.addr %s274, 8
        %s276 = scalar_lea.vmem %s0, %s275
        %v278 = vld [vmem:[%s276] sm:$0xff]
        %v279 = vld [vmem:[%s276 + $0x8] sm:$0xff]
        %v280 = vld [vmem:[%s276 + $0x10] sm:$0xff]
        %v281 = vld [vmem:[%s276 + $0x18] sm:$0xff]
        %vm282 = vcmp.gt.f32.partialorder %v278, 0.0
        %vm283 = vcmp.gt.f32.partialorder %v279, 0.0
        %vm284 = vcmp.gt.f32.partialorder %v280, 0.0
        %vm285 = vcmp.gt.f32.partialorder %v281, 0.0
        %v286 = vmul.f32 %v278, 0.2
        %v287 = vmul.f32 %v279, 0.2
        %v288 = vmul.f32 %v280, 0.2
        %v289 = vmul.f32 %v281, 0.2
        %v290 = vsel %vm282, %v278, %v286
        %v291 = vsel %vm283, %v279, %v287
        %v292 = vsel %vm284, %v280, %v288
        %v293 = vsel %vm285, %v281, %v289
        %v294 = vpack.c.bf16 %v290, %v290
        %v295 = vpack.c.bf16 %v291, %v291
        %v296 = vpack.c.bf16 %v292, %v292
        %v297 = vpack.c.bf16 %v293, %v293
        %v298 = vpack.c.bf16 %v278, %v278
        %v299 = vpack.c.bf16 %v279, %v279
        %v300 = vpack.c.bf16 %v280, %v280
        %v301 = vpack.c.bf16 %v281, %v281
        %v302 = vld [vmem:[%s1] sm:$0x7]
        %v303 = vld [vmem:[%s3] sm:$0xff]
        %v304 = vld [vmem:[%s5] sm:$0xff]
        %v305 = vld [vmem:[%s2] sm:$0xf]
        %s306 = scalar_lea.vmem %s2, 4
        %v307 = vld [vmem:[%s306] sm:$0xf]
        %312 = vrot.lane.b32.xlu0 %v294, 127
        %v313 = vpop.permute.xlu0 %312
        %314 = vrot.lane.b32.xlu0 %v295, 127
        %v315 = vpop.permute.xlu0 %314
        %316 = vrot.lane.b32.xlu0 %v296, 127
        %v317 = vpop.permute.xlu0 %316
        %318 = vrot.lane.b32.xlu0 %v297, 127
        %v319 = vpop.permute.xlu0 %318
        %vm320 = vcmask 1039360
        %v321 = vsel %vm320, %v313, %v315
        %v322 = vsel %vm320, %v315, %v317
        %v323 = vsel %vm320, %v317, %v319
        %vm324 = vcmask 64512
        %v326 = vsel %vm324, %v307, 0
        %vm328 = vcmask 1043456
        %v330 = vsel %vm328, %v321, 0
        %v333 = vsel %vm328, %v322, 0
        %v336 = vsel %vm328, %v323, 0
        %338 = vmatprep.subr.bf16.mxu0 %v333
        %339 = vmatpush1.bf16.msra.mxu0 %v330
        %340 = vmatprep.subr.bf16.mxu0 0
        %341 = vmatpush1.bf16.msra.mxu0 0
        %342 = vmatprep.subr.bf16.mxu0 0
        %343 = vmatpush1.bf16.msra.mxu0 0
        %344 = vmatprep.subr.bf16.mxu0 0
        %345 = vmatpush1.bf16.msra.mxu0 0
        %346 = vmatprep.subr.bf16.mxu0 0
        %347 = vmatpush1.bf16.msra.mxu0 0
        %348 = vmatprep.subr.bf16.mxu0 0
        %349 = vmatpush1.bf16.msra.mxu0 0
        %350 = vmatprep.subr.bf16.mxu0 0
        %351 = vmatpush1.bf16.msra.mxu0 0
        %352 = vmatprep.subr.bf16.mxu0 0
        %353 = vmatpush1.bf16.msra.mxu0 0
        %354 = vmatprep.subr.bf16.mxu0 0
        %355 = vmatpush1.bf16.msra.mxu0 0
        %356 = vmatprep.subr.bf16.mxu0 0
        %357 = vmatpush1.bf16.msra.mxu0 0
        %358 = vmatprep.subr.bf16.mxu0 0
        %359 = vmatpush1.bf16.msra.mxu0 0
        %360 = vmatprep.subr.bf16.mxu0 0
        %361 = vmatpush1.bf16.msra.mxu0 0
        %362 = vmatprep.subr.bf16.mxu0 0
        %363 = vmatpush1.bf16.msra.mxu0 0
        %364 = vmatprep.subr.bf16.mxu0 0
        %365 = vmatpush1.bf16.msra.mxu0 0
        %366 = vmatprep.subr.bf16.mxu0 0
        %367 = vmatpush1.bf16.msra.mxu0 0
        %368 = vmatprep.subr.bf16.mxu0 0
        %369 = vmatpush1.bf16.msra.mxu0 0
        %370 = vmatprep.mubr.bf16.mxu0 0
        %371 = vmatmul.mubr.bf16.gmra.mrb[0].mxu0 %v326
        %v372 = vpop.f32.mrb[0].mxu0
        %v373 = vadd.f32 0.0, %v372
        %v374 = vpop.f32.mrb[0].mxu0
        %v375 = vadd.f32 0.0, %v374
        %v376 = vpop.f32.mrb[0].mxu0
        %v377 = vpop.f32.mrb[0].mxu0
        %378 = vdwg.mxu0
        %379 = vmatprep.subr.bf16.mxu0 0
        %380 = vmatpush1.bf16.msra.mxu0 %v336
        %381 = vmatprep.subr.bf16.mxu0 0
        %382 = vmatpush1.bf16.msra.mxu0 0
        %383 = vmatprep.subr.bf16.mxu0 0
        %384 = vmatpush1.bf16.msra.mxu0 0
        %385 = vmatprep.subr.bf16.mxu0 0
        %386 = vmatpush1.bf16.msra.mxu0 0
        %387 = vmatprep.subr.bf16.mxu0 0
        %388 = vmatpush1.bf16.msra.mxu0 0
        %389 = vmatprep.subr.bf16.mxu0 0
        %390 = vmatpush1.bf16.msra.mxu0 0
        %391 = vmatprep.subr.bf16.mxu0 0
        %392 = vmatpush1.bf16.msra.mxu0 0
        %393 = vmatprep.subr.bf16.mxu0 0
        %394 = vmatpush1.bf16.msra.mxu0 0
        %395 = vmatprep.subr.bf16.mxu0 0
        %396 = vmatpush1.bf16.msra.mxu0 0
        %397 = vmatprep.subr.bf16.mxu0 0
        %398 = vmatpush1.bf16.msra.mxu0 0
        %399 = vmatprep.subr.bf16.mxu0 0
        %400 = vmatpush1.bf16.msra.mxu0 0
        %401 = vmatprep.subr.bf16.mxu0 0
        %402 = vmatpush1.bf16.msra.mxu0 0
        %403 = vmatprep.subr.bf16.mxu0 0
        %404 = vmatpush1.bf16.msra.mxu0 0
        %405 = vmatprep.subr.bf16.mxu0 0
        %406 = vmatpush1.bf16.msra.mxu0 0
        %407 = vmatprep.subr.bf16.mxu0 0
        %408 = vmatpush1.bf16.msra.mxu0 0
        %409 = vmatprep.subr.bf16.mxu0 0
        %410 = vmatpush1.bf16.msra.mxu0 0
        %411 = vmatprep.mubr.bf16.mxu0 0
        %412 = vmatmul.mubr.bf16.gmra.mrb[0].mxu0 %v326
        %v413 = vpop.f32.mrb[0].mxu0
        %v414 = vadd.f32 0.0, %v413
        %v415 = vpop.f32.mrb[0].mxu0
        %v416 = vpop.f32.mrb[0].mxu0
        %v417 = vpop.f32.mrb[0].mxu0
        %418 = vdwg.mxu0
        %v420 = vsel %vm324, %v305, 0
        %v423 = vsel %vm328, %v294, 0
        %v426 = vsel %vm328, %v295, 0
        %v429 = vsel %vm328, %v296, 0
        %431 = vmatprep.subr.bf16.mxu0 %v426
        %432 = vmatpush1.bf16.msra.mxu0 %v423
        %433 = vmatprep.subr.bf16.mxu0 0
        %434 = vmatpush1.bf16.msra.mxu0 0
        %435 = vmatprep.subr.bf16.mxu0 0
        %436 = vmatpush1.bf16.msra.mxu0 0
        %437 = vmatprep.subr.bf16.mxu0 0
        %438 = vmatpush1.bf16.msra.mxu0 0
        %439 = vmatprep.subr.bf16.mxu0 0
        %440 = vmatpush1.bf16.msra.mxu0 0
        %441 = vmatprep.subr.bf16.mxu0 0
        %442 = vmatpush1.bf16.msra.mxu0 0
        %443 = vmatprep.subr.bf16.mxu0 0
        %444 = vmatpush1.bf16.msra.mxu0 0
        %445 = vmatprep.subr.bf16.mxu0 0
        %446 = vmatpush1.bf16.msra.mxu0 0
        %447 = vmatprep.subr.bf16.mxu0 0
        %448 = vmatpush1.bf16.msra.mxu0 0
        %449 = vmatprep.subr.bf16.mxu0 0
        %450 = vmatpush1.bf16.msra.mxu0 0
        %451 = vmatprep.subr.bf16.mxu0 0
        %452 = vmatpush1.bf16.msra.mxu0 0
        %453 = vmatprep.subr.bf16.mxu0 0
        %454 = vmatpush1.bf16.msra.mxu0 0
        %455 = vmatprep.subr.bf16.mxu0 0
        %456 = vmatpush1.bf16.msra.mxu0 0
        %457 = vmatprep.subr.bf16.mxu0 0
        %458 = vmatpush1.bf16.msra.mxu0 0
        %459 = vmatprep.subr.bf16.mxu0 0
        %460 = vmatpush1.bf16.msra.mxu0 0
        %461 = vmatprep.subr.bf16.mxu0 0
        %462 = vmatpush1.bf16.msra.mxu0 0
        %463 = vmatprep.mubr.bf16.mxu0 0
        %464 = vmatmul.mubr.bf16.gmra.mrb[0].mxu0 %v420
        %v465 = vpop.f32.mrb[0].mxu0
        %v466 = vadd.f32 %v373, %v465
        %v467 = vpop.f32.mrb[0].mxu0
        %v468 = vadd.f32 %v375, %v467
        %v469 = vpop.f32.mrb[0].mxu0
        %v470 = vpop.f32.mrb[0].mxu0
        %471 = vdwg.mxu0
        %472 = vmatprep.subr.bf16.mxu0 0
        %473 = vmatpush1.bf16.msra.mxu0 %v429
        %474 = vmatprep.subr.bf16.mxu0 0
        %475 = vmatpush1.bf16.msra.mxu0 0
        %476 = vmatprep.subr.bf16.mxu0 0
        %477 = vmatpush1.bf16.msra.mxu0 0
        %478 = vmatprep.subr.bf16.mxu0 0
        %479 = vmatpush1.bf16.msra.mxu0 0
        %480 = vmatprep.subr.bf16.mxu0 0
        %481 = vmatpush1.bf16.msra.mxu0 0
        %482 = vmatprep.subr.bf16.mxu0 0
        %483 = vmatpush1.bf16.msra.mxu0 0
        %484 = vmatprep.subr.bf16.mxu0 0
        %485 = vmatpush1.bf16.msra.mxu0 0
        %486 = vmatprep.subr.bf16.mxu0 0
        %487 = vmatpush1.bf16.msra.mxu0 0
        %488 = vmatprep.subr.bf16.mxu0 0
        %489 = vmatpush1.bf16.msra.mxu0 0
        %490 = vmatprep.subr.bf16.mxu0 0
        %491 = vmatpush1.bf16.msra.mxu0 0
        %492 = vmatprep.subr.bf16.mxu0 0
        %493 = vmatpush1.bf16.msra.mxu0 0
        %494 = vmatprep.subr.bf16.mxu0 0
        %495 = vmatpush1.bf16.msra.mxu0 0
        %496 = vmatprep.subr.bf16.mxu0 0
        %497 = vmatpush1.bf16.msra.mxu0 0
        %498 = vmatprep.subr.bf16.mxu0 0
        %499 = vmatpush1.bf16.msra.mxu0 0
        %500 = vmatprep.subr.bf16.mxu0 0
        %501 = vmatpush1.bf16.msra.mxu0 0
        %502 = vmatprep.subr.bf16.mxu0 0
        %503 = vmatpush1.bf16.msra.mxu0 0
        %504 = vmatprep.mubr.bf16.mxu0 0
        %505 = vmatmul.mubr.bf16.gmra.mrb[0].mxu0 %v420
        %v506 = vpop.f32.mrb[0].mxu0
        %v507 = vadd.f32 %v414, %v506
        %v508 = vpop.f32.mrb[0].mxu0
        %v509 = vpop.f32.mrb[0].mxu0
        %v510 = vpop.f32.mrb[0].mxu0
        %511 = vdwg.mxu0
        %s512 = scalar_lea.vmem %s2, 8
        %v513 = vld [vmem:[%s512] sm:$0xf]
        %514 = vrot.lane.b32.xlu0 %v294, 110
        %v515 = vpop.permute.xlu0 %514
        %516 = vrot.lane.b32.xlu0 %v295, 110
        %v517 = vpop.permute.xlu0 %516
        %518 = vrot.lane.b32.xlu0 %v296, 110
        %v519 = vpop.permute.xlu0 %518
        %520 = vrot.lane.b32.xlu0 %v297, 110
        %v521 = vpop.permute.xlu0 %520
        %vm522 = vcmask 900096
        %v523 = vsel %vm522, %v515, %v517
        %v524 = vsel %vm522, %v517, %v519
        %v525 = vsel %vm522, %v519, %v521
        %v527 = vsel %vm324, %v513, 0
        %v530 = vsel %vm328, %v523, 0
        %v533 = vsel %vm328, %v524, 0
        %v536 = vsel %vm328, %v525, 0
        %538 = vmatprep.subr.bf16.mxu0 %v533
        %539 = vmatpush1.bf16.msra.mxu0 %v530
        %540 = vmatprep.subr.bf16.mxu0 0
        %541 = vmatpush1.bf16.msra.mxu0 0
        %542 = vmatprep.subr.bf16.mxu0 0
        %543 = vmatpush1.bf16.msra.mxu0 0
        %544 = vmatprep.subr.bf16.mxu0 0
        %545 = vmatpush1.bf16.msra.mxu0 0
        %546 = vmatprep.subr.bf16.mxu0 0
        %547 = vmatpush1.bf16.msra.mxu0 0
        %548 = vmatprep.subr.bf16.mxu0 0
        %549 = vmatpush1.bf16.msra.mxu0 0
        %550 = vmatprep.subr.bf16.mxu0 0
        %551 = vmatpush1.bf16.msra.mxu0 0
        %552 = vmatprep.subr.bf16.mxu0 0
        %553 = vmatpush1.bf16.msra.mxu0 0
        %554 = vmatprep.subr.bf16.mxu0 0
        %555 = vmatpush1.bf16.msra.mxu0 0
        %556 = vmatprep.subr.bf16.mxu0 0
        %557 = vmatpush1.bf16.msra.mxu0 0
        %558 = vmatprep.subr.bf16.mxu0 0
        %559 = vmatpush1.bf16.msra.mxu0 0
        %560 = vmatprep.subr.bf16.mxu0 0
        %561 = vmatpush1.bf16.msra.mxu0 0
        %562 = vmatprep.subr.bf16.mxu0 0
        %563 = vmatpush1.bf16.msra.mxu0 0
        %564 = vmatprep.subr.bf16.mxu0 0
        %565 = vmatpush1.bf16.msra.mxu0 0
        %566 = vmatprep.subr.bf16.mxu0 0
        %567 = vmatpush1.bf16.msra.mxu0 0
        %568 = vmatprep.subr.bf16.mxu0 0
        %569 = vmatpush1.bf16.msra.mxu0 0
        %570 = vmatprep.mubr.bf16.mxu0 0
        %571 = vmatmul.mubr.bf16.gmra.mrb[0].mxu0 %v527
        %v572 = vpop.f32.mrb[0].mxu0
        %v573 = vadd.f32 0.0, %v572
        %v574 = vpop.f32.mrb[0].mxu0
        %v575 = vadd.f32 0.0, %v574
        %v576 = vpop.f32.mrb[0].mxu0
        %v577 = vpop.f32.mrb[0].mxu0
        %578 = vdwg.mxu0
        %579 = vmatprep.subr.bf16.mxu0 0
        %580 = vmatpush1.bf16.msra.mxu0 %v536
        %581 = vmatprep.subr.bf16.mxu0 0
        %582 = vmatpush1.bf16.msra.mxu0 0
        %583 = vmatprep.subr.bf16.mxu0 0
        %584 = vmatpush1.bf16.msra.mxu0 0
        %585 = vmatprep.subr.bf16.mxu0 0
        %586 = vmatpush1.bf16.msra.mxu0 0
        %587 = vmatprep.subr.bf16.mxu0 0
        %588 = vmatpush1.bf16.msra.mxu0 0
        %589 = vmatprep.subr.bf16.mxu0 0
        %590 = vmatpush1.bf16.msra.mxu0 0
        %591 = vmatprep.subr.bf16.mxu0 0
        %592 = vmatpush1.bf16.msra.mxu0 0
        %593 = vmatprep.subr.bf16.mxu0 0
        %594 = vmatpush1.bf16.msra.mxu0 0
        %595 = vmatprep.subr.bf16.mxu0 0
        %596 = vmatpush1.bf16.msra.mxu0 0
        %597 = vmatprep.subr.bf16.mxu0 0
        %598 = vmatpush1.bf16.msra.mxu0 0
        %599 = vmatprep.subr.bf16.mxu0 0
        %600 = vmatpush1.bf16.msra.mxu0 0
        %601 = vmatprep.subr.bf16.mxu0 0
        %602 = vmatpush1.bf16.msra.mxu0 0
        %603 = vmatprep.subr.bf16.mxu0 0
        %604 = vmatpush1.bf16.msra.mxu0 0
        %605 = vmatprep.subr.bf16.mxu0 0
        %606 = vmatpush1.bf16.msra.mxu0 0
        %607 = vmatprep.subr.bf16.mxu0 0
        %608 = vmatpush1.bf16.msra.mxu0 0
        %609 = vmatprep.subr.bf16.mxu0 0
        %610 = vmatpush1.bf16.msra.mxu0 0
        %611 = vmatprep.mubr.bf16.mxu0 0
        %612 = vmatmul.mubr.bf16.gmra.mrb[0].mxu0 %v527
        %v613 = vpop.f32.mrb[0].mxu0
        %v614 = vadd.f32 0.0, %v613
        %v615 = vpop.f32.mrb[0].mxu0
        %v616 = vpop.f32.mrb[0].mxu0
        %v617 = vpop.f32.mrb[0].mxu0
        %618 = vdwg.mxu0
        %v619 = vadd.f32 %v466, %v573
        %v620 = vadd.f32 %v468, %v575
        %v621 = vadd.f32 %v507, %v614
        %s622 = scalar_lea.vmem %s2, 12
        %v623 = vld [vmem:[%s622] sm:$0xf]
        %624 = vrot.lane.b32.xlu0 %v294, 109
        %v625 = vpop.permute.xlu0 %624
        %626 = vrot.lane.b32.xlu0 %v295, 109
        %v627 = vpop.permute.xlu0 %626
        %628 = vrot.lane.b32.xlu0 %v296, 109
        %v629 = vpop.permute.xlu0 %628
        %630 = vrot.lane.b32.xlu0 %v297, 109
        %v631 = vpop.permute.xlu0 %630
        %vm632 = vcmask 891904
        %v633 = vsel %vm632, %v625, %v627
        %v634 = vsel %vm632, %v627, %v629
        %v635 = vsel %vm632, %v629, %v631
        %v637 = vsel %vm324, %v623, 0
        %v640 = vsel %vm328, %v633, 0
        %v643 = vsel %vm328, %v634, 0
        %v646 = vsel %vm328, %v635, 0
        %648 = vmatprep.subr.bf16.mxu0 %v643
        %649 = vmatpush1.bf16.msra.mxu0 %v640
        %650 = vmatprep.subr.bf16.mxu0 0
        %651 = vmatpush1.bf16.msra.mxu0 0
        %652 = vmatprep.subr.bf16.mxu0 0
        %653 = vmatpush1.bf16.msra.mxu0 0
        %654 = vmatprep.subr.bf16.mxu0 0
        %655 = vmatpush1.bf16.msra.mxu0 0
        %656 = vmatprep.subr.bf16.mxu0 0
        %657 = vmatpush1.bf16.msra.mxu0 0
        %658 = vmatprep.subr.bf16.mxu0 0
        %659 = vmatpush1.bf16.msra.mxu0 0
        %660 = vmatprep.subr.bf16.mxu0 0
        %661 = vmatpush1.bf16.msra.mxu0 0
        %662 = vmatprep.subr.bf16.mxu0 0
        %663 = vmatpush1.bf16.msra.mxu0 0
        %664 = vmatprep.subr.bf16.mxu0 0
        %665 = vmatpush1.bf16.msra.mxu0 0
        %666 = vmatprep.subr.bf16.mxu0 0
        %667 = vmatpush1.bf16.msra.mxu0 0
        %668 = vmatprep.subr.bf16.mxu0 0
        %669 = vmatpush1.bf16.msra.mxu0 0
        %670 = vmatprep.subr.bf16.mxu0 0
        %671 = vmatpush1.bf16.msra.mxu0 0
        %672 = vmatprep.subr.bf16.mxu0 0
        %673 = vmatpush1.bf16.msra.mxu0 0
        %674 = vmatprep.subr.bf16.mxu0 0
        %675 = vmatpush1.bf16.msra.mxu0 0
        %676 = vmatprep.subr.bf16.mxu0 0
        %677 = vmatpush1.bf16.msra.mxu0 0
        %678 = vmatprep.subr.bf16.mxu0 0
        %679 = vmatpush1.bf16.msra.mxu0 0
        %680 = vmatprep.mubr.bf16.mxu0 0
        %681 = vmatmul.mubr.bf16.gmra.mrb[0].mxu0 %v637
        %v682 = vpop.f32.mrb[0].mxu0
        %v683 = vadd.f32 0.0, %v682
        %v684 = vpop.f32.mrb[0].mxu0
        %v685 = vadd.f32 0.0, %v684
        %v686 = vpop.f32.mrb[0].mxu0
        %v687 = vpop.f32.mrb[0].mxu0
        %688 = vdwg.mxu0
        %689 = vmatprep.subr.bf16.mxu0 0
        %690 = vmatpush1.bf16.msra.mxu0 %v646
        %691 = vmatprep.subr.bf16.mxu0 0
        %692 = vmatpush1.bf16.msra.mxu0 0
        %693 = vmatprep.subr.bf16.mxu0 0
        %694 = vmatpush1.bf16.msra.mxu0 0
        %695 = vmatprep.subr.bf16.mxu0 0
        %696 = vmatpush1.bf16.msra.mxu0 0
        %697 = vmatprep.subr.bf16.mxu0 0
        %698 = vmatpush1.bf16.msra.mxu0 0
        %699 = vmatprep.subr.bf16.mxu0 0
        %700 = vmatpush1.bf16.msra.mxu0 0
        %701 = vmatprep.subr.bf16.mxu0 0
        %702 = vmatpush1.bf16.msra.mxu0 0
        %703 = vmatprep.subr.bf16.mxu0 0
        %704 = vmatpush1.bf16.msra.mxu0 0
        %705 = vmatprep.subr.bf16.mxu0 0
        %706 = vmatpush1.bf16.msra.mxu0 0
        %707 = vmatprep.subr.bf16.mxu0 0
        %708 = vmatpush1.bf16.msra.mxu0 0
        %709 = vmatprep.subr.bf16.mxu0 0
        %710 = vmatpush1.bf16.msra.mxu0 0
        %711 = vmatprep.subr.bf16.mxu0 0
        %712 = vmatpush1.bf16.msra.mxu0 0
        %713 = vmatprep.subr.bf16.mxu0 0
        %714 = vmatpush1.bf16.msra.mxu0 0
        %715 = vmatprep.subr.bf16.mxu0 0
        %716 = vmatpush1.bf16.msra.mxu0 0
        %717 = vmatprep.subr.bf16.mxu0 0
        %718 = vmatpush1.bf16.msra.mxu0 0
        %719 = vmatprep.subr.bf16.mxu0 0
        %720 = vmatpush1.bf16.msra.mxu0 0
        %721 = vmatprep.mubr.bf16.mxu0 0
        %722 = vmatmul.mubr.bf16.gmra.mrb[0].mxu0 %v637
        %v723 = vpop.f32.mrb[0].mxu0
        %v724 = vadd.f32 0.0, %v723
        %v725 = vpop.f32.mrb[0].mxu0
        %v726 = vpop.f32.mrb[0].mxu0
        %v727 = vpop.f32.mrb[0].mxu0
        %728 = vdwg.mxu0
        %v729 = vadd.f32 %v619, %v683
        %v730 = vadd.f32 %v620, %v685
        %v731 = vadd.f32 %v621, %v724
        %733 = vset.pattern.permute.xlu0 0
        %734 = vperm.xlu0 %733, %v303
        %v735 = vpop.permute.xlu0 %734
        %v737 = vadd.f32 %v729, %v735
        %v738 = vadd.f32 %v730, %v735
        %v739 = vadd.f32 %v731, %v735
        %vm740 = vcmp.gt.f32.partialorder %v737, 0.0
        %vm741 = vcmp.gt.f32.partialorder %v738, 0.0
        %vm742 = vcmp.gt.f32.partialorder %v739, 0.0
        %v743 = vmul.f32 %v737, 0.2
        %v744 = vmul.f32 %v738, 0.2
        %v745 = vmul.f32 %v739, 0.2
        %v746 = vsel %vm740, %v737, %v743
        %v747 = vsel %vm741, %v738, %v744
        %v748 = vsel %vm742, %v739, %v745
        %v750 = vlaneseq
        %v751 = vshrl.u32 %v750, 7
        %v752 = vsub.s32 0, %v751
        %v753 = vrot.slane %v302, %v752
        %v754 = vlaneseq
        %v755 = vshrl.u32 %v754, 7
        %v756 = vsub.s32 1, %v755
        %v757 = vrot.slane %v302, %v756
        %v758 = vlaneseq
        %v759 = vshrl.u32 %v758, 7
        %v760 = vsub.s32 2, %v759
        %v761 = vrot.slane %v302, %v760
        %v765 = vmul.f32 %v746, %v753
        %v766 = vmul.f32 %v747, %v757
        %v767 = vmul.f32 %v748, %v761
        %vm768 = vcmask 150528
        %769 = vst.msk [vmem:[#allocation2] sm:$0xf] %vm768, 0
        %vm770 = vcmask 437400
        %771 = vst.msk [vmem:[#allocation2 + $0xc] sm:$0xf] %vm770, 0
        %v772 = vpack.c.bf16 %v765, %v765
        %v773 = vpack.c.bf16 %v766, %v766
        %v774 = vpack.c.bf16 %v767, %v767
        %v778 = vunpack.c.l.b16 %v772
        %v779 = vunpack.c.l.b16 %v773
        %v780 = vunpack.c.l.b16 %v774
        %v781 = vpack.c.b16 %v779, %v778
        %v782 = vpack.c.b16 %v780, %v780
        %783 = vrot.lane.b32.xlu0 %v781, 19
        %v784 = vpop.permute.xlu0 %783
        %785 = vrot.lane.b32.xlu0 %v782, 19
        %v786 = vpop.permute.xlu0 %785
        %v787 = vrot.slane %v784, 4
        %v788 = vrot.slane %v786, 4
        %vm789 = vcmask 154624
        %v790 = vsel %vm789, %v787, %v784
        %vm791 = vcmask 1043456
        %v792 = vsel %vm791, %v787, %v788
        %v793 = vsel %vm789, %v792, %v786
        %vm796 = vcmask 1043608
        %vm797 = vcmask 1047556
        %vm798 = vmor %vm797, %vm796
        %799 = vst.msk [vmem:[#allocation2] sm:$0xff] %vm798, %v790
        %vm800 = vcmask 154628
        %vm801 = vmor %vm800, %vm328
        %802 = vst.msk [vmem:[#allocation2 + $0x8] sm:$0xff] %vm801, %v793
        %s803 = scalar_lea.vmem %s2, 16
        %v804 = vld [vmem:[%s803] sm:$0xf]
        %s805 = scalar_lea.vmem %s2, 20
        %v806 = vld [vmem:[%s805] sm:$0xf]
        %807 = vrot.lane.b32.xlu0 %v294, 126
        %v808 = vpop.permute.xlu0 %807
        %809 = vrot.lane.b32.xlu0 %v295, 126
        %v810 = vpop.permute.xlu0 %809
        %811 = vrot.lane.b32.xlu0 %v296, 126
        %v812 = vpop.permute.xlu0 %811
        %813 = vrot.lane.b32.xlu0 %v297, 126
        %v814 = vpop.permute.xlu0 %813
        %vm815 = vcmask 1031168
        %v816 = vsel %vm815, %v808, %v810
        %v817 = vsel %vm815, %v810, %v812
        %v818 = vsel %vm815, %v812, %v814
        %v820 = vsel %vm324, %v806, 0
        %v823 = vsel %vm328, %v816, 0
        %v826 = vsel %vm328, %v817, 0
        %v829 = vsel %vm328, %v818, 0
        %831 = vmatprep.subr.bf16.mxu0 %v826
        %832 = vmatpush1.bf16.msra.mxu0 %v823
        %833 = vmatprep.subr.bf16.mxu0 0
        %834 = vmatpush1.bf16.msra.mxu0 0
        %835 = vmatprep.subr.bf16.mxu0 0
        %836 = vmatpush1.bf16.msra.mxu0 0
        %837 = vmatprep.subr.bf16.mxu0 0
        %838 = vmatpush1.bf16.msra.mxu0 0
        %839 = vmatprep.subr.bf16.mxu0 0
        %840 = vmatpush1.bf16.msra.mxu0 0
        %841 = vmatprep.subr.bf16.mxu0 0
        %842 = vmatpush1.bf16.msra.mxu0 0
        %843 = vmatprep.subr.bf16.mxu0 0
        %844 = vmatpush1.bf16.msra.mxu0 0
        %845 = vmatprep.subr.bf16.mxu0 0
        %846 = vmatpush1.bf16.msra.mxu0 0
        %847 = vmatprep.subr.bf16.mxu0 0
        %848 = vmatpush1.bf16.msra.mxu0 0
        %849 = vmatprep.subr.bf16.mxu0 0
        %850 = vmatpush1.bf16.msra.mxu0 0
        %851 = vmatprep.subr.bf16.mxu0 0
        %852 = vmatpush1.bf16.msra.mxu0 0
        %853 = vmatprep.subr.bf16.mxu0 0
        %854 = vmatpush1.bf16.msra.mxu0 0
        %855 = vmatprep.subr.bf16.mxu0 0
        %856 = vmatpush1.bf16.msra.mxu0 0
        %857 = vmatprep.subr.bf16.mxu0 0
        %858 = vmatpush1.bf16.msra.mxu0 0
        %859 = vmatprep.subr.bf16.mxu0 0
        %860 = vmatpush1.bf16.msra.mxu0 0
        %861 = vmatprep.subr.bf16.mxu0 0
        %862 = vmatpush1.bf16.msra.mxu0 0
        %863 = vmatprep.mubr.bf16.mxu0 0
        %864 = vmatmul.mubr.bf16.gmra.mrb[0].mxu0 %v820
        %v865 = vpop.f32.mrb[0].mxu0
        %v866 = vadd.f32 0.0, %v865
        %v867 = vpop.f32.mrb[0].mxu0
        %v868 = vadd.f32 0.0, %v867
        %v869 = vpop.f32.mrb[0].mxu0
        %v870 = vpop.f32.mrb[0].mxu0
        %871 = vdwg.mxu0
        %872 = vmatprep.subr.bf16.mxu0 0
        %873 = vmatpush1.bf16.msra.mxu0 %v829
        %874 = vmatprep.subr.bf16.mxu0 0
        %875 = vmatpush1.bf16.msra.mxu0 0
        %876 = vmatprep.subr.bf16.mxu0 0
        %877 = vmatpush1.bf16.msra.mxu0 0
        %878 = vmatprep.subr.bf16.mxu0 0
        %879 = vmatpush1.bf16.msra.mxu0 0
        %880 = vmatprep.subr.bf16.mxu0 0
        %881 = vmatpush1.bf16.msra.mxu0 0
        %882 = vmatprep.subr.bf16.mxu0 0
        %883 = vmatpush1.bf16.msra.mxu0 0
        %884 = vmatprep.subr.bf16.mxu0 0
        %885 = vmatpush1.bf16.msra.mxu0 0
        %886 = vmatprep.subr.bf16.mxu0 0
        %887 = vmatpush1.bf16.msra.mxu0 0
        %888 = vmatprep.subr.bf16.mxu0 0
        %889 = vmatpush1.bf16.msra.mxu0 0
        %890 = vmatprep.subr.bf16.mxu0 0
        %891 = vmatpush1.bf16.msra.mxu0 0
        %892 = vmatprep.subr.bf16.mxu0 0
        %893 = vmatpush1.bf16.msra.mxu0 0
        %894 = vmatprep.subr.bf16.mxu0 0
        %895 = vmatpush1.bf16.msra.mxu0 0
        %896 = vmatprep.subr.bf16.mxu0 0
        %897 = vmatpush1.bf16.msra.mxu0 0
        %898 = vmatprep.subr.bf16.mxu0 0
        %899 = vmatpush1.bf16.msra.mxu0 0
        %900 = vmatprep.subr.bf16.mxu0 0
        %901 = vmatpush1.bf16.msra.mxu0 0
        %902 = vmatprep.subr.bf16.mxu0 0
        %903 = vmatpush1.bf16.msra.mxu0 0
        %904 = vmatprep.mubr.bf16.mxu0 0
        %905 = vmatmul.mubr.bf16.gmra.mrb[0].mxu0 %v820
        %v906 = vpop.f32.mrb[0].mxu0
        %v907 = vadd.f32 0.0, %v906
        %v908 = vpop.f32.mrb[0].mxu0
        %v909 = vpop.f32.mrb[0].mxu0
        %v910 = vpop.f32.mrb[0].mxu0
        %911 = vdwg.mxu0
        %v913 = vsel %vm324, %v804, 0
        %915 = vmatprep.subr.bf16.mxu0 %v333
        %916 = vmatpush1.bf16.msra.mxu0 %v330
        %917 = vmatprep.subr.bf16.mxu0 0
        %918 = vmatpush1.bf16.msra.mxu0 0
        %919 = vmatprep.subr.bf16.mxu0 0
        %920 = vmatpush1.bf16.msra.mxu0 0
        %921 = vmatprep.subr.bf16.mxu0 0
        %922 = vmatpush1.bf16.msra.mxu0 0
        %923 = vmatprep.subr.bf16.mxu0 0
        %924 = vmatpush1.bf16.msra.mxu0 0
        %925 = vmatprep.subr.bf16.mxu0 0
        %926 = vmatpush1.bf16.msra.mxu0 0
        %927 = vmatprep.subr.bf16.mxu0 0
        %928 = vmatpush1.bf16.msra.mxu0 0
        %929 = vmatprep.subr.bf16.mxu0 0
        %930 = vmatpush1.bf16.msra.mxu0 0
        %931 = vmatprep.subr.bf16.mxu0 0
        %932 = vmatpush1.bf16.msra.mxu0 0
        %933 = vmatprep.subr.bf16.mxu0 0
        %934 = vmatpush1.bf16.msra.mxu0 0
        %935 = vmatprep.subr.bf16.mxu0 0
        %936 = vmatpush1.bf16.msra.mxu0 0
        %937 = vmatprep.subr.bf16.mxu0 0
        %938 = vmatpush1.bf16.msra.mxu0 0
        %939 = vmatprep.subr.bf16.mxu0 0
        %940 = vmatpush1.bf16.msra.mxu0 0
        %941 = vmatprep.subr.bf16.mxu0 0
        %942 = vmatpush1.bf16.msra.mxu0 0
        %943 = vmatprep.subr.bf16.mxu0 0
        %944 = vmatpush1.bf16.msra.mxu0 0
        %945 = vmatprep.subr.bf16.mxu0 0
        %946 = vmatpush1.bf16.msra.mxu0 0
        %947 = vmatprep.mubr.bf16.mxu0 0
        %948 = vmatmul.mubr.bf16.gmra.mrb[0].mxu0 %v913
        %v949 = vpop.f32.mrb[0].mxu0
        %v950 = vadd.f32 %v866, %v949
        %v951 = vpop.f32.mrb[0].mxu0
        %v952 = vadd.f32 %v868, %v951
        %v953 = vpop.f32.mrb[0].mxu0
        %v954 = vpop.f32.mrb[0].mxu0
        %955 = vdwg.mxu0
        %956 = vmatprep.subr.bf16.mxu0 0
        %957 = vmatpush1.bf16.msra.mxu0 %v336
        %958 = vmatprep.subr.bf16.mxu0 0
        %959 = vmatpush1.bf16.msra.mxu0 0
        %960 = vmatprep.subr.bf16.mxu0 0
        %961 = vmatpush1.bf16.msra.mxu0 0
        %962 = vmatprep.subr.bf16.mxu0 0
        %963 = vmatpush1.bf16.msra.mxu0 0
        %964 = vmatprep.subr.bf16.mxu0 0
        %965 = vmatpush1.bf16.msra.mxu0 0
        %966 = vmatprep.subr.bf16.mxu0 0
        %967 = vmatpush1.bf16.msra.mxu0 0
        %968 = vmatprep.subr.bf16.mxu0 0
        %969 = vmatpush1.bf16.msra.mxu0 0
        %970 = vmatprep.subr.bf16.mxu0 0
        %971 = vmatpush1.bf16.msra.mxu0 0
        %972 = vmatprep.subr.bf16.mxu0 0
        %973 = vmatpush1.bf16.msra.mxu0 0
        %974 = vmatprep.subr.bf16.mxu0 0
        %975 = vmatpush1.bf16.msra.mxu0 0
        %976 = vmatprep.subr.bf16.mxu0 0
        %977 = vmatpush1.bf16.msra.mxu0 0
        %978 = vmatprep.subr.bf16.mxu0 0
        %979 = vmatpush1.bf16.msra.mxu0 0
        %980 = vmatprep.subr.bf16.mxu0 0
        %981 = vmatpush1.bf16.msra.mxu0 0
        %982 = vmatprep.subr.bf16.mxu0 0
        %983 = vmatpush1.bf16.msra.mxu0 0
        %984 = vmatprep.subr.bf16.mxu0 0
        %985 = vmatpush1.bf16.msra.mxu0 0
        %986 = vmatprep.subr.bf16.mxu0 0
        %987 = vmatpush1.bf16.msra.mxu0 0
        %988 = vmatprep.mubr.bf16.mxu0 0
        %989 = vmatmul.mubr.bf16.gmra.mrb[0].mxu0 %v913
        %v990 = vpop.f32.mrb[0].mxu0
        %v991 = vadd.f32 %v907, %v990
        %v992 = vpop.f32.mrb[0].mxu0
        %v993 = vpop.f32.mrb[0].mxu0
        %v994 = vpop.f32.mrb[0].mxu0
        %995 = vdwg.mxu0
        %s996 = scalar_lea.vmem %s2, 24
        %v997 = vld [vmem:[%s996] sm:$0xf]
        %v999 = vsel %vm324, %v997, 0
        %1001 = vmatprep.subr.bf16.mxu0 %v643
        %1002 = vmatpush1.bf16.msra.mxu0 %v640
        %1003 = vmatprep.subr.bf16.mxu0 0
        %1004 = vmatpush1.bf16.msra.mxu0 0
        %1005 = vmatprep.subr.bf16.mxu0 0
        %1006 = vmatpush1.bf16.msra.mxu0 0
        %1007 = vmatprep.subr.bf16.mxu0 0
        %1008 = vmatpush1.bf16.msra.mxu0 0
        %1009 = vmatprep.subr.bf16.mxu0 0
        %1010 = vmatpush1.bf16.msra.mxu0 0
        %1011 = vmatprep.subr.bf16.mxu0 0
        %1012 = vmatpush1.bf16.msra.mxu0 0
        %1013 = vmatprep.subr.bf16.mxu0 0
        %1014 = vmatpush1.bf16.msra.mxu0 0
        %1015 = vmatprep.subr.bf16.mxu0 0
        %1016 = vmatpush1.bf16.msra.mxu0 0
        %1017 = vmatprep.subr.bf16.mxu0 0
        %1018 = vmatpush1.bf16.msra.mxu0 0
        %1019 = vmatprep.subr.bf16.mxu0 0
        %1020 = vmatpush1.bf16.msra.mxu0 0
        %1021 = vmatprep.subr.bf16.mxu0 0
        %1022 = vmatpush1.bf16.msra.mxu0 0
        %1023 = vmatprep.subr.bf16.mxu0 0
        %1024 = vmatpush1.bf16.msra.mxu0 0
        %1025 = vmatprep.subr.bf16.mxu0 0
        %1026 = vmatpush1.bf16.msra.mxu0 0
        %1027 = vmatprep.subr.bf16.mxu0 0
        %1028 = vmatpush1.bf16.msra.mxu0 0
        %1029 = vmatprep.subr.bf16.mxu0 0
        %1030 = vmatpush1.bf16.msra.mxu0 0
        %1031 = vmatprep.subr.bf16.mxu0 0
        %1032 = vmatpush1.bf16.msra.mxu0 0
        %1033 = vmatprep.mubr.bf16.mxu0 0
        %1034 = vmatmul.mubr.bf16.gmra.mrb[0].mxu0 %v999
        %v1035 = vpop.f32.mrb[0].mxu0
        %v1036 = vadd.f32 0.0, %v1035
        %v1037 = vpop.f32.mrb[0].mxu0
        %v1038 = vadd.f32 0.0, %v1037
        %v1039 = vpop.f32.mrb[0].mxu0
        %v1040 = vpop.f32.mrb[0].mxu0
        %1041 = vdwg.mxu0
        %1042 = vmatprep.subr.bf16.mxu0 0
        %1043 = vmatpush1.bf16.msra.mxu0 %v646
        %1044 = vmatprep.subr.bf16.mxu0 0
        %1045 = vmatpush1.bf16.msra.mxu0 0
        %1046 = vmatprep.subr.bf16.mxu0 0
        %1047 = vmatpush1.bf16.msra.mxu0 0
        %1048 = vmatprep.subr.bf16.mxu0 0
        %1049 = vmatpush1.bf16.msra.mxu0 0
        %1050 = vmatprep.subr.bf16.mxu0 0
        %1051 = vmatpush1.bf16.msra.mxu0 0
        %1052 = vmatprep.subr.bf16.mxu0 0
        %1053 = vmatpush1.bf16.msra.mxu0 0
        %1054 = vmatprep.subr.bf16.mxu0 0
        %1055 = vmatpush1.bf16.msra.mxu0 0
        %1056 = vmatprep.subr.bf16.mxu0 0
        %1057 = vmatpush1.bf16.msra.mxu0 0
        %1058 = vmatprep.subr.bf16.mxu0 0
        %1059 = vmatpush1.bf16.msra.mxu0 0
        %1060 = vmatprep.subr.bf16.mxu0 0
        %1061 = vmatpush1.bf16.msra.mxu0 0
        %1062 = vmatprep.subr.bf16.mxu0 0
        %1063 = vmatpush1.bf16.msra.mxu0 0
        %1064 = vmatprep.subr.bf16.mxu0 0
        %1065 = vmatpush1.bf16.msra.mxu0 0
        %1066 = vmatprep.subr.bf16.mxu0 0
        %1067 = vmatpush1.bf16.msra.mxu0 0
        %1068 = vmatprep.subr.bf16.mxu0 0
        %1069 = vmatpush1.bf16.msra.mxu0 0
        %1070 = vmatprep.subr.bf16.mxu0 0
        %1071 = vmatpush1.bf16.msra.mxu0 0
        %1072 = vmatprep.subr.bf16.mxu0 0
        %1073 = vmatpush1.bf16.msra.mxu0 0
        %1074 = vmatprep.mubr.bf16.mxu0 0
        %1075 = vmatmul.mubr.bf16.gmra.mrb[0].mxu0 %v999
        %v1076 = vpop.f32.mrb[0].mxu0
        %v1077 = vadd.f32 0.0, %v1076
        %v1078 = vpop.f32.mrb[0].mxu0
        %v1079 = vpop.f32.mrb[0].mxu0
        %v1080 = vpop.f32.mrb[0].mxu0
        %1081 = vdwg.mxu0
        %v1082 = vadd.f32 %v950, %v1036
        %v1083 = vadd.f32 %v952, %v1038
        %v1084 = vadd.f32 %v991, %v1077
        %s1085 = scalar_lea.vmem %s2, 28
        %v1086 = vld [vmem:[%s1085] sm:$0xf]
        %1087 = vrot.lane.b32.xlu0 %v294, 108
        %v1088 = vpop.permute.xlu0 %1087
        %1089 = vrot.lane.b32.xlu0 %v295, 108
        %v1090 = vpop.permute.xlu0 %1089
        %1091 = vrot.lane.b32.xlu0 %v296, 108
        %v1092 = vpop.permute.xlu0 %1091
        %1093 = vrot.lane.b32.xlu0 %v297, 108
        %v1094 = vpop.permute.xlu0 %1093
        %vm1095 = vcmask 883712
        %v1096 = vsel %vm1095, %v1088, %v1090
        %v1097 = vsel %vm1095, %v1090, %v1092
        %v1098 = vsel %vm1095, %v1092, %v1094
        %v1100 = vsel %vm324, %v1086, 0
        %v1103 = vsel %vm328, %v1096, 0
        %v1106 = vsel %vm328, %v1097, 0
        %v1109 = vsel %vm328, %v1098, 0
        %1111 = vmatprep.subr.bf16.mxu0 %v1106
        %1112 = vmatpush1.bf16.msra.mxu0 %v1103
        %1113 = vmatprep.subr.bf16.mxu0 0
        %1114 = vmatpush1.bf16.msra.mxu0 0
        %1115 = vmatprep.subr.bf16.mxu0 0
        %1116 = vmatpush1.bf16.msra.mxu0 0
        %1117 = vmatprep.subr.bf16.mxu0 0
        %1118 = vmatpush1.bf16.msra.mxu0 0
        %1119 = vmatprep.subr.bf16.mxu0 0
        %1120 = vmatpush1.bf16.msra.mxu0 0
        %1121 = vmatprep.subr.bf16.mxu0 0
        %1122 = vmatpush1.bf16.msra.mxu0 0
        %1123 = vmatprep.subr.bf16.mxu0 0
        %1124 = vmatpush1.bf16.msra.mxu0 0
        %1125 = vmatprep.subr.bf16.mxu0 0
        %1126 = vmatpush1.bf16.msra.mxu0 0
        %1127 = vmatprep.subr.bf16.mxu0 0
        %1128 = vmatpush1.bf16.msra.mxu0 0
        %1129 = vmatprep.subr.bf16.mxu0 0
        %1130 = vmatpush1.bf16.msra.mxu0 0
        %1131 = vmatprep.subr.bf16.mxu0 0
        %1132 = vmatpush1.bf16.msra.mxu0 0
        %1133 = vmatprep.subr.bf16.mxu0 0
        %1134 = vmatpush1.bf16.msra.mxu0 0
        %1135 = vmatprep.subr.bf16.mxu0 0
        %1136 = vmatpush1.bf16.msra.mxu0 0
        %1137 = vmatprep.subr.bf16.mxu0 0
        %1138 = vmatpush1.bf16.msra.mxu0 0
        %1139 = vmatprep.subr.bf16.mxu0 0
        %1140 = vmatpush1.bf16.msra.mxu0 0
        %1141 = vmatprep.subr.bf16.mxu0 0
        %1142 = vmatpush1.bf16.msra.mxu0 0
        %1143 = vmatprep.mubr.bf16.mxu0 0
        %1144 = vmatmul.mubr.bf16.gmra.mrb[0].mxu0 %v1100
        %v1145 = vpop.f32.mrb[0].mxu0
        %v1146 = vadd.f32 0.0, %v1145
        %v1147 = vpop.f32.mrb[0].mxu0
        %v1148 = vadd.f32 0.0, %v1147
        %v1149 = vpop.f32.mrb[0].mxu0
        %v1150 = vpop.f32.mrb[0].mxu0
        %1151 = vdwg.mxu0
        %1152 = vmatprep.subr.bf16.mxu0 0
        %1153 = vmatpush1.bf16.msra.mxu0 %v1109
        %1154 = vmatprep.subr.bf16.mxu0 0
        %1155 = vmatpush1.bf16.msra.mxu0 0
        %1156 = vmatprep.subr.bf16.mxu0 0
        %1157 = vmatpush1.bf16.msra.mxu0 0
        %1158 = vmatprep.subr.bf16.mxu0 0
        %1159 = vmatpush1.bf16.msra.mxu0 0
        %1160 = vmatprep.subr.bf16.mxu0 0
        %1161 = vmatpush1.bf16.msra.mxu0 0
        %1162 = vmatprep.subr.bf16.mxu0 0
        %1163 = vmatpush1.bf16.msra.mxu0 0
        %1164 = vmatprep.subr.bf16.mxu0 0
        %1165 = vmatpush1.bf16.msra.mxu0 0
        %1166 = vmatprep.subr.bf16.mxu0 0
        %1167 = vmatpush1.bf16.msra.mxu0 0
        %1168 = vmatprep.subr.bf16.mxu0 0
        %1169 = vmatpush1.bf16.msra.mxu0 0
        %1170 = vmatprep.subr.bf16.mxu0 0
        %1171 = vmatpush1.bf16.msra.mxu0 0
        %1172 = vmatprep.subr.bf16.mxu0 0
        %1173 = vmatpush1.bf16.msra.mxu0 0
        %1174 = vmatprep.subr.bf16.mxu0 0
        %1175 = vmatpush1.bf16.msra.mxu0 0
        %1176 = vmatprep.subr.bf16.mxu0 0
        %1177 = vmatpush1.bf16.msra.mxu0 0
        %1178 = vmatprep.subr.bf16.mxu0 0
        %1179 = vmatpush1.bf16.msra.mxu0 0
        %1180 = vmatprep.subr.bf16.mxu0 0
        %1181 = vmatpush1.bf16.msra.mxu0 0
        %1182 = vmatprep.subr.bf16.mxu0 0
        %1183 = vmatpush1.bf16.msra.mxu0 0
        %1184 = vmatprep.mubr.bf16.mxu0 0
        %1185 = vmatmul.mubr.bf16.gmra.mrb[0].mxu0 %v1100
        %v1186 = vpop.f32.mrb[0].mxu0
        %v1187 = vadd.f32 0.0, %v1186
        %v1188 = vpop.f32.mrb[0].mxu0
        %v1189 = vpop.f32.mrb[0].mxu0
        %v1190 = vpop.f32.mrb[0].mxu0
        %1191 = vdwg.mxu0
        %v1192 = vadd.f32 %v1082, %v1146
        %v1193 = vadd.f32 %v1083, %v1148
        %v1194 = vadd.f32 %v1084, %v1187
        %v1195 = vadd.f32 %v1192, %v735
        %v1196 = vadd.f32 %v1193, %v735
        %v1197 = vadd.f32 %v1194, %v735
        %vm1198 = vcmp.gt.f32.partialorder %v1195, 0.0
        %vm1199 = vcmp.gt.f32.partialorder %v1196, 0.0
        %vm1200 = vcmp.gt.f32.partialorder %v1197, 0.0
        %v1201 = vmul.f32 %v1195, 0.2
        %v1202 = vmul.f32 %v1196, 0.2
        %v1203 = vmul.f32 %v1197, 0.2
        %v1204 = vsel %vm1198, %v1195, %v1201
        %v1205 = vsel %vm1199, %v1196, %v1202
        %v1206 = vsel %vm1200, %v1197, %v1203
        %v1207 = vmul.f32 %v1204, %v753
        %v1208 = vmul.f32 %v1205, %v757
        %v1209 = vmul.f32 %v1206, %v761
        %s1210 = scalar_lea.vmem [#allocation2], 16
        %1211 = vst.msk [vmem:[%s1210] sm:$0xf] %vm768, 0
        %1212 = vst.msk [vmem:[%s1210 + $0xc] sm:$0xf] %vm770, 0
        %v1213 = vpack.c.bf16 %v1207, %v1207
        %v1214 = vpack.c.bf16 %v1208, %v1208
        %v1215 = vpack.c.bf16 %v1209, %v1209
        %v1219 = vunpack.c.l.b16 %v1213
        %v1220 = vunpack.c.l.b16 %v1214
        %v1221 = vunpack.c.l.b16 %v1215
        %v1222 = vpack.c.b16 %v1220, %v1219
        %v1223 = vpack.c.b16 %v1221, %v1221
        %1224 = vrot.lane.b32.xlu0 %v1222, 19
        %v1225 = vpop.permute.xlu0 %1224
        %1226 = vrot.lane.b32.xlu0 %v1223, 19
        %v1227 = vpop.permute.xlu0 %1226
        %v1228 = vrot.slane %v1225, 4
        %v1229 = vrot.slane %v1227, 4
        %v1230 = vsel %vm789, %v1228, %v1225
        %v1231 = vsel %vm791, %v1228, %v1229
        %v1232 = vsel %vm789, %v1231, %v1227
        %1235 = vst.msk [vmem:[%s1210] sm:$0xff] %vm798, %v1230
        %1236 = vst.msk [vmem:[%s1210 + $0x8] sm:$0xff] %vm801, %v1232
        %s1237 = scalar_lea.vmem %s2, 32
        %v1238 = vld [vmem:[%s1237] sm:$0xf]
        %s1239 = scalar_lea.vmem %s2, 36
        %v1240 = vld [vmem:[%s1239] sm:$0xf]
        %v1242 = vsel %vm324, %v1240, 0
        %1244 = vmatprep.subr.bf16.mxu0 %v643
        %1245 = vmatpush1.bf16.msra.mxu0 %v640
        %1246 = vmatprep.subr.bf16.mxu0 0
        %1247 = vmatpush1.bf16.msra.mxu0 0
        %1248 = vmatprep.subr.bf16.mxu0 0
        %1249 = vmatpush1.bf16.msra.mxu0 0
        %1250 = vmatprep.subr.bf16.mxu0 0
        %1251 = vmatpush1.bf16.msra.mxu0 0
        %1252 = vmatprep.subr.bf16.mxu0 0
        %1253 = vmatpush1.bf16.msra.mxu0 0
        %1254 = vmatprep.subr.bf16.mxu0 0
        %1255 = vmatpush1.bf16.msra.mxu0 0
        %1256 = vmatprep.subr.bf16.mxu0 0
        %1257 = vmatpush1.bf16.msra.mxu0 0
        %1258 = vmatprep.subr.bf16.mxu0 0
        %1259 = vmatpush1.bf16.msra.mxu0 0
        %1260 = vmatprep.subr.bf16.mxu0 0
        %1261 = vmatpush1.bf16.msra.mxu0 0
        %1262 = vmatprep.subr.bf16.mxu0 0
        %1263 = vmatpush1.bf16.msra.mxu0 0
        %1264 = vmatprep.subr.bf16.mxu0 0
        %1265 = vmatpush1.bf16.msra.mxu0 0
        %1266 = vmatprep.subr.bf16.mxu0 0
        %1267 = vmatpush1.bf16.msra.mxu0 0
        %1268 = vmatprep.subr.bf16.mxu0 0
        %1269 = vmatpush1.bf16.msra.mxu0 0
        %1270 = vmatprep.subr.bf16.mxu0 0
        %1271 = vmatpush1.bf16.msra.mxu0 0
        %1272 = vmatprep.subr.bf16.mxu0 0
        %1273 = vmatpush1.bf16.msra.mxu0 0
        %1274 = vmatprep.subr.bf16.mxu0 0
        %1275 = vmatpush1.bf16.msra.mxu0 0
        %1276 = vmatprep.mubr.bf16.mxu0 0
        %1277 = vmatmul.mubr.bf16.gmra.mrb[0].mxu0 %v1242
        %v1278 = vpop.f32.mrb[0].mxu0
        %v1279 = vadd.f32 0.0, %v1278
        %v1280 = vpop.f32.mrb[0].mxu0
        %v1281 = vadd.f32 0.0, %v1280
        %v1282 = vpop.f32.mrb[0].mxu0
        %v1283 = vpop.f32.mrb[0].mxu0
        %1284 = vdwg.mxu0
        %1285 = vmatprep.subr.bf16.mxu0 0
        %1286 = vmatpush1.bf16.msra.mxu0 %v646
        %1287 = vmatprep.subr.bf16.mxu0 0
        %1288 = vmatpush1.bf16.msra.mxu0 0
        %1289 = vmatprep.subr.bf16.mxu0 0
        %1290 = vmatpush1.bf16.msra.mxu0 0
        %1291 = vmatprep.subr.bf16.mxu0 0
        %1292 = vmatpush1.bf16.msra.mxu0 0
        %1293 = vmatprep.subr.bf16.mxu0 0
        %1294 = vmatpush1.bf16.msra.mxu0 0
        %1295 = vmatprep.subr.bf16.mxu0 0
        %1296 = vmatpush1.bf16.msra.mxu0 0
        %1297 = vmatprep.subr.bf16.mxu0 0
        %1298 = vmatpush1.bf16.msra.mxu0 0
        %1299 = vmatprep.subr.bf16.mxu0 0
        %1300 = vmatpush1.bf16.msra.mxu0 0
        %1301 = vmatprep.subr.bf16.mxu0 0
        %1302 = vmatpush1.bf16.msra.mxu0 0
        %1303 = vmatprep.subr.bf16.mxu0 0
        %1304 = vmatpush1.bf16.msra.mxu0 0
        %1305 = vmatprep.subr.bf16.mxu0 0
        %1306 = vmatpush1.bf16.msra.mxu0 0
        %1307 = vmatprep.subr.bf16.mxu0 0
        %1308 = vmatpush1.bf16.msra.mxu0 0
        %1309 = vmatprep.subr.bf16.mxu0 0
        %1310 = vmatpush1.bf16.msra.mxu0 0
        %1311 = vmatprep.subr.bf16.mxu0 0
        %1312 = vmatpush1.bf16.msra.mxu0 0
        %1313 = vmatprep.subr.bf16.mxu0 0
        %1314 = vmatpush1.bf16.msra.mxu0 0
        %1315 = vmatprep.subr.bf16.mxu0 0
        %1316 = vmatpush1.bf16.msra.mxu0 0
        %1317 = vmatprep.mubr.bf16.mxu0 0
        %1318 = vmatmul.mubr.bf16.gmra.mrb[0].mxu0 %v1242
        %v1319 = vpop.f32.mrb[0].mxu0
        %v1320 = vadd.f32 0.0, %v1319
        %v1321 = vpop.f32.mrb[0].mxu0
        %v1322 = vpop.f32.mrb[0].mxu0
        %v1323 = vpop.f32.mrb[0].mxu0
        %1324 = vdwg.mxu0
        %v1326 = vsel %vm324, %v1238, 0
        %1328 = vmatprep.subr.bf16.mxu0 %v533
        %1329 = vmatpush1.bf16.msra.mxu0 %v530
        %1330 = vmatprep.subr.bf16.mxu0 0
        %1331 = vmatpush1.bf16.msra.mxu0 0
        %1332 = vmatprep.subr.bf16.mxu0 0
        %1333 = vmatpush1.bf16.msra.mxu0 0
        %1334 = vmatprep.subr.bf16.mxu0 0
        %1335 = vmatpush1.bf16.msra.mxu0 0
        %1336 = vmatprep.subr.bf16.mxu0 0
        %1337 = vmatpush1.bf16.msra.mxu0 0
        %1338 = vmatprep.subr.bf16.mxu0 0
        %1339 = vmatpush1.bf16.msra.mxu0 0
        %1340 = vmatprep.subr.bf16.mxu0 0
        %1341 = vmatpush1.bf16.msra.mxu0 0
        %1342 = vmatprep.subr.bf16.mxu0 0
        %1343 = vmatpush1.bf16.msra.mxu0 0
        %1344 = vmatprep.subr.bf16.mxu0 0
        %1345 = vmatpush1.bf16.msra.mxu0 0
        %1346 = vmatprep.subr.bf16.mxu0 0
        %1347 = vmatpush1.bf16.msra.mxu0 0
        %1348 = vmatprep.subr.bf16.mxu0 0
        %1349 = vmatpush1.bf16.msra.mxu0 0
        %1350 = vmatprep.subr.bf16.mxu0 0
        %1351 = vmatpush1.bf16.msra.mxu0 0
        %1352 = vmatprep.subr.bf16.mxu0 0
        %1353 = vmatpush1.bf16.msra.mxu0 0
        %1354 = vmatprep.subr.bf16.mxu0 0
        %1355 = vmatpush1.bf16.msra.mxu0 0
        %1356 = vmatprep.subr.bf16.mxu0 0
        %1357 = vmatpush1.bf16.msra.mxu0 0
        %1358 = vmatprep.subr.bf16.mxu0 0
        %1359 = vmatpush1.bf16.msra.mxu0 0
        %1360 = vmatprep.mubr.bf16.mxu0 0
        %1361 = vmatmul.mubr.bf16.gmra.mrb[0].mxu0 %v1326
        %v1362 = vpop.f32.mrb[0].mxu0
        %v1363 = vadd.f32 %v1279, %v1362
        %v1364 = vpop.f32.mrb[0].mxu0
        %v1365 = vadd.f32 %v1281, %v1364
        %v1366 = vpop.f32.mrb[0].mxu0
        %v1367 = vpop.f32.mrb[0].mxu0
        %1368 = vdwg.mxu0
        %1369 = vmatprep.subr.bf16.mxu0 0
        %1370 = vmatpush1.bf16.msra.mxu0 %v536
        %1371 = vmatprep.subr.bf16.mxu0 0
        %1372 = vmatpush1.bf16.msra.mxu0 0
        %1373 = vmatprep.subr.bf16.mxu0 0
        %1374 = vmatpush1.bf16.msra.mxu0 0
        %1375 = vmatprep.subr.bf16.mxu0 0
        %1376 = vmatpush1.bf16.msra.mxu0 0
        %1377 = vmatprep.subr.bf16.mxu0 0
        %1378 = vmatpush1.bf16.msra.mxu0 0
        %1379 = vmatprep.subr.bf16.mxu0 0
        %1380 = vmatpush1.bf16.msra.mxu0 0
        %1381 = vmatprep.subr.bf16.mxu0 0
        %1382 = vmatpush1.bf16.msra.mxu0 0
        %1383 = vmatprep.subr.bf16.mxu0 0
        %1384 = vmatpush1.bf16.msra.mxu0 0
        %1385 = vmatprep.subr.bf16.mxu0 0
        %1386 = vmatpush1.bf16.msra.mxu0 0
        %1387 = vmatprep.subr.bf16.mxu0 0
        %1388 = vmatpush1.bf16.msra.mxu0 0
        %1389 = vmatprep.subr.bf16.mxu0 0
        %1390 = vmatpush1.bf16.msra.mxu0 0
        %1391 = vmatprep.subr.bf16.mxu0 0
        %1392 = vmatpush1.bf16.msra.mxu0 0
        %1393 = vmatprep.subr.bf16.mxu0 0
        %1394 = vmatpush1.bf16.msra.mxu0 0
        %1395 = vmatprep.subr.bf16.mxu0 0
        %1396 = vmatpush1.bf16.msra.mxu0 0
        %1397 = vmatprep.subr.bf16.mxu0 0
        %1398 = vmatpush1.bf16.msra.mxu0 0
        %1399 = vmatprep.subr.bf16.mxu0 0
        %1400 = vmatpush1.bf16.msra.mxu0 0
        %1401 = vmatprep.mubr.bf16.mxu0 0
        %1402 = vmatmul.mubr.bf16.gmra.mrb[0].mxu0 %v1326
        %v1403 = vpop.f32.mrb[0].mxu0
        %v1404 = vadd.f32 %v1320, %v1403
        %v1405 = vpop.f32.mrb[0].mxu0
        %v1406 = vpop.f32.mrb[0].mxu0
        %v1407 = vpop.f32.mrb[0].mxu0
        %1408 = vdwg.mxu0
        %s1409 = scalar_lea.vmem %s2, 40
        %v1410 = vld [vmem:[%s1409] sm:$0xf]
        %1411 = vrot.lane.b32.xlu0 %v294, 92
        %v1412 = vpop.permute.xlu0 %1411
        %1413 = vrot.lane.b32.xlu0 %v295, 92
        %v1414 = vpop.permute.xlu0 %1413
        %1415 = vrot.lane.b32.xlu0 %v296, 92
        %v1416 = vpop.permute.xlu0 %1415
        %1417 = vrot.lane.b32.xlu0 %v297, 92
        %v1418 = vpop.permute.xlu0 %1417
        %vm1419 = vcmask 752640
        %v1420 = vsel %vm1419, %v1412, %v1414
        %v1421 = vsel %vm1419, %v1414, %v1416
        %v1422 = vsel %vm1419, %v1416, %v1418
        %v1424 = vsel %vm324, %v1410, 0
        %v1427 = vsel %vm328, %v1420, 0
        %v1430 = vsel %vm328, %v1421, 0
        %v1433 = vsel %vm328, %v1422, 0
        %1435 = vmatprep.subr.bf16.mxu0 %v1430
        %1436 = vmatpush1.bf16.msra.mxu0 %v1427
        %1437 = vmatprep.subr.bf16.mxu0 0
        %1438 = vmatpush1.bf16.msra.mxu0 0
        %1439 = vmatprep.subr.bf16.mxu0 0
        %1440 = vmatpush1.bf16.msra.mxu0 0
        %1441 = vmatprep.subr.bf16.mxu0 0
        %1442 = vmatpush1.bf16.msra.mxu0 0
        %1443 = vmatprep.subr.bf16.mxu0 0
        %1444 = vmatpush1.bf16.msra.mxu0 0
        %1445 = vmatprep.subr.bf16.mxu0 0
        %1446 = vmatpush1.bf16.msra.mxu0 0
        %1447 = vmatprep.subr.bf16.mxu0 0
        %1448 = vmatpush1.bf16.msra.mxu0 0
        %1449 = vmatprep.subr.bf16.mxu0 0
        %1450 = vmatpush1.bf16.msra.mxu0 0
        %1451 = vmatprep.subr.bf16.mxu0 0
        %1452 = vmatpush1.bf16.msra.mxu0 0
        %1453 = vmatprep.subr.bf16.mxu0 0
        %1454 = vmatpush1.bf16.msra.mxu0 0
        %1455 = vmatprep.subr.bf16.mxu0 0
        %1456 = vmatpush1.bf16.msra.mxu0 0
        %1457 = vmatprep.subr.bf16.mxu0 0
        %1458 = vmatpush1.bf16.msra.mxu0 0
        %1459 = vmatprep.subr.bf16.mxu0 0
        %1460 = vmatpush1.bf16.msra.mxu0 0
        %1461 = vmatprep.subr.bf16.mxu0 0
        %1462 = vmatpush1.bf16.msra.mxu0 0
        %1463 = vmatprep.subr.bf16.mxu0 0
        %1464 = vmatpush1.bf16.msra.mxu0 0
        %1465 = vmatprep.subr.bf16.mxu0 0
        %1466 = vmatpush1.bf16.msra.mxu0 0
        %1467 = vmatprep.mubr.bf16.mxu0 0
        %1468 = vmatmul.mubr.bf16.gmra.mrb[0].mxu0 %v1424
        %v1469 = vpop.f32.mrb[0].mxu0
        %v1470 = vadd.f32 0.0, %v1469
        %v1471 = vpop.f32.mrb[0].mxu0
        %v1472 = vadd.f32 0.0, %v1471
        %v1473 = vpop.f32.mrb[0].mxu0
        %v1474 = vpop.f32.mrb[0].mxu0
        %1475 = vdwg.mxu0
        %1476 = vmatprep.subr.bf16.mxu0 0
        %1477 = vmatpush1.bf16.msra.mxu0 %v1433
        %1478 = vmatprep.subr.bf16.mxu0 0
        %1479 = vmatpush1.bf16.msra.mxu0 0
        %1480 = vmatprep.subr.bf16.mxu0 0
        %1481 = vmatpush1.bf16.msra.mxu0 0
        %1482 = vmatprep.subr.bf16.mxu0 0
        %1483 = vmatpush1.bf16.msra.mxu0 0
        %1484 = vmatprep.subr.bf16.mxu0 0
        %1485 = vmatpush1.bf16.msra.mxu0 0
        %1486 = vmatprep.subr.bf16.mxu0 0
        %1487 = vmatpush1.bf16.msra.mxu0 0
        %1488 = vmatprep.subr.bf16.mxu0 0
        %1489 = vmatpush1.bf16.msra.mxu0 0
        %1490 = vmatprep.subr.bf16.mxu0 0
        %1491 = vmatpush1.bf16.msra.mxu0 0
        %1492 = vmatprep.subr.bf16.mxu0 0
        %1493 = vmatpush1.bf16.msra.mxu0 0
        %1494 = vmatprep.subr.bf16.mxu0 0
        %1495 = vmatpush1.bf16.msra.mxu0 0
        %1496 = vmatprep.subr.bf16.mxu0 0
        %1497 = vmatpush1.bf16.msra.mxu0 0
        %1498 = vmatprep.subr.bf16.mxu0 0
        %1499 = vmatpush1.bf16.msra.mxu0 0
        %1500 = vmatprep.subr.bf16.mxu0 0
        %1501 = vmatpush1.bf16.msra.mxu0 0
        %1502 = vmatprep.subr.bf16.mxu0 0
        %1503 = vmatpush1.bf16.msra.mxu0 0
        %1504 = vmatprep.subr.bf16.mxu0 0
        %1505 = vmatpush1.bf16.msra.mxu0 0
        %1506 = vmatprep.subr.bf16.mxu0 0
        %1507 = vmatpush1.bf16.msra.mxu0 0
        %1508 = vmatprep.mubr.bf16.mxu0 0
        %1509 = vmatmul.mubr.bf16.gmra.mrb[0].mxu0 %v1424
        %v1510 = vpop.f32.mrb[0].mxu0
        %v1511 = vadd.f32 0.0, %v1510
        %v1512 = vpop.f32.mrb[0].mxu0
        %v1513 = vpop.f32.mrb[0].mxu0
        %v1514 = vpop.f32.mrb[0].mxu0
        %1515 = vdwg.mxu0
        %v1516 = vadd.f32 %v1363, %v1470
        %v1517 = vadd.f32 %v1365, %v1472
        %v1518 = vadd.f32 %v1404, %v1511
        %s1519 = scalar_lea.vmem %s2, 44
        %v1520 = vld [vmem:[%s1519] sm:$0xf]
        %1521 = vrot.lane.b32.xlu0 %v294, 91
        %v1522 = vpop.permute.xlu0 %1521
        %1523 = vrot.lane.b32.xlu0 %v295, 91
        %v1524 = vpop.permute.xlu0 %1523
        %1525 = vrot.lane.b32.xlu0 %v296, 91
        %v1526 = vpop.permute.xlu0 %1525
        %1527 = vrot.lane.b32.xlu0 %v297, 91
        %v1528 = vpop.permute.xlu0 %1527
        %vm1529 = vcmask 744448
        %v1530 = vsel %vm1529, %v1522, %v1524
        %v1531 = vsel %vm1529, %v1524, %v1526
        %v1532 = vsel %vm1529, %v1526, %v1528
        %v1534 = vsel %vm324, %v1520, 0
        %v1537 = vsel %vm328, %v1530, 0
        %v1540 = vsel %vm328, %v1531, 0
        %v1543 = vsel %vm328, %v1532, 0
        %1545 = vmatprep.subr.bf16.mxu0 %v1540
        %1546 = vmatpush1.bf16.msra.mxu0 %v1537
        %1547 = vmatprep.subr.bf16.mxu0 0
        %1548 = vmatpush1.bf16.msra.mxu0 0
        %1549 = vmatprep.subr.bf16.mxu0 0
        %1550 = vmatpush1.bf16.msra.mxu0 0
        %1551 = vmatprep.subr.bf16.mxu0 0
        %1552 = vmatpush1.bf16.msra.mxu0 0
        %1553 = vmatprep.subr.bf16.mxu0 0
        %1554 = vmatpush1.bf16.msra.mxu0 0
        %1555 = vmatprep.subr.bf16.mxu0 0
        %1556 = vmatpush1.bf16.msra.mxu0 0
        %1557 = vmatprep.subr.bf16.mxu0 0
        %1558 = vmatpush1.bf16.msra.mxu0 0
        %1559 = vmatprep.subr.bf16.mxu0 0
        %1560 = vmatpush1.bf16.msra.mxu0 0
        %1561 = vmatprep.subr.bf16.mxu0 0
        %1562 = vmatpush1.bf16.msra.mxu0 0
        %1563 = vmatprep.subr.bf16.mxu0 0
        %1564 = vmatpush1.bf16.msra.mxu0 0
        %1565 = vmatprep.subr.bf16.mxu0 0
        %1566 = vmatpush1.bf16.msra.mxu0 0
        %1567 = vmatprep.subr.bf16.mxu0 0
        %1568 = vmatpush1.bf16.msra.mxu0 0
        %1569 = vmatprep.subr.bf16.mxu0 0
        %1570 = vmatpush1.bf16.msra.mxu0 0
        %1571 = vmatprep.subr.bf16.mxu0 0
        %1572 = vmatpush1.bf16.msra.mxu0 0
        %1573 = vmatprep.subr.bf16.mxu0 0
        %1574 = vmatpush1.bf16.msra.mxu0 0
        %1575 = vmatprep.subr.bf16.mxu0 0
        %1576 = vmatpush1.bf16.msra.mxu0 0
        %1577 = vmatprep.mubr.bf16.mxu0 0
        %1578 = vmatmul.mubr.bf16.gmra.mrb[0].mxu0 %v1534
        %v1579 = vpop.f32.mrb[0].mxu0
        %v1580 = vadd.f32 0.0, %v1579
        %v1581 = vpop.f32.mrb[0].mxu0
        %v1582 = vadd.f32 0.0, %v1581
        %v1583 = vpop.f32.mrb[0].mxu0
        %v1584 = vpop.f32.mrb[0].mxu0
        %1585 = vdwg.mxu0
        %1586 = vmatprep.subr.bf16.mxu0 0
        %1587 = vmatpush1.bf16.msra.mxu0 %v1543
        %1588 = vmatprep.subr.bf16.mxu0 0
        %1589 = vmatpush1.bf16.msra.mxu0 0
        %1590 = vmatprep.subr.bf16.mxu0 0
        %1591 = vmatpush1.bf16.msra.mxu0 0
        %1592 = vmatprep.subr.bf16.mxu0 0
        %1593 = vmatpush1.bf16.msra.mxu0 0
        %1594 = vmatprep.subr.bf16.mxu0 0
        %1595 = vmatpush1.bf16.msra.mxu0 0
        %1596 = vmatprep.subr.bf16.mxu0 0
        %1597 = vmatpush1.bf16.msra.mxu0 0
        %1598 = vmatprep.subr.bf16.mxu0 0
        %1599 = vmatpush1.bf16.msra.mxu0 0
        %1600 = vmatprep.subr.bf16.mxu0 0
        %1601 = vmatpush1.bf16.msra.mxu0 0
        %1602 = vmatprep.subr.bf16.mxu0 0
        %1603 = vmatpush1.bf16.msra.mxu0 0
        %1604 = vmatprep.subr.bf16.mxu0 0
        %1605 = vmatpush1.bf16.msra.mxu0 0
        %1606 = vmatprep.subr.bf16.mxu0 0
        %1607 = vmatpush1.bf16.msra.mxu0 0
        %1608 = vmatprep.subr.bf16.mxu0 0
        %1609 = vmatpush1.bf16.msra.mxu0 0
        %1610 = vmatprep.subr.bf16.mxu0 0
        %1611 = vmatpush1.bf16.msra.mxu0 0
        %1612 = vmatprep.subr.bf16.mxu0 0
        %1613 = vmatpush1.bf16.msra.mxu0 0
        %1614 = vmatprep.subr.bf16.mxu0 0
        %1615 = vmatpush1.bf16.msra.mxu0 0
        %1616 = vmatprep.subr.bf16.mxu0 0
        %1617 = vmatpush1.bf16.msra.mxu0 0
        %1618 = vmatprep.mubr.bf16.mxu0 0
        %1619 = vmatmul.mubr.bf16.gmra.mrb[0].mxu0 %v1534
        %v1620 = vpop.f32.mrb[0].mxu0
        %v1621 = vadd.f32 0.0, %v1620
        %v1622 = vpop.f32.mrb[0].mxu0
        %v1623 = vpop.f32.mrb[0].mxu0
        %v1624 = vpop.f32.mrb[0].mxu0
        %1625 = vdwg.mxu0
        %v1626 = vadd.f32 %v1516, %v1580
        %v1627 = vadd.f32 %v1517, %v1582
        %v1628 = vadd.f32 %v1518, %v1621
        %v1629 = vadd.f32 %v1626, %v735
        %v1630 = vadd.f32 %v1627, %v735
        %v1631 = vadd.f32 %v1628, %v735
        %vm1632 = vcmp.gt.f32.partialorder %v1629, 0.0
        %vm1633 = vcmp.gt.f32.partialorder %v1630, 0.0
        %vm1634 = vcmp.gt.f32.partialorder %v1631, 0.0
        %v1635 = vmul.f32 %v1629, 0.2
        %v1636 = vmul.f32 %v1630, 0.2
        %v1637 = vmul.f32 %v1631, 0.2
        %v1638 = vsel %vm1632, %v1629, %v1635
        %v1639 = vsel %vm1633, %v1630, %v1636
        %v1640 = vsel %vm1634, %v1631, %v1637
        %v1641 = vmul.f32 %v1638, %v753
        %v1642 = vmul.f32 %v1639, %v757
        %v1643 = vmul.f32 %v1640, %v761
        %s1644 = scalar_lea.vmem [#allocation2], 32
        %1645 = vst.msk [vmem:[%s1644] sm:$0xf] %vm768, 0
        %1646 = vst.msk [vmem:[%s1644 + $0xc] sm:$0xf] %vm770, 0
        %v1647 = vpack.c.bf16 %v1641, %v1641
        %v1648 = vpack.c.bf16 %v1642, %v1642
        %v1649 = vpack.c.bf16 %v1643, %v1643
        %v1653 = vunpack.c.l.b16 %v1647
        %v1654 = vunpack.c.l.b16 %v1648
        %v1655 = vunpack.c.l.b16 %v1649
        %v1656 = vpack.c.b16 %v1654, %v1653
        %v1657 = vpack.c.b16 %v1655, %v1655
        %1658 = vrot.lane.b32.xlu0 %v1656, 19
        %v1659 = vpop.permute.xlu0 %1658
        %1660 = vrot.lane.b32.xlu0 %v1657, 19
        %v1661 = vpop.permute.xlu0 %1660
        %v1662 = vrot.slane %v1659, 4
        %v1663 = vrot.slane %v1661, 4
        %v1664 = vsel %vm789, %v1662, %v1659
        %v1665 = vsel %vm791, %v1662, %v1663
        %v1666 = vsel %vm789, %v1665, %v1661
        %1669 = vst.msk [vmem:[%s1644] sm:$0xff] %vm798, %v1664
        %1670 = vst.msk [vmem:[%s1644 + $0x8] sm:$0xff] %vm801, %v1666
        %s1671 = scalar_lea.vmem %s2, 48
        %v1672 = vld [vmem:[%s1671] sm:$0xf]
        %s1673 = scalar_lea.vmem %s2, 52
        %v1674 = vld [vmem:[%s1673] sm:$0xf]
        %v1676 = vsel %vm324, %v1674, 0
        %1678 = vmatprep.subr.bf16.mxu0 %v1106
        %1679 = vmatpush1.bf16.msra.mxu0 %v1103
        %1680 = vmatprep.subr.bf16.mxu0 0
        %1681 = vmatpush1.bf16.msra.mxu0 0
        %1682 = vmatprep.subr.bf16.mxu0 0
        %1683 = vmatpush1.bf16.msra.mxu0 0
        %1684 = vmatprep.subr.bf16.mxu0 0
        %1685 = vmatpush1.bf16.msra.mxu0 0
        %1686 = vmatprep.subr.bf16.mxu0 0
        %1687 = vmatpush1.bf16.msra.mxu0 0
        %1688 = vmatprep.subr.bf16.mxu0 0
        %1689 = vmatpush1.bf16.msra.mxu0 0
        %1690 = vmatprep.subr.bf16.mxu0 0
        %1691 = vmatpush1.bf16.msra.mxu0 0
        %1692 = vmatprep.subr.bf16.mxu0 0
        %1693 = vmatpush1.bf16.msra.mxu0 0
        %1694 = vmatprep.subr.bf16.mxu0 0
        %1695 = vmatpush1.bf16.msra.mxu0 0
        %1696 = vmatprep.subr.bf16.mxu0 0
        %1697 = vmatpush1.bf16.msra.mxu0 0
        %1698 = vmatprep.subr.bf16.mxu0 0
        %1699 = vmatpush1.bf16.msra.mxu0 0
        %1700 = vmatprep.subr.bf16.mxu0 0
        %1701 = vmatpush1.bf16.msra.mxu0 0
        %1702 = vmatprep.subr.bf16.mxu0 0
        %1703 = vmatpush1.bf16.msra.mxu0 0
        %1704 = vmatprep.subr.bf16.mxu0 0
        %1705 = vmatpush1.bf16.msra.mxu0 0
        %1706 = vmatprep.subr.bf16.mxu0 0
        %1707 = vmatpush1.bf16.msra.mxu0 0
        %1708 = vmatprep.subr.bf16.mxu0 0
        %1709 = vmatpush1.bf16.msra.mxu0 0
        %1710 = vmatprep.mubr.bf16.mxu0 0
        %1711 = vmatmul.mubr.bf16.gmra.mrb[0].mxu0 %v1676
        %v1712 = vpop.f32.mrb[0].mxu0
        %v1713 = vadd.f32 0.0, %v1712
        %v1714 = vpop.f32.mrb[0].mxu0
        %v1715 = vadd.f32 0.0, %v1714
        %v1716 = vpop.f32.mrb[0].mxu0
        %v1717 = vpop.f32.mrb[0].mxu0
        %1718 = vdwg.mxu0
        %1719 = vmatprep.subr.bf16.mxu0 0
        %1720 = vmatpush1.bf16.msra.mxu0 %v1109
        %1721 = vmatprep.subr.bf16.mxu0 0
        %1722 = vmatpush1.bf16.msra.mxu0 0
        %1723 = vmatprep.subr.bf16.mxu0 0
        %1724 = vmatpush1.bf16.msra.mxu0 0
        %1725 = vmatprep.subr.bf16.mxu0 0
        %1726 = vmatpush1.bf16.msra.mxu0 0
        %1727 = vmatprep.subr.bf16.mxu0 0
        %1728 = vmatpush1.bf16.msra.mxu0 0
        %1729 = vmatprep.subr.bf16.mxu0 0
        %1730 = vmatpush1.bf16.msra.mxu0 0
        %1731 = vmatprep.subr.bf16.mxu0 0
        %1732 = vmatpush1.bf16.msra.mxu0 0
        %1733 = vmatprep.subr.bf16.mxu0 0
        %1734 = vmatpush1.bf16.msra.mxu0 0
        %1735 = vmatprep.subr.bf16.mxu0 0
        %1736 = vmatpush1.bf16.msra.mxu0 0
        %1737 = vmatprep.subr.bf16.mxu0 0
        %1738 = vmatpush1.bf16.msra.mxu0 0
        %1739 = vmatprep.subr.bf16.mxu0 0
        %1740 = vmatpush1.bf16.msra.mxu0 0
        %1741 = vmatprep.subr.bf16.mxu0 0
        %1742 = vmatpush1.bf16.msra.mxu0 0
        %1743 = vmatprep.subr.bf16.mxu0 0
        %1744 = vmatpush1.bf16.msra.mxu0 0
        %1745 = vmatprep.subr.bf16.mxu0 0
        %1746 = vmatpush1.bf16.msra.mxu0 0
        %1747 = vmatprep.subr.bf16.mxu0 0
        %1748 = vmatpush1.bf16.msra.mxu0 0
        %1749 = vmatprep.subr.bf16.mxu0 0
        %1750 = vmatpush1.bf16.msra.mxu0 0
        %1751 = vmatprep.mubr.bf16.mxu0 0
        %1752 = vmatmul.mubr.bf16.gmra.mrb[0].mxu0 %v1676
        %v1753 = vpop.f32.mrb[0].mxu0
        %v1754 = vadd.f32 0.0, %v1753
        %v1755 = vpop.f32.mrb[0].mxu0
        %v1756 = vpop.f32.mrb[0].mxu0
        %v1757 = vpop.f32.mrb[0].mxu0
        %1758 = vdwg.mxu0
        %v1760 = vsel %vm324, %v1672, 0
        %1762 = vmatprep.subr.bf16.mxu0 %v643
        %1763 = vmatpush1.bf16.msra.mxu0 %v640
        %1764 = vmatprep.subr.bf16.mxu0 0
        %1765 = vmatpush1.bf16.msra.mxu0 0
        %1766 = vmatprep.subr.bf16.mxu0 0
        %1767 = vmatpush1.bf16.msra.mxu0 0
        %1768 = vmatprep.subr.bf16.mxu0 0
        %1769 = vmatpush1.bf16.msra.mxu0 0
        %1770 = vmatprep.subr.bf16.mxu0 0
        %1771 = vmatpush1.bf16.msra.mxu0 0
        %1772 = vmatprep.subr.bf16.mxu0 0
        %1773 = vmatpush1.bf16.msra.mxu0 0
        %1774 = vmatprep.subr.bf16.mxu0 0
        %1775 = vmatpush1.bf16.msra.mxu0 0
        %1776 = vmatprep.subr.bf16.mxu0 0
        %1777 = vmatpush1.bf16.msra.mxu0 0
        %1778 = vmatprep.subr.bf16.mxu0 0
        %1779 = vmatpush1.bf16.msra.mxu0 0
        %1780 = vmatprep.subr.bf16.mxu0 0
        %1781 = vmatpush1.bf16.msra.mxu0 0
        %1782 = vmatprep.subr.bf16.mxu0 0
        %1783 = vmatpush1.bf16.msra.mxu0 0
        %1784 = vmatprep.subr.bf16.mxu0 0
        %1785 = vmatpush1.bf16.msra.mxu0 0
        %1786 = vmatprep.subr.bf16.mxu0 0
        %1787 = vmatpush1.bf16.msra.mxu0 0
        %1788 = vmatprep.subr.bf16.mxu0 0
        %1789 = vmatpush1.bf16.msra.mxu0 0
        %1790 = vmatprep.subr.bf16.mxu0 0
        %1791 = vmatpush1.bf16.msra.mxu0 0
        %1792 = vmatprep.subr.bf16.mxu0 0
        %1793 = vmatpush1.bf16.msra.mxu0 0
        %1794 = vmatprep.mubr.bf16.mxu0 0
        %1795 = vmatmul.mubr.bf16.gmra.mrb[0].mxu0 %v1760
        %v1796 = vpop.f32.mrb[0].mxu0
        %v1797 = vadd.f32 %v1713, %v1796
        %v1798 = vpop.f32.mrb[0].mxu0
        %v1799 = vadd.f32 %v1715, %v1798
        %v1800 = vpop.f32.mrb[0].mxu0
        %v1801 = vpop.f32.mrb[0].mxu0
        %1802 = vdwg.mxu0
        %1803 = vmatprep.subr.bf16.mxu0 0
        %1804 = vmatpush1.bf16.msra.mxu0 %v646
        %1805 = vmatprep.subr.bf16.mxu0 0
        %1806 = vmatpush1.bf16.msra.mxu0 0
        %1807 = vmatprep.subr.bf16.mxu0 0
        %1808 = vmatpush1.bf16.msra.mxu0 0
        %1809 = vmatprep.subr.bf16.mxu0 0
        %1810 = vmatpush1.bf16.msra.mxu0 0
        %1811 = vmatprep.subr.bf16.mxu0 0
        %1812 = vmatpush1.bf16.msra.mxu0 0
        %1813 = vmatprep.subr.bf16.mxu0 0
        %1814 = vmatpush1.bf16.msra.mxu0 0
        %1815 = vmatprep.subr.bf16.mxu0 0
        %1816 = vmatpush1.bf16.msra.mxu0 0
        %1817 = vmatprep.subr.bf16.mxu0 0
        %1818 = vmatpush1.bf16.msra.mxu0 0
        %1819 = vmatprep.subr.bf16.mxu0 0
        %1820 = vmatpush1.bf16.msra.mxu0 0
        %1821 = vmatprep.subr.bf16.mxu0 0
        %1822 = vmatpush1.bf16.msra.mxu0 0
        %1823 = vmatprep.subr.bf16.mxu0 0
        %1824 = vmatpush1.bf16.msra.mxu0 0
        %1825 = vmatprep.subr.bf16.mxu0 0
        %1826 = vmatpush1.bf16.msra.mxu0 0
        %1827 = vmatprep.subr.bf16.mxu0 0
        %1828 = vmatpush1.bf16.msra.mxu0 0
        %1829 = vmatprep.subr.bf16.mxu0 0
        %1830 = vmatpush1.bf16.msra.mxu0 0
        %1831 = vmatprep.subr.bf16.mxu0 0
        %1832 = vmatpush1.bf16.msra.mxu0 0
        %1833 = vmatprep.subr.bf16.mxu0 0
        %1834 = vmatpush1.bf16.msra.mxu0 0
        %1835 = vmatprep.mubr.bf16.mxu0 0
        %1836 = vmatmul.mubr.bf16.gmra.mrb[0].mxu0 %v1760
        %v1837 = vpop.f32.mrb[0].mxu0
        %v1838 = vadd.f32 %v1754, %v1837
        %v1839 = vpop.f32.mrb[0].mxu0
        %v1840 = vpop.f32.mrb[0].mxu0
        %v1841 = vpop.f32.mrb[0].mxu0
        %1842 = vdwg.mxu0
        %s1843 = scalar_lea.vmem %s2, 56
        %v1844 = vld [vmem:[%s1843] sm:$0xf]
        %v1846 = vsel %vm324, %v1844, 0
        %1848 = vmatprep.subr.bf16.mxu0 %v1540
        %1849 = vmatpush1.bf16.msra.mxu0 %v1537
        %1850 = vmatprep.subr.bf16.mxu0 0
        %1851 = vmatpush1.bf16.msra.mxu0 0
        %1852 = vmatprep.subr.bf16.mxu0 0
        %1853 = vmatpush1.bf16.msra.mxu0 0
        %1854 = vmatprep.subr.bf16.mxu0 0
        %1855 = vmatpush1.bf16.msra.mxu0 0
        %1856 = vmatprep.subr.bf16.mxu0 0
        %1857 = vmatpush1.bf16.msra.mxu0 0
        %1858 = vmatprep.subr.bf16.mxu0 0
        %1859 = vmatpush1.bf16.msra.mxu0 0
        %1860 = vmatprep.subr.bf16.mxu0 0
        %1861 = vmatpush1.bf16.msra.mxu0 0
        %1862 = vmatprep.subr.bf16.mxu0 0
        %1863 = vmatpush1.bf16.msra.mxu0 0
        %1864 = vmatprep.subr.bf16.mxu0 0
        %1865 = vmatpush1.bf16.msra.mxu0 0
        %1866 = vmatprep.subr.bf16.mxu0 0
        %1867 = vmatpush1.bf16.msra.mxu0 0
        %1868 = vmatprep.subr.bf16.mxu0 0
        %1869 = vmatpush1.bf16.msra.mxu0 0
        %1870 = vmatprep.subr.bf16.mxu0 0
        %1871 = vmatpush1.bf16.msra.mxu0 0
        %1872 = vmatprep.subr.bf16.mxu0 0
        %1873 = vmatpush1.bf16.msra.mxu0 0
        %1874 = vmatprep.subr.bf16.mxu0 0
        %1875 = vmatpush1.bf16.msra.mxu0 0
        %1876 = vmatprep.subr.bf16.mxu0 0
        %1877 = vmatpush1.bf16.msra.mxu0 0
        %1878 = vmatprep.subr.bf16.mxu0 0
        %1879 = vmatpush1.bf16.msra.mxu0 0
        %1880 = vmatprep.mubr.bf16.mxu0 0
        %1881 = vmatmul.mubr.bf16.gmra.mrb[0].mxu0 %v1846
        %v1882 = vpop.f32.mrb[0].mxu0
        %v1883 = vadd.f32 0.0, %v1882
        %v1884 = vpop.f32.mrb[0].mxu0
        %v1885 = vadd.f32 0.0, %v1884
        %v1886 = vpop.f32.mrb[0].mxu0
        %v1887 = vpop.f32.mrb[0].mxu0
        %1888 = vdwg.mxu0
        %1889 = vmatprep.subr.bf16.mxu0 0
        %1890 = vmatpush1.bf16.msra.mxu0 %v1543
        %1891 = vmatprep.subr.bf16.mxu0 0
        %1892 = vmatpush1.bf16.msra.mxu0 0
        %1893 = vmatprep.subr.bf16.mxu0 0
        %1894 = vmatpush1.bf16.msra.mxu0 0
        %1895 = vmatprep.subr.bf16.mxu0 0
        %1896 = vmatpush1.bf16.msra.mxu0 0
        %1897 = vmatprep.subr.bf16.mxu0 0
        %1898 = vmatpush1.bf16.msra.mxu0 0
        %1899 = vmatprep.subr.bf16.mxu0 0
        %1900 = vmatpush1.bf16.msra.mxu0 0
        %1901 = vmatprep.subr.bf16.mxu0 0
        %1902 = vmatpush1.bf16.msra.mxu0 0
        %1903 = vmatprep.subr.bf16.mxu0 0
        %1904 = vmatpush1.bf16.msra.mxu0 0
        %1905 = vmatprep.subr.bf16.mxu0 0
        %1906 = vmatpush1.bf16.msra.mxu0 0
        %1907 = vmatprep.subr.bf16.mxu0 0
        %1908 = vmatpush1.bf16.msra.mxu0 0
        %1909 = vmatprep.subr.bf16.mxu0 0
        %1910 = vmatpush1.bf16.msra.mxu0 0
        %1911 = vmatprep.subr.bf16.mxu0 0
        %1912 = vmatpush1.bf16.msra.mxu0 0
        %1913 = vmatprep.subr.bf16.mxu0 0
        %1914 = vmatpush1.bf16.msra.mxu0 0
        %1915 = vmatprep.subr.bf16.mxu0 0
        %1916 = vmatpush1.bf16.msra.mxu0 0
        %1917 = vmatprep.subr.bf16.mxu0 0
        %1918 = vmatpush1.bf16.msra.mxu0 0
        %1919 = vmatprep.subr.bf16.mxu0 0
        %1920 = vmatpush1.bf16.msra.mxu0 0
        %1921 = vmatprep.mubr.bf16.mxu0 0
        %1922 = vmatmul.mubr.bf16.gmra.mrb[0].mxu0 %v1846
        %v1923 = vpop.f32.mrb[0].mxu0
        %v1924 = vadd.f32 0.0, %v1923
        %v1925 = vpop.f32.mrb[0].mxu0
        %v1926 = vpop.f32.mrb[0].mxu0
        %v1927 = vpop.f32.mrb[0].mxu0
        %1928 = vdwg.mxu0
        %v1929 = vadd.f32 %v1797, %v1883
        %v1930 = vadd.f32 %v1799, %v1885
        %v1931 = vadd.f32 %v1838, %v1924
        %s1932 = scalar_lea.vmem %s2, 60
        %v1933 = vld [vmem:[%s1932] sm:$0xf]
        %1934 = vrot.lane.b32.xlu0 %v294, 90
        %v1935 = vpop.permute.xlu0 %1934
        %1936 = vrot.lane.b32.xlu0 %v295, 90
        %v1937 = vpop.permute.xlu0 %1936
        %1938 = vrot.lane.b32.xlu0 %v296, 90
        %v1939 = vpop.permute.xlu0 %1938
        %1940 = vrot.lane.b32.xlu0 %v297, 90
        %v1941 = vpop.permute.xlu0 %1940
        %vm1942 = vcmask 736256
        %v1943 = vsel %vm1942, %v1935, %v1937
        %v1944 = vsel %vm1942, %v1937, %v1939
        %v1945 = vsel %vm1942, %v1939, %v1941
        %v1947 = vsel %vm324, %v1933, 0
        %v1950 = vsel %vm328, %v1943, 0
        %v1953 = vsel %vm328, %v1944, 0
        %v1956 = vsel %vm328, %v1945, 0
        %1958 = vmatprep.subr.bf16.mxu0 %v1953
        %1959 = vmatpush1.bf16.msra.mxu0 %v1950
        %1960 = vmatprep.subr.bf16.mxu0 0
        %1961 = vmatpush1.bf16.msra.mxu0 0
        %1962 = vmatprep.subr.bf16.mxu0 0
        %1963 = vmatpush1.bf16.msra.mxu0 0
        %1964 = vmatprep.subr.bf16.mxu0 0
        %1965 = vmatpush1.bf16.msra.mxu0 0
        %1966 = vmatprep.subr.bf16.mxu0 0
        %1967 = vmatpush1.bf16.msra.mxu0 0
        %1968 = vmatprep.subr.bf16.mxu0 0
        %1969 = vmatpush1.bf16.msra.mxu0 0
        %1970 = vmatprep.subr.bf16.mxu0 0
        %1971 = vmatpush1.bf16.msra.mxu0 0
        %1972 = vmatprep.subr.bf16.mxu0 0
        %1973 = vmatpush1.bf16.msra.mxu0 0
        %1974 = vmatprep.subr.bf16.mxu0 0
        %1975 = vmatpush1.bf16.msra.mxu0 0
        %1976 = vmatprep.subr.bf16.mxu0 0
        %1977 = vmatpush1.bf16.msra.mxu0 0
        %1978 = vmatprep.subr.bf16.mxu0 0
        %1979 = vmatpush1.bf16.msra.mxu0 0
        %1980 = vmatprep.subr.bf16.mxu0 0
        %1981 = vmatpush1.bf16.msra.mxu0 0
        %1982 = vmatprep.subr.bf16.mxu0 0
        %1983 = vmatpush1.bf16.msra.mxu0 0
        %1984 = vmatprep.subr.bf16.mxu0 0
        %1985 = vmatpush1.bf16.msra.mxu0 0
        %1986 = vmatprep.subr.bf16.mxu0 0
        %1987 = vmatpush1.bf16.msra.mxu0 0
        %1988 = vmatprep.subr.bf16.mxu0 0
        %1989 = vmatpush1.bf16.msra.mxu0 0
        %1990 = vmatprep.mubr.bf16.mxu0 0
        %1991 = vmatmul.mubr.bf16.gmra.mrb[0].mxu0 %v1947
        %v1992 = vpop.f32.mrb[0].mxu0
        %v1993 = vadd.f32 0.0, %v1992
        %v1994 = vpop.f32.mrb[0].mxu0
        %v1995 = vadd.f32 0.0, %v1994
        %v1996 = vpop.f32.mrb[0].mxu0
        %v1997 = vpop.f32.mrb[0].mxu0
        %1998 = vdwg.mxu0
        %1999 = vmatprep.subr.bf16.mxu0 0
        %2000 = vmatpush1.bf16.msra.mxu0 %v1956
        %2001 = vmatprep.subr.bf16.mxu0 0
        %2002 = vmatpush1.bf16.msra.mxu0 0
        %2003 = vmatprep.subr.bf16.mxu0 0
        %2004 = vmatpush1.bf16.msra.mxu0 0
        %2005 = vmatprep.subr.bf16.mxu0 0
        %2006 = vmatpush1.bf16.msra.mxu0 0
        %2007 = vmatprep.subr.bf16.mxu0 0
        %2008 = vmatpush1.bf16.msra.mxu0 0
        %2009 = vmatprep.subr.bf16.mxu0 0
        %2010 = vmatpush1.bf16.msra.mxu0 0
        %2011 = vmatprep.subr.bf16.mxu0 0
        %2012 = vmatpush1.bf16.msra.mxu0 0
        %2013 = vmatprep.subr.bf16.mxu0 0
        %2014 = vmatpush1.bf16.msra.mxu0 0
        %2015 = vmatprep.subr.bf16.mxu0 0
        %2016 = vmatpush1.bf16.msra.mxu0 0
        %2017 = vmatprep.subr.bf16.mxu0 0
        %2018 = vmatpush1.bf16.msra.mxu0 0
        %2019 = vmatprep.subr.bf16.mxu0 0
        %2020 = vmatpush1.bf16.msra.mxu0 0
        %2021 = vmatprep.subr.bf16.mxu0 0
        %2022 = vmatpush1.bf16.msra.mxu0 0
        %2023 = vmatprep.subr.bf16.mxu0 0
        %2024 = vmatpush1.bf16.msra.mxu0 0
        %2025 = vmatprep.subr.bf16.mxu0 0
        %2026 = vmatpush1.bf16.msra.mxu0 0
        %2027 = vmatprep.subr.bf16.mxu0 0
        %2028 = vmatpush1.bf16.msra.mxu0 0
        %2029 = vmatprep.subr.bf16.mxu0 0
        %2030 = vmatpush1.bf16.msra.mxu0 0
        %2031 = vmatprep.mubr.bf16.mxu0 0
        %2032 = vmatmul.mubr.bf16.gmra.mrb[0].mxu0 %v1947
        %v2033 = vpop.f32.mrb[0].mxu0
        %v2034 = vadd.f32 0.0, %v2033
        %v2035 = vpop.f32.mrb[0].mxu0
        %v2036 = vpop.f32.mrb[0].mxu0
        %v2037 = vpop.f32.mrb[0].mxu0
        %2038 = vdwg.mxu0
        %v2039 = vadd.f32 %v1929, %v1993
        %v2040 = vadd.f32 %v1930, %v1995
        %v2041 = vadd.f32 %v1931, %v2034
        %v2042 = vadd.f32 %v2039, %v735
        %v2043 = vadd.f32 %v2040, %v735
        %v2044 = vadd.f32 %v2041, %v735
        %vm2045 = vcmp.gt.f32.partialorder %v2042, 0.0
        %vm2046 = vcmp.gt.f32.partialorder %v2043, 0.0
        %vm2047 = vcmp.gt.f32.partialorder %v2044, 0.0
        %v2048 = vmul.f32 %v2042, 0.2
        %v2049 = vmul.f32 %v2043, 0.2
        %v2050 = vmul.f32 %v2044, 0.2
        %v2051 = vsel %vm2045, %v2042, %v2048
        %v2052 = vsel %vm2046, %v2043, %v2049
        %v2053 = vsel %vm2047, %v2044, %v2050
        %v2054 = vmul.f32 %v2051, %v753
        %v2055 = vmul.f32 %v2052, %v757
        %v2056 = vmul.f32 %v2053, %v761
        %s2057 = scalar_lea.vmem [#allocation2], 48
        %2058 = vst.msk [vmem:[%s2057] sm:$0xf] %vm768, 0
        %2059 = vst.msk [vmem:[%s2057 + $0xc] sm:$0xf] %vm770, 0
        %v2060 = vpack.c.bf16 %v2054, %v2054
        %v2061 = vpack.c.bf16 %v2055, %v2055
        %v2062 = vpack.c.bf16 %v2056, %v2056
        %v2066 = vunpack.c.l.b16 %v2060
        %v2067 = vunpack.c.l.b16 %v2061
        %v2068 = vunpack.c.l.b16 %v2062
        %v2069 = vpack.c.b16 %v2067, %v2066
        %v2070 = vpack.c.b16 %v2068, %v2068
        %2071 = vrot.lane.b32.xlu0 %v2069, 19
        %v2072 = vpop.permute.xlu0 %2071
        %2073 = vrot.lane.b32.xlu0 %v2070, 19
        %v2074 = vpop.permute.xlu0 %2073
        %v2075 = vrot.slane %v2072, 4
        %v2076 = vrot.slane %v2074, 4
        %v2077 = vsel %vm789, %v2075, %v2072
        %v2078 = vsel %vm791, %v2075, %v2076
        %v2079 = vsel %vm789, %v2078, %v2074
        %2082 = vst.msk [vmem:[%s2057] sm:$0xff] %vm798, %v2077
        %2083 = vst.msk [vmem:[%s2057 + $0x8] sm:$0xff] %vm801, %v2079
        %v2084 = vld [vmem:[%s6] sm:$0xf]
        %2089 = vrot.lane.b32.xlu0 %v298, 109
        %v2090 = vpop.permute.xlu0 %2089
        %2091 = vrot.lane.b32.xlu0 %v299, 109
        %v2092 = vpop.permute.xlu0 %2091
        %2093 = vrot.lane.b32.xlu0 %v300, 109
        %v2094 = vpop.permute.xlu0 %2093
        %2095 = vrot.lane.b32.xlu0 %v301, 109
        %v2096 = vpop.permute.xlu0 %2095
        %v2097 = vsel %vm632, %v2090, %v2092
        %v2098 = vsel %vm632, %v2092, %v2094
        %v2099 = vsel %vm632, %v2094, %v2096
        %v2101 = vsel %vm324, %v2084, 0
        %v2104 = vsel %vm328, %v2097, 0
        %v2107 = vsel %vm328, %v2098, 0
        %v2110 = vsel %vm328, %v2099, 0
        %2112 = vmatprep.subr.bf16.mxu0 %v2107
        %2113 = vmatpush1.bf16.msra.mxu0 %v2104
        %2114 = vmatprep.subr.bf16.mxu0 0
        %2115 = vmatpush1.bf16.msra.mxu0 0
        %2116 = vmatprep.subr.bf16.mxu0 0
        %2117 = vmatpush1.bf16.msra.mxu0 0
        %2118 = vmatprep.subr.bf16.mxu0 0
        %2119 = vmatpush1.bf16.msra.mxu0 0
        %2120 = vmatprep.subr.bf16.mxu0 0
        %2121 = vmatpush1.bf16.msra.mxu0 0
        %2122 = vmatprep.subr.bf16.mxu0 0
        %2123 = vmatpush1.bf16.msra.mxu0 0
        %2124 = vmatprep.subr.bf16.mxu0 0
        %2125 = vmatpush1.bf16.msra.mxu0 0
        %2126 = vmatprep.subr.bf16.mxu0 0
        %2127 = vmatpush1.bf16.msra.mxu0 0
        %2128 = vmatprep.subr.bf16.mxu0 0
        %2129 = vmatpush1.bf16.msra.mxu0 0
        %2130 = vmatprep.subr.bf16.mxu0 0
        %2131 = vmatpush1.bf16.msra.mxu0 0
        %2132 = vmatprep.subr.bf16.mxu0 0
        %2133 = vmatpush1.bf16.msra.mxu0 0
        %2134 = vmatprep.subr.bf16.mxu0 0
        %2135 = vmatpush1.bf16.msra.mxu0 0
        %2136 = vmatprep.subr.bf16.mxu0 0
        %2137 = vmatpush1.bf16.msra.mxu0 0
        %2138 = vmatprep.subr.bf16.mxu0 0
        %2139 = vmatpush1.bf16.msra.mxu0 0
        %2140 = vmatprep.subr.bf16.mxu0 0
        %2141 = vmatpush1.bf16.msra.mxu0 0
        %2142 = vmatprep.subr.bf16.mxu0 0
        %2143 = vmatpush1.bf16.msra.mxu0 0
        %2144 = vmatprep.mubr.bf16.mxu0 0
        %2145 = vmatmul.mubr.bf16.gmra.mrb[0].mxu0 %v2101
        %v2146 = vpop.f32.mrb[0].mxu0
        %v2147 = vadd.f32 0.0, %v2146
        %v2148 = vpop.f32.mrb[0].mxu0
        %v2149 = vadd.f32 0.0, %v2148
        %v2150 = vpop.f32.mrb[0].mxu0
        %v2151 = vpop.f32.mrb[0].mxu0
        %2152 = vdwg.mxu0
        %2153 = vmatprep.subr.bf16.mxu0 0
        %2154 = vmatpush1.bf16.msra.mxu0 %v2110
        %2155 = vmatprep.subr.bf16.mxu0 0
        %2156 = vmatpush1.bf16.msra.mxu0 0
        %2157 = vmatprep.subr.bf16.mxu0 0
        %2158 = vmatpush1.bf16.msra.mxu0 0
        %2159 = vmatprep.subr.bf16.mxu0 0
        %2160 = vmatpush1.bf16.msra.mxu0 0
        %2161 = vmatprep.subr.bf16.mxu0 0
        %2162 = vmatpush1.bf16.msra.mxu0 0
        %2163 = vmatprep.subr.bf16.mxu0 0
        %2164 = vmatpush1.bf16.msra.mxu0 0
        %2165 = vmatprep.subr.bf16.mxu0 0
        %2166 = vmatpush1.bf16.msra.mxu0 0
        %2167 = vmatprep.subr.bf16.mxu0 0
        %2168 = vmatpush1.bf16.msra.mxu0 0
        %2169 = vmatprep.subr.bf16.mxu0 0
        %2170 = vmatpush1.bf16.msra.mxu0 0
        %2171 = vmatprep.subr.bf16.mxu0 0
        %2172 = vmatpush1.bf16.msra.mxu0 0
        %2173 = vmatprep.subr.bf16.mxu0 0
        %2174 = vmatpush1.bf16.msra.mxu0 0
        %2175 = vmatprep.subr.bf16.mxu0 0
        %2176 = vmatpush1.bf16.msra.mxu0 0
        %2177 = vmatprep.subr.bf16.mxu0 0
        %2178 = vmatpush1.bf16.msra.mxu0 0
        %2179 = vmatprep.subr.bf16.mxu0 0
        %2180 = vmatpush1.bf16.msra.mxu0 0
        %2181 = vmatprep.subr.bf16.mxu0 0
        %2182 = vmatpush1.bf16.msra.mxu0 0
        %2183 = vmatprep.subr.bf16.mxu0 0
        %2184 = vmatpush1.bf16.msra.mxu0 0
        %2185 = vmatprep.mubr.bf16.mxu0 0
        %2186 = vmatmul.mubr.bf16.gmra.mrb[0].mxu0 %v2101
        %v2187 = vpop.f32.mrb[0].mxu0
        %v2188 = vadd.f32 0.0, %v2187
        %v2189 = vpop.f32.mrb[0].mxu0
        %v2190 = vpop.f32.mrb[0].mxu0
        %v2191 = vpop.f32.mrb[0].mxu0
        %2192 = vdwg.mxu0
        %v2193 = vld [vmem:[%s4] sm:$0xf]
        %v2194 = vld [vmem:[%s2057] sm:$0xff]
        %v2195 = vld [vmem:[%s2057 + $0x8] sm:$0xf]
        %s2196 = scalar_lea.vmem %s4, 4
        %v2197 = vld [vmem:[%s2196] sm:$0xf]
        %v2198 = vld [vmem:[%s1644] sm:$0xff]
        %v2199 = vld [vmem:[%s1644 + $0x8] sm:$0xff]
        %v2202 = vunpack.c.l.b16 %v2198
        %v2203 = vunpack.c.h.b16 %v2198
        %v2204 = vunpack.c.l.b16 %v2199
        %v2205 = vunpack.c.h.b16 %v2199
        %v2206 = vpack.c.b16 %v2202, %v2202
        %v2207 = vpack.c.b16 %v2203, %v2203
        %v2208 = vpack.c.b16 %v2204, %v2204
        %v2209 = vpack.c.b16 %v2205, %v2205
        %2210 = vrot.lane.b32.xlu0 %v2206, 127
        %v2211 = vpop.permute.xlu0 %2210
        %2212 = vrot.lane.b32.xlu0 %v2207, 127
        %v2213 = vpop.permute.xlu0 %2212
        %2214 = vrot.lane.b32.xlu0 %v2208, 127
        %v2215 = vpop.permute.xlu0 %2214
        %2216 = vrot.lane.b32.xlu0 %v2209, 127
        %v2217 = vpop.permute.xlu0 %2216
        %v2218 = vsel %vm320, %v2211, %v2213
        %v2219 = vsel %vm320, %v2213, %v2215
        %v2220 = vsel %vm320, %v2215, %v2217
        %v2222 = vsel %vm324, %v2197, 0
        %v2225 = vsel %vm328, %v2218, 0
        %v2228 = vsel %vm328, %v2219, 0
        %v2231 = vsel %vm328, %v2220, 0
        %2233 = vmatprep.subr.bf16.mxu0 %v2228
        %2234 = vmatpush1.bf16.msra.mxu0 %v2225
        %2235 = vmatprep.subr.bf16.mxu0 0
        %2236 = vmatpush1.bf16.msra.mxu0 0
        %2237 = vmatprep.subr.bf16.mxu0 0
        %2238 = vmatpush1.bf16.msra.mxu0 0
        %2239 = vmatprep.subr.bf16.mxu0 0
        %2240 = vmatpush1.bf16.msra.mxu0 0
        %2241 = vmatprep.subr.bf16.mxu0 0
        %2242 = vmatpush1.bf16.msra.mxu0 0
        %2243 = vmatprep.subr.bf16.mxu0 0
        %2244 = vmatpush1.bf16.msra.mxu0 0
        %2245 = vmatprep.subr.bf16.mxu0 0
        %2246 = vmatpush1.bf16.msra.mxu0 0
        %2247 = vmatprep.subr.bf16.mxu0 0
        %2248 = vmatpush1.bf16.msra.mxu0 0
        %2249 = vmatprep.subr.bf16.mxu0 0
        %2250 = vmatpush1.bf16.msra.mxu0 0
        %2251 = vmatprep.subr.bf16.mxu0 0
        %2252 = vmatpush1.bf16.msra.mxu0 0
        %2253 = vmatprep.subr.bf16.mxu0 0
        %2254 = vmatpush1.bf16.msra.mxu0 0
        %2255 = vmatprep.subr.bf16.mxu0 0
        %2256 = vmatpush1.bf16.msra.mxu0 0
        %2257 = vmatprep.subr.bf16.mxu0 0
        %2258 = vmatpush1.bf16.msra.mxu0 0
        %2259 = vmatprep.subr.bf16.mxu0 0
        %2260 = vmatpush1.bf16.msra.mxu0 0
        %2261 = vmatprep.subr.bf16.mxu0 0
        %2262 = vmatpush1.bf16.msra.mxu0 0
        %2263 = vmatprep.subr.bf16.mxu0 0
        %2264 = vmatpush1.bf16.msra.mxu0 0
        %2265 = vmatprep.mubr.bf16.mxu0 0
        %2266 = vmatmul.mubr.bf16.gmra.mrb[0].mxu0 %v2222
        %v2267 = vpop.f32.mrb[0].mxu0
        %v2268 = vadd.f32 0.0, %v2267
        %v2269 = vpop.f32.mrb[0].mxu0
        %v2270 = vadd.f32 0.0, %v2269
        %v2271 = vpop.f32.mrb[0].mxu0
        %v2272 = vpop.f32.mrb[0].mxu0
        %2273 = vdwg.mxu0
        %2274 = vmatprep.subr.bf16.mxu0 0
        %2275 = vmatpush1.bf16.msra.mxu0 %v2231
        %2276 = vmatprep.subr.bf16.mxu0 0
        %2277 = vmatpush1.bf16.msra.mxu0 0
        %2278 = vmatprep.subr.bf16.mxu0 0
        %2279 = vmatpush1.bf16.msra.mxu0 0
        %2280 = vmatprep.subr.bf16.mxu0 0
        %2281 = vmatpush1.bf16.msra.mxu0 0
        %2282 = vmatprep.subr.bf16.mxu0 0
        %2283 = vmatpush1.bf16.msra.mxu0 0
        %2284 = vmatprep.subr.bf16.mxu0 0
        %2285 = vmatpush1.bf16.msra.mxu0 0
        %2286 = vmatprep.subr.bf16.mxu0 0
        %2287 = vmatpush1.bf16.msra.mxu0 0
        %2288 = vmatprep.subr.bf16.mxu0 0
        %2289 = vmatpush1.bf16.msra.mxu0 0
        %2290 = vmatprep.subr.bf16.mxu0 0
        %2291 = vmatpush1.bf16.msra.mxu0 0
        %2292 = vmatprep.subr.bf16.mxu0 0
        %2293 = vmatpush1.bf16.msra.mxu0 0
        %2294 = vmatprep.subr.bf16.mxu0 0
        %2295 = vmatpush1.bf16.msra.mxu0 0
        %2296 = vmatprep.subr.bf16.mxu0 0
        %2297 = vmatpush1.bf16.msra.mxu0 0
        %2298 = vmatprep.subr.bf16.mxu0 0
        %2299 = vmatpush1.bf16.msra.mxu0 0
        %2300 = vmatprep.subr.bf16.mxu0 0
        %2301 = vmatpush1.bf16.msra.mxu0 0
        %2302 = vmatprep.subr.bf16.mxu0 0
        %2303 = vmatpush1.bf16.msra.mxu0 0
        %2304 = vmatprep.subr.bf16.mxu0 0
        %2305 = vmatpush1.bf16.msra.mxu0 0
        %2306 = vmatprep.mubr.bf16.mxu0 0
        %2307 = vmatmul.mubr.bf16.gmra.mrb[0].mxu0 %v2222
        %v2308 = vpop.f32.mrb[0].mxu0
        %v2309 = vadd.f32 0.0, %v2308
        %v2310 = vpop.f32.mrb[0].mxu0
        %v2311 = vpop.f32.mrb[0].mxu0
        %v2312 = vpop.f32.mrb[0].mxu0
        %2313 = vdwg.mxu0
        %v2316 = vunpack.c.l.b16 %v2194
        %v2317 = vunpack.c.h.b16 %v2194
        %v2318 = vunpack.c.l.b16 %v2195
        %v2319 = vpack.c.b16 %v2316, %v2316
        %v2320 = vpack.c.b16 %v2317, %v2317
        %v2321 = vpack.c.b16 %v2318, %v2318
        %v2323 = vsel %vm324, %v2193, 0
        %v2326 = vsel %vm328, %v2319, 0
        %v2329 = vsel %vm328, %v2320, 0
        %v2332 = vsel %vm328, %v2321, 0
        %2334 = vmatprep.subr.bf16.mxu0 %v2329
        %2335 = vmatpush1.bf16.msra.mxu0 %v2326
        %2336 = vmatprep.subr.bf16.mxu0 0
        %2337 = vmatpush1.bf16.msra.mxu0 0
        %2338 = vmatprep.subr.bf16.mxu0 0
        %2339 = vmatpush1.bf16.msra.mxu0 0
        %2340 = vmatprep.subr.bf16.mxu0 0
        %2341 = vmatpush1.bf16.msra.mxu0 0
        %2342 = vmatprep.subr.bf16.mxu0 0
        %2343 = vmatpush1.bf16.msra.mxu0 0
        %2344 = vmatprep.subr.bf16.mxu0 0
        %2345 = vmatpush1.bf16.msra.mxu0 0
        %2346 = vmatprep.subr.bf16.mxu0 0
        %2347 = vmatpush1.bf16.msra.mxu0 0
        %2348 = vmatprep.subr.bf16.mxu0 0
        %2349 = vmatpush1.bf16.msra.mxu0 0
        %2350 = vmatprep.subr.bf16.mxu0 0
        %2351 = vmatpush1.bf16.msra.mxu0 0
        %2352 = vmatprep.subr.bf16.mxu0 0
        %2353 = vmatpush1.bf16.msra.mxu0 0
        %2354 = vmatprep.subr.bf16.mxu0 0
        %2355 = vmatpush1.bf16.msra.mxu0 0
        %2356 = vmatprep.subr.bf16.mxu0 0
        %2357 = vmatpush1.bf16.msra.mxu0 0
        %2358 = vmatprep.subr.bf16.mxu0 0
        %2359 = vmatpush1.bf16.msra.mxu0 0
        %2360 = vmatprep.subr.bf16.mxu0 0
        %2361 = vmatpush1.bf16.msra.mxu0 0
        %2362 = vmatprep.subr.bf16.mxu0 0
        %2363 = vmatpush1.bf16.msra.mxu0 0
        %2364 = vmatprep.subr.bf16.mxu0 0
        %2365 = vmatpush1.bf16.msra.mxu0 0
        %2366 = vmatprep.mubr.bf16.mxu0 0
        %2367 = vmatmul.mubr.bf16.gmra.mrb[0].mxu0 %v2323
        %v2368 = vpop.f32.mrb[0].mxu0
        %v2369 = vadd.f32 %v2268, %v2368
        %v2370 = vpop.f32.mrb[0].mxu0
        %v2371 = vadd.f32 %v2270, %v2370
        %v2372 = vpop.f32.mrb[0].mxu0
        %v2373 = vpop.f32.mrb[0].mxu0
        %2374 = vdwg.mxu0
        %2375 = vmatprep.subr.bf16.mxu0 0
        %2376 = vmatpush1.bf16.msra.mxu0 %v2332
        %2377 = vmatprep.subr.bf16.mxu0 0
        %2378 = vmatpush1.bf16.msra.mxu0 0
        %2379 = vmatprep.subr.bf16.mxu0 0
        %2380 = vmatpush1.bf16.msra.mxu0 0
        %2381 = vmatprep.subr.bf16.mxu0 0
        %2382 = vmatpush1.bf16.msra.mxu0 0
        %2383 = vmatprep.subr.bf16.mxu0 0
        %2384 = vmatpush1.bf16.msra.mxu0 0
        %2385 = vmatprep.subr.bf16.mxu0 0
        %2386 = vmatpush1.bf16.msra.mxu0 0
        %2387 = vmatprep.subr.bf16.mxu0 0
        %2388 = vmatpush1.bf16.msra.mxu0 0
        %2389 = vmatprep.subr.bf16.mxu0 0
        %2390 = vmatpush1.bf16.msra.mxu0 0
        %2391 = vmatprep.subr.bf16.mxu0 0
        %2392 = vmatpush1.bf16.msra.mxu0 0
        %2393 = vmatprep.subr.bf16.mxu0 0
        %2394 = vmatpush1.bf16.msra.mxu0 0
        %2395 = vmatprep.subr.bf16.mxu0 0
        %2396 = vmatpush1.bf16.msra.mxu0 0
        %2397 = vmatprep.subr.bf16.mxu0 0
        %2398 = vmatpush1.bf16.msra.mxu0 0
        %2399 = vmatprep.subr.bf16.mxu0 0
        %2400 = vmatpush1.bf16.msra.mxu0 0
        %2401 = vmatprep.subr.bf16.mxu0 0
        %2402 = vmatpush1.bf16.msra.mxu0 0
        %2403 = vmatprep.subr.bf16.mxu0 0
        %2404 = vmatpush1.bf16.msra.mxu0 0
        %2405 = vmatprep.subr.bf16.mxu0 0
        %2406 = vmatpush1.bf16.msra.mxu0 0
        %2407 = vmatprep.mubr.bf16.mxu0 0
        %2408 = vmatmul.mubr.bf16.gmra.mrb[0].mxu0 %v2323
        %v2409 = vpop.f32.mrb[0].mxu0
        %v2410 = vadd.f32 %v2309, %v2409
        %v2411 = vpop.f32.mrb[0].mxu0
        %v2412 = vpop.f32.mrb[0].mxu0
        %v2413 = vpop.f32.mrb[0].mxu0
        %2414 = vdwg.mxu0
        %s2415 = scalar_lea.vmem %s4, 8
        %v2416 = vld [vmem:[%s2415] sm:$0xf]
        %v2417 = vld [vmem:[%s2057] sm:$0xff]
        %v2418 = vld [vmem:[%s2057 + $0x8] sm:$0xff]
        %v2421 = vunpack.c.l.b16 %v2417
        %v2422 = vunpack.c.h.b16 %v2417
        %v2423 = vunpack.c.l.b16 %v2418
        %v2424 = vunpack.c.h.b16 %v2418
        %v2425 = vpack.c.b16 %v2421, %v2421
        %v2426 = vpack.c.b16 %v2422, %v2422
        %v2427 = vpack.c.b16 %v2423, %v2423
        %v2428 = vpack.c.b16 %v2424, %v2424
        %2429 = vrot.lane.b32.xlu0 %v2425, 127
        %v2430 = vpop.permute.xlu0 %2429
        %2431 = vrot.lane.b32.xlu0 %v2426, 127
        %v2432 = vpop.permute.xlu0 %2431
        %2433 = vrot.lane.b32.xlu0 %v2427, 127
        %v2434 = vpop.permute.xlu0 %2433
        %2435 = vrot.lane.b32.xlu0 %v2428, 127
        %v2436 = vpop.permute.xlu0 %2435
        %v2437 = vsel %vm320, %v2430, %v2432
        %v2438 = vsel %vm320, %v2432, %v2434
        %v2439 = vsel %vm320, %v2434, %v2436
        %v2441 = vsel %vm324, %v2416, 0
        %v2444 = vsel %vm328, %v2437, 0
        %v2447 = vsel %vm328, %v2438, 0
        %v2450 = vsel %vm328, %v2439, 0
        %2452 = vmatprep.subr.bf16.mxu0 %v2447
        %2453 = vmatpush1.bf16.msra.mxu0 %v2444
        %2454 = vmatprep.subr.bf16.mxu0 0
        %2455 = vmatpush1.bf16.msra.mxu0 0
        %2456 = vmatprep.subr.bf16.mxu0 0
        %2457 = vmatpush1.bf16.msra.mxu0 0
        %2458 = vmatprep.subr.bf16.mxu0 0
        %2459 = vmatpush1.bf16.msra.mxu0 0
        %2460 = vmatprep.subr.bf16.mxu0 0
        %2461 = vmatpush1.bf16.msra.mxu0 0
        %2462 = vmatprep.subr.bf16.mxu0 0
        %2463 = vmatpush1.bf16.msra.mxu0 0
        %2464 = vmatprep.subr.bf16.mxu0 0
        %2465 = vmatpush1.bf16.msra.mxu0 0
        %2466 = vmatprep.subr.bf16.mxu0 0
        %2467 = vmatpush1.bf16.msra.mxu0 0
        %2468 = vmatprep.subr.bf16.mxu0 0
        %2469 = vmatpush1.bf16.msra.mxu0 0
        %2470 = vmatprep.subr.bf16.mxu0 0
        %2471 = vmatpush1.bf16.msra.mxu0 0
        %2472 = vmatprep.subr.bf16.mxu0 0
        %2473 = vmatpush1.bf16.msra.mxu0 0
        %2474 = vmatprep.subr.bf16.mxu0 0
        %2475 = vmatpush1.bf16.msra.mxu0 0
        %2476 = vmatprep.subr.bf16.mxu0 0
        %2477 = vmatpush1.bf16.msra.mxu0 0
        %2478 = vmatprep.subr.bf16.mxu0 0
        %2479 = vmatpush1.bf16.msra.mxu0 0
        %2480 = vmatprep.subr.bf16.mxu0 0
        %2481 = vmatpush1.bf16.msra.mxu0 0
        %2482 = vmatprep.subr.bf16.mxu0 0
        %2483 = vmatpush1.bf16.msra.mxu0 0
        %2484 = vmatprep.mubr.bf16.mxu0 0
        %2485 = vmatmul.mubr.bf16.gmra.mrb[0].mxu0 %v2441
        %v2486 = vpop.f32.mrb[0].mxu0
        %v2487 = vadd.f32 0.0, %v2486
        %v2488 = vpop.f32.mrb[0].mxu0
        %v2489 = vadd.f32 0.0, %v2488
        %v2490 = vpop.f32.mrb[0].mxu0
        %v2491 = vpop.f32.mrb[0].mxu0
        %2492 = vdwg.mxu0
        %2493 = vmatprep.subr.bf16.mxu0 0
        %2494 = vmatpush1.bf16.msra.mxu0 %v2450
        %2495 = vmatprep.subr.bf16.mxu0 0
        %2496 = vmatpush1.bf16.msra.mxu0 0
        %2497 = vmatprep.subr.bf16.mxu0 0
        %2498 = vmatpush1.bf16.msra.mxu0 0
        %2499 = vmatprep.subr.bf16.mxu0 0
        %2500 = vmatpush1.bf16.msra.mxu0 0
        %2501 = vmatprep.subr.bf16.mxu0 0
        %2502 = vmatpush1.bf16.msra.mxu0 0
        %2503 = vmatprep.subr.bf16.mxu0 0
        %2504 = vmatpush1.bf16.msra.mxu0 0
        %2505 = vmatprep.subr.bf16.mxu0 0
        %2506 = vmatpush1.bf16.msra.mxu0 0
        %2507 = vmatprep.subr.bf16.mxu0 0
        %2508 = vmatpush1.bf16.msra.mxu0 0
        %2509 = vmatprep.subr.bf16.mxu0 0
        %2510 = vmatpush1.bf16.msra.mxu0 0
        %2511 = vmatprep.subr.bf16.mxu0 0
        %2512 = vmatpush1.bf16.msra.mxu0 0
        %2513 = vmatprep.subr.bf16.mxu0 0
        %2514 = vmatpush1.bf16.msra.mxu0 0
        %2515 = vmatprep.subr.bf16.mxu0 0
        %2516 = vmatpush1.bf16.msra.mxu0 0
        %2517 = vmatprep.subr.bf16.mxu0 0
        %2518 = vmatpush1.bf16.msra.mxu0 0
        %2519 = vmatprep.subr.bf16.mxu0 0
        %2520 = vmatpush1.bf16.msra.mxu0 0
        %2521 = vmatprep.subr.bf16.mxu0 0
        %2522 = vmatpush1.bf16.msra.mxu0 0
        %2523 = vmatprep.subr.bf16.mxu0 0
        %2524 = vmatpush1.bf16.msra.mxu0 0
        %2525 = vmatprep.mubr.bf16.mxu0 0
        %2526 = vmatmul.mubr.bf16.gmra.mrb[0].mxu0 %v2441
        %v2527 = vpop.f32.mrb[0].mxu0
        %v2528 = vadd.f32 0.0, %v2527
        %v2529 = vpop.f32.mrb[0].mxu0
        %v2530 = vpop.f32.mrb[0].mxu0
        %v2531 = vpop.f32.mrb[0].mxu0
        %2532 = vdwg.mxu0
        %v2533 = vadd.f32 %v2369, %v2487
        %v2534 = vadd.f32 %v2371, %v2489
        %v2535 = vadd.f32 %v2410, %v2528
        %s2536 = scalar_lea.vmem %s4, 12
        %v2537 = vld [vmem:[%s2536] sm:$0xf]
        %v2538 = vld [vmem:[%s1210] sm:$0xff]
        %v2539 = vld [vmem:[%s1210 + $0x8] sm:$0xff]
        %v2542 = vunpack.c.l.b16 %v2538
        %v2543 = vunpack.c.h.b16 %v2538
        %v2544 = vunpack.c.l.b16 %v2539
        %v2545 = vunpack.c.h.b16 %v2539
        %v2546 = vpack.c.b16 %v2542, %v2542
        %v2547 = vpack.c.b16 %v2543, %v2543
        %v2548 = vpack.c.b16 %v2544, %v2544
        %v2549 = vpack.c.b16 %v2545, %v2545
        %2550 = vrot.lane.b32.xlu0 %v2546, 110
        %v2551 = vpop.permute.xlu0 %2550
        %2552 = vrot.lane.b32.xlu0 %v2547, 110
        %v2553 = vpop.permute.xlu0 %2552
        %2554 = vrot.lane.b32.xlu0 %v2548, 110
        %v2555 = vpop.permute.xlu0 %2554
        %2556 = vrot.lane.b32.xlu0 %v2549, 110
        %v2557 = vpop.permute.xlu0 %2556
        %v2558 = vsel %vm522, %v2551, %v2553
        %v2559 = vsel %vm522, %v2553, %v2555
        %v2560 = vsel %vm522, %v2555, %v2557
        %v2562 = vsel %vm324, %v2537, 0
        %v2565 = vsel %vm328, %v2558, 0
        %v2568 = vsel %vm328, %v2559, 0
        %v2571 = vsel %vm328, %v2560, 0
        %2573 = vmatprep.subr.bf16.mxu0 %v2568
        %2574 = vmatpush1.bf16.msra.mxu0 %v2565
        %2575 = vmatprep.subr.bf16.mxu0 0
        %2576 = vmatpush1.bf16.msra.mxu0 0
        %2577 = vmatprep.subr.bf16.mxu0 0
        %2578 = vmatpush1.bf16.msra.mxu0 0
        %2579 = vmatprep.subr.bf16.mxu0 0
        %2580 = vmatpush1.bf16.msra.mxu0 0
        %2581 = vmatprep.subr.bf16.mxu0 0
        %2582 = vmatpush1.bf16.msra.mxu0 0
        %2583 = vmatprep.subr.bf16.mxu0 0
        %2584 = vmatpush1.bf16.msra.mxu0 0
        %2585 = vmatprep.subr.bf16.mxu0 0
        %2586 = vmatpush1.bf16.msra.mxu0 0
        %2587 = vmatprep.subr.bf16.mxu0 0
        %2588 = vmatpush1.bf16.msra.mxu0 0
        %2589 = vmatprep.subr.bf16.mxu0 0
        %2590 = vmatpush1.bf16.msra.mxu0 0
        %2591 = vmatprep.subr.bf16.mxu0 0
        %2592 = vmatpush1.bf16.msra.mxu0 0
        %2593 = vmatprep.subr.bf16.mxu0 0
        %2594 = vmatpush1.bf16.msra.mxu0 0
        %2595 = vmatprep.subr.bf16.mxu0 0
        %2596 = vmatpush1.bf16.msra.mxu0 0
        %2597 = vmatprep.subr.bf16.mxu0 0
        %2598 = vmatpush1.bf16.msra.mxu0 0
        %2599 = vmatprep.subr.bf16.mxu0 0
        %2600 = vmatpush1.bf16.msra.mxu0 0
        %2601 = vmatprep.subr.bf16.mxu0 0
        %2602 = vmatpush1.bf16.msra.mxu0 0
        %2603 = vmatprep.subr.bf16.mxu0 0
        %2604 = vmatpush1.bf16.msra.mxu0 0
        %2605 = vmatprep.mubr.bf16.mxu0 0
        %2606 = vmatmul.mubr.bf16.gmra.mrb[0].mxu0 %v2562
        %v2607 = vpop.f32.mrb[0].mxu0
        %v2608 = vadd.f32 0.0, %v2607
        %v2609 = vpop.f32.mrb[0].mxu0
        %v2610 = vadd.f32 0.0, %v2609
        %v2611 = vpop.f32.mrb[0].mxu0
        %v2612 = vpop.f32.mrb[0].mxu0
        %2613 = vdwg.mxu0
        %2614 = vmatprep.subr.bf16.mxu0 0
        %2615 = vmatpush1.bf16.msra.mxu0 %v2571
        %2616 = vmatprep.subr.bf16.mxu0 0
        %2617 = vmatpush1.bf16.msra.mxu0 0
        %2618 = vmatprep.subr.bf16.mxu0 0
        %2619 = vmatpush1.bf16.msra.mxu0 0
        %2620 = vmatprep.subr.bf16.mxu0 0
        %2621 = vmatpush1.bf16.msra.mxu0 0
        %2622 = vmatprep.subr.bf16.mxu0 0
        %2623 = vmatpush1.bf16.msra.mxu0 0
        %2624 = vmatprep.subr.bf16.mxu0 0
        %2625 = vmatpush1.bf16.msra.mxu0 0
        %2626 = vmatprep.subr.bf16.mxu0 0
        %2627 = vmatpush1.bf16.msra.mxu0 0
        %2628 = vmatprep.subr.bf16.mxu0 0
        %2629 = vmatpush1.bf16.msra.mxu0 0
        %2630 = vmatprep.subr.bf16.mxu0 0
        %2631 = vmatpush1.bf16.msra.mxu0 0
        %2632 = vmatprep.subr.bf16.mxu0 0
        %2633 = vmatpush1.bf16.msra.mxu0 0
        %2634 = vmatprep.subr.bf16.mxu0 0
        %2635 = vmatpush1.bf16.msra.mxu0 0
        %2636 = vmatprep.subr.bf16.mxu0 0
        %2637 = vmatpush1.bf16.msra.mxu0 0
        %2638 = vmatprep.subr.bf16.mxu0 0
        %2639 = vmatpush1.bf16.msra.mxu0 0
        %2640 = vmatprep.subr.bf16.mxu0 0
        %2641 = vmatpush1.bf16.msra.mxu0 0
        %2642 = vmatprep.subr.bf16.mxu0 0
        %2643 = vmatpush1.bf16.msra.mxu0 0
        %2644 = vmatprep.subr.bf16.mxu0 0
        %2645 = vmatpush1.bf16.msra.mxu0 0
        %2646 = vmatprep.mubr.bf16.mxu0 0
        %2647 = vmatmul.mubr.bf16.gmra.mrb[0].mxu0 %v2562
        %v2648 = vpop.f32.mrb[0].mxu0
        %v2649 = vadd.f32 0.0, %v2648
        %v2650 = vpop.f32.mrb[0].mxu0
        %v2651 = vpop.f32.mrb[0].mxu0
        %v2652 = vpop.f32.mrb[0].mxu0
        %2653 = vdwg.mxu0
        %v2654 = vadd.f32 %v2533, %v2608
        %v2655 = vadd.f32 %v2534, %v2610
        %v2656 = vadd.f32 %v2535, %v2649
        %s2657 = scalar_lea.vmem %s4, 16
        %v2658 = vld [vmem:[%s2657] sm:$0xf]
        %v2659 = vld [vmem:[#allocation2] sm:$0xff]
        %v2660 = vld [vmem:[#allocation2 + $0x8] sm:$0xff]
        %v2663 = vunpack.c.l.b16 %v2659
        %v2664 = vunpack.c.h.b16 %v2659
        %v2665 = vunpack.c.l.b16 %v2660
        %v2666 = vunpack.c.h.b16 %v2660
        %v2667 = vpack.c.b16 %v2663, %v2663
        %v2668 = vpack.c.b16 %v2664, %v2664
        %v2669 = vpack.c.b16 %v2665, %v2665
        %v2670 = vpack.c.b16 %v2666, %v2666
        %2671 = vrot.lane.b32.xlu0 %v2667, 109
        %v2672 = vpop.permute.xlu0 %2671
        %2673 = vrot.lane.b32.xlu0 %v2668, 109
        %v2674 = vpop.permute.xlu0 %2673
        %2675 = vrot.lane.b32.xlu0 %v2669, 109
        %v2676 = vpop.permute.xlu0 %2675
        %2677 = vrot.lane.b32.xlu0 %v2670, 109
        %v2678 = vpop.permute.xlu0 %2677
        %v2679 = vsel %vm632, %v2672, %v2674
        %v2680 = vsel %vm632, %v2674, %v2676
        %v2681 = vsel %vm632, %v2676, %v2678
        %v2683 = vsel %vm324, %v2658, 0
        %v2686 = vsel %vm328, %v2679, 0
        %v2689 = vsel %vm328, %v2680, 0
        %v2692 = vsel %vm328, %v2681, 0
        %2694 = vmatprep.subr.bf16.mxu0 %v2689
        %2695 = vmatpush1.bf16.msra.mxu0 %v2686
        %2696 = vmatprep.subr.bf16.mxu0 0
        %2697 = vmatpush1.bf16.msra.mxu0 0
        %2698 = vmatprep.subr.bf16.mxu0 0
        %2699 = vmatpush1.bf16.msra.mxu0 0
        %2700 = vmatprep.subr.bf16.mxu0 0
        %2701 = vmatpush1.bf16.msra.mxu0 0
        %2702 = vmatprep.subr.bf16.mxu0 0
        %2703 = vmatpush1.bf16.msra.mxu0 0
        %2704 = vmatprep.subr.bf16.mxu0 0
        %2705 = vmatpush1.bf16.msra.mxu0 0
        %2706 = vmatprep.subr.bf16.mxu0 0
        %2707 = vmatpush1.bf16.msra.mxu0 0
        %2708 = vmatprep.subr.bf16.mxu0 0
        %2709 = vmatpush1.bf16.msra.mxu0 0
        %2710 = vmatprep.subr.bf16.mxu0 0
        %2711 = vmatpush1.bf16.msra.mxu0 0
        %2712 = vmatprep.subr.bf16.mxu0 0
        %2713 = vmatpush1.bf16.msra.mxu0 0
        %2714 = vmatprep.subr.bf16.mxu0 0
        %2715 = vmatpush1.bf16.msra.mxu0 0
        %2716 = vmatprep.subr.bf16.mxu0 0
        %2717 = vmatpush1.bf16.msra.mxu0 0
        %2718 = vmatprep.subr.bf16.mxu0 0
        %2719 = vmatpush1.bf16.msra.mxu0 0
        %2720 = vmatprep.subr.bf16.mxu0 0
        %2721 = vmatpush1.bf16.msra.mxu0 0
        %2722 = vmatprep.subr.bf16.mxu0 0
        %2723 = vmatpush1.bf16.msra.mxu0 0
        %2724 = vmatprep.subr.bf16.mxu0 0
        %2725 = vmatpush1.bf16.msra.mxu0 0
        %2726 = vmatprep.mubr.bf16.mxu0 0
        %2727 = vmatmul.mubr.bf16.gmra.mrb[0].mxu0 %v2683
        %v2728 = vpop.f32.mrb[0].mxu0
        %v2729 = vadd.f32 0.0, %v2728
        %v2730 = vpop.f32.mrb[0].mxu0
        %v2731 = vadd.f32 0.0, %v2730
        %v2732 = vpop.f32.mrb[0].mxu0
        %v2733 = vpop.f32.mrb[0].mxu0
        %2734 = vdwg.mxu0
        %2735 = vmatprep.subr.bf16.mxu0 0
        %2736 = vmatpush1.bf16.msra.mxu0 %v2692
        %2737 = vmatprep.subr.bf16.mxu0 0
        %2738 = vmatpush1.bf16.msra.mxu0 0
        %2739 = vmatprep.subr.bf16.mxu0 0
        %2740 = vmatpush1.bf16.msra.mxu0 0
        %2741 = vmatprep.subr.bf16.mxu0 0
        %2742 = vmatpush1.bf16.msra.mxu0 0
        %2743 = vmatprep.subr.bf16.mxu0 0
        %2744 = vmatpush1.bf16.msra.mxu0 0
        %2745 = vmatprep.subr.bf16.mxu0 0
        %2746 = vmatpush1.bf16.msra.mxu0 0
        %2747 = vmatprep.subr.bf16.mxu0 0
        %2748 = vmatpush1.bf16.msra.mxu0 0
        %2749 = vmatprep.subr.bf16.mxu0 0
        %2750 = vmatpush1.bf16.msra.mxu0 0
        %2751 = vmatprep.subr.bf16.mxu0 0
        %2752 = vmatpush1.bf16.msra.mxu0 0
        %2753 = vmatprep.subr.bf16.mxu0 0
        %2754 = vmatpush1.bf16.msra.mxu0 0
        %2755 = vmatprep.subr.bf16.mxu0 0
        %2756 = vmatpush1.bf16.msra.mxu0 0
        %2757 = vmatprep.subr.bf16.mxu0 0
        %2758 = vmatpush1.bf16.msra.mxu0 0
        %2759 = vmatprep.subr.bf16.mxu0 0
        %2760 = vmatpush1.bf16.msra.mxu0 0
        %2761 = vmatprep.subr.bf16.mxu0 0
        %2762 = vmatpush1.bf16.msra.mxu0 0
        %2763 = vmatprep.subr.bf16.mxu0 0
        %2764 = vmatpush1.bf16.msra.mxu0 0
        %2765 = vmatprep.subr.bf16.mxu0 0
        %2766 = vmatpush1.bf16.msra.mxu0 0
        %2767 = vmatprep.mubr.bf16.mxu0 0
        %2768 = vmatmul.mubr.bf16.gmra.mrb[0].mxu0 %v2683
        %v2769 = vpop.f32.mrb[0].mxu0
        %v2770 = vadd.f32 0.0, %v2769
        %v2771 = vpop.f32.mrb[0].mxu0
        %v2772 = vpop.f32.mrb[0].mxu0
        %v2773 = vpop.f32.mrb[0].mxu0
        %2774 = vdwg.mxu0
        %v2775 = vadd.f32 %v2654, %v2729
        %v2776 = vadd.f32 %v2655, %v2731
        %v2777 = vadd.f32 %v2656, %v2770
        %s2778 = scalar_lea.vmem %s4, 20
        %v2779 = vld [vmem:[%s2778] sm:$0xf]
        %2780 = vrot.lane.b32.xlu0 %v2546, 109
        %v2781 = vpop.permute.xlu0 %2780
        %2782 = vrot.lane.b32.xlu0 %v2547, 109
        %v2783 = vpop.permute.xlu0 %2782
        %2784 = vrot.lane.b32.xlu0 %v2548, 109
        %v2785 = vpop.permute.xlu0 %2784
        %2786 = vrot.lane.b32.xlu0 %v2549, 109
        %v2787 = vpop.permute.xlu0 %2786
        %v2788 = vsel %vm632, %v2781, %v2783
        %v2789 = vsel %vm632, %v2783, %v2785
        %v2790 = vsel %vm632, %v2785, %v2787
        %v2792 = vsel %vm324, %v2779, 0
        %v2795 = vsel %vm328, %v2788, 0
        %v2798 = vsel %vm328, %v2789, 0
        %v2801 = vsel %vm328, %v2790, 0
        %2803 = vmatprep.subr.bf16.mxu0 %v2798
        %2804 = vmatpush1.bf16.msra.mxu0 %v2795
        %2805 = vmatprep.subr.bf16.mxu0 0
        %2806 = vmatpush1.bf16.msra.mxu0 0
        %2807 = vmatprep.subr.bf16.mxu0 0
        %2808 = vmatpush1.bf16.msra.mxu0 0
        %2809 = vmatprep.subr.bf16.mxu0 0
        %2810 = vmatpush1.bf16.msra.mxu0 0
        %2811 = vmatprep.subr.bf16.mxu0 0
        %2812 = vmatpush1.bf16.msra.mxu0 0
        %2813 = vmatprep.subr.bf16.mxu0 0
        %2814 = vmatpush1.bf16.msra.mxu0 0
        %2815 = vmatprep.subr.bf16.mxu0 0
        %2816 = vmatpush1.bf16.msra.mxu0 0
        %2817 = vmatprep.subr.bf16.mxu0 0
        %2818 = vmatpush1.bf16.msra.mxu0 0
        %2819 = vmatprep.subr.bf16.mxu0 0
        %2820 = vmatpush1.bf16.msra.mxu0 0
        %2821 = vmatprep.subr.bf16.mxu0 0
        %2822 = vmatpush1.bf16.msra.mxu0 0
        %2823 = vmatprep.subr.bf16.mxu0 0
        %2824 = vmatpush1.bf16.msra.mxu0 0
        %2825 = vmatprep.subr.bf16.mxu0 0
        %2826 = vmatpush1.bf16.msra.mxu0 0
        %2827 = vmatprep.subr.bf16.mxu0 0
        %2828 = vmatpush1.bf16.msra.mxu0 0
        %2829 = vmatprep.subr.bf16.mxu0 0
        %2830 = vmatpush1.bf16.msra.mxu0 0
        %2831 = vmatprep.subr.bf16.mxu0 0
        %2832 = vmatpush1.bf16.msra.mxu0 0
        %2833 = vmatprep.subr.bf16.mxu0 0
        %2834 = vmatpush1.bf16.msra.mxu0 0
        %2835 = vmatprep.mubr.bf16.mxu0 0
        %2836 = vmatmul.mubr.bf16.gmra.mrb[0].mxu0 %v2792
        %v2837 = vpop.f32.mrb[0].mxu0
        %v2838 = vadd.f32 0.0, %v2837
        %v2839 = vpop.f32.mrb[0].mxu0
        %v2840 = vadd.f32 0.0, %v2839
        %v2841 = vpop.f32.mrb[0].mxu0
        %v2842 = vpop.f32.mrb[0].mxu0
        %2843 = vdwg.mxu0
        %2844 = vmatprep.subr.bf16.mxu0 0
        %2845 = vmatpush1.bf16.msra.mxu0 %v2801
        %2846 = vmatprep.subr.bf16.mxu0 0
        %2847 = vmatpush1.bf16.msra.mxu0 0
        %2848 = vmatprep.subr.bf16.mxu0 0
        %2849 = vmatpush1.bf16.msra.mxu0 0
        %2850 = vmatprep.subr.bf16.mxu0 0
        %2851 = vmatpush1.bf16.msra.mxu0 0
        %2852 = vmatprep.subr.bf16.mxu0 0
        %2853 = vmatpush1.bf16.msra.mxu0 0
        %2854 = vmatprep.subr.bf16.mxu0 0
        %2855 = vmatpush1.bf16.msra.mxu0 0
        %2856 = vmatprep.subr.bf16.mxu0 0
        %2857 = vmatpush1.bf16.msra.mxu0 0
        %2858 = vmatprep.subr.bf16.mxu0 0
        %2859 = vmatpush1.bf16.msra.mxu0 0
        %2860 = vmatprep.subr.bf16.mxu0 0
        %2861 = vmatpush1.bf16.msra.mxu0 0
        %2862 = vmatprep.subr.bf16.mxu0 0
        %2863 = vmatpush1.bf16.msra.mxu0 0
        %2864 = vmatprep.subr.bf16.mxu0 0
        %2865 = vmatpush1.bf16.msra.mxu0 0
        %2866 = vmatprep.subr.bf16.mxu0 0
        %2867 = vmatpush1.bf16.msra.mxu0 0
        %2868 = vmatprep.subr.bf16.mxu0 0
        %2869 = vmatpush1.bf16.msra.mxu0 0
        %2870 = vmatprep.subr.bf16.mxu0 0
        %2871 = vmatpush1.bf16.msra.mxu0 0
        %2872 = vmatprep.subr.bf16.mxu0 0
        %2873 = vmatpush1.bf16.msra.mxu0 0
        %2874 = vmatprep.subr.bf16.mxu0 0
        %2875 = vmatpush1.bf16.msra.mxu0 0
        %2876 = vmatprep.mubr.bf16.mxu0 0
        %2877 = vmatmul.mubr.bf16.gmra.mrb[0].mxu0 %v2792
        %v2878 = vpop.f32.mrb[0].mxu0
        %v2879 = vadd.f32 0.0, %v2878
        %v2880 = vpop.f32.mrb[0].mxu0
        %v2881 = vpop.f32.mrb[0].mxu0
        %v2882 = vpop.f32.mrb[0].mxu0
        %2883 = vdwg.mxu0
        %v2884 = vadd.f32 %v2775, %v2838
        %v2885 = vadd.f32 %v2776, %v2840
        %v2886 = vadd.f32 %v2777, %v2879
        %s2887 = scalar_lea.vmem %s4, 24
        %v2888 = vld [vmem:[%s2887] sm:$0xf]
        %2889 = vrot.lane.b32.xlu0 %v2425, 110
        %v2890 = vpop.permute.xlu0 %2889
        %2891 = vrot.lane.b32.xlu0 %v2426, 110
        %v2892 = vpop.permute.xlu0 %2891
        %2893 = vrot.lane.b32.xlu0 %v2427, 110
        %v2894 = vpop.permute.xlu0 %2893
        %2895 = vrot.lane.b32.xlu0 %v2428, 110
        %v2896 = vpop.permute.xlu0 %2895
        %v2897 = vsel %vm522, %v2890, %v2892
        %v2898 = vsel %vm522, %v2892, %v2894
        %v2899 = vsel %vm522, %v2894, %v2896
        %v2901 = vsel %vm324, %v2888, 0
        %v2904 = vsel %vm328, %v2897, 0
        %v2907 = vsel %vm328, %v2898, 0
        %v2910 = vsel %vm328, %v2899, 0
        %2912 = vmatprep.subr.bf16.mxu0 %v2907
        %2913 = vmatpush1.bf16.msra.mxu0 %v2904
        %2914 = vmatprep.subr.bf16.mxu0 0
        %2915 = vmatpush1.bf16.msra.mxu0 0
        %2916 = vmatprep.subr.bf16.mxu0 0
        %2917 = vmatpush1.bf16.msra.mxu0 0
        %2918 = vmatprep.subr.bf16.mxu0 0
        %2919 = vmatpush1.bf16.msra.mxu0 0
        %2920 = vmatprep.subr.bf16.mxu0 0
        %2921 = vmatpush1.bf16.msra.mxu0 0
        %2922 = vmatprep.subr.bf16.mxu0 0
        %2923 = vmatpush1.bf16.msra.mxu0 0
        %2924 = vmatprep.subr.bf16.mxu0 0
        %2925 = vmatpush1.bf16.msra.mxu0 0
        %2926 = vmatprep.subr.bf16.mxu0 0
        %2927 = vmatpush1.bf16.msra.mxu0 0
        %2928 = vmatprep.subr.bf16.mxu0 0
        %2929 = vmatpush1.bf16.msra.mxu0 0
        %2930 = vmatprep.subr.bf16.mxu0 0
        %2931 = vmatpush1.bf16.msra.mxu0 0
        %2932 = vmatprep.subr.bf16.mxu0 0
        %2933 = vmatpush1.bf16.msra.mxu0 0
        %2934 = vmatprep.subr.bf16.mxu0 0
        %2935 = vmatpush1.bf16.msra.mxu0 0
        %2936 = vmatprep.subr.bf16.mxu0 0
        %2937 = vmatpush1.bf16.msra.mxu0 0
        %2938 = vmatprep.subr.bf16.mxu0 0
        %2939 = vmatpush1.bf16.msra.mxu0 0
        %2940 = vmatprep.subr.bf16.mxu0 0
        %2941 = vmatpush1.bf16.msra.mxu0 0
        %2942 = vmatprep.subr.bf16.mxu0 0
        %2943 = vmatpush1.bf16.msra.mxu0 0
        %2944 = vmatprep.mubr.bf16.mxu0 0
        %2945 = vmatmul.mubr.bf16.gmra.mrb[0].mxu0 %v2901
        %v2946 = vpop.f32.mrb[0].mxu0
        %v2947 = vadd.f32 0.0, %v2946
        %v2948 = vpop.f32.mrb[0].mxu0
        %v2949 = vadd.f32 0.0, %v2948
        %v2950 = vpop.f32.mrb[0].mxu0
        %v2951 = vpop.f32.mrb[0].mxu0
        %2952 = vdwg.mxu0
        %2953 = vmatprep.subr.bf16.mxu0 0
        %2954 = vmatpush1.bf16.msra.mxu0 %v2910
        %2955 = vmatprep.subr.bf16.mxu0 0
        %2956 = vmatpush1.bf16.msra.mxu0 0
        %2957 = vmatprep.subr.bf16.mxu0 0
        %2958 = vmatpush1.bf16.msra.mxu0 0
        %2959 = vmatprep.subr.bf16.mxu0 0
        %2960 = vmatpush1.bf16.msra.mxu0 0
        %2961 = vmatprep.subr.bf16.mxu0 0
        %2962 = vmatpush1.bf16.msra.mxu0 0
        %2963 = vmatprep.subr.bf16.mxu0 0
        %2964 = vmatpush1.bf16.msra.mxu0 0
        %2965 = vmatprep.subr.bf16.mxu0 0
        %2966 = vmatpush1.bf16.msra.mxu0 0
        %2967 = vmatprep.subr.bf16.mxu0 0
        %2968 = vmatpush1.bf16.msra.mxu0 0
        %2969 = vmatprep.subr.bf16.mxu0 0
        %2970 = vmatpush1.bf16.msra.mxu0 0
        %2971 = vmatprep.subr.bf16.mxu0 0
        %2972 = vmatpush1.bf16.msra.mxu0 0
        %2973 = vmatprep.subr.bf16.mxu0 0
        %2974 = vmatpush1.bf16.msra.mxu0 0
        %2975 = vmatprep.subr.bf16.mxu0 0
        %2976 = vmatpush1.bf16.msra.mxu0 0
        %2977 = vmatprep.subr.bf16.mxu0 0
        %2978 = vmatpush1.bf16.msra.mxu0 0
        %2979 = vmatprep.subr.bf16.mxu0 0
        %2980 = vmatpush1.bf16.msra.mxu0 0
        %2981 = vmatprep.subr.bf16.mxu0 0
        %2982 = vmatpush1.bf16.msra.mxu0 0
        %2983 = vmatprep.subr.bf16.mxu0 0
        %2984 = vmatpush1.bf16.msra.mxu0 0
        %2985 = vmatprep.mubr.bf16.mxu0 0
        %2986 = vmatmul.mubr.bf16.gmra.mrb[0].mxu0 %v2901
        %v2987 = vpop.f32.mrb[0].mxu0
        %v2988 = vadd.f32 0.0, %v2987
        %v2989 = vpop.f32.mrb[0].mxu0
        %v2990 = vpop.f32.mrb[0].mxu0
        %v2991 = vpop.f32.mrb[0].mxu0
        %2992 = vdwg.mxu0
        %v2993 = vadd.f32 %v2884, %v2947
        %v2994 = vadd.f32 %v2885, %v2949
        %v2995 = vadd.f32 %v2886, %v2988
        %s2996 = scalar_lea.vmem %s4, 28
        %v2997 = vld [vmem:[%s2996] sm:$0xf]
        %2998 = vrot.lane.b32.xlu0 %v2206, 109
        %v2999 = vpop.permute.xlu0 %2998
        %3000 = vrot.lane.b32.xlu0 %v2207, 109
        %v3001 = vpop.permute.xlu0 %3000
        %3002 = vrot.lane.b32.xlu0 %v2208, 109
        %v3003 = vpop.permute.xlu0 %3002
        %3004 = vrot.lane.b32.xlu0 %v2209, 109
        %v3005 = vpop.permute.xlu0 %3004
        %v3006 = vsel %vm632, %v2999, %v3001
        %v3007 = vsel %vm632, %v3001, %v3003
        %v3008 = vsel %vm632, %v3003, %v3005
        %v3010 = vsel %vm324, %v2997, 0
        %v3013 = vsel %vm328, %v3006, 0
        %v3016 = vsel %vm328, %v3007, 0
        %v3019 = vsel %vm328, %v3008, 0
        %3021 = vmatprep.subr.bf16.mxu0 %v3016
        %3022 = vmatpush1.bf16.msra.mxu0 %v3013
        %3023 = vmatprep.subr.bf16.mxu0 0
        %3024 = vmatpush1.bf16.msra.mxu0 0
        %3025 = vmatprep.subr.bf16.mxu0 0
        %3026 = vmatpush1.bf16.msra.mxu0 0
        %3027 = vmatprep.subr.bf16.mxu0 0
        %3028 = vmatpush1.bf16.msra.mxu0 0
        %3029 = vmatprep.subr.bf16.mxu0 0
        %3030 = vmatpush1.bf16.msra.mxu0 0
        %3031 = vmatprep.subr.bf16.mxu0 0
        %3032 = vmatpush1.bf16.msra.mxu0 0
        %3033 = vmatprep.subr.bf16.mxu0 0
        %3034 = vmatpush1.bf16.msra.mxu0 0
        %3035 = vmatprep.subr.bf16.mxu0 0
        %3036 = vmatpush1.bf16.msra.mxu0 0
        %3037 = vmatprep.subr.bf16.mxu0 0
        %3038 = vmatpush1.bf16.msra.mxu0 0
        %3039 = vmatprep.subr.bf16.mxu0 0
        %3040 = vmatpush1.bf16.msra.mxu0 0
        %3041 = vmatprep.subr.bf16.mxu0 0
        %3042 = vmatpush1.bf16.msra.mxu0 0
        %3043 = vmatprep.subr.bf16.mxu0 0
        %3044 = vmatpush1.bf16.msra.mxu0 0
        %3045 = vmatprep.subr.bf16.mxu0 0
        %3046 = vmatpush1.bf16.msra.mxu0 0
        %3047 = vmatprep.subr.bf16.mxu0 0
        %3048 = vmatpush1.bf16.msra.mxu0 0
        %3049 = vmatprep.subr.bf16.mxu0 0
        %3050 = vmatpush1.bf16.msra.mxu0 0
        %3051 = vmatprep.subr.bf16.mxu0 0
        %3052 = vmatpush1.bf16.msra.mxu0 0
        %3053 = vmatprep.mubr.bf16.mxu0 0
        %3054 = vmatmul.mubr.bf16.gmra.mrb[0].mxu0 %v3010
        %v3055 = vpop.f32.mrb[0].mxu0
        %v3056 = vadd.f32 0.0, %v3055
        %v3057 = vpop.f32.mrb[0].mxu0
        %v3058 = vadd.f32 0.0, %v3057
        %v3059 = vpop.f32.mrb[0].mxu0
        %v3060 = vpop.f32.mrb[0].mxu0
        %3061 = vdwg.mxu0
        %3062 = vmatprep.subr.bf16.mxu0 0
        %3063 = vmatpush1.bf16.msra.mxu0 %v3019
        %3064 = vmatprep.subr.bf16.mxu0 0
        %3065 = vmatpush1.bf16.msra.mxu0 0
        %3066 = vmatprep.subr.bf16.mxu0 0
        %3067 = vmatpush1.bf16.msra.mxu0 0
        %3068 = vmatprep.subr.bf16.mxu0 0
        %3069 = vmatpush1.bf16.msra.mxu0 0
        %3070 = vmatprep.subr.bf16.mxu0 0
        %3071 = vmatpush1.bf16.msra.mxu0 0
        %3072 = vmatprep.subr.bf16.mxu0 0
        %3073 = vmatpush1.bf16.msra.mxu0 0
        %3074 = vmatprep.subr.bf16.mxu0 0
        %3075 = vmatpush1.bf16.msra.mxu0 0
        %3076 = vmatprep.subr.bf16.mxu0 0
        %3077 = vmatpush1.bf16.msra.mxu0 0
        %3078 = vmatprep.subr.bf16.mxu0 0
        %3079 = vmatpush1.bf16.msra.mxu0 0
        %3080 = vmatprep.subr.bf16.mxu0 0
        %3081 = vmatpush1.bf16.msra.mxu0 0
        %3082 = vmatprep.subr.bf16.mxu0 0
        %3083 = vmatpush1.bf16.msra.mxu0 0
        %3084 = vmatprep.subr.bf16.mxu0 0
        %3085 = vmatpush1.bf16.msra.mxu0 0
        %3086 = vmatprep.subr.bf16.mxu0 0
        %3087 = vmatpush1.bf16.msra.mxu0 0
        %3088 = vmatprep.subr.bf16.mxu0 0
        %3089 = vmatpush1.bf16.msra.mxu0 0
        %3090 = vmatprep.subr.bf16.mxu0 0
        %3091 = vmatpush1.bf16.msra.mxu0 0
        %3092 = vmatprep.subr.bf16.mxu0 0
        %3093 = vmatpush1.bf16.msra.mxu0 0
        %3094 = vmatprep.mubr.bf16.mxu0 0
        %3095 = vmatmul.mubr.bf16.gmra.mrb[0].mxu0 %v3010
        %v3096 = vpop.f32.mrb[0].mxu0
        %v3097 = vadd.f32 0.0, %v3096
        %v3098 = vpop.f32.mrb[0].mxu0
        %v3099 = vpop.f32.mrb[0].mxu0
        %v3100 = vpop.f32.mrb[0].mxu0
        %3101 = vdwg.mxu0
        %v3102 = vadd.f32 %v2993, %v3056
        %v3103 = vadd.f32 %v2994, %v3058
        %v3104 = vadd.f32 %v2995, %v3097
        %s3105 = scalar_lea.vmem %s4, 32
        %v3106 = vld [vmem:[%s3105] sm:$0xf]
        %3107 = vrot.lane.b32.xlu0 %v2425, 109
        %v3108 = vpop.permute.xlu0 %3107
        %3109 = vrot.lane.b32.xlu0 %v2426, 109
        %v3110 = vpop.permute.xlu0 %3109
        %3111 = vrot.lane.b32.xlu0 %v2427, 109
        %v3112 = vpop.permute.xlu0 %3111
        %3113 = vrot.lane.b32.xlu0 %v2428, 109
        %v3114 = vpop.permute.xlu0 %3113
        %v3115 = vsel %vm632, %v3108, %v3110
        %v3116 = vsel %vm632, %v3110, %v3112
        %v3117 = vsel %vm632, %v3112, %v3114
        %v3119 = vsel %vm324, %v3106, 0
        %v3122 = vsel %vm328, %v3115, 0
        %v3125 = vsel %vm328, %v3116, 0
        %v3128 = vsel %vm328, %v3117, 0
        %3130 = vmatprep.subr.bf16.mxu0 %v3125
        %3131 = vmatpush1.bf16.msra.mxu0 %v3122
        %3132 = vmatprep.subr.bf16.mxu0 0
        %3133 = vmatpush1.bf16.msra.mxu0 0
        %3134 = vmatprep.subr.bf16.mxu0 0
        %3135 = vmatpush1.bf16.msra.mxu0 0
        %3136 = vmatprep.subr.bf16.mxu0 0
        %3137 = vmatpush1.bf16.msra.mxu0 0
        %3138 = vmatprep.subr.bf16.mxu0 0
        %3139 = vmatpush1.bf16.msra.mxu0 0
        %3140 = vmatprep.subr.bf16.mxu0 0
        %3141 = vmatpush1.bf16.msra.mxu0 0
        %3142 = vmatprep.subr.bf16.mxu0 0
        %3143 = vmatpush1.bf16.msra.mxu0 0
        %3144 = vmatprep.subr.bf16.mxu0 0
        %3145 = vmatpush1.bf16.msra.mxu0 0
        %3146 = vmatprep.subr.bf16.mxu0 0
        %3147 = vmatpush1.bf16.msra.mxu0 0
        %3148 = vmatprep.subr.bf16.mxu0 0
        %3149 = vmatpush1.bf16.msra.mxu0 0
        %3150 = vmatprep.subr.bf16.mxu0 0
        %3151 = vmatpush1.bf16.msra.mxu0 0
        %3152 = vmatprep.subr.bf16.mxu0 0
        %3153 = vmatpush1.bf16.msra.mxu0 0
        %3154 = vmatprep.subr.bf16.mxu0 0
        %3155 = vmatpush1.bf16.msra.mxu0 0
        %3156 = vmatprep.subr.bf16.mxu0 0
        %3157 = vmatpush1.bf16.msra.mxu0 0
        %3158 = vmatprep.subr.bf16.mxu0 0
        %3159 = vmatpush1.bf16.msra.mxu0 0
        %3160 = vmatprep.subr.bf16.mxu0 0
        %3161 = vmatpush1.bf16.msra.mxu0 0
        %3162 = vmatprep.mubr.bf16.mxu0 0
        %3163 = vmatmul.mubr.bf16.gmra.mrb[0].mxu0 %v3119
        %v3164 = vpop.f32.mrb[0].mxu0
        %v3165 = vadd.f32 0.0, %v3164
        %v3166 = vpop.f32.mrb[0].mxu0
        %v3167 = vadd.f32 0.0, %v3166
        %v3168 = vpop.f32.mrb[0].mxu0
        %v3169 = vpop.f32.mrb[0].mxu0
        %3170 = vdwg.mxu0
        %3171 = vmatprep.subr.bf16.mxu0 0
        %3172 = vmatpush1.bf16.msra.mxu0 %v3128
        %3173 = vmatprep.subr.bf16.mxu0 0
        %3174 = vmatpush1.bf16.msra.mxu0 0
        %3175 = vmatprep.subr.bf16.mxu0 0
        %3176 = vmatpush1.bf16.msra.mxu0 0
        %3177 = vmatprep.subr.bf16.mxu0 0
        %3178 = vmatpush1.bf16.msra.mxu0 0
        %3179 = vmatprep.subr.bf16.mxu0 0
        %3180 = vmatpush1.bf16.msra.mxu0 0
        %3181 = vmatprep.subr.bf16.mxu0 0
        %3182 = vmatpush1.bf16.msra.mxu0 0
        %3183 = vmatprep.subr.bf16.mxu0 0
        %3184 = vmatpush1.bf16.msra.mxu0 0
        %3185 = vmatprep.subr.bf16.mxu0 0
        %3186 = vmatpush1.bf16.msra.mxu0 0
        %3187 = vmatprep.subr.bf16.mxu0 0
        %3188 = vmatpush1.bf16.msra.mxu0 0
        %3189 = vmatprep.subr.bf16.mxu0 0
        %3190 = vmatpush1.bf16.msra.mxu0 0
        %3191 = vmatprep.subr.bf16.mxu0 0
        %3192 = vmatpush1.bf16.msra.mxu0 0
        %3193 = vmatprep.subr.bf16.mxu0 0
        %3194 = vmatpush1.bf16.msra.mxu0 0
        %3195 = vmatprep.subr.bf16.mxu0 0
        %3196 = vmatpush1.bf16.msra.mxu0 0
        %3197 = vmatprep.subr.bf16.mxu0 0
        %3198 = vmatpush1.bf16.msra.mxu0 0
        %3199 = vmatprep.subr.bf16.mxu0 0
        %3200 = vmatpush1.bf16.msra.mxu0 0
        %3201 = vmatprep.subr.bf16.mxu0 0
        %3202 = vmatpush1.bf16.msra.mxu0 0
        %3203 = vmatprep.mubr.bf16.mxu0 0
        %3204 = vmatmul.mubr.bf16.gmra.mrb[0].mxu0 %v3119
        %v3205 = vpop.f32.mrb[0].mxu0
        %v3206 = vadd.f32 0.0, %v3205
        %v3207 = vpop.f32.mrb[0].mxu0
        %v3208 = vpop.f32.mrb[0].mxu0
        %v3209 = vpop.f32.mrb[0].mxu0
        %3210 = vdwg.mxu0
        %v3211 = vadd.f32 %v3102, %v3165
        %v3212 = vadd.f32 %v3103, %v3167
        %v3213 = vadd.f32 %v3104, %v3206
        %3215 = vset.pattern.permute.xlu0 0
        %3216 = vperm.xlu0 %3215, %v304
        %v3217 = vpop.permute.xlu0 %3216
        %v3219 = vadd.f32 %v3211, %v3217
        %v3220 = vadd.f32 %v3212, %v3217
        %v3221 = vadd.f32 %v3213, %v3217
        %v3222 = vadd.f32 %v3219, %v2147
        %v3223 = vadd.f32 %v3220, %v2149
        %v3224 = vadd.f32 %v3221, %v2188
        %3225 = vst [vmem:[%s271] sm:$0xff] %v3222
        %3226 = vst [vmem:[%s271 + $0x8] sm:$0xff] %v3223
        %3227 = vst [vmem:[%s271 + $0x10] sm:$0xff] %v3224
        %v3228 = vld [vmem:[%s4] sm:$0xf]
        %v3229 = vld [vmem:[%s1644] sm:$0xff]
        %v3230 = vld [vmem:[%s1644 + $0x8] sm:$0xff]
        %v3231 = vld [vmem:[%s2196] sm:$0xf]
        %v3232 = vld [vmem:[%s2057] sm:$0xff]
        %v3233 = vld [vmem:[%s2057 + $0x8] sm:$0xff]
        %v3236 = vunpack.c.l.b16 %v3232
        %v3237 = vunpack.c.h.b16 %v3232
        %v3238 = vunpack.c.l.b16 %v3233
        %v3239 = vunpack.c.h.b16 %v3233
        %v3240 = vpack.c.b16 %v3236, %v3236
        %v3241 = vpack.c.b16 %v3237, %v3237
        %v3242 = vpack.c.b16 %v3238, %v3238
        %v3243 = vpack.c.b16 %v3239, %v3239
        %3244 = vrot.lane.b32.xlu0 %v3240, 127
        %v3245 = vpop.permute.xlu0 %3244
        %3246 = vrot.lane.b32.xlu0 %v3241, 127
        %v3247 = vpop.permute.xlu0 %3246
        %3248 = vrot.lane.b32.xlu0 %v3242, 127
        %v3249 = vpop.permute.xlu0 %3248
        %3250 = vrot.lane.b32.xlu0 %v3243, 127
        %v3251 = vpop.permute.xlu0 %3250
        %v3252 = vsel %vm320, %v3245, %v3247
        %v3253 = vsel %vm320, %v3247, %v3249
        %v3254 = vsel %vm320, %v3249, %v3251
        %v3256 = vsel %vm324, %v3231, 0
        %v3259 = vsel %vm328, %v3252, 0
        %v3262 = vsel %vm328, %v3253, 0
        %v3265 = vsel %vm328, %v3254, 0
        %3267 = vmatprep.subr.bf16.mxu0 %v3262
        %3268 = vmatpush1.bf16.msra.mxu0 %v3259
        %3269 = vmatprep.subr.bf16.mxu0 0
        %3270 = vmatpush1.bf16.msra.mxu0 0
        %3271 = vmatprep.subr.bf16.mxu0 0
        %3272 = vmatpush1.bf16.msra.mxu0 0
        %3273 = vmatprep.subr.bf16.mxu0 0
        %3274 = vmatpush1.bf16.msra.mxu0 0
        %3275 = vmatprep.subr.bf16.mxu0 0
        %3276 = vmatpush1.bf16.msra.mxu0 0
        %3277 = vmatprep.subr.bf16.mxu0 0
        %3278 = vmatpush1.bf16.msra.mxu0 0
        %3279 = vmatprep.subr.bf16.mxu0 0
        %3280 = vmatpush1.bf16.msra.mxu0 0
        %3281 = vmatprep.subr.bf16.mxu0 0
        %3282 = vmatpush1.bf16.msra.mxu0 0
        %3283 = vmatprep.subr.bf16.mxu0 0
        %3284 = vmatpush1.bf16.msra.mxu0 0
        %3285 = vmatprep.subr.bf16.mxu0 0
        %3286 = vmatpush1.bf16.msra.mxu0 0
        %3287 = vmatprep.subr.bf16.mxu0 0
        %3288 = vmatpush1.bf16.msra.mxu0 0
        %3289 = vmatprep.subr.bf16.mxu0 0
        %3290 = vmatpush1.bf16.msra.mxu0 0
        %3291 = vmatprep.subr.bf16.mxu0 0
        %3292 = vmatpush1.bf16.msra.mxu0 0
        %3293 = vmatprep.subr.bf16.mxu0 0
        %3294 = vmatpush1.bf16.msra.mxu0 0
        %3295 = vmatprep.subr.bf16.mxu0 0
        %3296 = vmatpush1.bf16.msra.mxu0 0
        %3297 = vmatprep.subr.bf16.mxu0 0
        %3298 = vmatpush1.bf16.msra.mxu0 0
        %3299 = vmatprep.mubr.bf16.mxu0 0
        %3300 = vmatmul.mubr.bf16.gmra.mrb[0].mxu0 %v3256
        %v3301 = vpop.f32.mrb[0].mxu0
        %v3302 = vadd.f32 0.0, %v3301
        %v3303 = vpop.f32.mrb[0].mxu0
        %v3304 = vadd.f32 0.0, %v3303
        %v3305 = vpop.f32.mrb[0].mxu0
        %v3306 = vpop.f32.mrb[0].mxu0
        %3307 = vdwg.mxu0
        %3308 = vmatprep.subr.bf16.mxu0 0
        %3309 = vmatpush1.bf16.msra.mxu0 %v3265
        %3310 = vmatprep.subr.bf16.mxu0 0
        %3311 = vmatpush1.bf16.msra.mxu0 0
        %3312 = vmatprep.subr.bf16.mxu0 0
        %3313 = vmatpush1.bf16.msra.mxu0 0
        %3314 = vmatprep.subr.bf16.mxu0 0
        %3315 = vmatpush1.bf16.msra.mxu0 0
        %3316 = vmatprep.subr.bf16.mxu0 0
        %3317 = vmatpush1.bf16.msra.mxu0 0
        %3318 = vmatprep.subr.bf16.mxu0 0
        %3319 = vmatpush1.bf16.msra.mxu0 0
        %3320 = vmatprep.subr.bf16.mxu0 0
        %3321 = vmatpush1.bf16.msra.mxu0 0
        %3322 = vmatprep.subr.bf16.mxu0 0
        %3323 = vmatpush1.bf16.msra.mxu0 0
        %3324 = vmatprep.subr.bf16.mxu0 0
        %3325 = vmatpush1.bf16.msra.mxu0 0
        %3326 = vmatprep.subr.bf16.mxu0 0
        %3327 = vmatpush1.bf16.msra.mxu0 0
        %3328 = vmatprep.subr.bf16.mxu0 0
        %3329 = vmatpush1.bf16.msra.mxu0 0
        %3330 = vmatprep.subr.bf16.mxu0 0
        %3331 = vmatpush1.bf16.msra.mxu0 0
        %3332 = vmatprep.subr.bf16.mxu0 0
        %3333 = vmatpush1.bf16.msra.mxu0 0
        %3334 = vmatprep.subr.bf16.mxu0 0
        %3335 = vmatpush1.bf16.msra.mxu0 0
        %3336 = vmatprep.subr.bf16.mxu0 0
        %3337 = vmatpush1.bf16.msra.mxu0 0
        %3338 = vmatprep.subr.bf16.mxu0 0
        %3339 = vmatpush1.bf16.msra.mxu0 0
        %3340 = vmatprep.mubr.bf16.mxu0 0
        %3341 = vmatmul.mubr.bf16.gmra.mrb[0].mxu0 %v3256
        %v3342 = vpop.f32.mrb[0].mxu0
        %v3343 = vadd.f32 0.0, %v3342
        %v3344 = vpop.f32.mrb[0].mxu0
        %v3345 = vpop.f32.mrb[0].mxu0
        %v3346 = vpop.f32.mrb[0].mxu0
        %3347 = vdwg.mxu0
        %v3350 = vunpack.c.l.b16 %v3229
        %v3351 = vunpack.c.h.b16 %v3229
        %v3352 = vunpack.c.l.b16 %v3230
        %v3353 = vunpack.c.h.b16 %v3230
        %v3354 = vpack.c.b16 %v3350, %v3350
        %v3355 = vpack.c.b16 %v3351, %v3351
        %v3356 = vpack.c.b16 %v3352, %v3352
        %v3357 = vpack.c.b16 %v3353, %v3353
        %3358 = vrot.lane.b32.xlu0 %v3354, 127
        %v3359 = vpop.permute.xlu0 %3358
        %3360 = vrot.lane.b32.xlu0 %v3355, 127
        %v3361 = vpop.permute.xlu0 %3360
        %3362 = vrot.lane.b32.xlu0 %v3356, 127
        %v3363 = vpop.permute.xlu0 %3362
        %3364 = vrot.lane.b32.xlu0 %v3357, 127
        %v3365 = vpop.permute.xlu0 %3364
        %v3366 = vsel %vm320, %v3359, %v3361
        %v3367 = vsel %vm320, %v3361, %v3363
        %v3368 = vsel %vm320, %v3363, %v3365
        %v3370 = vsel %vm324, %v3228, 0
        %v3373 = vsel %vm328, %v3366, 0
        %v3376 = vsel %vm328, %v3367, 0
        %v3379 = vsel %vm328, %v3368, 0
        %3381 = vmatprep.subr.bf16.mxu0 %v3376
        %3382 = vmatpush1.bf16.msra.mxu0 %v3373
        %3383 = vmatprep.subr.bf16.mxu0 0
        %3384 = vmatpush1.bf16.msra.mxu0 0
        %3385 = vmatprep.subr.bf16.mxu0 0
        %3386 = vmatpush1.bf16.msra.mxu0 0
        %3387 = vmatprep.subr.bf16.mxu0 0
        %3388 = vmatpush1.bf16.msra.mxu0 0
        %3389 = vmatprep.subr.bf16.mxu0 0
        %3390 = vmatpush1.bf16.msra.mxu0 0
        %3391 = vmatprep.subr.bf16.mxu0 0
        %3392 = vmatpush1.bf16.msra.mxu0 0
        %3393 = vmatprep.subr.bf16.mxu0 0
        %3394 = vmatpush1.bf16.msra.mxu0 0
        %3395 = vmatprep.subr.bf16.mxu0 0
        %3396 = vmatpush1.bf16.msra.mxu0 0
        %3397 = vmatprep.subr.bf16.mxu0 0
        %3398 = vmatpush1.bf16.msra.mxu0 0
        %3399 = vmatprep.subr.bf16.mxu0 0
        %3400 = vmatpush1.bf16.msra.mxu0 0
        %3401 = vmatprep.subr.bf16.mxu0 0
        %3402 = vmatpush1.bf16.msra.mxu0 0
        %3403 = vmatprep.subr.bf16.mxu0 0
        %3404 = vmatpush1.bf16.msra.mxu0 0
        %3405 = vmatprep.subr.bf16.mxu0 0
        %3406 = vmatpush1.bf16.msra.mxu0 0
        %3407 = vmatprep.subr.bf16.mxu0 0
        %3408 = vmatpush1.bf16.msra.mxu0 0
        %3409 = vmatprep.subr.bf16.mxu0 0
        %3410 = vmatpush1.bf16.msra.mxu0 0
        %3411 = vmatprep.subr.bf16.mxu0 0
        %3412 = vmatpush1.bf16.msra.mxu0 0
        %3413 = vmatprep.mubr.bf16.mxu0 0
        %3414 = vmatmul.mubr.bf16.gmra.mrb[0].mxu0 %v3370
        %v3415 = vpop.f32.mrb[0].mxu0
        %v3416 = vadd.f32 %v3302, %v3415
        %v3417 = vpop.f32.mrb[0].mxu0
        %v3418 = vadd.f32 %v3304, %v3417
        %v3419 = vpop.f32.mrb[0].mxu0
        %v3420 = vpop.f32.mrb[0].mxu0
        %3421 = vdwg.mxu0
        %3422 = vmatprep.subr.bf16.mxu0 0
        %3423 = vmatpush1.bf16.msra.mxu0 %v3379
        %3424 = vmatprep.subr.bf16.mxu0 0
        %3425 = vmatpush1.bf16.msra.mxu0 0
        %3426 = vmatprep.subr.bf16.mxu0 0
        %3427 = vmatpush1.bf16.msra.mxu0 0
        %3428 = vmatprep.subr.bf16.mxu0 0
        %3429 = vmatpush1.bf16.msra.mxu0 0
        %3430 = vmatprep.subr.bf16.mxu0 0
        %3431 = vmatpush1.bf16.msra.mxu0 0
        %3432 = vmatprep.subr.bf16.mxu0 0
        %3433 = vmatpush1.bf16.msra.mxu0 0
        %3434 = vmatprep.subr.bf16.mxu0 0
        %3435 = vmatpush1.bf16.msra.mxu0 0
        %3436 = vmatprep.subr.bf16.mxu0 0
        %3437 = vmatpush1.bf16.msra.mxu0 0
        %3438 = vmatprep.subr.bf16.mxu0 0
        %3439 = vmatpush1.bf16.msra.mxu0 0
        %3440 = vmatprep.subr.bf16.mxu0 0
        %3441 = vmatpush1.bf16.msra.mxu0 0
        %3442 = vmatprep.subr.bf16.mxu0 0
        %3443 = vmatpush1.bf16.msra.mxu0 0
        %3444 = vmatprep.subr.bf16.mxu0 0
        %3445 = vmatpush1.bf16.msra.mxu0 0
        %3446 = vmatprep.subr.bf16.mxu0 0
        %3447 = vmatpush1.bf16.msra.mxu0 0
        %3448 = vmatprep.subr.bf16.mxu0 0
        %3449 = vmatpush1.bf16.msra.mxu0 0
        %3450 = vmatprep.subr.bf16.mxu0 0
        %3451 = vmatpush1.bf16.msra.mxu0 0
        %3452 = vmatprep.subr.bf16.mxu0 0
        %3453 = vmatpush1.bf16.msra.mxu0 0
        %3454 = vmatprep.mubr.bf16.mxu0 0
        %3455 = vmatmul.mubr.bf16.gmra.mrb[0].mxu0 %v3370
        %v3456 = vpop.f32.mrb[0].mxu0
        %v3457 = vadd.f32 %v3343, %v3456
        %v3458 = vpop.f32.mrb[0].mxu0
        %v3459 = vpop.f32.mrb[0].mxu0
        %v3460 = vpop.f32.mrb[0].mxu0
        %3461 = vdwg.mxu0
        %v3462 = vld [vmem:[%s2415] sm:$0xf]
        %3463 = vrot.lane.b32.xlu0 %v3354, 126
        %v3464 = vpop.permute.xlu0 %3463
        %3465 = vrot.lane.b32.xlu0 %v3355, 126
        %v3466 = vpop.permute.xlu0 %3465
        %3467 = vrot.lane.b32.xlu0 %v3356, 126
        %v3468 = vpop.permute.xlu0 %3467
        %3469 = vrot.lane.b32.xlu0 %v3357, 126
        %v3470 = vpop.permute.xlu0 %3469
        %v3471 = vsel %vm815, %v3464, %v3466
        %v3472 = vsel %vm815, %v3466, %v3468
        %v3473 = vsel %vm815, %v3468, %v3470
        %v3475 = vsel %vm324, %v3462, 0
        %v3478 = vsel %vm328, %v3471, 0
        %v3481 = vsel %vm328, %v3472, 0
        %v3484 = vsel %vm328, %v3473, 0
        %3486 = vmatprep.subr.bf16.mxu0 %v3481
        %3487 = vmatpush1.bf16.msra.mxu0 %v3478
        %3488 = vmatprep.subr.bf16.mxu0 0
        %3489 = vmatpush1.bf16.msra.mxu0 0
        %3490 = vmatprep.subr.bf16.mxu0 0
        %3491 = vmatpush1.bf16.msra.mxu0 0
        %3492 = vmatprep.subr.bf16.mxu0 0
        %3493 = vmatpush1.bf16.msra.mxu0 0
        %3494 = vmatprep.subr.bf16.mxu0 0
        %3495 = vmatpush1.bf16.msra.mxu0 0
        %3496 = vmatprep.subr.bf16.mxu0 0
        %3497 = vmatpush1.bf16.msra.mxu0 0
        %3498 = vmatprep.subr.bf16.mxu0 0
        %3499 = vmatpush1.bf16.msra.mxu0 0
        %3500 = vmatprep.subr.bf16.mxu0 0
        %3501 = vmatpush1.bf16.msra.mxu0 0
        %3502 = vmatprep.subr.bf16.mxu0 0
        %3503 = vmatpush1.bf16.msra.mxu0 0
        %3504 = vmatprep.subr.bf16.mxu0 0
        %3505 = vmatpush1.bf16.msra.mxu0 0
        %3506 = vmatprep.subr.bf16.mxu0 0
        %3507 = vmatpush1.bf16.msra.mxu0 0
        %3508 = vmatprep.subr.bf16.mxu0 0
        %3509 = vmatpush1.bf16.msra.mxu0 0
        %3510 = vmatprep.subr.bf16.mxu0 0
        %3511 = vmatpush1.bf16.msra.mxu0 0
        %3512 = vmatprep.subr.bf16.mxu0 0
        %3513 = vmatpush1.bf16.msra.mxu0 0
        %3514 = vmatprep.subr.bf16.mxu0 0
        %3515 = vmatpush1.bf16.msra.mxu0 0
        %3516 = vmatprep.subr.bf16.mxu0 0
        %3517 = vmatpush1.bf16.msra.mxu0 0
        %3518 = vmatprep.mubr.bf16.mxu0 0
        %3519 = vmatmul.mubr.bf16.gmra.mrb[0].mxu0 %v3475
        %v3520 = vpop.f32.mrb[0].mxu0
        %v3521 = vadd.f32 0.0, %v3520
        %v3522 = vpop.f32.mrb[0].mxu0
        %v3523 = vadd.f32 0.0, %v3522
        %v3524 = vpop.f32.mrb[0].mxu0
        %v3525 = vpop.f32.mrb[0].mxu0
        %3526 = vdwg.mxu0
        %3527 = vmatprep.subr.bf16.mxu0 0
        %3528 = vmatpush1.bf16.msra.mxu0 %v3484
        %3529 = vmatprep.subr.bf16.mxu0 0
        %3530 = vmatpush1.bf16.msra.mxu0 0
        %3531 = vmatprep.subr.bf16.mxu0 0
        %3532 = vmatpush1.bf16.msra.mxu0 0
        %3533 = vmatprep.subr.bf16.mxu0 0
        %3534 = vmatpush1.bf16.msra.mxu0 0
        %3535 = vmatprep.subr.bf16.mxu0 0
        %3536 = vmatpush1.bf16.msra.mxu0 0
        %3537 = vmatprep.subr.bf16.mxu0 0
        %3538 = vmatpush1.bf16.msra.mxu0 0
        %3539 = vmatprep.subr.bf16.mxu0 0
        %3540 = vmatpush1.bf16.msra.mxu0 0
        %3541 = vmatprep.subr.bf16.mxu0 0
        %3542 = vmatpush1.bf16.msra.mxu0 0
        %3543 = vmatprep.subr.bf16.mxu0 0
        %3544 = vmatpush1.bf16.msra.mxu0 0
        %3545 = vmatprep.subr.bf16.mxu0 0
        %3546 = vmatpush1.bf16.msra.mxu0 0
        %3547 = vmatprep.subr.bf16.mxu0 0
        %3548 = vmatpush1.bf16.msra.mxu0 0
        %3549 = vmatprep.subr.bf16.mxu0 0
        %3550 = vmatpush1.bf16.msra.mxu0 0
        %3551 = vmatprep.subr.bf16.mxu0 0
        %3552 = vmatpush1.bf16.msra.mxu0 0
        %3553 = vmatprep.subr.bf16.mxu0 0
        %3554 = vmatpush1.bf16.msra.mxu0 0
        %3555 = vmatprep.subr.bf16.mxu0 0
        %3556 = vmatpush1.bf16.msra.mxu0 0
        %3557 = vmatprep.subr.bf16.mxu0 0
        %3558 = vmatpush1.bf16.msra.mxu0 0
        %3559 = vmatprep.mubr.bf16.mxu0 0
        %3560 = vmatmul.mubr.bf16.gmra.mrb[0].mxu0 %v3475
        %v3561 = vpop.f32.mrb[0].mxu0
        %v3562 = vadd.f32 0.0, %v3561
        %v3563 = vpop.f32.mrb[0].mxu0
        %v3564 = vpop.f32.mrb[0].mxu0
        %v3565 = vpop.f32.mrb[0].mxu0
        %3566 = vdwg.mxu0
        %v3567 = vadd.f32 %v3416, %v3521
        %v3568 = vadd.f32 %v3418, %v3523
        %v3569 = vadd.f32 %v3457, %v3562
        %v3570 = vld [vmem:[%s2536] sm:$0xf]
        %v3571 = vld [vmem:[#allocation2] sm:$0xff]
        %v3572 = vld [vmem:[#allocation2 + $0x8] sm:$0xff]
        %v3575 = vunpack.c.l.b16 %v3571
        %v3576 = vunpack.c.h.b16 %v3571
        %v3577 = vunpack.c.l.b16 %v3572
        %v3578 = vunpack.c.h.b16 %v3572
        %v3579 = vpack.c.b16 %v3575, %v3575
        %v3580 = vpack.c.b16 %v3576, %v3576
        %v3581 = vpack.c.b16 %v3577, %v3577
        %v3582 = vpack.c.b16 %v3578, %v3578
        %3583 = vrot.lane.b32.xlu0 %v3579, 109
        %v3584 = vpop.permute.xlu0 %3583
        %3585 = vrot.lane.b32.xlu0 %v3580, 109
        %v3586 = vpop.permute.xlu0 %3585
        %3587 = vrot.lane.b32.xlu0 %v3581, 109
        %v3588 = vpop.permute.xlu0 %3587
        %3589 = vrot.lane.b32.xlu0 %v3582, 109
        %v3590 = vpop.permute.xlu0 %3589
        %v3591 = vsel %vm632, %v3584, %v3586
        %v3592 = vsel %vm632, %v3586, %v3588
        %v3593 = vsel %vm632, %v3588, %v3590
        %v3595 = vsel %vm324, %v3570, 0
        %v3598 = vsel %vm328, %v3591, 0
        %v3601 = vsel %vm328, %v3592, 0
        %v3604 = vsel %vm328, %v3593, 0
        %3606 = vmatprep.subr.bf16.mxu0 %v3601
        %3607 = vmatpush1.bf16.msra.mxu0 %v3598
        %3608 = vmatprep.subr.bf16.mxu0 0
        %3609 = vmatpush1.bf16.msra.mxu0 0
        %3610 = vmatprep.subr.bf16.mxu0 0
        %3611 = vmatpush1.bf16.msra.mxu0 0
        %3612 = vmatprep.subr.bf16.mxu0 0
        %3613 = vmatpush1.bf16.msra.mxu0 0
        %3614 = vmatprep.subr.bf16.mxu0 0
        %3615 = vmatpush1.bf16.msra.mxu0 0
        %3616 = vmatprep.subr.bf16.mxu0 0
        %3617 = vmatpush1.bf16.msra.mxu0 0
        %3618 = vmatprep.subr.bf16.mxu0 0
        %3619 = vmatpush1.bf16.msra.mxu0 0
        %3620 = vmatprep.subr.bf16.mxu0 0
        %3621 = vmatpush1.bf16.msra.mxu0 0
        %3622 = vmatprep.subr.bf16.mxu0 0
        %3623 = vmatpush1.bf16.msra.mxu0 0
        %3624 = vmatprep.subr.bf16.mxu0 0
        %3625 = vmatpush1.bf16.msra.mxu0 0
        %3626 = vmatprep.subr.bf16.mxu0 0
        %3627 = vmatpush1.bf16.msra.mxu0 0
        %3628 = vmatprep.subr.bf16.mxu0 0
        %3629 = vmatpush1.bf16.msra.mxu0 0
        %3630 = vmatprep.subr.bf16.mxu0 0
        %3631 = vmatpush1.bf16.msra.mxu0 0
        %3632 = vmatprep.subr.bf16.mxu0 0
        %3633 = vmatpush1.bf16.msra.mxu0 0
        %3634 = vmatprep.subr.bf16.mxu0 0
        %3635 = vmatpush1.bf16.msra.mxu0 0
        %3636 = vmatprep.subr.bf16.mxu0 0
        %3637 = vmatpush1.bf16.msra.mxu0 0
        %3638 = vmatprep.mubr.bf16.mxu0 0
        %3639 = vmatmul.mubr.bf16.gmra.mrb[0].mxu0 %v3595
        %v3640 = vpop.f32.mrb[0].mxu0
        %v3641 = vadd.f32 0.0, %v3640
        %v3642 = vpop.f32.mrb[0].mxu0
        %v3643 = vadd.f32 0.0, %v3642
        %v3644 = vpop.f32.mrb[0].mxu0
        %v3645 = vpop.f32.mrb[0].mxu0
        %3646 = vdwg.mxu0
        %3647 = vmatprep.subr.bf16.mxu0 0
        %3648 = vmatpush1.bf16.msra.mxu0 %v3604
        %3649 = vmatprep.subr.bf16.mxu0 0
        %3650 = vmatpush1.bf16.msra.mxu0 0
        %3651 = vmatprep.subr.bf16.mxu0 0
        %3652 = vmatpush1.bf16.msra.mxu0 0
        %3653 = vmatprep.subr.bf16.mxu0 0
        %3654 = vmatpush1.bf16.msra.mxu0 0
        %3655 = vmatprep.subr.bf16.mxu0 0
        %3656 = vmatpush1.bf16.msra.mxu0 0
        %3657 = vmatprep.subr.bf16.mxu0 0
        %3658 = vmatpush1.bf16.msra.mxu0 0
        %3659 = vmatprep.subr.bf16.mxu0 0
        %3660 = vmatpush1.bf16.msra.mxu0 0
        %3661 = vmatprep.subr.bf16.mxu0 0
        %3662 = vmatpush1.bf16.msra.mxu0 0
        %3663 = vmatprep.subr.bf16.mxu0 0
        %3664 = vmatpush1.bf16.msra.mxu0 0
        %3665 = vmatprep.subr.bf16.mxu0 0
        %3666 = vmatpush1.bf16.msra.mxu0 0
        %3667 = vmatprep.subr.bf16.mxu0 0
        %3668 = vmatpush1.bf16.msra.mxu0 0
        %3669 = vmatprep.subr.bf16.mxu0 0
        %3670 = vmatpush1.bf16.msra.mxu0 0
        %3671 = vmatprep.subr.bf16.mxu0 0
        %3672 = vmatpush1.bf16.msra.mxu0 0
        %3673 = vmatprep.subr.bf16.mxu0 0
        %3674 = vmatpush1.bf16.msra.mxu0 0
        %3675 = vmatprep.subr.bf16.mxu0 0
        %3676 = vmatpush1.bf16.msra.mxu0 0
        %3677 = vmatprep.subr.bf16.mxu0 0
        %3678 = vmatpush1.bf16.msra.mxu0 0
        %3679 = vmatprep.mubr.bf16.mxu0 0
        %3680 = vmatmul.mubr.bf16.gmra.mrb[0].mxu0 %v3595
        %v3681 = vpop.f32.mrb[0].mxu0
        %v3682 = vadd.f32 0.0, %v3681
        %v3683 = vpop.f32.mrb[0].mxu0
        %v3684 = vpop.f32.mrb[0].mxu0
        %v3685 = vpop.f32.mrb[0].mxu0
        %3686 = vdwg.mxu0
        %v3687 = vadd.f32 %v3567, %v3641
        %v3688 = vadd.f32 %v3568, %v3643
        %v3689 = vadd.f32 %v3569, %v3682
        %v3690 = vld [vmem:[%s2657] sm:$0xf]
        %v3691 = vld [vmem:[%s1210] sm:$0xff]
        %v3692 = vld [vmem:[%s1210 + $0x8] sm:$0xff]
        %v3695 = vunpack.c.l.b16 %v3691
        %v3696 = vunpack.c.h.b16 %v3691
        %v3697 = vunpack.c.l.b16 %v3692
        %v3698 = vunpack.c.h.b16 %v3692
        %v3699 = vpack.c.b16 %v3695, %v3695
        %v3700 = vpack.c.b16 %v3696, %v3696
        %v3701 = vpack.c.b16 %v3697, %v3697
        %v3702 = vpack.c.b16 %v3698, %v3698
        %3703 = vrot.lane.b32.xlu0 %v3699, 109
        %v3704 = vpop.permute.xlu0 %3703
        %3705 = vrot.lane.b32.xlu0 %v3700, 109
        %v3706 = vpop.permute.xlu0 %3705
        %3707 = vrot.lane.b32.xlu0 %v3701, 109
        %v3708 = vpop.permute.xlu0 %3707
        %3709 = vrot.lane.b32.xlu0 %v3702, 109
        %v3710 = vpop.permute.xlu0 %3709
        %v3711 = vsel %vm632, %v3704, %v3706
        %v3712 = vsel %vm632, %v3706, %v3708
        %v3713 = vsel %vm632, %v3708, %v3710
        %v3715 = vsel %vm324, %v3690, 0
        %v3718 = vsel %vm328, %v3711, 0
        %v3721 = vsel %vm328, %v3712, 0
        %v3724 = vsel %vm328, %v3713, 0
        %3726 = vmatprep.subr.bf16.mxu0 %v3721
        %3727 = vmatpush1.bf16.msra.mxu0 %v3718
        %3728 = vmatprep.subr.bf16.mxu0 0
        %3729 = vmatpush1.bf16.msra.mxu0 0
        %3730 = vmatprep.subr.bf16.mxu0 0
        %3731 = vmatpush1.bf16.msra.mxu0 0
        %3732 = vmatprep.subr.bf16.mxu0 0
        %3733 = vmatpush1.bf16.msra.mxu0 0
        %3734 = vmatprep.subr.bf16.mxu0 0
        %3735 = vmatpush1.bf16.msra.mxu0 0
        %3736 = vmatprep.subr.bf16.mxu0 0
        %3737 = vmatpush1.bf16.msra.mxu0 0
        %3738 = vmatprep.subr.bf16.mxu0 0
        %3739 = vmatpush1.bf16.msra.mxu0 0
        %3740 = vmatprep.subr.bf16.mxu0 0
        %3741 = vmatpush1.bf16.msra.mxu0 0
        %3742 = vmatprep.subr.bf16.mxu0 0
        %3743 = vmatpush1.bf16.msra.mxu0 0
        %3744 = vmatprep.subr.bf16.mxu0 0
        %3745 = vmatpush1.bf16.msra.mxu0 0
        %3746 = vmatprep.subr.bf16.mxu0 0
        %3747 = vmatpush1.bf16.msra.mxu0 0
        %3748 = vmatprep.subr.bf16.mxu0 0
        %3749 = vmatpush1.bf16.msra.mxu0 0
        %3750 = vmatprep.subr.bf16.mxu0 0
        %3751 = vmatpush1.bf16.msra.mxu0 0
        %3752 = vmatprep.subr.bf16.mxu0 0
        %3753 = vmatpush1.bf16.msra.mxu0 0
        %3754 = vmatprep.subr.bf16.mxu0 0
        %3755 = vmatpush1.bf16.msra.mxu0 0
        %3756 = vmatprep.subr.bf16.mxu0 0
        %3757 = vmatpush1.bf16.msra.mxu0 0
        %3758 = vmatprep.mubr.bf16.mxu0 0
        %3759 = vmatmul.mubr.bf16.gmra.mrb[0].mxu0 %v3715
        %v3760 = vpop.f32.mrb[0].mxu0
        %v3761 = vadd.f32 0.0, %v3760
        %v3762 = vpop.f32.mrb[0].mxu0
        %v3763 = vadd.f32 0.0, %v3762
        %v3764 = vpop.f32.mrb[0].mxu0
        %v3765 = vpop.f32.mrb[0].mxu0
        %3766 = vdwg.mxu0
        %3767 = vmatprep.subr.bf16.mxu0 0
        %3768 = vmatpush1.bf16.msra.mxu0 %v3724
        %3769 = vmatprep.subr.bf16.mxu0 0
        %3770 = vmatpush1.bf16.msra.mxu0 0
        %3771 = vmatprep.subr.bf16.mxu0 0
        %3772 = vmatpush1.bf16.msra.mxu0 0
        %3773 = vmatprep.subr.bf16.mxu0 0
        %3774 = vmatpush1.bf16.msra.mxu0 0
        %3775 = vmatprep.subr.bf16.mxu0 0
        %3776 = vmatpush1.bf16.msra.mxu0 0
        %3777 = vmatprep.subr.bf16.mxu0 0
        %3778 = vmatpush1.bf16.msra.mxu0 0
        %3779 = vmatprep.subr.bf16.mxu0 0
        %3780 = vmatpush1.bf16.msra.mxu0 0
        %3781 = vmatprep.subr.bf16.mxu0 0
        %3782 = vmatpush1.bf16.msra.mxu0 0
        %3783 = vmatprep.subr.bf16.mxu0 0
        %3784 = vmatpush1.bf16.msra.mxu0 0
        %3785 = vmatprep.subr.bf16.mxu0 0
        %3786 = vmatpush1.bf16.msra.mxu0 0
        %3787 = vmatprep.subr.bf16.mxu0 0
        %3788 = vmatpush1.bf16.msra.mxu0 0
        %3789 = vmatprep.subr.bf16.mxu0 0
        %3790 = vmatpush1.bf16.msra.mxu0 0
        %3791 = vmatprep.subr.bf16.mxu0 0
        %3792 = vmatpush1.bf16.msra.mxu0 0
        %3793 = vmatprep.subr.bf16.mxu0 0
        %3794 = vmatpush1.bf16.msra.mxu0 0
        %3795 = vmatprep.subr.bf16.mxu0 0
        %3796 = vmatpush1.bf16.msra.mxu0 0
        %3797 = vmatprep.subr.bf16.mxu0 0
        %3798 = vmatpush1.bf16.msra.mxu0 0
        %3799 = vmatprep.mubr.bf16.mxu0 0
        %3800 = vmatmul.mubr.bf16.gmra.mrb[0].mxu0 %v3715
        %v3801 = vpop.f32.mrb[0].mxu0
        %v3802 = vadd.f32 0.0, %v3801
        %v3803 = vpop.f32.mrb[0].mxu0
        %v3804 = vpop.f32.mrb[0].mxu0
        %v3805 = vpop.f32.mrb[0].mxu0
        %3806 = vdwg.mxu0
        %v3807 = vadd.f32 %v3687, %v3761
        %v3808 = vadd.f32 %v3688, %v3763
        %v3809 = vadd.f32 %v3689, %v3802
        %v3810 = vld [vmem:[%s2778] sm:$0xf]
        %3811 = vrot.lane.b32.xlu0 %v3579, 108
        %v3812 = vpop.permute.xlu0 %3811
        %3813 = vrot.lane.b32.xlu0 %v3580, 108
        %v3814 = vpop.permute.xlu0 %3813
        %3815 = vrot.lane.b32.xlu0 %v3581, 108
        %v3816 = vpop.permute.xlu0 %3815
        %3817 = vrot.lane.b32.xlu0 %v3582, 108
        %v3818 = vpop.permute.xlu0 %3817
        %v3819 = vsel %vm1095, %v3812, %v3814
        %v3820 = vsel %vm1095, %v3814, %v3816
        %v3821 = vsel %vm1095, %v3816, %v3818
        %v3823 = vsel %vm324, %v3810, 0
        %v3826 = vsel %vm328, %v3819, 0
        %v3829 = vsel %vm328, %v3820, 0
        %v3832 = vsel %vm328, %v3821, 0
        %3834 = vmatprep.subr.bf16.mxu0 %v3829
        %3835 = vmatpush1.bf16.msra.mxu0 %v3826
        %3836 = vmatprep.subr.bf16.mxu0 0
        %3837 = vmatpush1.bf16.msra.mxu0 0
        %3838 = vmatprep.subr.bf16.mxu0 0
        %3839 = vmatpush1.bf16.msra.mxu0 0
        %3840 = vmatprep.subr.bf16.mxu0 0
        %3841 = vmatpush1.bf16.msra.mxu0 0
        %3842 = vmatprep.subr.bf16.mxu0 0
        %3843 = vmatpush1.bf16.msra.mxu0 0
        %3844 = vmatprep.subr.bf16.mxu0 0
        %3845 = vmatpush1.bf16.msra.mxu0 0
        %3846 = vmatprep.subr.bf16.mxu0 0
        %3847 = vmatpush1.bf16.msra.mxu0 0
        %3848 = vmatprep.subr.bf16.mxu0 0
        %3849 = vmatpush1.bf16.msra.mxu0 0
        %3850 = vmatprep.subr.bf16.mxu0 0
        %3851 = vmatpush1.bf16.msra.mxu0 0
        %3852 = vmatprep.subr.bf16.mxu0 0
        %3853 = vmatpush1.bf16.msra.mxu0 0
        %3854 = vmatprep.subr.bf16.mxu0 0
        %3855 = vmatpush1.bf16.msra.mxu0 0
        %3856 = vmatprep.subr.bf16.mxu0 0
        %3857 = vmatpush1.bf16.msra.mxu0 0
        %3858 = vmatprep.subr.bf16.mxu0 0
        %3859 = vmatpush1.bf16.msra.mxu0 0
        %3860 = vmatprep.subr.bf16.mxu0 0
        %3861 = vmatpush1.bf16.msra.mxu0 0
        %3862 = vmatprep.subr.bf16.mxu0 0
        %3863 = vmatpush1.bf16.msra.mxu0 0
        %3864 = vmatprep.subr.bf16.mxu0 0
        %3865 = vmatpush1.bf16.msra.mxu0 0
        %3866 = vmatprep.mubr.bf16.mxu0 0
        %3867 = vmatmul.mubr.bf16.gmra.mrb[0].mxu0 %v3823
        %v3868 = vpop.f32.mrb[0].mxu0
        %v3869 = vadd.f32 0.0, %v3868
        %v3870 = vpop.f32.mrb[0].mxu0
        %v3871 = vadd.f32 0.0, %v3870
        %v3872 = vpop.f32.mrb[0].mxu0
        %v3873 = vpop.f32.mrb[0].mxu0
        %3874 = vdwg.mxu0
        %3875 = vmatprep.subr.bf16.mxu0 0
        %3876 = vmatpush1.bf16.msra.mxu0 %v3832
        %3877 = vmatprep.subr.bf16.mxu0 0
        %3878 = vmatpush1.bf16.msra.mxu0 0
        %3879 = vmatprep.subr.bf16.mxu0 0
        %3880 = vmatpush1.bf16.msra.mxu0 0
        %3881 = vmatprep.subr.bf16.mxu0 0
        %3882 = vmatpush1.bf16.msra.mxu0 0
        %3883 = vmatprep.subr.bf16.mxu0 0
        %3884 = vmatpush1.bf16.msra.mxu0 0
        %3885 = vmatprep.subr.bf16.mxu0 0
        %3886 = vmatpush1.bf16.msra.mxu0 0
        %3887 = vmatprep.subr.bf16.mxu0 0
        %3888 = vmatpush1.bf16.msra.mxu0 0
        %3889 = vmatprep.subr.bf16.mxu0 0
        %3890 = vmatpush1.bf16.msra.mxu0 0
        %3891 = vmatprep.subr.bf16.mxu0 0
        %3892 = vmatpush1.bf16.msra.mxu0 0
        %3893 = vmatprep.subr.bf16.mxu0 0
        %3894 = vmatpush1.bf16.msra.mxu0 0
        %3895 = vmatprep.subr.bf16.mxu0 0
        %3896 = vmatpush1.bf16.msra.mxu0 0
        %3897 = vmatprep.subr.bf16.mxu0 0
        %3898 = vmatpush1.bf16.msra.mxu0 0
        %3899 = vmatprep.subr.bf16.mxu0 0
        %3900 = vmatpush1.bf16.msra.mxu0 0
        %3901 = vmatprep.subr.bf16.mxu0 0
        %3902 = vmatpush1.bf16.msra.mxu0 0
        %3903 = vmatprep.subr.bf16.mxu0 0
        %3904 = vmatpush1.bf16.msra.mxu0 0
        %3905 = vmatprep.subr.bf16.mxu0 0
        %3906 = vmatpush1.bf16.msra.mxu0 0
        %3907 = vmatprep.mubr.bf16.mxu0 0
        %3908 = vmatmul.mubr.bf16.gmra.mrb[0].mxu0 %v3823
        %v3909 = vpop.f32.mrb[0].mxu0
        %v3910 = vadd.f32 0.0, %v3909
        %v3911 = vpop.f32.mrb[0].mxu0
        %v3912 = vpop.f32.mrb[0].mxu0
        %v3913 = vpop.f32.mrb[0].mxu0
        %3914 = vdwg.mxu0
        %v3915 = vadd.f32 %v3807, %v3869
        %v3916 = vadd.f32 %v3808, %v3871
        %v3917 = vadd.f32 %v3809, %v3910
        %v3918 = vld [vmem:[%s2887] sm:$0xf]
        %3919 = vrot.lane.b32.xlu0 %v3354, 109
        %v3920 = vpop.permute.xlu0 %3919
        %3921 = vrot.lane.b32.xlu0 %v3355, 109
        %v3922 = vpop.permute.xlu0 %3921
        %3923 = vrot.lane.b32.xlu0 %v3356, 109
        %v3924 = vpop.permute.xlu0 %3923
        %3925 = vrot.lane.b32.xlu0 %v3357, 109
        %v3926 = vpop.permute.xlu0 %3925
        %v3927 = vsel %vm632, %v3920, %v3922
        %v3928 = vsel %vm632, %v3922, %v3924
        %v3929 = vsel %vm632, %v3924, %v3926
        %v3931 = vsel %vm324, %v3918, 0
        %v3934 = vsel %vm328, %v3927, 0
        %v3937 = vsel %vm328, %v3928, 0
        %v3940 = vsel %vm328, %v3929, 0
        %3942 = vmatprep.subr.bf16.mxu0 %v3937
        %3943 = vmatpush1.bf16.msra.mxu0 %v3934
        %3944 = vmatprep.subr.bf16.mxu0 0
        %3945 = vmatpush1.bf16.msra.mxu0 0
        %3946 = vmatprep.subr.bf16.mxu0 0
        %3947 = vmatpush1.bf16.msra.mxu0 0
        %3948 = vmatprep.subr.bf16.mxu0 0
        %3949 = vmatpush1.bf16.msra.mxu0 0
        %3950 = vmatprep.subr.bf16.mxu0 0
        %3951 = vmatpush1.bf16.msra.mxu0 0
        %3952 = vmatprep.subr.bf16.mxu0 0
        %3953 = vmatpush1.bf16.msra.mxu0 0
        %3954 = vmatprep.subr.bf16.mxu0 0
        %3955 = vmatpush1.bf16.msra.mxu0 0
        %3956 = vmatprep.subr.bf16.mxu0 0
        %3957 = vmatpush1.bf16.msra.mxu0 0
        %3958 = vmatprep.subr.bf16.mxu0 0
        %3959 = vmatpush1.bf16.msra.mxu0 0
        %3960 = vmatprep.subr.bf16.mxu0 0
        %3961 = vmatpush1.bf16.msra.mxu0 0
        %3962 = vmatprep.subr.bf16.mxu0 0
        %3963 = vmatpush1.bf16.msra.mxu0 0
        %3964 = vmatprep.subr.bf16.mxu0 0
        %3965 = vmatpush1.bf16.msra.mxu0 0
        %3966 = vmatprep.subr.bf16.mxu0 0
        %3967 = vmatpush1.bf16.msra.mxu0 0
        %3968 = vmatprep.subr.bf16.mxu0 0
        %3969 = vmatpush1.bf16.msra.mxu0 0
        %3970 = vmatprep.subr.bf16.mxu0 0
        %3971 = vmatpush1.bf16.msra.mxu0 0
        %3972 = vmatprep.subr.bf16.mxu0 0
        %3973 = vmatpush1.bf16.msra.mxu0 0
        %3974 = vmatprep.mubr.bf16.mxu0 0
        %3975 = vmatmul.mubr.bf16.gmra.mrb[0].mxu0 %v3931
        %v3976 = vpop.f32.mrb[0].mxu0
        %v3977 = vadd.f32 0.0, %v3976
        %v3978 = vpop.f32.mrb[0].mxu0
        %v3979 = vadd.f32 0.0, %v3978
        %v3980 = vpop.f32.mrb[0].mxu0
        %v3981 = vpop.f32.mrb[0].mxu0
        %3982 = vdwg.mxu0
        %3983 = vmatprep.subr.bf16.mxu0 0
        %3984 = vmatpush1.bf16.msra.mxu0 %v3940
        %3985 = vmatprep.subr.bf16.mxu0 0
        %3986 = vmatpush1.bf16.msra.mxu0 0
        %3987 = vmatprep.subr.bf16.mxu0 0
        %3988 = vmatpush1.bf16.msra.mxu0 0
        %3989 = vmatprep.subr.bf16.mxu0 0
        %3990 = vmatpush1.bf16.msra.mxu0 0
        %3991 = vmatprep.subr.bf16.mxu0 0
        %3992 = vmatpush1.bf16.msra.mxu0 0
        %3993 = vmatprep.subr.bf16.mxu0 0
        %3994 = vmatpush1.bf16.msra.mxu0 0
        %3995 = vmatprep.subr.bf16.mxu0 0
        %3996 = vmatpush1.bf16.msra.mxu0 0
        %3997 = vmatprep.subr.bf16.mxu0 0
        %3998 = vmatpush1.bf16.msra.mxu0 0
        %3999 = vmatprep.subr.bf16.mxu0 0
        %4000 = vmatpush1.bf16.msra.mxu0 0
        %4001 = vmatprep.subr.bf16.mxu0 0
        %4002 = vmatpush1.bf16.msra.mxu0 0
        %4003 = vmatprep.subr.bf16.mxu0 0
        %4004 = vmatpush1.bf16.msra.mxu0 0
        %4005 = vmatprep.subr.bf16.mxu0 0
        %4006 = vmatpush1.bf16.msra.mxu0 0
        %4007 = vmatprep.subr.bf16.mxu0 0
        %4008 = vmatpush1.bf16.msra.mxu0 0
        %4009 = vmatprep.subr.bf16.mxu0 0
        %4010 = vmatpush1.bf16.msra.mxu0 0
        %4011 = vmatprep.subr.bf16.mxu0 0
        %4012 = vmatpush1.bf16.msra.mxu0 0
        %4013 = vmatprep.subr.bf16.mxu0 0
        %4014 = vmatpush1.bf16.msra.mxu0 0
        %4015 = vmatprep.mubr.bf16.mxu0 0
        %4016 = vmatmul.mubr.bf16.gmra.mrb[0].mxu0 %v3931
        %v4017 = vpop.f32.mrb[0].mxu0
        %v4018 = vadd.f32 0.0, %v4017
        %v4019 = vpop.f32.mrb[0].mxu0
        %v4020 = vpop.f32.mrb[0].mxu0
        %v4021 = vpop.f32.mrb[0].mxu0
        %4022 = vdwg.mxu0
        %v4023 = vadd.f32 %v3915, %v3977
        %v4024 = vadd.f32 %v3916, %v3979
        %v4025 = vadd.f32 %v3917, %v4018
        %v4026 = vld [vmem:[%s2996] sm:$0xf]
        %4027 = vrot.lane.b32.xlu0 %v3240, 109
        %v4028 = vpop.permute.xlu0 %4027
        %4029 = vrot.lane.b32.xlu0 %v3241, 109
        %v4030 = vpop.permute.xlu0 %4029
        %4031 = vrot.lane.b32.xlu0 %v3242, 109
        %v4032 = vpop.permute.xlu0 %4031
        %4033 = vrot.lane.b32.xlu0 %v3243, 109
        %v4034 = vpop.permute.xlu0 %4033
        %v4035 = vsel %vm632, %v4028, %v4030
        %v4036 = vsel %vm632, %v4030, %v4032
        %v4037 = vsel %vm632, %v4032, %v4034
        %v4039 = vsel %vm324, %v4026, 0
        %v4042 = vsel %vm328, %v4035, 0
        %v4045 = vsel %vm328, %v4036, 0
        %v4048 = vsel %vm328, %v4037, 0
        %4050 = vmatprep.subr.bf16.mxu0 %v4045
        %4051 = vmatpush1.bf16.msra.mxu0 %v4042
        %4052 = vmatprep.subr.bf16.mxu0 0
        %4053 = vmatpush1.bf16.msra.mxu0 0
        %4054 = vmatprep.subr.bf16.mxu0 0
        %4055 = vmatpush1.bf16.msra.mxu0 0
        %4056 = vmatprep.subr.bf16.mxu0 0
        %4057 = vmatpush1.bf16.msra.mxu0 0
        %4058 = vmatprep.subr.bf16.mxu0 0
        %4059 = vmatpush1.bf16.msra.mxu0 0
        %4060 = vmatprep.subr.bf16.mxu0 0
        %4061 = vmatpush1.bf16.msra.mxu0 0
        %4062 = vmatprep.subr.bf16.mxu0 0
        %4063 = vmatpush1.bf16.msra.mxu0 0
        %4064 = vmatprep.subr.bf16.mxu0 0
        %4065 = vmatpush1.bf16.msra.mxu0 0
        %4066 = vmatprep.subr.bf16.mxu0 0
        %4067 = vmatpush1.bf16.msra.mxu0 0
        %4068 = vmatprep.subr.bf16.mxu0 0
        %4069 = vmatpush1.bf16.msra.mxu0 0
        %4070 = vmatprep.subr.bf16.mxu0 0
        %4071 = vmatpush1.bf16.msra.mxu0 0
        %4072 = vmatprep.subr.bf16.mxu0 0
        %4073 = vmatpush1.bf16.msra.mxu0 0
        %4074 = vmatprep.subr.bf16.mxu0 0
        %4075 = vmatpush1.bf16.msra.mxu0 0
        %4076 = vmatprep.subr.bf16.mxu0 0
        %4077 = vmatpush1.bf16.msra.mxu0 0
        %4078 = vmatprep.subr.bf16.mxu0 0
        %4079 = vmatpush1.bf16.msra.mxu0 0
        %4080 = vmatprep.subr.bf16.mxu0 0
        %4081 = vmatpush1.bf16.msra.mxu0 0
        %4082 = vmatprep.mubr.bf16.mxu0 0
        %4083 = vmatmul.mubr.bf16.gmra.mrb[0].mxu0 %v4039
        %v4084 = vpop.f32.mrb[0].mxu0
        %v4085 = vadd.f32 0.0, %v4084
        %v4086 = vpop.f32.mrb[0].mxu0
        %v4087 = vadd.f32 0.0, %v4086
        %v4088 = vpop.f32.mrb[0].mxu0
        %v4089 = vpop.f32.mrb[0].mxu0
        %4090 = vdwg.mxu0
        %4091 = vmatprep.subr.bf16.mxu0 0
        %4092 = vmatpush1.bf16.msra.mxu0 %v4048
        %4093 = vmatprep.subr.bf16.mxu0 0
        %4094 = vmatpush1.bf16.msra.mxu0 0
        %4095 = vmatprep.subr.bf16.mxu0 0
        %4096 = vmatpush1.bf16.msra.mxu0 0
        %4097 = vmatprep.subr.bf16.mxu0 0
        %4098 = vmatpush1.bf16.msra.mxu0 0
        %4099 = vmatprep.subr.bf16.mxu0 0
        %4100 = vmatpush1.bf16.msra.mxu0 0
        %4101 = vmatprep.subr.bf16.mxu0 0
        %4102 = vmatpush1.bf16.msra.mxu0 0
        %4103 = vmatprep.subr.bf16.mxu0 0
        %4104 = vmatpush1.bf16.msra.mxu0 0
        %4105 = vmatprep.subr.bf16.mxu0 0
        %4106 = vmatpush1.bf16.msra.mxu0 0
        %4107 = vmatprep.subr.bf16.mxu0 0
        %4108 = vmatpush1.bf16.msra.mxu0 0
        %4109 = vmatprep.subr.bf16.mxu0 0
        %4110 = vmatpush1.bf16.msra.mxu0 0
        %4111 = vmatprep.subr.bf16.mxu0 0
        %4112 = vmatpush1.bf16.msra.mxu0 0
        %4113 = vmatprep.subr.bf16.mxu0 0
        %4114 = vmatpush1.bf16.msra.mxu0 0
        %4115 = vmatprep.subr.bf16.mxu0 0
        %4116 = vmatpush1.bf16.msra.mxu0 0
        %4117 = vmatprep.subr.bf16.mxu0 0
        %4118 = vmatpush1.bf16.msra.mxu0 0
        %4119 = vmatprep.subr.bf16.mxu0 0
        %4120 = vmatpush1.bf16.msra.mxu0 0
        %4121 = vmatprep.subr.bf16.mxu0 0
        %4122 = vmatpush1.bf16.msra.mxu0 0
        %4123 = vmatprep.mubr.bf16.mxu0 0
        %4124 = vmatmul.mubr.bf16.gmra.mrb[0].mxu0 %v4039
        %v4125 = vpop.f32.mrb[0].mxu0
        %v4126 = vadd.f32 0.0, %v4125
        %v4127 = vpop.f32.mrb[0].mxu0
        %v4128 = vpop.f32.mrb[0].mxu0
        %v4129 = vpop.f32.mrb[0].mxu0
        %4130 = vdwg.mxu0
        %v4131 = vadd.f32 %v4023, %v4085
        %v4132 = vadd.f32 %v4024, %v4087
        %v4133 = vadd.f32 %v4025, %v4126
        %v4134 = vld [vmem:[%s3105] sm:$0xf]
        %4135 = vrot.lane.b32.xlu0 %v3354, 108
        %v4136 = vpop.permute.xlu0 %4135
        %4137 = vrot.lane.b32.xlu0 %v3355, 108
        %v4138 = vpop.permute.xlu0 %4137
        %4139 = vrot.lane.b32.xlu0 %v3356, 108
        %v4140 = vpop.permute.xlu0 %4139
        %4141 = vrot.lane.b32.xlu0 %v3357, 108
        %v4142 = vpop.permute.xlu0 %4141
        %v4143 = vsel %vm1095, %v4136, %v4138
        %v4144 = vsel %vm1095, %v4138, %v4140
        %v4145 = vsel %vm1095, %v4140, %v4142
        %v4147 = vsel %vm324, %v4134, 0
        %v4150 = vsel %vm328, %v4143, 0
        %v4153 = vsel %vm328, %v4144, 0
        %v4156 = vsel %vm328, %v4145, 0
        %4158 = vmatprep.subr.bf16.mxu0 %v4153
        %4159 = vmatpush1.bf16.msra.mxu0 %v4150
        %4160 = vmatprep.subr.bf16.mxu0 0
        %4161 = vmatpush1.bf16.msra.mxu0 0
        %4162 = vmatprep.subr.bf16.mxu0 0
        %4163 = vmatpush1.bf16.msra.mxu0 0
        %4164 = vmatprep.subr.bf16.mxu0 0
        %4165 = vmatpush1.bf16.msra.mxu0 0
        %4166 = vmatprep.subr.bf16.mxu0 0
        %4167 = vmatpush1.bf16.msra.mxu0 0
        %4168 = vmatprep.subr.bf16.mxu0 0
        %4169 = vmatpush1.bf16.msra.mxu0 0
        %4170 = vmatprep.subr.bf16.mxu0 0
        %4171 = vmatpush1.bf16.msra.mxu0 0
        %4172 = vmatprep.subr.bf16.mxu0 0
        %4173 = vmatpush1.bf16.msra.mxu0 0
        %4174 = vmatprep.subr.bf16.mxu0 0
        %4175 = vmatpush1.bf16.msra.mxu0 0
        %4176 = vmatprep.subr.bf16.mxu0 0
        %4177 = vmatpush1.bf16.msra.mxu0 0
        %4178 = vmatprep.subr.bf16.mxu0 0
        %4179 = vmatpush1.bf16.msra.mxu0 0
        %4180 = vmatprep.subr.bf16.mxu0 0
        %4181 = vmatpush1.bf16.msra.mxu0 0
        %4182 = vmatprep.subr.bf16.mxu0 0
        %4183 = vmatpush1.bf16.msra.mxu0 0
        %4184 = vmatprep.subr.bf16.mxu0 0
        %4185 = vmatpush1.bf16.msra.mxu0 0
        %4186 = vmatprep.subr.bf16.mxu0 0
        %4187 = vmatpush1.bf16.msra.mxu0 0
        %4188 = vmatprep.subr.bf16.mxu0 0
        %4189 = vmatpush1.bf16.msra.mxu0 0
        %4190 = vmatprep.mubr.bf16.mxu0 0
        %4191 = vmatmul.mubr.bf16.gmra.mrb[0].mxu0 %v4147
        %v4192 = vpop.f32.mrb[0].mxu0
        %v4193 = vadd.f32 0.0, %v4192
        %v4194 = vpop.f32.mrb[0].mxu0
        %v4195 = vadd.f32 0.0, %v4194
        %v4196 = vpop.f32.mrb[0].mxu0
        %v4197 = vpop.f32.mrb[0].mxu0
        %4198 = vdwg.mxu0
        %4199 = vmatprep.subr.bf16.mxu0 0
        %4200 = vmatpush1.bf16.msra.mxu0 %v4156
        %4201 = vmatprep.subr.bf16.mxu0 0
        %4202 = vmatpush1.bf16.msra.mxu0 0
        %4203 = vmatprep.subr.bf16.mxu0 0
        %4204 = vmatpush1.bf16.msra.mxu0 0
        %4205 = vmatprep.subr.bf16.mxu0 0
        %4206 = vmatpush1.bf16.msra.mxu0 0
        %4207 = vmatprep.subr.bf16.mxu0 0
        %4208 = vmatpush1.bf16.msra.mxu0 0
        %4209 = vmatprep.subr.bf16.mxu0 0
        %4210 = vmatpush1.bf16.msra.mxu0 0
        %4211 = vmatprep.subr.bf16.mxu0 0
        %4212 = vmatpush1.bf16.msra.mxu0 0
        %4213 = vmatprep.subr.bf16.mxu0 0
        %4214 = vmatpush1.bf16.msra.mxu0 0
        %4215 = vmatprep.subr.bf16.mxu0 0
        %4216 = vmatpush1.bf16.msra.mxu0 0
        %4217 = vmatprep.subr.bf16.mxu0 0
        %4218 = vmatpush1.bf16.msra.mxu0 0
        %4219 = vmatprep.subr.bf16.mxu0 0
        %4220 = vmatpush1.bf16.msra.mxu0 0
        %4221 = vmatprep.subr.bf16.mxu0 0
        %4222 = vmatpush1.bf16.msra.mxu0 0
        %4223 = vmatprep.subr.bf16.mxu0 0
        %4224 = vmatpush1.bf16.msra.mxu0 0
        %4225 = vmatprep.subr.bf16.mxu0 0
        %4226 = vmatpush1.bf16.msra.mxu0 0
        %4227 = vmatprep.subr.bf16.mxu0 0
        %4228 = vmatpush1.bf16.msra.mxu0 0
        %4229 = vmatprep.subr.bf16.mxu0 0
        %4230 = vmatpush1.bf16.msra.mxu0 0
        %4231 = vmatprep.mubr.bf16.mxu0 0
        %4232 = vmatmul.mubr.bf16.gmra.mrb[0].mxu0 %v4147
        %v4233 = vpop.f32.mrb[0].mxu0
        %v4234 = vadd.f32 0.0, %v4233
        %v4235 = vpop.f32.mrb[0].mxu0
        %v4236 = vpop.f32.mrb[0].mxu0
        %v4237 = vpop.f32.mrb[0].mxu0
        %4238 = vdwg.mxu0
        %v4239 = vadd.f32 %v4131, %v4193
        %v4240 = vadd.f32 %v4132, %v4195
        %v4241 = vadd.f32 %v4133, %v4234
        %v4242 = vadd.f32 %v4239, %v3217
        %v4243 = vadd.f32 %v4240, %v3217
        %v4244 = vadd.f32 %v4241, %v3217
        %v4245 = vadd.f32 %v4242, %v2147
        %v4246 = vadd.f32 %v4243, %v2149
        %v4247 = vadd.f32 %v4244, %v2188
        %s4248 = scalar_lea.vmem %s271, 24 [#allocation3]
        %4249 = vst [vmem:[%s4248] sm:$0xff] %v4245
        %4250 = vst [vmem:[%s4248 + $0x8] sm:$0xff] %v4246
        %4251 = vst [vmem:[%s4248 + $0x10] sm:$0xff] %v4247
        %v4252 = vld [vmem:[%s4] sm:$0xf]
        %v4253 = vld [vmem:[%s1210] sm:$0xff]
        %v4254 = vld [vmem:[%s1210 + $0x8] sm:$0xff]
        %v4255 = vld [vmem:[%s2196] sm:$0xf]
        %v4256 = vld [vmem:[#allocation2] sm:$0xff]
        %v4257 = vld [vmem:[#allocation2 + $0x8] sm:$0xff]
        %v4260 = vunpack.c.l.b16 %v4256
        %v4261 = vunpack.c.h.b16 %v4256
        %v4262 = vunpack.c.l.b16 %v4257
        %v4263 = vunpack.c.h.b16 %v4257
        %v4264 = vpack.c.b16 %v4260, %v4260
        %v4265 = vpack.c.b16 %v4261, %v4261
        %v4266 = vpack.c.b16 %v4262, %v4262
        %v4267 = vpack.c.b16 %v4263, %v4263
        %4268 = vrot.lane.b32.xlu0 %v4264, 109
        %v4269 = vpop.permute.xlu0 %4268
        %4270 = vrot.lane.b32.xlu0 %v4265, 109
        %v4271 = vpop.permute.xlu0 %4270
        %4272 = vrot.lane.b32.xlu0 %v4266, 109
        %v4273 = vpop.permute.xlu0 %4272
        %4274 = vrot.lane.b32.xlu0 %v4267, 109
        %v4275 = vpop.permute.xlu0 %4274
        %v4276 = vsel %vm632, %v4269, %v4271
        %v4277 = vsel %vm632, %v4271, %v4273
        %v4278 = vsel %vm632, %v4273, %v4275
        %v4280 = vsel %vm324, %v4255, 0
        %v4283 = vsel %vm328, %v4276, 0
        %v4286 = vsel %vm328, %v4277, 0
        %v4289 = vsel %vm328, %v4278, 0
        %4291 = vmatprep.subr.bf16.mxu0 %v4286
        %4292 = vmatpush1.bf16.msra.mxu0 %v4283
        %4293 = vmatprep.subr.bf16.mxu0 0
        %4294 = vmatpush1.bf16.msra.mxu0 0
        %4295 = vmatprep.subr.bf16.mxu0 0
        %4296 = vmatpush1.bf16.msra.mxu0 0
        %4297 = vmatprep.subr.bf16.mxu0 0
        %4298 = vmatpush1.bf16.msra.mxu0 0
        %4299 = vmatprep.subr.bf16.mxu0 0
        %4300 = vmatpush1.bf16.msra.mxu0 0
        %4301 = vmatprep.subr.bf16.mxu0 0
        %4302 = vmatpush1.bf16.msra.mxu0 0
        %4303 = vmatprep.subr.bf16.mxu0 0
        %4304 = vmatpush1.bf16.msra.mxu0 0
        %4305 = vmatprep.subr.bf16.mxu0 0
        %4306 = vmatpush1.bf16.msra.mxu0 0
        %4307 = vmatprep.subr.bf16.mxu0 0
        %4308 = vmatpush1.bf16.msra.mxu0 0
        %4309 = vmatprep.subr.bf16.mxu0 0
        %4310 = vmatpush1.bf16.msra.mxu0 0
        %4311 = vmatprep.subr.bf16.mxu0 0
        %4312 = vmatpush1.bf16.msra.mxu0 0
        %4313 = vmatprep.subr.bf16.mxu0 0
        %4314 = vmatpush1.bf16.msra.mxu0 0
        %4315 = vmatprep.subr.bf16.mxu0 0
        %4316 = vmatpush1.bf16.msra.mxu0 0
        %4317 = vmatprep.subr.bf16.mxu0 0
        %4318 = vmatpush1.bf16.msra.mxu0 0
        %4319 = vmatprep.subr.bf16.mxu0 0
        %4320 = vmatpush1.bf16.msra.mxu0 0
        %4321 = vmatprep.subr.bf16.mxu0 0
        %4322 = vmatpush1.bf16.msra.mxu0 0
        %4323 = vmatprep.mubr.bf16.mxu0 0
        %4324 = vmatmul.mubr.bf16.gmra.mrb[0].mxu0 %v4280
        %v4325 = vpop.f32.mrb[0].mxu0
        %v4326 = vadd.f32 0.0, %v4325
        %v4327 = vpop.f32.mrb[0].mxu0
        %v4328 = vadd.f32 0.0, %v4327
        %v4329 = vpop.f32.mrb[0].mxu0
        %v4330 = vpop.f32.mrb[0].mxu0
        %4331 = vdwg.mxu0
        %4332 = vmatprep.subr.bf16.mxu0 0
        %4333 = vmatpush1.bf16.msra.mxu0 %v4289
        %4334 = vmatprep.subr.bf16.mxu0 0
        %4335 = vmatpush1.bf16.msra.mxu0 0
        %4336 = vmatprep.subr.bf16.mxu0 0
        %4337 = vmatpush1.bf16.msra.mxu0 0
        %4338 = vmatprep.subr.bf16.mxu0 0
        %4339 = vmatpush1.bf16.msra.mxu0 0
        %4340 = vmatprep.subr.bf16.mxu0 0
        %4341 = vmatpush1.bf16.msra.mxu0 0
        %4342 = vmatprep.subr.bf16.mxu0 0
        %4343 = vmatpush1.bf16.msra.mxu0 0
        %4344 = vmatprep.subr.bf16.mxu0 0
        %4345 = vmatpush1.bf16.msra.mxu0 0
        %4346 = vmatprep.subr.bf16.mxu0 0
        %4347 = vmatpush1.bf16.msra.mxu0 0
        %4348 = vmatprep.subr.bf16.mxu0 0
        %4349 = vmatpush1.bf16.msra.mxu0 0
        %4350 = vmatprep.subr.bf16.mxu0 0
        %4351 = vmatpush1.bf16.msra.mxu0 0
        %4352 = vmatprep.subr.bf16.mxu0 0
        %4353 = vmatpush1.bf16.msra.mxu0 0
        %4354 = vmatprep.subr.bf16.mxu0 0
        %4355 = vmatpush1.bf16.msra.mxu0 0
        %4356 = vmatprep.subr.bf16.mxu0 0
        %4357 = vmatpush1.bf16.msra.mxu0 0
        %4358 = vmatprep.subr.bf16.mxu0 0
        %4359 = vmatpush1.bf16.msra.mxu0 0
        %4360 = vmatprep.subr.bf16.mxu0 0
        %4361 = vmatpush1.bf16.msra.mxu0 0
        %4362 = vmatprep.subr.bf16.mxu0 0
        %4363 = vmatpush1.bf16.msra.mxu0 0
        %4364 = vmatprep.mubr.bf16.mxu0 0
        %4365 = vmatmul.mubr.bf16.gmra.mrb[0].mxu0 %v4280
        %v4366 = vpop.f32.mrb[0].mxu0
        %v4367 = vadd.f32 0.0, %v4366
        %v4368 = vpop.f32.mrb[0].mxu0
        %v4369 = vpop.f32.mrb[0].mxu0
        %v4370 = vpop.f32.mrb[0].mxu0
        %4371 = vdwg.mxu0
        %v4374 = vunpack.c.l.b16 %v4253
        %v4375 = vunpack.c.h.b16 %v4253
        %v4376 = vunpack.c.l.b16 %v4254
        %v4377 = vunpack.c.h.b16 %v4254
        %v4378 = vpack.c.b16 %v4374, %v4374
        %v4379 = vpack.c.b16 %v4375, %v4375
        %v4380 = vpack.c.b16 %v4376, %v4376
        %v4381 = vpack.c.b16 %v4377, %v4377
        %4382 = vrot.lane.b32.xlu0 %v4378, 110
        %v4383 = vpop.permute.xlu0 %4382
        %4384 = vrot.lane.b32.xlu0 %v4379, 110
        %v4385 = vpop.permute.xlu0 %4384
        %4386 = vrot.lane.b32.xlu0 %v4380, 110
        %v4387 = vpop.permute.xlu0 %4386
        %4388 = vrot.lane.b32.xlu0 %v4381, 110
        %v4389 = vpop.permute.xlu0 %4388
        %v4390 = vsel %vm522, %v4383, %v4385
        %v4391 = vsel %vm522, %v4385, %v4387
        %v4392 = vsel %vm522, %v4387, %v4389
        %v4394 = vsel %vm324, %v4252, 0
        %v4397 = vsel %vm328, %v4390, 0
        %v4400 = vsel %vm328, %v4391, 0
        %v4403 = vsel %vm328, %v4392, 0
        %4405 = vmatprep.subr.bf16.mxu0 %v4400
        %4406 = vmatpush1.bf16.msra.mxu0 %v4397
        %4407 = vmatprep.subr.bf16.mxu0 0
        %4408 = vmatpush1.bf16.msra.mxu0 0
        %4409 = vmatprep.subr.bf16.mxu0 0
        %4410 = vmatpush1.bf16.msra.mxu0 0
        %4411 = vmatprep.subr.bf16.mxu0 0
        %4412 = vmatpush1.bf16.msra.mxu0 0
        %4413 = vmatprep.subr.bf16.mxu0 0
        %4414 = vmatpush1.bf16.msra.mxu0 0
        %4415 = vmatprep.subr.bf16.mxu0 0
        %4416 = vmatpush1.bf16.msra.mxu0 0
        %4417 = vmatprep.subr.bf16.mxu0 0
        %4418 = vmatpush1.bf16.msra.mxu0 0
        %4419 = vmatprep.subr.bf16.mxu0 0
        %4420 = vmatpush1.bf16.msra.mxu0 0
        %4421 = vmatprep.subr.bf16.mxu0 0
        %4422 = vmatpush1.bf16.msra.mxu0 0
        %4423 = vmatprep.subr.bf16.mxu0 0
        %4424 = vmatpush1.bf16.msra.mxu0 0
        %4425 = vmatprep.subr.bf16.mxu0 0
        %4426 = vmatpush1.bf16.msra.mxu0 0
        %4427 = vmatprep.subr.bf16.mxu0 0
        %4428 = vmatpush1.bf16.msra.mxu0 0
        %4429 = vmatprep.subr.bf16.mxu0 0
        %4430 = vmatpush1.bf16.msra.mxu0 0
        %4431 = vmatprep.subr.bf16.mxu0 0
        %4432 = vmatpush1.bf16.msra.mxu0 0
        %4433 = vmatprep.subr.bf16.mxu0 0
        %4434 = vmatpush1.bf16.msra.mxu0 0
        %4435 = vmatprep.subr.bf16.mxu0 0
        %4436 = vmatpush1.bf16.msra.mxu0 0
        %4437 = vmatprep.mubr.bf16.mxu0 0
        %4438 = vmatmul.mubr.bf16.gmra.mrb[0].mxu0 %v4394
        %v4439 = vpop.f32.mrb[0].mxu0
        %v4440 = vadd.f32 %v4326, %v4439
        %v4441 = vpop.f32.mrb[0].mxu0
        %v4442 = vadd.f32 %v4328, %v4441
        %v4443 = vpop.f32.mrb[0].mxu0
        %v4444 = vpop.f32.mrb[0].mxu0
        %4445 = vdwg.mxu0
        %4446 = vmatprep.subr.bf16.mxu0 0
        %4447 = vmatpush1.bf16.msra.mxu0 %v4403
        %4448 = vmatprep.subr.bf16.mxu0 0
        %4449 = vmatpush1.bf16.msra.mxu0 0
        %4450 = vmatprep.subr.bf16.mxu0 0
        %4451 = vmatpush1.bf16.msra.mxu0 0
        %4452 = vmatprep.subr.bf16.mxu0 0
        %4453 = vmatpush1.bf16.msra.mxu0 0
        %4454 = vmatprep.subr.bf16.mxu0 0
        %4455 = vmatpush1.bf16.msra.mxu0 0
        %4456 = vmatprep.subr.bf16.mxu0 0
        %4457 = vmatpush1.bf16.msra.mxu0 0
        %4458 = vmatprep.subr.bf16.mxu0 0
        %4459 = vmatpush1.bf16.msra.mxu0 0
        %4460 = vmatprep.subr.bf16.mxu0 0
        %4461 = vmatpush1.bf16.msra.mxu0 0
        %4462 = vmatprep.subr.bf16.mxu0 0
        %4463 = vmatpush1.bf16.msra.mxu0 0
        %4464 = vmatprep.subr.bf16.mxu0 0
        %4465 = vmatpush1.bf16.msra.mxu0 0
        %4466 = vmatprep.subr.bf16.mxu0 0
        %4467 = vmatpush1.bf16.msra.mxu0 0
        %4468 = vmatprep.subr.bf16.mxu0 0
        %4469 = vmatpush1.bf16.msra.mxu0 0
        %4470 = vmatprep.subr.bf16.mxu0 0
        %4471 = vmatpush1.bf16.msra.mxu0 0
        %4472 = vmatprep.subr.bf16.mxu0 0
        %4473 = vmatpush1.bf16.msra.mxu0 0
        %4474 = vmatprep.subr.bf16.mxu0 0
        %4475 = vmatpush1.bf16.msra.mxu0 0
        %4476 = vmatprep.subr.bf16.mxu0 0
        %4477 = vmatpush1.bf16.msra.mxu0 0
        %4478 = vmatprep.mubr.bf16.mxu0 0
        %4479 = vmatmul.mubr.bf16.gmra.mrb[0].mxu0 %v4394
        %v4480 = vpop.f32.mrb[0].mxu0
        %v4481 = vadd.f32 %v4367, %v4480
        %v4482 = vpop.f32.mrb[0].mxu0
        %v4483 = vpop.f32.mrb[0].mxu0
        %v4484 = vpop.f32.mrb[0].mxu0
        %4485 = vdwg.mxu0
        %v4486 = vld [vmem:[%s2415] sm:$0xf]
        %4487 = vrot.lane.b32.xlu0 %v4378, 109
        %v4488 = vpop.permute.xlu0 %4487
        %4489 = vrot.lane.b32.xlu0 %v4379, 109
        %v4490 = vpop.permute.xlu0 %4489
        %4491 = vrot.lane.b32.xlu0 %v4380, 109
        %v4492 = vpop.permute.xlu0 %4491
        %4493 = vrot.lane.b32.xlu0 %v4381, 109
        %v4494 = vpop.permute.xlu0 %4493
        %v4495 = vsel %vm632, %v4488, %v4490
        %v4496 = vsel %vm632, %v4490, %v4492
        %v4497 = vsel %vm632, %v4492, %v4494
        %v4499 = vsel %vm324, %v4486, 0
        %v4502 = vsel %vm328, %v4495, 0
        %v4505 = vsel %vm328, %v4496, 0
        %v4508 = vsel %vm328, %v4497, 0
        %4510 = vmatprep.subr.bf16.mxu0 %v4505
        %4511 = vmatpush1.bf16.msra.mxu0 %v4502
        %4512 = vmatprep.subr.bf16.mxu0 0
        %4513 = vmatpush1.bf16.msra.mxu0 0
        %4514 = vmatprep.subr.bf16.mxu0 0
        %4515 = vmatpush1.bf16.msra.mxu0 0
        %4516 = vmatprep.subr.bf16.mxu0 0
        %4517 = vmatpush1.bf16.msra.mxu0 0
        %4518 = vmatprep.subr.bf16.mxu0 0
        %4519 = vmatpush1.bf16.msra.mxu0 0
        %4520 = vmatprep.subr.bf16.mxu0 0
        %4521 = vmatpush1.bf16.msra.mxu0 0
        %4522 = vmatprep.subr.bf16.mxu0 0
        %4523 = vmatpush1.bf16.msra.mxu0 0
        %4524 = vmatprep.subr.bf16.mxu0 0
        %4525 = vmatpush1.bf16.msra.mxu0 0
        %4526 = vmatprep.subr.bf16.mxu0 0
        %4527 = vmatpush1.bf16.msra.mxu0 0
        %4528 = vmatprep.subr.bf16.mxu0 0
        %4529 = vmatpush1.bf16.msra.mxu0 0
        %4530 = vmatprep.subr.bf16.mxu0 0
        %4531 = vmatpush1.bf16.msra.mxu0 0
        %4532 = vmatprep.subr.bf16.mxu0 0
        %4533 = vmatpush1.bf16.msra.mxu0 0
        %4534 = vmatprep.subr.bf16.mxu0 0
        %4535 = vmatpush1.bf16.msra.mxu0 0
        %4536 = vmatprep.subr.bf16.mxu0 0
        %4537 = vmatpush1.bf16.msra.mxu0 0
        %4538 = vmatprep.subr.bf16.mxu0 0
        %4539 = vmatpush1.bf16.msra.mxu0 0
        %4540 = vmatprep.subr.bf16.mxu0 0
        %4541 = vmatpush1.bf16.msra.mxu0 0
        %4542 = vmatprep.mubr.bf16.mxu0 0
        %4543 = vmatmul.mubr.bf16.gmra.mrb[0].mxu0 %v4499
        %v4544 = vpop.f32.mrb[0].mxu0
        %v4545 = vadd.f32 0.0, %v4544
        %v4546 = vpop.f32.mrb[0].mxu0
        %v4547 = vadd.f32 0.0, %v4546
        %v4548 = vpop.f32.mrb[0].mxu0
        %v4549 = vpop.f32.mrb[0].mxu0
        %4550 = vdwg.mxu0
        %4551 = vmatprep.subr.bf16.mxu0 0
        %4552 = vmatpush1.bf16.msra.mxu0 %v4508
        %4553 = vmatprep.subr.bf16.mxu0 0
        %4554 = vmatpush1.bf16.msra.mxu0 0
        %4555 = vmatprep.subr.bf16.mxu0 0
        %4556 = vmatpush1.bf16.msra.mxu0 0
        %4557 = vmatprep.subr.bf16.mxu0 0
        %4558 = vmatpush1.bf16.msra.mxu0 0
        %4559 = vmatprep.subr.bf16.mxu0 0
        %4560 = vmatpush1.bf16.msra.mxu0 0
        %4561 = vmatprep.subr.bf16.mxu0 0
        %4562 = vmatpush1.bf16.msra.mxu0 0
        %4563 = vmatprep.subr.bf16.mxu0 0
        %4564 = vmatpush1.bf16.msra.mxu0 0
        %4565 = vmatprep.subr.bf16.mxu0 0
        %4566 = vmatpush1.bf16.msra.mxu0 0
        %4567 = vmatprep.subr.bf16.mxu0 0
        %4568 = vmatpush1.bf16.msra.mxu0 0
        %4569 = vmatprep.subr.bf16.mxu0 0
        %4570 = vmatpush1.bf16.msra.mxu0 0
        %4571 = vmatprep.subr.bf16.mxu0 0
        %4572 = vmatpush1.bf16.msra.mxu0 0
        %4573 = vmatprep.subr.bf16.mxu0 0
        %4574 = vmatpush1.bf16.msra.mxu0 0
        %4575 = vmatprep.subr.bf16.mxu0 0
        %4576 = vmatpush1.bf16.msra.mxu0 0
        %4577 = vmatprep.subr.bf16.mxu0 0
        %4578 = vmatpush1.bf16.msra.mxu0 0
        %4579 = vmatprep.subr.bf16.mxu0 0
        %4580 = vmatpush1.bf16.msra.mxu0 0
        %4581 = vmatprep.subr.bf16.mxu0 0
        %4582 = vmatpush1.bf16.msra.mxu0 0
        %4583 = vmatprep.mubr.bf16.mxu0 0
        %4584 = vmatmul.mubr.bf16.gmra.mrb[0].mxu0 %v4499
        %v4585 = vpop.f32.mrb[0].mxu0
        %v4586 = vadd.f32 0.0, %v4585
        %v4587 = vpop.f32.mrb[0].mxu0
        %v4588 = vpop.f32.mrb[0].mxu0
        %v4589 = vpop.f32.mrb[0].mxu0
        %4590 = vdwg.mxu0
        %v4591 = vadd.f32 %v4440, %v4545
        %v4592 = vadd.f32 %v4442, %v4547
        %v4593 = vadd.f32 %v4481, %v4586
        %v4594 = vld [vmem:[%s2536] sm:$0xf]
        %v4595 = vld [vmem:[%s2057] sm:$0xff]
        %v4596 = vld [vmem:[%s2057 + $0x8] sm:$0xff]
        %v4599 = vunpack.c.l.b16 %v4595
        %v4600 = vunpack.c.h.b16 %v4595
        %v4601 = vunpack.c.l.b16 %v4596
        %v4602 = vunpack.c.h.b16 %v4596
        %v4603 = vpack.c.b16 %v4599, %v4599
        %v4604 = vpack.c.b16 %v4600, %v4600
        %v4605 = vpack.c.b16 %v4601, %v4601
        %v4606 = vpack.c.b16 %v4602, %v4602
        %4607 = vrot.lane.b32.xlu0 %v4603, 110
        %v4608 = vpop.permute.xlu0 %4607
        %4609 = vrot.lane.b32.xlu0 %v4604, 110
        %v4610 = vpop.permute.xlu0 %4609
        %4611 = vrot.lane.b32.xlu0 %v4605, 110
        %v4612 = vpop.permute.xlu0 %4611
        %4613 = vrot.lane.b32.xlu0 %v4606, 110
        %v4614 = vpop.permute.xlu0 %4613
        %v4615 = vsel %vm522, %v4608, %v4610
        %v4616 = vsel %vm522, %v4610, %v4612
        %v4617 = vsel %vm522, %v4612, %v4614
        %v4619 = vsel %vm324, %v4594, 0
        %v4622 = vsel %vm328, %v4615, 0
        %v4625 = vsel %vm328, %v4616, 0
        %v4628 = vsel %vm328, %v4617, 0
        %4630 = vmatprep.subr.bf16.mxu0 %v4625
        %4631 = vmatpush1.bf16.msra.mxu0 %v4622
        %4632 = vmatprep.subr.bf16.mxu0 0
        %4633 = vmatpush1.bf16.msra.mxu0 0
        %4634 = vmatprep.subr.bf16.mxu0 0
        %4635 = vmatpush1.bf16.msra.mxu0 0
        %4636 = vmatprep.subr.bf16.mxu0 0
        %4637 = vmatpush1.bf16.msra.mxu0 0
        %4638 = vmatprep.subr.bf16.mxu0 0
        %4639 = vmatpush1.bf16.msra.mxu0 0
        %4640 = vmatprep.subr.bf16.mxu0 0
        %4641 = vmatpush1.bf16.msra.mxu0 0
        %4642 = vmatprep.subr.bf16.mxu0 0
        %4643 = vmatpush1.bf16.msra.mxu0 0
        %4644 = vmatprep.subr.bf16.mxu0 0
        %4645 = vmatpush1.bf16.msra.mxu0 0
        %4646 = vmatprep.subr.bf16.mxu0 0
        %4647 = vmatpush1.bf16.msra.mxu0 0
        %4648 = vmatprep.subr.bf16.mxu0 0
        %4649 = vmatpush1.bf16.msra.mxu0 0
        %4650 = vmatprep.subr.bf16.mxu0 0
        %4651 = vmatpush1.bf16.msra.mxu0 0
        %4652 = vmatprep.subr.bf16.mxu0 0
        %4653 = vmatpush1.bf16.msra.mxu0 0
        %4654 = vmatprep.subr.bf16.mxu0 0
        %4655 = vmatpush1.bf16.msra.mxu0 0
        %4656 = vmatprep.subr.bf16.mxu0 0
        %4657 = vmatpush1.bf16.msra.mxu0 0
        %4658 = vmatprep.subr.bf16.mxu0 0
        %4659 = vmatpush1.bf16.msra.mxu0 0
        %4660 = vmatprep.subr.bf16.mxu0 0
        %4661 = vmatpush1.bf16.msra.mxu0 0
        %4662 = vmatprep.mubr.bf16.mxu0 0
        %4663 = vmatmul.mubr.bf16.gmra.mrb[0].mxu0 %v4619
        %v4664 = vpop.f32.mrb[0].mxu0
        %v4665 = vadd.f32 0.0, %v4664
        %v4666 = vpop.f32.mrb[0].mxu0
        %v4667 = vadd.f32 0.0, %v4666
        %v4668 = vpop.f32.mrb[0].mxu0
        %v4669 = vpop.f32.mrb[0].mxu0
        %4670 = vdwg.mxu0
        %4671 = vmatprep.subr.bf16.mxu0 0
        %4672 = vmatpush1.bf16.msra.mxu0 %v4628
        %4673 = vmatprep.subr.bf16.mxu0 0
        %4674 = vmatpush1.bf16.msra.mxu0 0
        %4675 = vmatprep.subr.bf16.mxu0 0
        %4676 = vmatpush1.bf16.msra.mxu0 0
        %4677 = vmatprep.subr.bf16.mxu0 0
        %4678 = vmatpush1.bf16.msra.mxu0 0
        %4679 = vmatprep.subr.bf16.mxu0 0
        %4680 = vmatpush1.bf16.msra.mxu0 0
        %4681 = vmatprep.subr.bf16.mxu0 0
        %4682 = vmatpush1.bf16.msra.mxu0 0
        %4683 = vmatprep.subr.bf16.mxu0 0
        %4684 = vmatpush1.bf16.msra.mxu0 0
        %4685 = vmatprep.subr.bf16.mxu0 0
        %4686 = vmatpush1.bf16.msra.mxu0 0
        %4687 = vmatprep.subr.bf16.mxu0 0
        %4688 = vmatpush1.bf16.msra.mxu0 0
        %4689 = vmatprep.subr.bf16.mxu0 0
        %4690 = vmatpush1.bf16.msra.mxu0 0
        %4691 = vmatprep.subr.bf16.mxu0 0
        %4692 = vmatpush1.bf16.msra.mxu0 0
        %4693 = vmatprep.subr.bf16.mxu0 0
        %4694 = vmatpush1.bf16.msra.mxu0 0
        %4695 = vmatprep.subr.bf16.mxu0 0
        %4696 = vmatpush1.bf16.msra.mxu0 0
        %4697 = vmatprep.subr.bf16.mxu0 0
        %4698 = vmatpush1.bf16.msra.mxu0 0
        %4699 = vmatprep.subr.bf16.mxu0 0
        %4700 = vmatpush1.bf16.msra.mxu0 0
        %4701 = vmatprep.subr.bf16.mxu0 0
        %4702 = vmatpush1.bf16.msra.mxu0 0
        %4703 = vmatprep.mubr.bf16.mxu0 0
        %4704 = vmatmul.mubr.bf16.gmra.mrb[0].mxu0 %v4619
        %v4705 = vpop.f32.mrb[0].mxu0
        %v4706 = vadd.f32 0.0, %v4705
        %v4707 = vpop.f32.mrb[0].mxu0
        %v4708 = vpop.f32.mrb[0].mxu0
        %v4709 = vpop.f32.mrb[0].mxu0
        %4710 = vdwg.mxu0
        %v4711 = vadd.f32 %v4591, %v4665
        %v4712 = vadd.f32 %v4592, %v4667
        %v4713 = vadd.f32 %v4593, %v4706
        %v4714 = vld [vmem:[%s2657] sm:$0xf]
        %v4715 = vld [vmem:[%s1644] sm:$0xff]
        %v4716 = vld [vmem:[%s1644 + $0x8] sm:$0xff]
        %v4719 = vunpack.c.l.b16 %v4715
        %v4720 = vunpack.c.h.b16 %v4715
        %v4721 = vunpack.c.l.b16 %v4716
        %v4722 = vunpack.c.h.b16 %v4716
        %v4723 = vpack.c.b16 %v4719, %v4719
        %v4724 = vpack.c.b16 %v4720, %v4720
        %v4725 = vpack.c.b16 %v4721, %v4721
        %v4726 = vpack.c.b16 %v4722, %v4722
        %4727 = vrot.lane.b32.xlu0 %v4723, 109
        %v4728 = vpop.permute.xlu0 %4727
        %4729 = vrot.lane.b32.xlu0 %v4724, 109
        %v4730 = vpop.permute.xlu0 %4729
        %4731 = vrot.lane.b32.xlu0 %v4725, 109
        %v4732 = vpop.permute.xlu0 %4731
        %4733 = vrot.lane.b32.xlu0 %v4726, 109
        %v4734 = vpop.permute.xlu0 %4733
        %v4735 = vsel %vm632, %v4728, %v4730
        %v4736 = vsel %vm632, %v4730, %v4732
        %v4737 = vsel %vm632, %v4732, %v4734
        %v4739 = vsel %vm324, %v4714, 0
        %v4742 = vsel %vm328, %v4735, 0
        %v4745 = vsel %vm328, %v4736, 0
        %v4748 = vsel %vm328, %v4737, 0
        %4750 = vmatprep.subr.bf16.mxu0 %v4745
        %4751 = vmatpush1.bf16.msra.mxu0 %v4742
        %4752 = vmatprep.subr.bf16.mxu0 0
        %4753 = vmatpush1.bf16.msra.mxu0 0
        %4754 = vmatprep.subr.bf16.mxu0 0
        %4755 = vmatpush1.bf16.msra.mxu0 0
        %4756 = vmatprep.subr.bf16.mxu0 0
        %4757 = vmatpush1.bf16.msra.mxu0 0
        %4758 = vmatprep.subr.bf16.mxu0 0
        %4759 = vmatpush1.bf16.msra.mxu0 0
        %4760 = vmatprep.subr.bf16.mxu0 0
        %4761 = vmatpush1.bf16.msra.mxu0 0
        %4762 = vmatprep.subr.bf16.mxu0 0
        %4763 = vmatpush1.bf16.msra.mxu0 0
        %4764 = vmatprep.subr.bf16.mxu0 0
        %4765 = vmatpush1.bf16.msra.mxu0 0
        %4766 = vmatprep.subr.bf16.mxu0 0
        %4767 = vmatpush1.bf16.msra.mxu0 0
        %4768 = vmatprep.subr.bf16.mxu0 0
        %4769 = vmatpush1.bf16.msra.mxu0 0
        %4770 = vmatprep.subr.bf16.mxu0 0
        %4771 = vmatpush1.bf16.msra.mxu0 0
        %4772 = vmatprep.subr.bf16.mxu0 0
        %4773 = vmatpush1.bf16.msra.mxu0 0
        %4774 = vmatprep.subr.bf16.mxu0 0
        %4775 = vmatpush1.bf16.msra.mxu0 0
        %4776 = vmatprep.subr.bf16.mxu0 0
        %4777 = vmatpush1.bf16.msra.mxu0 0
        %4778 = vmatprep.subr.bf16.mxu0 0
        %4779 = vmatpush1.bf16.msra.mxu0 0
        %4780 = vmatprep.subr.bf16.mxu0 0
        %4781 = vmatpush1.bf16.msra.mxu0 0
        %4782 = vmatprep.mubr.bf16.mxu0 0
        %4783 = vmatmul.mubr.bf16.gmra.mrb[0].mxu0 %v4739
        %v4784 = vpop.f32.mrb[0].mxu0
        %v4785 = vadd.f32 0.0, %v4784
        %v4786 = vpop.f32.mrb[0].mxu0
        %v4787 = vadd.f32 0.0, %v4786
        %v4788 = vpop.f32.mrb[0].mxu0
        %v4789 = vpop.f32.mrb[0].mxu0
        %4790 = vdwg.mxu0
        %4791 = vmatprep.subr.bf16.mxu0 0
        %4792 = vmatpush1.bf16.msra.mxu0 %v4748
        %4793 = vmatprep.subr.bf16.mxu0 0
        %4794 = vmatpush1.bf16.msra.mxu0 0
        %4795 = vmatprep.subr.bf16.mxu0 0
        %4796 = vmatpush1.bf16.msra.mxu0 0
        %4797 = vmatprep.subr.bf16.mxu0 0
        %4798 = vmatpush1.bf16.msra.mxu0 0
        %4799 = vmatprep.subr.bf16.mxu0 0
        %4800 = vmatpush1.bf16.msra.mxu0 0
        %4801 = vmatprep.subr.bf16.mxu0 0
        %4802 = vmatpush1.bf16.msra.mxu0 0
        %4803 = vmatprep.subr.bf16.mxu0 0
        %4804 = vmatpush1.bf16.msra.mxu0 0
        %4805 = vmatprep.subr.bf16.mxu0 0
        %4806 = vmatpush1.bf16.msra.mxu0 0
        %4807 = vmatprep.subr.bf16.mxu0 0
        %4808 = vmatpush1.bf16.msra.mxu0 0
        %4809 = vmatprep.subr.bf16.mxu0 0
        %4810 = vmatpush1.bf16.msra.mxu0 0
        %4811 = vmatprep.subr.bf16.mxu0 0
        %4812 = vmatpush1.bf16.msra.mxu0 0
        %4813 = vmatprep.subr.bf16.mxu0 0
        %4814 = vmatpush1.bf16.msra.mxu0 0
        %4815 = vmatprep.subr.bf16.mxu0 0
        %4816 = vmatpush1.bf16.msra.mxu0 0
        %4817 = vmatprep.subr.bf16.mxu0 0
        %4818 = vmatpush1.bf16.msra.mxu0 0
        %4819 = vmatprep.subr.bf16.mxu0 0
        %4820 = vmatpush1.bf16.msra.mxu0 0
        %4821 = vmatprep.subr.bf16.mxu0 0
        %4822 = vmatpush1.bf16.msra.mxu0 0
        %4823 = vmatprep.mubr.bf16.mxu0 0
        %4824 = vmatmul.mubr.bf16.gmra.mrb[0].mxu0 %v4739
        %v4825 = vpop.f32.mrb[0].mxu0
        %v4826 = vadd.f32 0.0, %v4825
        %v4827 = vpop.f32.mrb[0].mxu0
        %v4828 = vpop.f32.mrb[0].mxu0
        %v4829 = vpop.f32.mrb[0].mxu0
        %4830 = vdwg.mxu0
        %v4831 = vadd.f32 %v4711, %v4785
        %v4832 = vadd.f32 %v4712, %v4787
        %v4833 = vadd.f32 %v4713, %v4826
        %v4834 = vld [vmem:[%s2778] sm:$0xf]
        %4835 = vrot.lane.b32.xlu0 %v4603, 109
        %v4836 = vpop.permute.xlu0 %4835
        %4837 = vrot.lane.b32.xlu0 %v4604, 109
        %v4838 = vpop.permute.xlu0 %4837
        %4839 = vrot.lane.b32.xlu0 %v4605, 109
        %v4840 = vpop.permute.xlu0 %4839
        %4841 = vrot.lane.b32.xlu0 %v4606, 109
        %v4842 = vpop.permute.xlu0 %4841
        %v4843 = vsel %vm632, %v4836, %v4838
        %v4844 = vsel %vm632, %v4838, %v4840
        %v4845 = vsel %vm632, %v4840, %v4842
        %v4847 = vsel %vm324, %v4834, 0
        %v4850 = vsel %vm328, %v4843, 0
        %v4853 = vsel %vm328, %v4844, 0
        %v4856 = vsel %vm328, %v4845, 0
        %4858 = vmatprep.subr.bf16.mxu0 %v4853
        %4859 = vmatpush1.bf16.msra.mxu0 %v4850
        %4860 = vmatprep.subr.bf16.mxu0 0
        %4861 = vmatpush1.bf16.msra.mxu0 0
        %4862 = vmatprep.subr.bf16.mxu0 0
        %4863 = vmatpush1.bf16.msra.mxu0 0
        %4864 = vmatprep.subr.bf16.mxu0 0
        %4865 = vmatpush1.bf16.msra.mxu0 0
        %4866 = vmatprep.subr.bf16.mxu0 0
        %4867 = vmatpush1.bf16.msra.mxu0 0
        %4868 = vmatprep.subr.bf16.mxu0 0
        %4869 = vmatpush1.bf16.msra.mxu0 0
        %4870 = vmatprep.subr.bf16.mxu0 0
        %4871 = vmatpush1.bf16.msra.mxu0 0
        %4872 = vmatprep.subr.bf16.mxu0 0
        %4873 = vmatpush1.bf16.msra.mxu0 0
        %4874 = vmatprep.subr.bf16.mxu0 0
        %4875 = vmatpush1.bf16.msra.mxu0 0
        %4876 = vmatprep.subr.bf16.mxu0 0
        %4877 = vmatpush1.bf16.msra.mxu0 0
        %4878 = vmatprep.subr.bf16.mxu0 0
        %4879 = vmatpush1.bf16.msra.mxu0 0
        %4880 = vmatprep.subr.bf16.mxu0 0
        %4881 = vmatpush1.bf16.msra.mxu0 0
        %4882 = vmatprep.subr.bf16.mxu0 0
        %4883 = vmatpush1.bf16.msra.mxu0 0
        %4884 = vmatprep.subr.bf16.mxu0 0
        %4885 = vmatpush1.bf16.msra.mxu0 0
        %4886 = vmatprep.subr.bf16.mxu0 0
        %4887 = vmatpush1.bf16.msra.mxu0 0
        %4888 = vmatprep.subr.bf16.mxu0 0
        %4889 = vmatpush1.bf16.msra.mxu0 0
        %4890 = vmatprep.mubr.bf16.mxu0 0
        %4891 = vmatmul.mubr.bf16.gmra.mrb[0].mxu0 %v4847
        %v4892 = vpop.f32.mrb[0].mxu0
        %v4893 = vadd.f32 0.0, %v4892
        %v4894 = vpop.f32.mrb[0].mxu0
        %v4895 = vadd.f32 0.0, %v4894
        %v4896 = vpop.f32.mrb[0].mxu0
        %v4897 = vpop.f32.mrb[0].mxu0
        %4898 = vdwg.mxu0
        %4899 = vmatprep.subr.bf16.mxu0 0
        %4900 = vmatpush1.bf16.msra.mxu0 %v4856
        %4901 = vmatprep.subr.bf16.mxu0 0
        %4902 = vmatpush1.bf16.msra.mxu0 0
        %4903 = vmatprep.subr.bf16.mxu0 0
        %4904 = vmatpush1.bf16.msra.mxu0 0
        %4905 = vmatprep.subr.bf16.mxu0 0
        %4906 = vmatpush1.bf16.msra.mxu0 0
        %4907 = vmatprep.subr.bf16.mxu0 0
        %4908 = vmatpush1.bf16.msra.mxu0 0
        %4909 = vmatprep.subr.bf16.mxu0 0
        %4910 = vmatpush1.bf16.msra.mxu0 0
        %4911 = vmatprep.subr.bf16.mxu0 0
        %4912 = vmatpush1.bf16.msra.mxu0 0
        %4913 = vmatprep.subr.bf16.mxu0 0
        %4914 = vmatpush1.bf16.msra.mxu0 0
        %4915 = vmatprep.subr.bf16.mxu0 0
        %4916 = vmatpush1.bf16.msra.mxu0 0
        %4917 = vmatprep.subr.bf16.mxu0 0
        %4918 = vmatpush1.bf16.msra.mxu0 0
        %4919 = vmatprep.subr.bf16.mxu0 0
        %4920 = vmatpush1.bf16.msra.mxu0 0
        %4921 = vmatprep.subr.bf16.mxu0 0
        %4922 = vmatpush1.bf16.msra.mxu0 0
        %4923 = vmatprep.subr.bf16.mxu0 0
        %4924 = vmatpush1.bf16.msra.mxu0 0
        %4925 = vmatprep.subr.bf16.mxu0 0
        %4926 = vmatpush1.bf16.msra.mxu0 0
        %4927 = vmatprep.subr.bf16.mxu0 0
        %4928 = vmatpush1.bf16.msra.mxu0 0
        %4929 = vmatprep.subr.bf16.mxu0 0
        %4930 = vmatpush1.bf16.msra.mxu0 0
        %4931 = vmatprep.mubr.bf16.mxu0 0
        %4932 = vmatmul.mubr.bf16.gmra.mrb[0].mxu0 %v4847
        %v4933 = vpop.f32.mrb[0].mxu0
        %v4934 = vadd.f32 0.0, %v4933
        %v4935 = vpop.f32.mrb[0].mxu0
        %v4936 = vpop.f32.mrb[0].mxu0
        %v4937 = vpop.f32.mrb[0].mxu0
        %4938 = vdwg.mxu0
        %v4939 = vadd.f32 %v4831, %v4893
        %v4940 = vadd.f32 %v4832, %v4895
        %v4941 = vadd.f32 %v4833, %v4934
        %v4942 = vld [vmem:[%s2887] sm:$0xf]
        %4943 = vrot.lane.b32.xlu0 %v4378, 92
        %v4944 = vpop.permute.xlu0 %4943
        %4945 = vrot.lane.b32.xlu0 %v4379, 92
        %v4946 = vpop.permute.xlu0 %4945
        %4947 = vrot.lane.b32.xlu0 %v4380, 92
        %v4948 = vpop.permute.xlu0 %4947
        %4949 = vrot.lane.b32.xlu0 %v4381, 92
        %v4950 = vpop.permute.xlu0 %4949
        %v4951 = vsel %vm1419, %v4944, %v4946
        %v4952 = vsel %vm1419, %v4946, %v4948
        %v4953 = vsel %vm1419, %v4948, %v4950
        %v4955 = vsel %vm324, %v4942, 0
        %v4958 = vsel %vm328, %v4951, 0
        %v4961 = vsel %vm328, %v4952, 0
        %v4964 = vsel %vm328, %v4953, 0
        %4966 = vmatprep.subr.bf16.mxu0 %v4961
        %4967 = vmatpush1.bf16.msra.mxu0 %v4958
        %4968 = vmatprep.subr.bf16.mxu0 0
        %4969 = vmatpush1.bf16.msra.mxu0 0
        %4970 = vmatprep.subr.bf16.mxu0 0
        %4971 = vmatpush1.bf16.msra.mxu0 0
        %4972 = vmatprep.subr.bf16.mxu0 0
        %4973 = vmatpush1.bf16.msra.mxu0 0
        %4974 = vmatprep.subr.bf16.mxu0 0
        %4975 = vmatpush1.bf16.msra.mxu0 0
        %4976 = vmatprep.subr.bf16.mxu0 0
        %4977 = vmatpush1.bf16.msra.mxu0 0
        %4978 = vmatprep.subr.bf16.mxu0 0
        %4979 = vmatpush1.bf16.msra.mxu0 0
        %4980 = vmatprep.subr.bf16.mxu0 0
        %4981 = vmatpush1.bf16.msra.mxu0 0
        %4982 = vmatprep.subr.bf16.mxu0 0
        %4983 = vmatpush1.bf16.msra.mxu0 0
        %4984 = vmatprep.subr.bf16.mxu0 0
        %4985 = vmatpush1.bf16.msra.mxu0 0
        %4986 = vmatprep.subr.bf16.mxu0 0
        %4987 = vmatpush1.bf16.msra.mxu0 0
        %4988 = vmatprep.subr.bf16.mxu0 0
        %4989 = vmatpush1.bf16.msra.mxu0 0
        %4990 = vmatprep.subr.bf16.mxu0 0
        %4991 = vmatpush1.bf16.msra.mxu0 0
        %4992 = vmatprep.subr.bf16.mxu0 0
        %4993 = vmatpush1.bf16.msra.mxu0 0
        %4994 = vmatprep.subr.bf16.mxu0 0
        %4995 = vmatpush1.bf16.msra.mxu0 0
        %4996 = vmatprep.subr.bf16.mxu0 0
        %4997 = vmatpush1.bf16.msra.mxu0 0
        %4998 = vmatprep.mubr.bf16.mxu0 0
        %4999 = vmatmul.mubr.bf16.gmra.mrb[0].mxu0 %v4955
        %v5000 = vpop.f32.mrb[0].mxu0
        %v5001 = vadd.f32 0.0, %v5000
        %v5002 = vpop.f32.mrb[0].mxu0
        %v5003 = vadd.f32 0.0, %v5002
        %v5004 = vpop.f32.mrb[0].mxu0
        %v5005 = vpop.f32.mrb[0].mxu0
        %5006 = vdwg.mxu0
        %5007 = vmatprep.subr.bf16.mxu0 0
        %5008 = vmatpush1.bf16.msra.mxu0 %v4964
        %5009 = vmatprep.subr.bf16.mxu0 0
        %5010 = vmatpush1.bf16.msra.mxu0 0
        %5011 = vmatprep.subr.bf16.mxu0 0
        %5012 = vmatpush1.bf16.msra.mxu0 0
        %5013 = vmatprep.subr.bf16.mxu0 0
        %5014 = vmatpush1.bf16.msra.mxu0 0
        %5015 = vmatprep.subr.bf16.mxu0 0
        %5016 = vmatpush1.bf16.msra.mxu0 0
        %5017 = vmatprep.subr.bf16.mxu0 0
        %5018 = vmatpush1.bf16.msra.mxu0 0
        %5019 = vmatprep.subr.bf16.mxu0 0
        %5020 = vmatpush1.bf16.msra.mxu0 0
        %5021 = vmatprep.subr.bf16.mxu0 0
        %5022 = vmatpush1.bf16.msra.mxu0 0
        %5023 = vmatprep.subr.bf16.mxu0 0
        %5024 = vmatpush1.bf16.msra.mxu0 0
        %5025 = vmatprep.subr.bf16.mxu0 0
        %5026 = vmatpush1.bf16.msra.mxu0 0
        %5027 = vmatprep.subr.bf16.mxu0 0
        %5028 = vmatpush1.bf16.msra.mxu0 0
        %5029 = vmatprep.subr.bf16.mxu0 0
        %5030 = vmatpush1.bf16.msra.mxu0 0
        %5031 = vmatprep.subr.bf16.mxu0 0
        %5032 = vmatpush1.bf16.msra.mxu0 0
        %5033 = vmatprep.subr.bf16.mxu0 0
        %5034 = vmatpush1.bf16.msra.mxu0 0
        %5035 = vmatprep.subr.bf16.mxu0 0
        %5036 = vmatpush1.bf16.msra.mxu0 0
        %5037 = vmatprep.subr.bf16.mxu0 0
        %5038 = vmatpush1.bf16.msra.mxu0 0
        %5039 = vmatprep.mubr.bf16.mxu0 0
        %5040 = vmatmul.mubr.bf16.gmra.mrb[0].mxu0 %v4955
        %v5041 = vpop.f32.mrb[0].mxu0
        %v5042 = vadd.f32 0.0, %v5041
        %v5043 = vpop.f32.mrb[0].mxu0
        %v5044 = vpop.f32.mrb[0].mxu0
        %v5045 = vpop.f32.mrb[0].mxu0
        %5046 = vdwg.mxu0
        %v5047 = vadd.f32 %v4939, %v5001
        %v5048 = vadd.f32 %v4940, %v5003
        %v5049 = vadd.f32 %v4941, %v5042
        %v5050 = vld [vmem:[%s2996] sm:$0xf]
        %5051 = vrot.lane.b32.xlu0 %v4264, 91
        %v5052 = vpop.permute.xlu0 %5051
        %5053 = vrot.lane.b32.xlu0 %v4265, 91
        %v5054 = vpop.permute.xlu0 %5053
        %5055 = vrot.lane.b32.xlu0 %v4266, 91
        %v5056 = vpop.permute.xlu0 %5055
        %5057 = vrot.lane.b32.xlu0 %v4267, 91
        %v5058 = vpop.permute.xlu0 %5057
        %v5059 = vsel %vm1529, %v5052, %v5054
        %v5060 = vsel %vm1529, %v5054, %v5056
        %v5061 = vsel %vm1529, %v5056, %v5058
        %v5063 = vsel %vm324, %v5050, 0
        %v5066 = vsel %vm328, %v5059, 0
        %v5069 = vsel %vm328, %v5060, 0
        %v5072 = vsel %vm328, %v5061, 0
        %5074 = vmatprep.subr.bf16.mxu0 %v5069
        %5075 = vmatpush1.bf16.msra.mxu0 %v5066
        %5076 = vmatprep.subr.bf16.mxu0 0
        %5077 = vmatpush1.bf16.msra.mxu0 0
        %5078 = vmatprep.subr.bf16.mxu0 0
        %5079 = vmatpush1.bf16.msra.mxu0 0
        %5080 = vmatprep.subr.bf16.mxu0 0
        %5081 = vmatpush1.bf16.msra.mxu0 0
        %5082 = vmatprep.subr.bf16.mxu0 0
        %5083 = vmatpush1.bf16.msra.mxu0 0
        %5084 = vmatprep.subr.bf16.mxu0 0
        %5085 = vmatpush1.bf16.msra.mxu0 0
        %5086 = vmatprep.subr.bf16.mxu0 0
        %5087 = vmatpush1.bf16.msra.mxu0 0
        %5088 = vmatprep.subr.bf16.mxu0 0
        %5089 = vmatpush1.bf16.msra.mxu0 0
        %5090 = vmatprep.subr.bf16.mxu0 0
        %5091 = vmatpush1.bf16.msra.mxu0 0
        %5092 = vmatprep.subr.bf16.mxu0 0
        %5093 = vmatpush1.bf16.msra.mxu0 0
        %5094 = vmatprep.subr.bf16.mxu0 0
        %5095 = vmatpush1.bf16.msra.mxu0 0
        %5096 = vmatprep.subr.bf16.mxu0 0
        %5097 = vmatpush1.bf16.msra.mxu0 0
        %5098 = vmatprep.subr.bf16.mxu0 0
        %5099 = vmatpush1.bf16.msra.mxu0 0
        %5100 = vmatprep.subr.bf16.mxu0 0
        %5101 = vmatpush1.bf16.msra.mxu0 0
        %5102 = vmatprep.subr.bf16.mxu0 0
        %5103 = vmatpush1.bf16.msra.mxu0 0
        %5104 = vmatprep.subr.bf16.mxu0 0
        %5105 = vmatpush1.bf16.msra.mxu0 0
        %5106 = vmatprep.mubr.bf16.mxu0 0
        %5107 = vmatmul.mubr.bf16.gmra.mrb[0].mxu0 %v5063
        %v5108 = vpop.f32.mrb[0].mxu0
        %v5109 = vadd.f32 0.0, %v5108
        %v5110 = vpop.f32.mrb[0].mxu0
        %v5111 = vadd.f32 0.0, %v5110
        %v5112 = vpop.f32.mrb[0].mxu0
        %v5113 = vpop.f32.mrb[0].mxu0
        %5114 = vdwg.mxu0
        %5115 = vmatprep.subr.bf16.mxu0 0
        %5116 = vmatpush1.bf16.msra.mxu0 %v5072
        %5117 = vmatprep.subr.bf16.mxu0 0
        %5118 = vmatpush1.bf16.msra.mxu0 0
        %5119 = vmatprep.subr.bf16.mxu0 0
        %5120 = vmatpush1.bf16.msra.mxu0 0
        %5121 = vmatprep.subr.bf16.mxu0 0
        %5122 = vmatpush1.bf16.msra.mxu0 0
        %5123 = vmatprep.subr.bf16.mxu0 0
        %5124 = vmatpush1.bf16.msra.mxu0 0
        %5125 = vmatprep.subr.bf16.mxu0 0
        %5126 = vmatpush1.bf16.msra.mxu0 0
        %5127 = vmatprep.subr.bf16.mxu0 0
        %5128 = vmatpush1.bf16.msra.mxu0 0
        %5129 = vmatprep.subr.bf16.mxu0 0
        %5130 = vmatpush1.bf16.msra.mxu0 0
        %5131 = vmatprep.subr.bf16.mxu0 0
        %5132 = vmatpush1.bf16.msra.mxu0 0
        %5133 = vmatprep.subr.bf16.mxu0 0
        %5134 = vmatpush1.bf16.msra.mxu0 0
        %5135 = vmatprep.subr.bf16.mxu0 0
        %5136 = vmatpush1.bf16.msra.mxu0 0
        %5137 = vmatprep.subr.bf16.mxu0 0
        %5138 = vmatpush1.bf16.msra.mxu0 0
        %5139 = vmatprep.subr.bf16.mxu0 0
        %5140 = vmatpush1.bf16.msra.mxu0 0
        %5141 = vmatprep.subr.bf16.mxu0 0
        %5142 = vmatpush1.bf16.msra.mxu0 0
        %5143 = vmatprep.subr.bf16.mxu0 0
        %5144 = vmatpush1.bf16.msra.mxu0 0
        %5145 = vmatprep.subr.bf16.mxu0 0
        %5146 = vmatpush1.bf16.msra.mxu0 0
        %5147 = vmatprep.mubr.bf16.mxu0 0
        %5148 = vmatmul.mubr.bf16.gmra.mrb[0].mxu0 %v5063
        %v5149 = vpop.f32.mrb[0].mxu0
        %v5150 = vadd.f32 0.0, %v5149
        %v5151 = vpop.f32.mrb[0].mxu0
        %v5152 = vpop.f32.mrb[0].mxu0
        %v5153 = vpop.f32.mrb[0].mxu0
        %5154 = vdwg.mxu0
        %v5155 = vadd.f32 %v5047, %v5109
        %v5156 = vadd.f32 %v5048, %v5111
        %v5157 = vadd.f32 %v5049, %v5150
        %v5158 = vld [vmem:[%s3105] sm:$0xf]
        %5159 = vrot.lane.b32.xlu0 %v4378, 91
        %v5160 = vpop.permute.xlu0 %5159
        %5161 = vrot.lane.b32.xlu0 %v4379, 91
        %v5162 = vpop.permute.xlu0 %5161
        %5163 = vrot.lane.b32.xlu0 %v4380, 91
        %v5164 = vpop.permute.xlu0 %5163
        %5165 = vrot.lane.b32.xlu0 %v4381, 91
        %v5166 = vpop.permute.xlu0 %5165
        %v5167 = vsel %vm1529, %v5160, %v5162
        %v5168 = vsel %vm1529, %v5162, %v5164
        %v5169 = vsel %vm1529, %v5164, %v5166
        %v5171 = vsel %vm324, %v5158, 0
        %v5174 = vsel %vm328, %v5167, 0
        %v5177 = vsel %vm328, %v5168, 0
        %v5180 = vsel %vm328, %v5169, 0
        %5182 = vmatprep.subr.bf16.mxu0 %v5177
        %5183 = vmatpush1.bf16.msra.mxu0 %v5174
        %5184 = vmatprep.subr.bf16.mxu0 0
        %5185 = vmatpush1.bf16.msra.mxu0 0
        %5186 = vmatprep.subr.bf16.mxu0 0
        %5187 = vmatpush1.bf16.msra.mxu0 0
        %5188 = vmatprep.subr.bf16.mxu0 0
        %5189 = vmatpush1.bf16.msra.mxu0 0
        %5190 = vmatprep.subr.bf16.mxu0 0
        %5191 = vmatpush1.bf16.msra.mxu0 0
        %5192 = vmatprep.subr.bf16.mxu0 0
        %5193 = vmatpush1.bf16.msra.mxu0 0
        %5194 = vmatprep.subr.bf16.mxu0 0
        %5195 = vmatpush1.bf16.msra.mxu0 0
        %5196 = vmatprep.subr.bf16.mxu0 0
        %5197 = vmatpush1.bf16.msra.mxu0 0
        %5198 = vmatprep.subr.bf16.mxu0 0
        %5199 = vmatpush1.bf16.msra.mxu0 0
        %5200 = vmatprep.subr.bf16.mxu0 0
        %5201 = vmatpush1.bf16.msra.mxu0 0
        %5202 = vmatprep.subr.bf16.mxu0 0
        %5203 = vmatpush1.bf16.msra.mxu0 0
        %5204 = vmatprep.subr.bf16.mxu0 0
        %5205 = vmatpush1.bf16.msra.mxu0 0
        %5206 = vmatprep.subr.bf16.mxu0 0
        %5207 = vmatpush1.bf16.msra.mxu0 0
        %5208 = vmatprep.subr.bf16.mxu0 0
        %5209 = vmatpush1.bf16.msra.mxu0 0
        %5210 = vmatprep.subr.bf16.mxu0 0
        %5211 = vmatpush1.bf16.msra.mxu0 0
        %5212 = vmatprep.subr.bf16.mxu0 0
        %5213 = vmatpush1.bf16.msra.mxu0 0
        %5214 = vmatprep.mubr.bf16.mxu0 0
        %5215 = vmatmul.mubr.bf16.gmra.mrb[0].mxu0 %v5171
        %v5216 = vpop.f32.mrb[0].mxu0
        %v5217 = vadd.f32 0.0, %v5216
        %v5218 = vpop.f32.mrb[0].mxu0
        %v5219 = vadd.f32 0.0, %v5218
        %v5220 = vpop.f32.mrb[0].mxu0
        %v5221 = vpop.f32.mrb[0].mxu0
        %5222 = vdwg.mxu0
        %5223 = vmatprep.subr.bf16.mxu0 0
        %5224 = vmatpush1.bf16.msra.mxu0 %v5180
        %5225 = vmatprep.subr.bf16.mxu0 0
        %5226 = vmatpush1.bf16.msra.mxu0 0
        %5227 = vmatprep.subr.bf16.mxu0 0
        %5228 = vmatpush1.bf16.msra.mxu0 0
        %5229 = vmatprep.subr.bf16.mxu0 0
        %5230 = vmatpush1.bf16.msra.mxu0 0
        %5231 = vmatprep.subr.bf16.mxu0 0
        %5232 = vmatpush1.bf16.msra.mxu0 0
        %5233 = vmatprep.subr.bf16.mxu0 0
        %5234 = vmatpush1.bf16.msra.mxu0 0
        %5235 = vmatprep.subr.bf16.mxu0 0
        %5236 = vmatpush1.bf16.msra.mxu0 0
        %5237 = vmatprep.subr.bf16.mxu0 0
        %5238 = vmatpush1.bf16.msra.mxu0 0
        %5239 = vmatprep.subr.bf16.mxu0 0
        %5240 = vmatpush1.bf16.msra.mxu0 0
        %5241 = vmatprep.subr.bf16.mxu0 0
        %5242 = vmatpush1.bf16.msra.mxu0 0
        %5243 = vmatprep.subr.bf16.mxu0 0
        %5244 = vmatpush1.bf16.msra.mxu0 0
        %5245 = vmatprep.subr.bf16.mxu0 0
        %5246 = vmatpush1.bf16.msra.mxu0 0
        %5247 = vmatprep.subr.bf16.mxu0 0
        %5248 = vmatpush1.bf16.msra.mxu0 0
        %5249 = vmatprep.subr.bf16.mxu0 0
        %5250 = vmatpush1.bf16.msra.mxu0 0
        %5251 = vmatprep.subr.bf16.mxu0 0
        %5252 = vmatpush1.bf16.msra.mxu0 0
        %5253 = vmatprep.subr.bf16.mxu0 0
        %5254 = vmatpush1.bf16.msra.mxu0 0
        %5255 = vmatprep.mubr.bf16.mxu0 0
        %5256 = vmatmul.mubr.bf16.gmra.mrb[0].mxu0 %v5171
        %v5257 = vpop.f32.mrb[0].mxu0
        %v5258 = vadd.f32 0.0, %v5257
        %v5259 = vpop.f32.mrb[0].mxu0
        %v5260 = vpop.f32.mrb[0].mxu0
        %v5261 = vpop.f32.mrb[0].mxu0
        %5262 = vdwg.mxu0
        %v5263 = vadd.f32 %v5155, %v5217
        %v5264 = vadd.f32 %v5156, %v5219
        %v5265 = vadd.f32 %v5157, %v5258
        %v5266 = vadd.f32 %v5263, %v3217
        %v5267 = vadd.f32 %v5264, %v3217
        %v5268 = vadd.f32 %v5265, %v3217
        %v5269 = vadd.f32 %v5266, %v2147
        %v5270 = vadd.f32 %v5267, %v2149
        %v5271 = vadd.f32 %v5268, %v2188
        %s5272 = scalar_lea.vmem %s271, 48 [#allocation3]
        %5273 = vst [vmem:[%s5272] sm:$0xff] %v5269
        %5274 = vst [vmem:[%s5272 + $0x8] sm:$0xff] %v5270
        %5275 = vst [vmem:[%s5272 + $0x10] sm:$0xff] %v5271
        %v5276 = vld [vmem:[%s4] sm:$0xf]
        %v5277 = vld [vmem:[#allocation2] sm:$0xff]
        %v5278 = vld [vmem:[#allocation2 + $0x8] sm:$0xff]
        %v5279 = vld [vmem:[%s2196] sm:$0xf]
        %v5280 = vld [vmem:[%s1210] sm:$0xff]
        %v5281 = vld [vmem:[%s1210 + $0x8] sm:$0xff]
        %v5284 = vunpack.c.l.b16 %v5280
        %v5285 = vunpack.c.h.b16 %v5280
        %v5286 = vunpack.c.l.b16 %v5281
        %v5287 = vunpack.c.h.b16 %v5281
        %v5288 = vpack.c.b16 %v5284, %v5284
        %v5289 = vpack.c.b16 %v5285, %v5285
        %v5290 = vpack.c.b16 %v5286, %v5286
        %v5291 = vpack.c.b16 %v5287, %v5287
        %5292 = vrot.lane.b32.xlu0 %v5288, 109
        %v5293 = vpop.permute.xlu0 %5292
        %5294 = vrot.lane.b32.xlu0 %v5289, 109
        %v5295 = vpop.permute.xlu0 %5294
        %5296 = vrot.lane.b32.xlu0 %v5290, 109
        %v5297 = vpop.permute.xlu0 %5296
        %5298 = vrot.lane.b32.xlu0 %v5291, 109
        %v5299 = vpop.permute.xlu0 %5298
        %v5300 = vsel %vm632, %v5293, %v5295
        %v5301 = vsel %vm632, %v5295, %v5297
        %v5302 = vsel %vm632, %v5297, %v5299
        %v5304 = vsel %vm324, %v5279, 0
        %v5307 = vsel %vm328, %v5300, 0
        %v5310 = vsel %vm328, %v5301, 0
        %v5313 = vsel %vm328, %v5302, 0
        %5315 = vmatprep.subr.bf16.mxu0 %v5310
        %5316 = vmatpush1.bf16.msra.mxu0 %v5307
        %5317 = vmatprep.subr.bf16.mxu0 0
        %5318 = vmatpush1.bf16.msra.mxu0 0
        %5319 = vmatprep.subr.bf16.mxu0 0
        %5320 = vmatpush1.bf16.msra.mxu0 0
        %5321 = vmatprep.subr.bf16.mxu0 0
        %5322 = vmatpush1.bf16.msra.mxu0 0
        %5323 = vmatprep.subr.bf16.mxu0 0
        %5324 = vmatpush1.bf16.msra.mxu0 0
        %5325 = vmatprep.subr.bf16.mxu0 0
        %5326 = vmatpush1.bf16.msra.mxu0 0
        %5327 = vmatprep.subr.bf16.mxu0 0
        %5328 = vmatpush1.bf16.msra.mxu0 0
        %5329 = vmatprep.subr.bf16.mxu0 0
        %5330 = vmatpush1.bf16.msra.mxu0 0
        %5331 = vmatprep.subr.bf16.mxu0 0
        %5332 = vmatpush1.bf16.msra.mxu0 0
        %5333 = vmatprep.subr.bf16.mxu0 0
        %5334 = vmatpush1.bf16.msra.mxu0 0
        %5335 = vmatprep.subr.bf16.mxu0 0
        %5336 = vmatpush1.bf16.msra.mxu0 0
        %5337 = vmatprep.subr.bf16.mxu0 0
        %5338 = vmatpush1.bf16.msra.mxu0 0
        %5339 = vmatprep.subr.bf16.mxu0 0
        %5340 = vmatpush1.bf16.msra.mxu0 0
        %5341 = vmatprep.subr.bf16.mxu0 0
        %5342 = vmatpush1.bf16.msra.mxu0 0
        %5343 = vmatprep.subr.bf16.mxu0 0
        %5344 = vmatpush1.bf16.msra.mxu0 0
        %5345 = vmatprep.subr.bf16.mxu0 0
        %5346 = vmatpush1.bf16.msra.mxu0 0
        %5347 = vmatprep.mubr.bf16.mxu0 0
        %5348 = vmatmul.mubr.bf16.gmra.mrb[0].mxu0 %v5304
        %v5349 = vpop.f32.mrb[0].mxu0
        %v5350 = vadd.f32 0.0, %v5349
        %v5351 = vpop.f32.mrb[0].mxu0
        %v5352 = vadd.f32 0.0, %v5351
        %v5353 = vpop.f32.mrb[0].mxu0
        %v5354 = vpop.f32.mrb[0].mxu0
        %5355 = vdwg.mxu0
        %5356 = vmatprep.subr.bf16.mxu0 0
        %5357 = vmatpush1.bf16.msra.mxu0 %v5313
        %5358 = vmatprep.subr.bf16.mxu0 0
        %5359 = vmatpush1.bf16.msra.mxu0 0
        %5360 = vmatprep.subr.bf16.mxu0 0
        %5361 = vmatpush1.bf16.msra.mxu0 0
        %5362 = vmatprep.subr.bf16.mxu0 0
        %5363 = vmatpush1.bf16.msra.mxu0 0
        %5364 = vmatprep.subr.bf16.mxu0 0
        %5365 = vmatpush1.bf16.msra.mxu0 0
        %5366 = vmatprep.subr.bf16.mxu0 0
        %5367 = vmatpush1.bf16.msra.mxu0 0
        %5368 = vmatprep.subr.bf16.mxu0 0
        %5369 = vmatpush1.bf16.msra.mxu0 0
        %5370 = vmatprep.subr.bf16.mxu0 0
        %5371 = vmatpush1.bf16.msra.mxu0 0
        %5372 = vmatprep.subr.bf16.mxu0 0
        %5373 = vmatpush1.bf16.msra.mxu0 0
        %5374 = vmatprep.subr.bf16.mxu0 0
        %5375 = vmatpush1.bf16.msra.mxu0 0
        %5376 = vmatprep.subr.bf16.mxu0 0
        %5377 = vmatpush1.bf16.msra.mxu0 0
        %5378 = vmatprep.subr.bf16.mxu0 0
        %5379 = vmatpush1.bf16.msra.mxu0 0
        %5380 = vmatprep.subr.bf16.mxu0 0
        %5381 = vmatpush1.bf16.msra.mxu0 0
        %5382 = vmatprep.subr.bf16.mxu0 0
        %5383 = vmatpush1.bf16.msra.mxu0 0
        %5384 = vmatprep.subr.bf16.mxu0 0
        %5385 = vmatpush1.bf16.msra.mxu0 0
        %5386 = vmatprep.subr.bf16.mxu0 0
        %5387 = vmatpush1.bf16.msra.mxu0 0
        %5388 = vmatprep.mubr.bf16.mxu0 0
        %5389 = vmatmul.mubr.bf16.gmra.mrb[0].mxu0 %v5304
        %v5390 = vpop.f32.mrb[0].mxu0
        %v5391 = vadd.f32 0.0, %v5390
        %v5392 = vpop.f32.mrb[0].mxu0
        %v5393 = vpop.f32.mrb[0].mxu0
        %v5394 = vpop.f32.mrb[0].mxu0
        %5395 = vdwg.mxu0
        %v5398 = vunpack.c.l.b16 %v5277
        %v5399 = vunpack.c.h.b16 %v5277
        %v5400 = vunpack.c.l.b16 %v5278
        %v5401 = vunpack.c.h.b16 %v5278
        %v5402 = vpack.c.b16 %v5398, %v5398
        %v5403 = vpack.c.b16 %v5399, %v5399
        %v5404 = vpack.c.b16 %v5400, %v5400
        %v5405 = vpack.c.b16 %v5401, %v5401
        %5406 = vrot.lane.b32.xlu0 %v5402, 109
        %v5407 = vpop.permute.xlu0 %5406
        %5408 = vrot.lane.b32.xlu0 %v5403, 109
        %v5409 = vpop.permute.xlu0 %5408
        %5410 = vrot.lane.b32.xlu0 %v5404, 109
        %v5411 = vpop.permute.xlu0 %5410
        %5412 = vrot.lane.b32.xlu0 %v5405, 109
        %v5413 = vpop.permute.xlu0 %5412
        %v5414 = vsel %vm632, %v5407, %v5409
        %v5415 = vsel %vm632, %v5409, %v5411
        %v5416 = vsel %vm632, %v5411, %v5413
        %v5418 = vsel %vm324, %v5276, 0
        %v5421 = vsel %vm328, %v5414, 0
        %v5424 = vsel %vm328, %v5415, 0
        %v5427 = vsel %vm328, %v5416, 0
        %5429 = vmatprep.subr.bf16.mxu0 %v5424
        %5430 = vmatpush1.bf16.msra.mxu0 %v5421
        %5431 = vmatprep.subr.bf16.mxu0 0
        %5432 = vmatpush1.bf16.msra.mxu0 0
        %5433 = vmatprep.subr.bf16.mxu0 0
        %5434 = vmatpush1.bf16.msra.mxu0 0
        %5435 = vmatprep.subr.bf16.mxu0 0
        %5436 = vmatpush1.bf16.msra.mxu0 0
        %5437 = vmatprep.subr.bf16.mxu0 0
        %5438 = vmatpush1.bf16.msra.mxu0 0
        %5439 = vmatprep.subr.bf16.mxu0 0
        %5440 = vmatpush1.bf16.msra.mxu0 0
        %5441 = vmatprep.subr.bf16.mxu0 0
        %5442 = vmatpush1.bf16.msra.mxu0 0
        %5443 = vmatprep.subr.bf16.mxu0 0
        %5444 = vmatpush1.bf16.msra.mxu0 0
        %5445 = vmatprep.subr.bf16.mxu0 0
        %5446 = vmatpush1.bf16.msra.mxu0 0
        %5447 = vmatprep.subr.bf16.mxu0 0
        %5448 = vmatpush1.bf16.msra.mxu0 0
        %5449 = vmatprep.subr.bf16.mxu0 0
        %5450 = vmatpush1.bf16.msra.mxu0 0
        %5451 = vmatprep.subr.bf16.mxu0 0
        %5452 = vmatpush1.bf16.msra.mxu0 0
        %5453 = vmatprep.subr.bf16.mxu0 0
        %5454 = vmatpush1.bf16.msra.mxu0 0
        %5455 = vmatprep.subr.bf16.mxu0 0
        %5456 = vmatpush1.bf16.msra.mxu0 0
        %5457 = vmatprep.subr.bf16.mxu0 0
        %5458 = vmatpush1.bf16.msra.mxu0 0
        %5459 = vmatprep.subr.bf16.mxu0 0
        %5460 = vmatpush1.bf16.msra.mxu0 0
        %5461 = vmatprep.mubr.bf16.mxu0 0
        %5462 = vmatmul.mubr.bf16.gmra.mrb[0].mxu0 %v5418
        %v5463 = vpop.f32.mrb[0].mxu0
        %v5464 = vadd.f32 %v5350, %v5463
        %v5465 = vpop.f32.mrb[0].mxu0
        %v5466 = vadd.f32 %v5352, %v5465
        %v5467 = vpop.f32.mrb[0].mxu0
        %v5468 = vpop.f32.mrb[0].mxu0
        %5469 = vdwg.mxu0
        %5470 = vmatprep.subr.bf16.mxu0 0
        %5471 = vmatpush1.bf16.msra.mxu0 %v5427
        %5472 = vmatprep.subr.bf16.mxu0 0
        %5473 = vmatpush1.bf16.msra.mxu0 0
        %5474 = vmatprep.subr.bf16.mxu0 0
        %5475 = vmatpush1.bf16.msra.mxu0 0
        %5476 = vmatprep.subr.bf16.mxu0 0
        %5477 = vmatpush1.bf16.msra.mxu0 0
        %5478 = vmatprep.subr.bf16.mxu0 0
        %5479 = vmatpush1.bf16.msra.mxu0 0
        %5480 = vmatprep.subr.bf16.mxu0 0
        %5481 = vmatpush1.bf16.msra.mxu0 0
        %5482 = vmatprep.subr.bf16.mxu0 0
        %5483 = vmatpush1.bf16.msra.mxu0 0
        %5484 = vmatprep.subr.bf16.mxu0 0
        %5485 = vmatpush1.bf16.msra.mxu0 0
        %5486 = vmatprep.subr.bf16.mxu0 0
        %5487 = vmatpush1.bf16.msra.mxu0 0
        %5488 = vmatprep.subr.bf16.mxu0 0
        %5489 = vmatpush1.bf16.msra.mxu0 0
        %5490 = vmatprep.subr.bf16.mxu0 0
        %5491 = vmatpush1.bf16.msra.mxu0 0
        %5492 = vmatprep.subr.bf16.mxu0 0
        %5493 = vmatpush1.bf16.msra.mxu0 0
        %5494 = vmatprep.subr.bf16.mxu0 0
        %5495 = vmatpush1.bf16.msra.mxu0 0
        %5496 = vmatprep.subr.bf16.mxu0 0
        %5497 = vmatpush1.bf16.msra.mxu0 0
        %5498 = vmatprep.subr.bf16.mxu0 0
        %5499 = vmatpush1.bf16.msra.mxu0 0
        %5500 = vmatprep.subr.bf16.mxu0 0
        %5501 = vmatpush1.bf16.msra.mxu0 0
        %5502 = vmatprep.mubr.bf16.mxu0 0
        %5503 = vmatmul.mubr.bf16.gmra.mrb[0].mxu0 %v5418
        %v5504 = vpop.f32.mrb[0].mxu0
        %v5505 = vadd.f32 %v5391, %v5504
        %v5506 = vpop.f32.mrb[0].mxu0
        %v5507 = vpop.f32.mrb[0].mxu0
        %v5508 = vpop.f32.mrb[0].mxu0
        %5509 = vdwg.mxu0
        %v5510 = vld [vmem:[%s2415] sm:$0xf]
        %5511 = vrot.lane.b32.xlu0 %v5402, 108
        %v5512 = vpop.permute.xlu0 %5511
        %5513 = vrot.lane.b32.xlu0 %v5403, 108
        %v5514 = vpop.permute.xlu0 %5513
        %5515 = vrot.lane.b32.xlu0 %v5404, 108
        %v5516 = vpop.permute.xlu0 %5515
        %5517 = vrot.lane.b32.xlu0 %v5405, 108
        %v5518 = vpop.permute.xlu0 %5517
        %v5519 = vsel %vm1095, %v5512, %v5514
        %v5520 = vsel %vm1095, %v5514, %v5516
        %v5521 = vsel %vm1095, %v5516, %v5518
        %v5523 = vsel %vm324, %v5510, 0
        %v5526 = vsel %vm328, %v5519, 0
        %v5529 = vsel %vm328, %v5520, 0
        %v5532 = vsel %vm328, %v5521, 0
        %5534 = vmatprep.subr.bf16.mxu0 %v5529
        %5535 = vmatpush1.bf16.msra.mxu0 %v5526
        %5536 = vmatprep.subr.bf16.mxu0 0
        %5537 = vmatpush1.bf16.msra.mxu0 0
        %5538 = vmatprep.subr.bf16.mxu0 0
        %5539 = vmatpush1.bf16.msra.mxu0 0
        %5540 = vmatprep.subr.bf16.mxu0 0
        %5541 = vmatpush1.bf16.msra.mxu0 0
        %5542 = vmatprep.subr.bf16.mxu0 0
        %5543 = vmatpush1.bf16.msra.mxu0 0
        %5544 = vmatprep.subr.bf16.mxu0 0
        %5545 = vmatpush1.bf16.msra.mxu0 0
        %5546 = vmatprep.subr.bf16.mxu0 0
        %5547 = vmatpush1.bf16.msra.mxu0 0
        %5548 = vmatprep.subr.bf16.mxu0 0
        %5549 = vmatpush1.bf16.msra.mxu0 0
        %5550 = vmatprep.subr.bf16.mxu0 0
        %5551 = vmatpush1.bf16.msra.mxu0 0
        %5552 = vmatprep.subr.bf16.mxu0 0
        %5553 = vmatpush1.bf16.msra.mxu0 0
        %5554 = vmatprep.subr.bf16.mxu0 0
        %5555 = vmatpush1.bf16.msra.mxu0 0
        %5556 = vmatprep.subr.bf16.mxu0 0
        %5557 = vmatpush1.bf16.msra.mxu0 0
        %5558 = vmatprep.subr.bf16.mxu0 0
        %5559 = vmatpush1.bf16.msra.mxu0 0
        %5560 = vmatprep.subr.bf16.mxu0 0
        %5561 = vmatpush1.bf16.msra.mxu0 0
        %5562 = vmatprep.subr.bf16.mxu0 0
        %5563 = vmatpush1.bf16.msra.mxu0 0
        %5564 = vmatprep.subr.bf16.mxu0 0
        %5565 = vmatpush1.bf16.msra.mxu0 0
        %5566 = vmatprep.mubr.bf16.mxu0 0
        %5567 = vmatmul.mubr.bf16.gmra.mrb[0].mxu0 %v5523
        %v5568 = vpop.f32.mrb[0].mxu0
        %v5569 = vadd.f32 0.0, %v5568
        %v5570 = vpop.f32.mrb[0].mxu0
        %v5571 = vadd.f32 0.0, %v5570
        %v5572 = vpop.f32.mrb[0].mxu0
        %v5573 = vpop.f32.mrb[0].mxu0
        %5574 = vdwg.mxu0
        %5575 = vmatprep.subr.bf16.mxu0 0
        %5576 = vmatpush1.bf16.msra.mxu0 %v5532
        %5577 = vmatprep.subr.bf16.mxu0 0
        %5578 = vmatpush1.bf16.msra.mxu0 0
        %5579 = vmatprep.subr.bf16.mxu0 0
        %5580 = vmatpush1.bf16.msra.mxu0 0
        %5581 = vmatprep.subr.bf16.mxu0 0
        %5582 = vmatpush1.bf16.msra.mxu0 0
        %5583 = vmatprep.subr.bf16.mxu0 0
        %5584 = vmatpush1.bf16.msra.mxu0 0
        %5585 = vmatprep.subr.bf16.mxu0 0
        %5586 = vmatpush1.bf16.msra.mxu0 0
        %5587 = vmatprep.subr.bf16.mxu0 0
        %5588 = vmatpush1.bf16.msra.mxu0 0
        %5589 = vmatprep.subr.bf16.mxu0 0
        %5590 = vmatpush1.bf16.msra.mxu0 0
        %5591 = vmatprep.subr.bf16.mxu0 0
        %5592 = vmatpush1.bf16.msra.mxu0 0
        %5593 = vmatprep.subr.bf16.mxu0 0
        %5594 = vmatpush1.bf16.msra.mxu0 0
        %5595 = vmatprep.subr.bf16.mxu0 0
        %5596 = vmatpush1.bf16.msra.mxu0 0
        %5597 = vmatprep.subr.bf16.mxu0 0
        %5598 = vmatpush1.bf16.msra.mxu0 0
        %5599 = vmatprep.subr.bf16.mxu0 0
        %5600 = vmatpush1.bf16.msra.mxu0 0
        %5601 = vmatprep.subr.bf16.mxu0 0
        %5602 = vmatpush1.bf16.msra.mxu0 0
        %5603 = vmatprep.subr.bf16.mxu0 0
        %5604 = vmatpush1.bf16.msra.mxu0 0
        %5605 = vmatprep.subr.bf16.mxu0 0
        %5606 = vmatpush1.bf16.msra.mxu0 0
        %5607 = vmatprep.mubr.bf16.mxu0 0
        %5608 = vmatmul.mubr.bf16.gmra.mrb[0].mxu0 %v5523
        %v5609 = vpop.f32.mrb[0].mxu0
        %v5610 = vadd.f32 0.0, %v5609
        %v5611 = vpop.f32.mrb[0].mxu0
        %v5612 = vpop.f32.mrb[0].mxu0
        %v5613 = vpop.f32.mrb[0].mxu0
        %5614 = vdwg.mxu0
        %v5615 = vadd.f32 %v5464, %v5569
        %v5616 = vadd.f32 %v5466, %v5571
        %v5617 = vadd.f32 %v5505, %v5610
        %v5618 = vld [vmem:[%s2536] sm:$0xf]
        %v5619 = vld [vmem:[%s1644] sm:$0xff]
        %v5620 = vld [vmem:[%s1644 + $0x8] sm:$0xff]
        %v5623 = vunpack.c.l.b16 %v5619
        %v5624 = vunpack.c.h.b16 %v5619
        %v5625 = vunpack.c.l.b16 %v5620
        %v5626 = vunpack.c.h.b16 %v5620
        %v5627 = vpack.c.b16 %v5623, %v5623
        %v5628 = vpack.c.b16 %v5624, %v5624
        %v5629 = vpack.c.b16 %v5625, %v5625
        %v5630 = vpack.c.b16 %v5626, %v5626
        %5631 = vrot.lane.b32.xlu0 %v5627, 109
        %v5632 = vpop.permute.xlu0 %5631
        %5633 = vrot.lane.b32.xlu0 %v5628, 109
        %v5634 = vpop.permute.xlu0 %5633
        %5635 = vrot.lane.b32.xlu0 %v5629, 109
        %v5636 = vpop.permute.xlu0 %5635
        %5637 = vrot.lane.b32.xlu0 %v5630, 109
        %v5638 = vpop.permute.xlu0 %5637
        %v5639 = vsel %vm632, %v5632, %v5634
        %v5640 = vsel %vm632, %v5634, %v5636
        %v5641 = vsel %vm632, %v5636, %v5638
        %v5643 = vsel %vm324, %v5618, 0
        %v5646 = vsel %vm328, %v5639, 0
        %v5649 = vsel %vm328, %v5640, 0
        %v5652 = vsel %vm328, %v5641, 0
        %5654 = vmatprep.subr.bf16.mxu0 %v5649
        %5655 = vmatpush1.bf16.msra.mxu0 %v5646
        %5656 = vmatprep.subr.bf16.mxu0 0
        %5657 = vmatpush1.bf16.msra.mxu0 0
        %5658 = vmatprep.subr.bf16.mxu0 0
        %5659 = vmatpush1.bf16.msra.mxu0 0
        %5660 = vmatprep.subr.bf16.mxu0 0
        %5661 = vmatpush1.bf16.msra.mxu0 0
        %5662 = vmatprep.subr.bf16.mxu0 0
        %5663 = vmatpush1.bf16.msra.mxu0 0
        %5664 = vmatprep.subr.bf16.mxu0 0
        %5665 = vmatpush1.bf16.msra.mxu0 0
        %5666 = vmatprep.subr.bf16.mxu0 0
        %5667 = vmatpush1.bf16.msra.mxu0 0
        %5668 = vmatprep.subr.bf16.mxu0 0
        %5669 = vmatpush1.bf16.msra.mxu0 0
        %5670 = vmatprep.subr.bf16.mxu0 0
        %5671 = vmatpush1.bf16.msra.mxu0 0
        %5672 = vmatprep.subr.bf16.mxu0 0
        %5673 = vmatpush1.bf16.msra.mxu0 0
        %5674 = vmatprep.subr.bf16.mxu0 0
        %5675 = vmatpush1.bf16.msra.mxu0 0
        %5676 = vmatprep.subr.bf16.mxu0 0
        %5677 = vmatpush1.bf16.msra.mxu0 0
        %5678 = vmatprep.subr.bf16.mxu0 0
        %5679 = vmatpush1.bf16.msra.mxu0 0
        %5680 = vmatprep.subr.bf16.mxu0 0
        %5681 = vmatpush1.bf16.msra.mxu0 0
        %5682 = vmatprep.subr.bf16.mxu0 0
        %5683 = vmatpush1.bf16.msra.mxu0 0
        %5684 = vmatprep.subr.bf16.mxu0 0
        %5685 = vmatpush1.bf16.msra.mxu0 0
        %5686 = vmatprep.mubr.bf16.mxu0 0
        %5687 = vmatmul.mubr.bf16.gmra.mrb[0].mxu0 %v5643
        %v5688 = vpop.f32.mrb[0].mxu0
        %v5689 = vadd.f32 0.0, %v5688
        %v5690 = vpop.f32.mrb[0].mxu0
        %v5691 = vadd.f32 0.0, %v5690
        %v5692 = vpop.f32.mrb[0].mxu0
        %v5693 = vpop.f32.mrb[0].mxu0
        %5694 = vdwg.mxu0
        %5695 = vmatprep.subr.bf16.mxu0 0
        %5696 = vmatpush1.bf16.msra.mxu0 %v5652
        %5697 = vmatprep.subr.bf16.mxu0 0
        %5698 = vmatpush1.bf16.msra.mxu0 0
        %5699 = vmatprep.subr.bf16.mxu0 0
        %5700 = vmatpush1.bf16.msra.mxu0 0
        %5701 = vmatprep.subr.bf16.mxu0 0
        %5702 = vmatpush1.bf16.msra.mxu0 0
        %5703 = vmatprep.subr.bf16.mxu0 0
        %5704 = vmatpush1.bf16.msra.mxu0 0
        %5705 = vmatprep.subr.bf16.mxu0 0
        %5706 = vmatpush1.bf16.msra.mxu0 0
        %5707 = vmatprep.subr.bf16.mxu0 0
        %5708 = vmatpush1.bf16.msra.mxu0 0
        %5709 = vmatprep.subr.bf16.mxu0 0
        %5710 = vmatpush1.bf16.msra.mxu0 0
        %5711 = vmatprep.subr.bf16.mxu0 0
        %5712 = vmatpush1.bf16.msra.mxu0 0
        %5713 = vmatprep.subr.bf16.mxu0 0
        %5714 = vmatpush1.bf16.msra.mxu0 0
        %5715 = vmatprep.subr.bf16.mxu0 0
        %5716 = vmatpush1.bf16.msra.mxu0 0
        %5717 = vmatprep.subr.bf16.mxu0 0
        %5718 = vmatpush1.bf16.msra.mxu0 0
        %5719 = vmatprep.subr.bf16.mxu0 0
        %5720 = vmatpush1.bf16.msra.mxu0 0
        %5721 = vmatprep.subr.bf16.mxu0 0
        %5722 = vmatpush1.bf16.msra.mxu0 0
        %5723 = vmatprep.subr.bf16.mxu0 0
        %5724 = vmatpush1.bf16.msra.mxu0 0
        %5725 = vmatprep.subr.bf16.mxu0 0
        %5726 = vmatpush1.bf16.msra.mxu0 0
        %5727 = vmatprep.mubr.bf16.mxu0 0
        %5728 = vmatmul.mubr.bf16.gmra.mrb[0].mxu0 %v5643
        %v5729 = vpop.f32.mrb[0].mxu0
        %v5730 = vadd.f32 0.0, %v5729
        %v5731 = vpop.f32.mrb[0].mxu0
        %v5732 = vpop.f32.mrb[0].mxu0
        %v5733 = vpop.f32.mrb[0].mxu0
        %5734 = vdwg.mxu0
        %v5735 = vadd.f32 %v5615, %v5689
        %v5736 = vadd.f32 %v5616, %v5691
        %v5737 = vadd.f32 %v5617, %v5730
        %v5738 = vld [vmem:[%s2657] sm:$0xf]
        %v5739 = vld [vmem:[%s2057] sm:$0xff]
        %v5740 = vld [vmem:[%s2057 + $0x8] sm:$0xff]
        %v5743 = vunpack.c.l.b16 %v5739
        %v5744 = vunpack.c.h.b16 %v5739
        %v5745 = vunpack.c.l.b16 %v5740
        %v5746 = vunpack.c.h.b16 %v5740
        %v5747 = vpack.c.b16 %v5743, %v5743
        %v5748 = vpack.c.b16 %v5744, %v5744
        %v5749 = vpack.c.b16 %v5745, %v5745
        %v5750 = vpack.c.b16 %v5746, %v5746
        %5751 = vrot.lane.b32.xlu0 %v5747, 109
        %v5752 = vpop.permute.xlu0 %5751
        %5753 = vrot.lane.b32.xlu0 %v5748, 109
        %v5754 = vpop.permute.xlu0 %5753
        %5755 = vrot.lane.b32.xlu0 %v5749, 109
        %v5756 = vpop.permute.xlu0 %5755
        %5757 = vrot.lane.b32.xlu0 %v5750, 109
        %v5758 = vpop.permute.xlu0 %5757
        %v5759 = vsel %vm632, %v5752, %v5754
        %v5760 = vsel %vm632, %v5754, %v5756
        %v5761 = vsel %vm632, %v5756, %v5758
        %v5763 = vsel %vm324, %v5738, 0
        %v5766 = vsel %vm328, %v5759, 0
        %v5769 = vsel %vm328, %v5760, 0
        %v5772 = vsel %vm328, %v5761, 0
        %5774 = vmatprep.subr.bf16.mxu0 %v5769
        %5775 = vmatpush1.bf16.msra.mxu0 %v5766
        %5776 = vmatprep.subr.bf16.mxu0 0
        %5777 = vmatpush1.bf16.msra.mxu0 0
        %5778 = vmatprep.subr.bf16.mxu0 0
        %5779 = vmatpush1.bf16.msra.mxu0 0
        %5780 = vmatprep.subr.bf16.mxu0 0
        %5781 = vmatpush1.bf16.msra.mxu0 0
        %5782 = vmatprep.subr.bf16.mxu0 0
        %5783 = vmatpush1.bf16.msra.mxu0 0
        %5784 = vmatprep.subr.bf16.mxu0 0
        %5785 = vmatpush1.bf16.msra.mxu0 0
        %5786 = vmatprep.subr.bf16.mxu0 0
        %5787 = vmatpush1.bf16.msra.mxu0 0
        %5788 = vmatprep.subr.bf16.mxu0 0
        %5789 = vmatpush1.bf16.msra.mxu0 0
        %5790 = vmatprep.subr.bf16.mxu0 0
        %5791 = vmatpush1.bf16.msra.mxu0 0
        %5792 = vmatprep.subr.bf16.mxu0 0
        %5793 = vmatpush1.bf16.msra.mxu0 0
        %5794 = vmatprep.subr.bf16.mxu0 0
        %5795 = vmatpush1.bf16.msra.mxu0 0
        %5796 = vmatprep.subr.bf16.mxu0 0
        %5797 = vmatpush1.bf16.msra.mxu0 0
        %5798 = vmatprep.subr.bf16.mxu0 0
        %5799 = vmatpush1.bf16.msra.mxu0 0
        %5800 = vmatprep.subr.bf16.mxu0 0
        %5801 = vmatpush1.bf16.msra.mxu0 0
        %5802 = vmatprep.subr.bf16.mxu0 0
        %5803 = vmatpush1.bf16.msra.mxu0 0
        %5804 = vmatprep.subr.bf16.mxu0 0
        %5805 = vmatpush1.bf16.msra.mxu0 0
        %5806 = vmatprep.mubr.bf16.mxu0 0
        %5807 = vmatmul.mubr.bf16.gmra.mrb[0].mxu0 %v5763
        %v5808 = vpop.f32.mrb[0].mxu0
        %v5809 = vadd.f32 0.0, %v5808
        %v5810 = vpop.f32.mrb[0].mxu0
        %v5811 = vadd.f32 0.0, %v5810
        %v5812 = vpop.f32.mrb[0].mxu0
        %v5813 = vpop.f32.mrb[0].mxu0
        %5814 = vdwg.mxu0
        %5815 = vmatprep.subr.bf16.mxu0 0
        %5816 = vmatpush1.bf16.msra.mxu0 %v5772
        %5817 = vmatprep.subr.bf16.mxu0 0
        %5818 = vmatpush1.bf16.msra.mxu0 0
        %5819 = vmatprep.subr.bf16.mxu0 0
        %5820 = vmatpush1.bf16.msra.mxu0 0
        %5821 = vmatprep.subr.bf16.mxu0 0
        %5822 = vmatpush1.bf16.msra.mxu0 0
        %5823 = vmatprep.subr.bf16.mxu0 0
        %5824 = vmatpush1.bf16.msra.mxu0 0
        %5825 = vmatprep.subr.bf16.mxu0 0
        %5826 = vmatpush1.bf16.msra.mxu0 0
        %5827 = vmatprep.subr.bf16.mxu0 0
        %5828 = vmatpush1.bf16.msra.mxu0 0
        %5829 = vmatprep.subr.bf16.mxu0 0
        %5830 = vmatpush1.bf16.msra.mxu0 0
        %5831 = vmatprep.subr.bf16.mxu0 0
        %5832 = vmatpush1.bf16.msra.mxu0 0
        %5833 = vmatprep.subr.bf16.mxu0 0
        %5834 = vmatpush1.bf16.msra.mxu0 0
        %5835 = vmatprep.subr.bf16.mxu0 0
        %5836 = vmatpush1.bf16.msra.mxu0 0
        %5837 = vmatprep.subr.bf16.mxu0 0
        %5838 = vmatpush1.bf16.msra.mxu0 0
        %5839 = vmatprep.subr.bf16.mxu0 0
        %5840 = vmatpush1.bf16.msra.mxu0 0
        %5841 = vmatprep.subr.bf16.mxu0 0
        %5842 = vmatpush1.bf16.msra.mxu0 0
        %5843 = vmatprep.subr.bf16.mxu0 0
        %5844 = vmatpush1.bf16.msra.mxu0 0
        %5845 = vmatprep.subr.bf16.mxu0 0
        %5846 = vmatpush1.bf16.msra.mxu0 0
        %5847 = vmatprep.mubr.bf16.mxu0 0
        %5848 = vmatmul.mubr.bf16.gmra.mrb[0].mxu0 %v5763
        %v5849 = vpop.f32.mrb[0].mxu0
        %v5850 = vadd.f32 0.0, %v5849
        %v5851 = vpop.f32.mrb[0].mxu0
        %v5852 = vpop.f32.mrb[0].mxu0
        %v5853 = vpop.f32.mrb[0].mxu0
        %5854 = vdwg.mxu0
        %v5855 = vadd.f32 %v5735, %v5809
        %v5856 = vadd.f32 %v5736, %v5811
        %v5857 = vadd.f32 %v5737, %v5850
        %v5858 = vld [vmem:[%s2778] sm:$0xf]
        %5859 = vrot.lane.b32.xlu0 %v5627, 108
        %v5860 = vpop.permute.xlu0 %5859
        %5861 = vrot.lane.b32.xlu0 %v5628, 108
        %v5862 = vpop.permute.xlu0 %5861
        %5863 = vrot.lane.b32.xlu0 %v5629, 108
        %v5864 = vpop.permute.xlu0 %5863
        %5865 = vrot.lane.b32.xlu0 %v5630, 108
        %v5866 = vpop.permute.xlu0 %5865
        %v5867 = vsel %vm1095, %v5860, %v5862
        %v5868 = vsel %vm1095, %v5862, %v5864
        %v5869 = vsel %vm1095, %v5864, %v5866
        %v5871 = vsel %vm324, %v5858, 0
        %v5874 = vsel %vm328, %v5867, 0
        %v5877 = vsel %vm328, %v5868, 0
        %v5880 = vsel %vm328, %v5869, 0
        %5882 = vmatprep.subr.bf16.mxu0 %v5877
        %5883 = vmatpush1.bf16.msra.mxu0 %v5874
        %5884 = vmatprep.subr.bf16.mxu0 0
        %5885 = vmatpush1.bf16.msra.mxu0 0
        %5886 = vmatprep.subr.bf16.mxu0 0
        %5887 = vmatpush1.bf16.msra.mxu0 0
        %5888 = vmatprep.subr.bf16.mxu0 0
        %5889 = vmatpush1.bf16.msra.mxu0 0
        %5890 = vmatprep.subr.bf16.mxu0 0
        %5891 = vmatpush1.bf16.msra.mxu0 0
        %5892 = vmatprep.subr.bf16.mxu0 0
        %5893 = vmatpush1.bf16.msra.mxu0 0
        %5894 = vmatprep.subr.bf16.mxu0 0
        %5895 = vmatpush1.bf16.msra.mxu0 0
        %5896 = vmatprep.subr.bf16.mxu0 0
        %5897 = vmatpush1.bf16.msra.mxu0 0
        %5898 = vmatprep.subr.bf16.mxu0 0
        %5899 = vmatpush1.bf16.msra.mxu0 0
        %5900 = vmatprep.subr.bf16.mxu0 0
        %5901 = vmatpush1.bf16.msra.mxu0 0
        %5902 = vmatprep.subr.bf16.mxu0 0
        %5903 = vmatpush1.bf16.msra.mxu0 0
        %5904 = vmatprep.subr.bf16.mxu0 0
        %5905 = vmatpush1.bf16.msra.mxu0 0
        %5906 = vmatprep.subr.bf16.mxu0 0
        %5907 = vmatpush1.bf16.msra.mxu0 0
        %5908 = vmatprep.subr.bf16.mxu0 0
        %5909 = vmatpush1.bf16.msra.mxu0 0
        %5910 = vmatprep.subr.bf16.mxu0 0
        %5911 = vmatpush1.bf16.msra.mxu0 0
        %5912 = vmatprep.subr.bf16.mxu0 0
        %5913 = vmatpush1.bf16.msra.mxu0 0
        %5914 = vmatprep.mubr.bf16.mxu0 0
        %5915 = vmatmul.mubr.bf16.gmra.mrb[0].mxu0 %v5871
        %v5916 = vpop.f32.mrb[0].mxu0
        %v5917 = vadd.f32 0.0, %v5916
        %v5918 = vpop.f32.mrb[0].mxu0
        %v5919 = vadd.f32 0.0, %v5918
        %v5920 = vpop.f32.mrb[0].mxu0
        %v5921 = vpop.f32.mrb[0].mxu0
        %5922 = vdwg.mxu0
        %5923 = vmatprep.subr.bf16.mxu0 0
        %5924 = vmatpush1.bf16.msra.mxu0 %v5880
        %5925 = vmatprep.subr.bf16.mxu0 0
        %5926 = vmatpush1.bf16.msra.mxu0 0
        %5927 = vmatprep.subr.bf16.mxu0 0
        %5928 = vmatpush1.bf16.msra.mxu0 0
        %5929 = vmatprep.subr.bf16.mxu0 0
        %5930 = vmatpush1.bf16.msra.mxu0 0
        %5931 = vmatprep.subr.bf16.mxu0 0
        %5932 = vmatpush1.bf16.msra.mxu0 0
        %5933 = vmatprep.subr.bf16.mxu0 0
        %5934 = vmatpush1.bf16.msra.mxu0 0
        %5935 = vmatprep.subr.bf16.mxu0 0
        %5936 = vmatpush1.bf16.msra.mxu0 0
        %5937 = vmatprep.subr.bf16.mxu0 0
        %5938 = vmatpush1.bf16.msra.mxu0 0
        %5939 = vmatprep.subr.bf16.mxu0 0
        %5940 = vmatpush1.bf16.msra.mxu0 0
        %5941 = vmatprep.subr.bf16.mxu0 0
        %5942 = vmatpush1.bf16.msra.mxu0 0
        %5943 = vmatprep.subr.bf16.mxu0 0
        %5944 = vmatpush1.bf16.msra.mxu0 0
        %5945 = vmatprep.subr.bf16.mxu0 0
        %5946 = vmatpush1.bf16.msra.mxu0 0
        %5947 = vmatprep.subr.bf16.mxu0 0
        %5948 = vmatpush1.bf16.msra.mxu0 0
        %5949 = vmatprep.subr.bf16.mxu0 0
        %5950 = vmatpush1.bf16.msra.mxu0 0
        %5951 = vmatprep.subr.bf16.mxu0 0
        %5952 = vmatpush1.bf16.msra.mxu0 0
        %5953 = vmatprep.subr.bf16.mxu0 0
        %5954 = vmatpush1.bf16.msra.mxu0 0
        %5955 = vmatprep.mubr.bf16.mxu0 0
        %5956 = vmatmul.mubr.bf16.gmra.mrb[0].mxu0 %v5871
        %v5957 = vpop.f32.mrb[0].mxu0
        %v5958 = vadd.f32 0.0, %v5957
        %v5959 = vpop.f32.mrb[0].mxu0
        %v5960 = vpop.f32.mrb[0].mxu0
        %v5961 = vpop.f32.mrb[0].mxu0
        %5962 = vdwg.mxu0
        %v5963 = vadd.f32 %v5855, %v5917
        %v5964 = vadd.f32 %v5856, %v5919
        %v5965 = vadd.f32 %v5857, %v5958
        %v5966 = vld [vmem:[%s2887] sm:$0xf]
        %5967 = vrot.lane.b32.xlu0 %v5402, 91
        %v5968 = vpop.permute.xlu0 %5967
        %5969 = vrot.lane.b32.xlu0 %v5403, 91
        %v5970 = vpop.permute.xlu0 %5969
        %5971 = vrot.lane.b32.xlu0 %v5404, 91
        %v5972 = vpop.permute.xlu0 %5971
        %5973 = vrot.lane.b32.xlu0 %v5405, 91
        %v5974 = vpop.permute.xlu0 %5973
        %v5975 = vsel %vm1529, %v5968, %v5970
        %v5976 = vsel %vm1529, %v5970, %v5972
        %v5977 = vsel %vm1529, %v5972, %v5974
        %v5979 = vsel %vm324, %v5966, 0
        %v5982 = vsel %vm328, %v5975, 0
        %v5985 = vsel %vm328, %v5976, 0
        %v5988 = vsel %vm328, %v5977, 0
        %5990 = vmatprep.subr.bf16.mxu0 %v5985
        %5991 = vmatpush1.bf16.msra.mxu0 %v5982
        %5992 = vmatprep.subr.bf16.mxu0 0
        %5993 = vmatpush1.bf16.msra.mxu0 0
        %5994 = vmatprep.subr.bf16.mxu0 0
        %5995 = vmatpush1.bf16.msra.mxu0 0
        %5996 = vmatprep.subr.bf16.mxu0 0
        %5997 = vmatpush1.bf16.msra.mxu0 0
        %5998 = vmatprep.subr.bf16.mxu0 0
        %5999 = vmatpush1.bf16.msra.mxu0 0
        %6000 = vmatprep.subr.bf16.mxu0 0
        %6001 = vmatpush1.bf16.msra.mxu0 0
        %6002 = vmatprep.subr.bf16.mxu0 0
        %6003 = vmatpush1.bf16.msra.mxu0 0
        %6004 = vmatprep.subr.bf16.mxu0 0
        %6005 = vmatpush1.bf16.msra.mxu0 0
        %6006 = vmatprep.subr.bf16.mxu0 0
        %6007 = vmatpush1.bf16.msra.mxu0 0
        %6008 = vmatprep.subr.bf16.mxu0 0
        %6009 = vmatpush1.bf16.msra.mxu0 0
        %6010 = vmatprep.subr.bf16.mxu0 0
        %6011 = vmatpush1.bf16.msra.mxu0 0
        %6012 = vmatprep.subr.bf16.mxu0 0
        %6013 = vmatpush1.bf16.msra.mxu0 0
        %6014 = vmatprep.subr.bf16.mxu0 0
        %6015 = vmatpush1.bf16.msra.mxu0 0
        %6016 = vmatprep.subr.bf16.mxu0 0
        %6017 = vmatpush1.bf16.msra.mxu0 0
        %6018 = vmatprep.subr.bf16.mxu0 0
        %6019 = vmatpush1.bf16.msra.mxu0 0
        %6020 = vmatprep.subr.bf16.mxu0 0
        %6021 = vmatpush1.bf16.msra.mxu0 0
        %6022 = vmatprep.mubr.bf16.mxu0 0
        %6023 = vmatmul.mubr.bf16.gmra.mrb[0].mxu0 %v5979
        %v6024 = vpop.f32.mrb[0].mxu0
        %v6025 = vadd.f32 0.0, %v6024
        %v6026 = vpop.f32.mrb[0].mxu0
        %v6027 = vadd.f32 0.0, %v6026
        %v6028 = vpop.f32.mrb[0].mxu0
        %v6029 = vpop.f32.mrb[0].mxu0
        %6030 = vdwg.mxu0
        %6031 = vmatprep.subr.bf16.mxu0 0
        %6032 = vmatpush1.bf16.msra.mxu0 %v5988
        %6033 = vmatprep.subr.bf16.mxu0 0
        %6034 = vmatpush1.bf16.msra.mxu0 0
        %6035 = vmatprep.subr.bf16.mxu0 0
        %6036 = vmatpush1.bf16.msra.mxu0 0
        %6037 = vmatprep.subr.bf16.mxu0 0
        %6038 = vmatpush1.bf16.msra.mxu0 0
        %6039 = vmatprep.subr.bf16.mxu0 0
        %6040 = vmatpush1.bf16.msra.mxu0 0
        %6041 = vmatprep.subr.bf16.mxu0 0
        %6042 = vmatpush1.bf16.msra.mxu0 0
        %6043 = vmatprep.subr.bf16.mxu0 0
        %6044 = vmatpush1.bf16.msra.mxu0 0
        %6045 = vmatprep.subr.bf16.mxu0 0
        %6046 = vmatpush1.bf16.msra.mxu0 0
        %6047 = vmatprep.subr.bf16.mxu0 0
        %6048 = vmatpush1.bf16.msra.mxu0 0
        %6049 = vmatprep.subr.bf16.mxu0 0
        %6050 = vmatpush1.bf16.msra.mxu0 0
        %6051 = vmatprep.subr.bf16.mxu0 0
        %6052 = vmatpush1.bf16.msra.mxu0 0
        %6053 = vmatprep.subr.bf16.mxu0 0
        %6054 = vmatpush1.bf16.msra.mxu0 0
        %6055 = vmatprep.subr.bf16.mxu0 0
        %6056 = vmatpush1.bf16.msra.mxu0 0
        %6057 = vmatprep.subr.bf16.mxu0 0
        %6058 = vmatpush1.bf16.msra.mxu0 0
        %6059 = vmatprep.subr.bf16.mxu0 0
        %6060 = vmatpush1.bf16.msra.mxu0 0
        %6061 = vmatprep.subr.bf16.mxu0 0
        %6062 = vmatpush1.bf16.msra.mxu0 0
        %6063 = vmatprep.mubr.bf16.mxu0 0
        %6064 = vmatmul.mubr.bf16.gmra.mrb[0].mxu0 %v5979
        %v6065 = vpop.f32.mrb[0].mxu0
        %v6066 = vadd.f32 0.0, %v6065
        %v6067 = vpop.f32.mrb[0].mxu0
        %v6068 = vpop.f32.mrb[0].mxu0
        %v6069 = vpop.f32.mrb[0].mxu0
        %6070 = vdwg.mxu0
        %v6071 = vadd.f32 %v5963, %v6025
        %v6072 = vadd.f32 %v5964, %v6027
        %v6073 = vadd.f32 %v5965, %v6066
        %v6074 = vld [vmem:[%s2996] sm:$0xf]
        %6075 = vrot.lane.b32.xlu0 %v5288, 91
        %v6076 = vpop.permute.xlu0 %6075
        %6077 = vrot.lane.b32.xlu0 %v5289, 91
        %v6078 = vpop.permute.xlu0 %6077
        %6079 = vrot.lane.b32.xlu0 %v5290, 91
        %v6080 = vpop.permute.xlu0 %6079
        %6081 = vrot.lane.b32.xlu0 %v5291, 91
        %v6082 = vpop.permute.xlu0 %6081
        %v6083 = vsel %vm1529, %v6076, %v6078
        %v6084 = vsel %vm1529, %v6078, %v6080
        %v6085 = vsel %vm1529, %v6080, %v6082
        %v6087 = vsel %vm324, %v6074, 0
        %v6090 = vsel %vm328, %v6083, 0
        %v6093 = vsel %vm328, %v6084, 0
        %v6096 = vsel %vm328, %v6085, 0
        %6098 = vmatprep.subr.bf16.mxu0 %v6093
        %6099 = vmatpush1.bf16.msra.mxu0 %v6090
        %6100 = vmatprep.subr.bf16.mxu0 0
        %6101 = vmatpush1.bf16.msra.mxu0 0
        %6102 = vmatprep.subr.bf16.mxu0 0
        %6103 = vmatpush1.bf16.msra.mxu0 0
        %6104 = vmatprep.subr.bf16.mxu0 0
        %6105 = vmatpush1.bf16.msra.mxu0 0
        %6106 = vmatprep.subr.bf16.mxu0 0
        %6107 = vmatpush1.bf16.msra.mxu0 0
        %6108 = vmatprep.subr.bf16.mxu0 0
        %6109 = vmatpush1.bf16.msra.mxu0 0
        %6110 = vmatprep.subr.bf16.mxu0 0
        %6111 = vmatpush1.bf16.msra.mxu0 0
        %6112 = vmatprep.subr.bf16.mxu0 0
        %6113 = vmatpush1.bf16.msra.mxu0 0
        %6114 = vmatprep.subr.bf16.mxu0 0
        %6115 = vmatpush1.bf16.msra.mxu0 0
        %6116 = vmatprep.subr.bf16.mxu0 0
        %6117 = vmatpush1.bf16.msra.mxu0 0
        %6118 = vmatprep.subr.bf16.mxu0 0
        %6119 = vmatpush1.bf16.msra.mxu0 0
        %6120 = vmatprep.subr.bf16.mxu0 0
        %6121 = vmatpush1.bf16.msra.mxu0 0
        %6122 = vmatprep.subr.bf16.mxu0 0
        %6123 = vmatpush1.bf16.msra.mxu0 0
        %6124 = vmatprep.subr.bf16.mxu0 0
        %6125 = vmatpush1.bf16.msra.mxu0 0
        %6126 = vmatprep.subr.bf16.mxu0 0
        %6127 = vmatpush1.bf16.msra.mxu0 0
        %6128 = vmatprep.subr.bf16.mxu0 0
        %6129 = vmatpush1.bf16.msra.mxu0 0
        %6130 = vmatprep.mubr.bf16.mxu0 0
        %6131 = vmatmul.mubr.bf16.gmra.mrb[0].mxu0 %v6087
        %v6132 = vpop.f32.mrb[0].mxu0
        %v6133 = vadd.f32 0.0, %v6132
        %v6134 = vpop.f32.mrb[0].mxu0
        %v6135 = vadd.f32 0.0, %v6134
        %v6136 = vpop.f32.mrb[0].mxu0
        %v6137 = vpop.f32.mrb[0].mxu0
        %6138 = vdwg.mxu0
        %6139 = vmatprep.subr.bf16.mxu0 0
        %6140 = vmatpush1.bf16.msra.mxu0 %v6096
        %6141 = vmatprep.subr.bf16.mxu0 0
        %6142 = vmatpush1.bf16.msra.mxu0 0
        %6143 = vmatprep.subr.bf16.mxu0 0
        %6144 = vmatpush1.bf16.msra.mxu0 0
        %6145 = vmatprep.subr.bf16.mxu0 0
        %6146 = vmatpush1.bf16.msra.mxu0 0
        %6147 = vmatprep.subr.bf16.mxu0 0
        %6148 = vmatpush1.bf16.msra.mxu0 0
        %6149 = vmatprep.subr.bf16.mxu0 0
        %6150 = vmatpush1.bf16.msra.mxu0 0
        %6151 = vmatprep.subr.bf16.mxu0 0
        %6152 = vmatpush1.bf16.msra.mxu0 0
        %6153 = vmatprep.subr.bf16.mxu0 0
        %6154 = vmatpush1.bf16.msra.mxu0 0
        %6155 = vmatprep.subr.bf16.mxu0 0
        %6156 = vmatpush1.bf16.msra.mxu0 0
        %6157 = vmatprep.subr.bf16.mxu0 0
        %6158 = vmatpush1.bf16.msra.mxu0 0
        %6159 = vmatprep.subr.bf16.mxu0 0
        %6160 = vmatpush1.bf16.msra.mxu0 0
        %6161 = vmatprep.subr.bf16.mxu0 0
        %6162 = vmatpush1.bf16.msra.mxu0 0
        %6163 = vmatprep.subr.bf16.mxu0 0
        %6164 = vmatpush1.bf16.msra.mxu0 0
        %6165 = vmatprep.subr.bf16.mxu0 0
        %6166 = vmatpush1.bf16.msra.mxu0 0
        %6167 = vmatprep.subr.bf16.mxu0 0
        %6168 = vmatpush1.bf16.msra.mxu0 0
        %6169 = vmatprep.subr.bf16.mxu0 0
        %6170 = vmatpush1.bf16.msra.mxu0 0
        %6171 = vmatprep.mubr.bf16.mxu0 0
        %6172 = vmatmul.mubr.bf16.gmra.mrb[0].mxu0 %v6087
        %v6173 = vpop.f32.mrb[0].mxu0
        %v6174 = vadd.f32 0.0, %v6173
        %v6175 = vpop.f32.mrb[0].mxu0
        %v6176 = vpop.f32.mrb[0].mxu0
        %v6177 = vpop.f32.mrb[0].mxu0
        %6178 = vdwg.mxu0
        %v6179 = vadd.f32 %v6071, %v6133
        %v6180 = vadd.f32 %v6072, %v6135
        %v6181 = vadd.f32 %v6073, %v6174
        %v6182 = vld [vmem:[%s3105] sm:$0xf]
        %6183 = vrot.lane.b32.xlu0 %v5402, 90
        %v6184 = vpop.permute.xlu0 %6183
        %6185 = vrot.lane.b32.xlu0 %v5403, 90
        %v6186 = vpop.permute.xlu0 %6185
        %6187 = vrot.lane.b32.xlu0 %v5404, 90
        %v6188 = vpop.permute.xlu0 %6187
        %6189 = vrot.lane.b32.xlu0 %v5405, 90
        %v6190 = vpop.permute.xlu0 %6189
        %v6191 = vsel %vm1942, %v6184, %v6186
        %v6192 = vsel %vm1942, %v6186, %v6188
        %v6193 = vsel %vm1942, %v6188, %v6190
        %v6195 = vsel %vm324, %v6182, 0
        %v6198 = vsel %vm328, %v6191, 0
        %v6201 = vsel %vm328, %v6192, 0
        %v6204 = vsel %vm328, %v6193, 0
        %6206 = vmatprep.subr.bf16.mxu0 %v6201
        %6207 = vmatpush1.bf16.msra.mxu0 %v6198
        %6208 = vmatprep.subr.bf16.mxu0 0
        %6209 = vmatpush1.bf16.msra.mxu0 0
        %6210 = vmatprep.subr.bf16.mxu0 0
        %6211 = vmatpush1.bf16.msra.mxu0 0
        %6212 = vmatprep.subr.bf16.mxu0 0
        %6213 = vmatpush1.bf16.msra.mxu0 0
        %6214 = vmatprep.subr.bf16.mxu0 0
        %6215 = vmatpush1.bf16.msra.mxu0 0
        %6216 = vmatprep.subr.bf16.mxu0 0
        %6217 = vmatpush1.bf16.msra.mxu0 0
        %6218 = vmatprep.subr.bf16.mxu0 0
        %6219 = vmatpush1.bf16.msra.mxu0 0
        %6220 = vmatprep.subr.bf16.mxu0 0
        %6221 = vmatpush1.bf16.msra.mxu0 0
        %6222 = vmatprep.subr.bf16.mxu0 0
        %6223 = vmatpush1.bf16.msra.mxu0 0
        %6224 = vmatprep.subr.bf16.mxu0 0
        %6225 = vmatpush1.bf16.msra.mxu0 0
        %6226 = vmatprep.subr.bf16.mxu0 0
        %6227 = vmatpush1.bf16.msra.mxu0 0
        %6228 = vmatprep.subr.bf16.mxu0 0
        %6229 = vmatpush1.bf16.msra.mxu0 0
        %6230 = vmatprep.subr.bf16.mxu0 0
        %6231 = vmatpush1.bf16.msra.mxu0 0
        %6232 = vmatprep.subr.bf16.mxu0 0
        %6233 = vmatpush1.bf16.msra.mxu0 0
        %6234 = vmatprep.subr.bf16.mxu0 0
        %6235 = vmatpush1.bf16.msra.mxu0 0
        %6236 = vmatprep.subr.bf16.mxu0 0
        %6237 = vmatpush1.bf16.msra.mxu0 0
        %6238 = vmatprep.mubr.bf16.mxu0 0
        %6239 = vmatmul.mubr.bf16.gmra.mrb[0].mxu0 %v6195
        %v6240 = vpop.f32.mrb[0].mxu0
        %v6241 = vadd.f32 0.0, %v6240
        %v6242 = vpop.f32.mrb[0].mxu0
        %v6243 = vadd.f32 0.0, %v6242
        %v6244 = vpop.f32.mrb[0].mxu0
        %v6245 = vpop.f32.mrb[0].mxu0
        %6246 = vdwg.mxu0
        %6247 = vmatprep.subr.bf16.mxu0 0
        %6248 = vmatpush1.bf16.msra.mxu0 %v6204
        %6249 = vmatprep.subr.bf16.mxu0 0
        %6250 = vmatpush1.bf16.msra.mxu0 0
        %6251 = vmatprep.subr.bf16.mxu0 0
        %6252 = vmatpush1.bf16.msra.mxu0 0
        %6253 = vmatprep.subr.bf16.mxu0 0
        %6254 = vmatpush1.bf16.msra.mxu0 0
        %6255 = vmatprep.subr.bf16.mxu0 0
        %6256 = vmatpush1.bf16.msra.mxu0 0
        %6257 = vmatprep.subr.bf16.mxu0 0
        %6258 = vmatpush1.bf16.msra.mxu0 0
        %6259 = vmatprep.subr.bf16.mxu0 0
        %6260 = vmatpush1.bf16.msra.mxu0 0
        %6261 = vmatprep.subr.bf16.mxu0 0
        %6262 = vmatpush1.bf16.msra.mxu0 0
        %6263 = vmatprep.subr.bf16.mxu0 0
        %6264 = vmatpush1.bf16.msra.mxu0 0
        %6265 = vmatprep.subr.bf16.mxu0 0
        %6266 = vmatpush1.bf16.msra.mxu0 0
        %6267 = vmatprep.subr.bf16.mxu0 0
        %6268 = vmatpush1.bf16.msra.mxu0 0
        %6269 = vmatprep.subr.bf16.mxu0 0
        %6270 = vmatpush1.bf16.msra.mxu0 0
        %6271 = vmatprep.subr.bf16.mxu0 0
        %6272 = vmatpush1.bf16.msra.mxu0 0
        %6273 = vmatprep.subr.bf16.mxu0 0
        %6274 = vmatpush1.bf16.msra.mxu0 0
        %6275 = vmatprep.subr.bf16.mxu0 0
        %6276 = vmatpush1.bf16.msra.mxu0 0
        %6277 = vmatprep.subr.bf16.mxu0 0
        %6278 = vmatpush1.bf16.msra.mxu0 0
        %6279 = vmatprep.mubr.bf16.mxu0 0
        %6280 = vmatmul.mubr.bf16.gmra.mrb[0].mxu0 %v6195
        %v6281 = vpop.f32.mrb[0].mxu0
        %v6282 = vadd.f32 0.0, %v6281
        %v6283 = vpop.f32.mrb[0].mxu0
        %v6284 = vpop.f32.mrb[0].mxu0
        %v6285 = vpop.f32.mrb[0].mxu0
        %6286 = vdwg.mxu0
        %v6287 = vadd.f32 %v6179, %v6241
        %v6288 = vadd.f32 %v6180, %v6243
        %v6289 = vadd.f32 %v6181, %v6282
        %v6290 = vadd.f32 %v6287, %v3217
        %v6291 = vadd.f32 %v6288, %v3217
        %v6292 = vadd.f32 %v6289, %v3217
        %v6293 = vadd.f32 %v6290, %v2147
        %v6294 = vadd.f32 %v6291, %v2149
        %v6295 = vadd.f32 %v6292, %v2188
        %s6296 = scalar_lea.vmem %s271, 72 [#allocation3]
        %6297 = vst [vmem:[%s6296] sm:$0xff] %v6293
        %6298 = vst [vmem:[%s6296 + $0x8] sm:$0xff] %v6294
        %6299 = vst [vmem:[%s6296 + $0x10] sm:$0xff] %v6295
        %s6300 = sand.u32 %s181, 1
        %s6301 = scalar_lea.sflag [#allocation4], %s6300
        %s6302 = sand.u32 %s181, 1
        %s6303 = smul.addr %s6302, 96
        %s6304 = scalar_lea.vmem [#allocation3], %s6303
        // Predicated region
        $region49: #{tpu_custom_call.1} parent=47 // pred_check
          %p6305 = pneg %p191
        $region50: #{tpu_custom_call.1} parent=47 // pred_check_branch
          %6307 = sbr.rel (%p6305) target = $region52
        $region51: #{tpu_custom_call.1} parent=47 // pred_region
          %s6309 = ssub.s32 1536, 1536
          %6310 = vsyncadd %s6301, %s6309
          %s6311 = smul.addr %s21, 12
          %s6312 = smul.addr %s6311, 128
          %s6313 = scalar_lea.hbm %s7, %s6312
          %s6314 = sshll.u32 %s6304, 4
          %s6315 = int_to_ptr.vmem [resolvable:$true] %s6314
          %6320 = dma.vmem_to_hbm [thread:$0]  %s6315, 1536, %s6313, %s6301, 384, 384, 24
        $region52: #{tpu_custom_call.1} parent=47 // pred_fallthru
          _
      $region48: #{tpu_custom_call.1} parent=5 // pred_fallthru
        _
      %p6321 = scmp.le.s32.totalorder 2, %s16
      // Predicated region
      $region53: #{tpu_custom_call.1} parent=5 // pred_check
        %p6322 = pneg %p6321
      $region54: #{tpu_custom_call.1} parent=5 // pred_check_branch
        %6324 = sbr.rel (%p6322) target = $region56
      $region55: #{tpu_custom_call.1} parent=5 // pred_region
        %s6325 = ssub.s32 %s16, 2
        // Predicated region
        $region57: #{tpu_custom_call.1} parent=55 // pred_check
          %p6326 = pneg %p197
        $region58: #{tpu_custom_call.1} parent=55 // pred_check_branch
          %6328 = sbr.rel (%p6326) target = $region60
        $region59: #{tpu_custom_call.1} parent=55 // pred_region
          %s6329 = sand.u32 %s182, 1
          %s6330 = scalar_lea.sflag [#allocation4], %s6329
          %s6331 = sand.u32 %s182, 1
          %s6332 = smul.addr %s6331, 96
          %s6333 = scalar_lea.vmem [#allocation3], %s6332
          %6334 = dma.done %s6330, 1536
        $region60: #{tpu_custom_call.1} parent=55 // pred_fallthru
          _
      $region56: #{tpu_custom_call.1} parent=5 // pred_fallthru
        _
    $region6: #{tpu_custom_call.1} parent=1 // loop_footer
      %s20 = sadd.s32 1, %s16
    $region7: #{tpu_custom_call.1} parent=1 // loop_footer_branch
      %15 = sbr.rel target = $region3
    $region8: #{tpu_custom_call.1} parent=1 // loop_exit
      _
    %6335 = vsyncpa [#allocation4], 1
    %s6336 = scalar_lea.sflag [#allocation4], 1
    %6337 = vsyncpa %s6336, 1

</llo_original>
